<compile_context>
chip_gen: v5e
topology: v5e:2x2
jax: 0.10.0
libtpu: 0.0.40
codegen_flags: <defaults>
</compile_context>

<pallas_src>
import functools

import jax
import jax.numpy as jnp
from jax.experimental import pallas as pl
from jax.experimental.pallas import tpu as pltpu


# ----------------------------- in-kernel helpers -----------------------------

def _apply_act(y, act):
    if act == "relu":
        return jnp.maximum(y, 0.0)
    if act == "leaky":
        return jnp.where(y > 0.0, y, 0.2 * y)
    if act == "sigmoid":
        # Numerically stable sigmoid; exp and approx reciprocal both run on the
        # EUP slot, result is guaranteed to stay inside [0, 1].
        e = jnp.exp(-jnp.abs(y))
        r = pl.reciprocal(1.0 + e, approx=True)
        return jnp.where(y >= 0.0, 1.0 - e * r, e * r)
    return y


def _batchnorm_act(x, gamma, beta, *, phases, cout, eps, act):
    """x: [phases*cout, M] f32.  Batch stats per channel over (phases, M)."""
    m_cols = x.shape[1]
    cnt = float(phases * m_cols)
    s1 = jnp.sum(x, axis=1, keepdims=True)                       # [P*C, 1]
    cs1 = s1[0:cout]
    for p in range(1, phases):
        cs1 = cs1 + s1[p * cout:(p + 1) * cout]
    mean = cs1 / cnt                                             # [C, 1]
    mean_full = jnp.concatenate([mean] * phases, axis=0) if phases > 1 else mean
    xc = x - mean_full
    s2 = jnp.sum(xc * xc, axis=1, keepdims=True)                 # [P*C, 1]
    cs2 = s2[0:cout]
    for p in range(1, phases):
        cs2 = cs2 + s2[p * cout:(p + 1) * cout]
    var = cs2 / cnt                                              # biased, like torch
    scale = jax.lax.rsqrt(var + eps) * gamma                     # [C, 1]
    scale_full = jnp.concatenate([scale] * phases, axis=0) if phases > 1 else scale
    beta_full = jnp.concatenate([beta] * phases, axis=0) if phases > 1 else beta
    return _apply_act(xc * scale_full + beta_full, act)


# ------------------------------ Pallas kernels --------------------------------

def _convT_act_kernel(w_ref, nb_ref, o_ref, *, act):
    """Lane-dense conv-as-matmul: out[R, tm] = W[R, KK] @ NB[KK, tm] (+act)."""
    y = jnp.dot(w_ref[...], nb_ref[...], preferred_element_type=jnp.float32)
    o_ref[...] = _apply_act(y, act).astype(o_ref.dtype)


def _convT_bn_act_kernel(w_ref, nb_ref, g_ref, b_ref, o_ref, *, act, eps,
                         phases, cout):
    """Conv-as-matmul + BatchNorm2d (batch stats) + activation, whole block.

    NOTE: batch statistics need the full M extent, so this path must keep
    grid=(1,) (single block).  The BN layers are tiny (<= [256, 128]).
    """
    x = jnp.dot(w_ref[...], nb_ref[...], preferred_element_type=jnp.float32)
    y = _batchnorm_act(x, g_ref[...], b_ref[...], phases=phases, cout=cout,
                       eps=eps, act=act)
    o_ref[...] = y.astype(o_ref.dtype)


def _head_kernel(z_ref, w1_ref, w2_ref, g_ref, b_ref, o_ref, *, eps, cout):
    """Fused layers 1+2 (1x1 spatial): matmul -> matmul -> BN -> LeakyReLU."""
    t = jnp.dot(w1_ref[...], z_ref[...], preferred_element_type=jnp.float32)
    x = jnp.dot(w2_ref[...], t.astype(w2_ref.dtype),
                preferred_element_type=jnp.float32)                # [4*cout, N]
    y = _batchnorm_act(x, g_ref[...], b_ref[...], phases=4, cout=cout,
                       eps=eps, act="leaky")
    o_ref[...] = y.astype(o_ref.dtype)


# -------------------------------- wrapper glue --------------------------------

def _round_up(x, m):
    return ((x + m - 1) // m) * m


def _neighborhood_T(x):
    """x: [N,H,W,C] -> NB^T [9*C, N*H*W]; row = (dh*3+dw)*C + c, col = n*H*W+h*W+w."""
    n, h, w, c = x.shape
    xp = jnp.pad(x, ((0, 0), (1, 1), (1, 1), (0, 0)))
    xpt = jnp.transpose(xp, (3, 0, 1, 2))                          # [C, N, H+2, W+2]
    taps = [xpt[:, :, dh:dh + h, dw:dw + w].reshape(c, n * h * w)
            for dh in range(3) for dw in range(3)]
    return jnp.concatenate(taps, axis=0)                           # [9*C, M]


def _wall_stride2(w):
    """w: [Cin, Cout, 4, 4] (torch ConvTranspose2d) -> W_all [4*Cout, 9*Cin].

    Row (r*2+q)*Cout+co is the polyphase component writing output (2h+r, 2w+q);
    column (dh*3+dw)*Cin+ci is the 3x3 neighbourhood tap of the 1-padded input.
    """
    cin, cout, k, _ = w.shape
    assert k == 4
    wall = jnp.zeros((2, 2, cout, 3, 3, cin), w.dtype)
    for r in range(2):
        for q in range(2):
            for dh in range(r, r + 2):
                for dw in range(q, q + 2):
                    a, b = 3 + r - 2 * dh, 3 + q - 2 * dw
                    wall = wall.at[r, q, :, dh, dw, :].set(w[:, :, a, b].T)
    return wall.reshape(4 * cout, 9 * cin)


def _wall_stride1(w):
    """w: [Cin, Cout, 3, 3] -> [Cout, 9*Cin] (transposed conv == conv w/ flipped kernel)."""
    cin, cout, k, _ = w.shape
    assert k == 3
    wflip = w[:, :, ::-1, ::-1]
    return jnp.transpose(wflip, (1, 2, 3, 0)).reshape(cout, 9 * cin)


def _interleave_phases(out, n, h, w, cout, stride):
    """out: [stride^2 * Cout, N*H*W] -> NHWC [N, stride*H, stride*W, Cout]."""
    if stride == 1:
        return jnp.transpose(out.reshape(cout, n, h, w), (1, 2, 3, 0))
    o = out.reshape(stride, stride, cout, n, h, w)                 # r, q, co, n, h, w
    o = jnp.transpose(o, (3, 4, 0, 5, 1, 2))                       # n, h, r, w, q, co
    return o.reshape(n, stride * h, stride * w, cout)


def conv_transpose2d(x, w, *, stride, act="none", bn=None, eps=1e-5,
                     out_dtype=jnp.bfloat16):
    """Polyphase transposed conv (k=4,s=2,p=1 or k=3,s=1,p=1) as one Pallas matmul.

    x: [N, H, W, Cin] NHWC; w: torch ConvTranspose2d weight [Cin, Cout, k, k].
    """
    n, h, w_sp, cin = x.shape
    cout = w.shape[1]
    phases = stride * stride
    wall = (_wall_stride2(w) if stride == 2 else _wall_stride1(w)).astype(jnp.bfloat16)
    nb = _neighborhood_T(x).astype(jnp.bfloat16)                   # [9*Cin, M]
    kk, m = nb.shape
    rows = phases * cout

    if bn is not None:
        gamma, beta = bn
        out = pl.pallas_call(
            functools.partial(_convT_bn_act_kernel, act=act, eps=eps,
                              phases=phases, cout=cout),
            out_shape=jax.ShapeDtypeStruct((rows, m), out_dtype),
            grid=(1,),   # BN batch stats need the whole M extent in one block
            in_specs=[
                pl.BlockSpec((rows, kk), lambda i: (0, 0)),
                pl.BlockSpec((kk, m), lambda i: (0, 0)),
                pl.BlockSpec((cout, 1), lambda i: (0, 0)),
                pl.BlockSpec((cout, 1), lambda i: (0, 0)),
            ],
            out_specs=pl.BlockSpec((rows, m), lambda i: (0, 0)),
        )(wall, nb, gamma.reshape(cout, 1).astype(jnp.float32),
          beta.reshape(cout, 1).astype(jnp.float32))
    else:
        # Lane-axis (M) tiling: large tiles, >=2 grid steps so v7x megacore can
        # split the 'parallel' axis; pl.cdiv handles non-divisible M.
        if m <= 256:
            tm = m
        else:
            tm = min(4096, _round_up(pl.cdiv(m, 2), 128))
        grid_m = pl.cdiv(m, tm)
        out = pl.pallas_call(
            functools.partial(_convT_act_kernel, act=act),
            out_shape=jax.ShapeDtypeStruct((rows, m), out_dtype),
            grid=(grid_m,),
            in_specs=[
                pl.BlockSpec((rows, kk), lambda i: (0, 0)),
                pl.BlockSpec((kk, tm), lambda i: (0, i)),
            ],
            out_specs=pl.BlockSpec((rows, tm), lambda i: (0, i)),
            compiler_params=pltpu.CompilerParams(
                dimension_semantics=("parallel",)),
        )(wall, nb)
    return _interleave_phases(out, n, h, w_sp, cout, stride)


def head_l1_l2(z_nhwc, w1, w2, gamma, beta, *, eps=1e-5, out_dtype=jnp.bfloat16):
    """Fused ConvT(nz,ngf4,3,1,1) + ConvT(ngf4,ngf8,4,2,1) + BN + LeakyReLU for
    1x1 spatial latents (the DCGAN case)."""
    n, h, w_sp, nz = z_nhwc.shape
    assert (h, w_sp) == (1, 1)
    c1, c2 = w1.shape[1], w2.shape[1]
    zt = jnp.transpose(z_nhwc.reshape(n, nz), (1, 0)).astype(jnp.bfloat16)  # [nz, N]
    w1eff = w1[:, :, 1, 1].T.astype(jnp.bfloat16)                           # [c1, nz]
    # only the centre tap of the 3x3 neighbourhood is non-zero for 1x1 inputs
    w2eff = _wall_stride2(w2)[:, 4 * c1:5 * c1].astype(jnp.bfloat16)        # [4*c2, c1]
    out = pl.pallas_call(
        functools.partial(_head_kernel, eps=eps, cout=c2),
        out_shape=jax.ShapeDtypeStruct((4 * c2, n), out_dtype),
        grid=(1,),
        in_specs=[
            pl.BlockSpec((nz, n), lambda i: (0, 0)),
            pl.BlockSpec((c1, nz), lambda i: (0, 0)),
            pl.BlockSpec((4 * c2, c1), lambda i: (0, 0)),
            pl.BlockSpec((c2, 1), lambda i: (0, 0)),
            pl.BlockSpec((c2, 1), lambda i: (0, 0)),
        ],
        out_specs=pl.BlockSpec((4 * c2, n), lambda i: (0, 0)),
    )(zt, w1eff, w2eff, gamma.reshape(c2, 1).astype(jnp.float32),
      beta.reshape(c2, 1).astype(jnp.float32))
    return _interleave_phases(out, n, 1, 1, c2, 2)


# -------------------------------- Generator -----------------------------------

def init_params(key, nz, ngf, c):
    ks = jax.random.split(key, 8)

    def w(k, shape):
        return 0.02 * jax.random.normal(k, shape, jnp.float32)

    return {
        "w1": w(ks[0], (nz,      ngf * 4, 3, 3)),
        "w2": w(ks[1], (ngf * 4, ngf * 8, 4, 4)),
        "w3": w(ks[2], (ngf * 8, ngf * 4, 4, 4)),
        "w4": w(ks[3], (ngf * 4, ngf * 2, 4, 4)),
        "w5": w(ks[4], (ngf * 2, ngf,     4, 4)),
        "w6": w(ks[5], (ngf,     ngf,     4, 4)),
        "w7": w(ks[6], (ngf,     ngf,     4, 4)),
        "w8": w(ks[7], (ngf,     c,       4, 4)),
        "g2": jnp.ones((ngf * 8,), jnp.float32), "b2": jnp.zeros((ngf * 8,), jnp.float32),
        "g3": jnp.ones((ngf * 4,), jnp.float32), "b3": jnp.zeros((ngf * 4,), jnp.float32),
        "g4": jnp.ones((ngf * 2,), jnp.float32), "b4": jnp.zeros((ngf * 2,), jnp.float32),
        "g5": jnp.ones((ngf,),     jnp.float32), "b5": jnp.zeros((ngf,),     jnp.float32),
    }


def generator_forward(z_nchw, params):
    x = jnp.transpose(z_nchw, (0, 2, 3, 1)).astype(jnp.float32)   # NCHW -> NHWC

    if x.shape[1:3] == (1, 1):
        # fused layers 1+2 (+BN+LeakyReLU): one launch instead of two
        x = head_l1_l2(x, params["w1"], params["w2"], params["g2"], params["b2"])
    else:
        x = conv_transpose2d(x, params["w1"], stride=1)
        x = conv_transpose2d(x, params["w2"], stride=2, act="leaky",
                             bn=(params["g2"], params["b2"]))

    # ConvTranspose2d -> BN -> ReLU (x3)
    x = conv_transpose2d(x, params["w3"], stride=2, act="relu",
                         bn=(params["g3"], params["b3"]))
    x = conv_transpose2d(x, params["w4"], stride=2, act="relu",
                         bn=(params["g4"], params["b4"]))
    x = conv_transpose2d(x, params["w5"], stride=2, act="relu",
                         bn=(params["g5"], params["b5"]))
    # plain ConvTranspose2d layers
    x = conv_transpose2d(x, params["w6"], stride=2)
    x = conv_transpose2d(x, params["w7"], stride=2)
    # final ConvTranspose2d -> Sigmoid (f32 output)
    x = conv_transpose2d(x, params["w8"], stride=2, act="sigmoid",
                         out_dtype=jnp.float32)
    return jnp.transpose(x, (0, 3, 1, 2))                          # NHWC -> NCHW


if __name__ == "__main__":
    nz, ngf, c, batch = 8, 8, 1, 2
    key = jax.random.PRNGKey(0)
    pkey, zkey = jax.random.split(key)
    params = init_params(pkey, nz, ngf, c)
    z = jax.random.normal(zkey, (batch, nz, 1, 1), jnp.float32)    # [N, nz, 1, 1]

    out = jax.jit(lambda zz: generator_forward(zz, params))(z)
    out = jax.block_until_ready(out)

    # 1x1 latent upsampled through 7 stride-2 transposed convs -> 128x128, c channels
    assert out.shape == (batch, c, 128, 128), out.shape
    assert bool(jnp.all(out >= 0.0)) and bool(jnp.all(out <= 1.0))  # sigmoid range
    assert bool(jnp.all(jnp.isfinite(out)))
    print("KERNEL_OK")
</pallas_src>

<mosaic_0001>
module attributes {stable_mosaic.version = 11 : i64} {
  func.func @_head_kernel(%arg0: i32, %arg1: memref<8x2xbf16, #tpu.memory_space<vmem>>, %arg2: memref<32x8xbf16, #tpu.memory_space<vmem>>, %arg3: memref<256x32xbf16, #tpu.memory_space<vmem>>, %arg4: memref<64x1xf32, #tpu.memory_space<vmem>>, %arg5: memref<64x1xf32, #tpu.memory_space<vmem>>, %arg6: memref<256x2xbf16, #tpu.memory_space<vmem>>) attributes {dimension_semantics = [#tpu.dimension_semantics<arbitrary>], iteration_bounds = array<i64: 1>, scalar_prefetch = 0 : i64, scratch_operands = 0 : i64, tpu.core_type = #tpu.core_type<tc>, window_params = [{pipeline_mode = #tpu.pipeline_mode<synchronous>, transform_indices = @transform_0, window_bounds = array<i64: 8, 2>}, {pipeline_mode = #tpu.pipeline_mode<synchronous>, transform_indices = @transform_1, window_bounds = array<i64: 32, 8>}, {pipeline_mode = #tpu.pipeline_mode<synchronous>, transform_indices = @transform_2, window_bounds = array<i64: 256, 32>}, {pipeline_mode = #tpu.pipeline_mode<synchronous>, transform_indices = @transform_3, window_bounds = array<i64: 64, 1>}, {pipeline_mode = #tpu.pipeline_mode<synchronous>, transform_indices = @transform_4, window_bounds = array<i64: 64, 1>}, {pipeline_mode = #tpu.pipeline_mode<synchronous>, transform_indices = @transform_5, window_bounds = array<i64: 256, 2>}]} {
    %c0 = arith.constant 0 : index
    %c0_0 = arith.constant 0 : index
    %0 = vector.load %arg2[%c0, %c0_0] : memref<32x8xbf16, #tpu.memory_space<vmem>>, vector<32x8xbf16>
    %c0_1 = arith.constant 0 : index
    %c0_2 = arith.constant 0 : index
    %1 = vector.load %arg1[%c0_1, %c0_2] : memref<8x2xbf16, #tpu.memory_space<vmem>>, vector<8x2xbf16>
    %cst = arith.constant dense<0.000000e+00> : vector<32x2xf32>
    %2 = tpu.matmul %0, %1, %cst {dimension_numbers = #tpu.dot_dimension_numbers<[1], [0], [0], [1], [0, 0, 1, 1], [], []>} : vector<32x8xbf16>, vector<8x2xbf16>, vector<32x2xf32> -> vector<32x2xf32>
    %c0_3 = arith.constant 0 : index
    %c0_4 = arith.constant 0 : index
    %3 = vector.load %arg3[%c0_3, %c0_4] : memref<256x32xbf16, #tpu.memory_space<vmem>>, vector<256x32xbf16>
    %4 = arith.truncf %2 : vector<32x2xf32> to vector<32x2xbf16>
    %cst_5 = arith.constant dense<0.000000e+00> : vector<256x2xf32>
    %5 = tpu.matmul %3, %4, %cst_5 {dimension_numbers = #tpu.dot_dimension_numbers<[1], [0], [0], [1], [0, 0, 1, 1], [], []>} : vector<256x32xbf16>, vector<32x2xbf16>, vector<256x2xf32> -> vector<256x2xf32>
    %c0_6 = arith.constant 0 : index
    %c0_7 = arith.constant 0 : index
    %6 = vector.load %arg4[%c0_6, %c0_7] : memref<64x1xf32, #tpu.memory_space<vmem>>, vector<64x1xf32>
    %c0_8 = arith.constant 0 : index
    %c0_9 = arith.constant 0 : index
    %7 = vector.load %arg5[%c0_8, %c0_9] : memref<64x1xf32, #tpu.memory_space<vmem>>, vector<64x1xf32>
    %cst_10 = arith.constant dense<0.000000e+00> : vector<256xf32>
    %8 = vector.multi_reduction <add>, %5, %cst_10 [1] : vector<256x2xf32> to vector<256xf32>
    %9 = vector.shape_cast %8 : vector<256xf32> to vector<256x1xf32>
    %10 = vector.extract_strided_slice %9 {offsets = [0, 0], sizes = [64, 1], strides = [1, 1]} : vector<256x1xf32> to vector<64x1xf32>
    %11 = vector.extract_strided_slice %9 {offsets = [64, 0], sizes = [64, 1], strides = [1, 1]} : vector<256x1xf32> to vector<64x1xf32>
    %12 = arith.addf %10, %11 : vector<64x1xf32>
    %13 = vector.extract_strided_slice %9 {offsets = [128, 0], sizes = [64, 1], strides = [1, 1]} : vector<256x1xf32> to vector<64x1xf32>
    %14 = arith.addf %12, %13 : vector<64x1xf32>
    %15 = vector.extract_strided_slice %9 {offsets = [192, 0], sizes = [64, 1], strides = [1, 1]} : vector<256x1xf32> to vector<64x1xf32>
    %16 = arith.addf %14, %15 : vector<64x1xf32>
    %cst_11 = arith.constant 8.000000e+00 : f32
    %17 = vector.broadcast %cst_11 : f32 to vector<64x1xf32>
    %18 = arith.divf %16, %17 : vector<64x1xf32>
    %19 = tpu.concatenate %18, %18, %18, %18 in 0 : vector<64x1xf32>, vector<64x1xf32>, vector<64x1xf32>, vector<64x1xf32> -> vector<256x1xf32>
    %20 = vector.broadcast %19 : vector<256x1xf32> to vector<256x2xf32>
    %21 = arith.subf %5, %20 : vector<256x2xf32>
    %22 = arith.mulf %21, %21 : vector<256x2xf32>
    %cst_12 = arith.constant dense<0.000000e+00> : vector<256xf32>
    %23 = vector.multi_reduction <add>, %22, %cst_12 [1] : vector<256x2xf32> to vector<256xf32>
    %24 = vector.shape_cast %23 : vector<256xf32> to vector<256x1xf32>
    %25 = vector.extract_strided_slice %24 {offsets = [0, 0], sizes = [64, 1], strides = [1, 1]} : vector<256x1xf32> to vector<64x1xf32>
    %26 = vector.extract_strided_slice %24 {offsets = [64, 0], sizes = [64, 1], strides = [1, 1]} : vector<256x1xf32> to vector<64x1xf32>
    %27 = arith.addf %25, %26 : vector<64x1xf32>
    %28 = vector.extract_strided_slice %24 {offsets = [128, 0], sizes = [64, 1], strides = [1, 1]} : vector<256x1xf32> to vector<64x1xf32>
    %29 = arith.addf %27, %28 : vector<64x1xf32>
    %30 = vector.extract_strided_slice %24 {offsets = [192, 0], sizes = [64, 1], strides = [1, 1]} : vector<256x1xf32> to vector<64x1xf32>
    %31 = arith.addf %29, %30 : vector<64x1xf32>
    %cst_13 = arith.constant 8.000000e+00 : f32
    %32 = vector.broadcast %cst_13 : f32 to vector<64x1xf32>
    %33 = arith.divf %31, %32 : vector<64x1xf32>
    %cst_14 = arith.constant 9.99999974E-6 : f32
    %34 = vector.broadcast %cst_14 : f32 to vector<64x1xf32>
    %35 = arith.addf %33, %34 : vector<64x1xf32>
    %36 = math.rsqrt %35 : vector<64x1xf32>
    %37 = arith.mulf %36, %6 : vector<64x1xf32>
    %38 = tpu.concatenate %37, %37, %37, %37 in 0 : vector<64x1xf32>, vector<64x1xf32>, vector<64x1xf32>, vector<64x1xf32> -> vector<256x1xf32>
    %39 = tpu.concatenate %7, %7, %7, %7 in 0 : vector<64x1xf32>, vector<64x1xf32>, vector<64x1xf32>, vector<64x1xf32> -> vector<256x1xf32>
    %40 = vector.broadcast %38 : vector<256x1xf32> to vector<256x2xf32>
    %41 = arith.mulf %21, %40 : vector<256x2xf32>
    %42 = vector.broadcast %39 : vector<256x1xf32> to vector<256x2xf32>
    %43 = arith.addf %41, %42 : vector<256x2xf32>
    %cst_15 = arith.constant 0.000000e+00 : f32
    %44 = vector.broadcast %cst_15 : f32 to vector<256x2xf32>
    %45 = arith.cmpf ogt, %43, %44 : vector<256x2xf32>
    %cst_16 = arith.constant 2.000000e-01 : f32
    %46 = vector.broadcast %cst_16 : f32 to vector<256x2xf32>
    %47 = arith.mulf %46, %43 : vector<256x2xf32>
    %48 = arith.select %45, %43, %47 : vector<256x2xi1>, vector<256x2xf32>
    %49 = arith.truncf %48 : vector<256x2xf32> to vector<256x2xbf16>
    %c0_17 = arith.constant 0 : index
    %c0_18 = arith.constant 0 : index
    %50 = vector.load %arg6[%c0_17, %c0_18] : memref<256x2xbf16, #tpu.memory_space<vmem>>, vector<256x2xbf16>
    tpu.vector_store %arg6[%c0_17, %c0_18], %49 {strides = array<i32>} : memref<256x2xbf16, #tpu.memory_space<vmem>>, vector<256x2xbf16>,
    return
  }
  func.func @transform_0(%arg0: i32) -> (i32, i32) {
    %c0_i32 = arith.constant 0 : i32
    %c0_i32_0 = arith.constant 0 : i32
    %c0_i32_1 = arith.constant 0 : i32
    return %c0_i32, %c0_i32_0 : i32, i32
  }
  func.func @transform_1(%arg0: i32) -> (i32, i32) {
    %c0_i32 = arith.constant 0 : i32
    %c0_i32_0 = arith.constant 0 : i32
    %c0_i32_1 = arith.constant 0 : i32
    return %c0_i32, %c0_i32_0 : i32, i32
  }
  func.func @transform_2(%arg0: i32) -> (i32, i32) {
    %c0_i32 = arith.constant 0 : i32
    %c0_i32_0 = arith.constant 0 : i32
    %c0_i32_1 = arith.constant 0 : i32
    return %c0_i32, %c0_i32_0 : i32, i32
  }
  func.func @transform_3(%arg0: i32) -> (i32, i32) {
    %c0_i32 = arith.constant 0 : i32
    %c0_i32_0 = arith.constant 0 : i32
    %c0_i32_1 = arith.constant 0 : i32
    return %c0_i32, %c0_i32_0 : i32, i32
  }
  func.func @transform_4(%arg0: i32) -> (i32, i32) {
    %c0_i32 = arith.constant 0 : i32
    %c0_i32_0 = arith.constant 0 : i32
    %c0_i32_1 = arith.constant 0 : i32
    return %c0_i32, %c0_i32_0 : i32, i32
  }
  func.func @transform_5(%arg0: i32) -> (i32, i32) {
    %c0_i32 = arith.constant 0 : i32
    %c0_i32_0 = arith.constant 0 : i32
    %c0_i32_1 = arith.constant 0 : i32
    return %c0_i32, %c0_i32_0 : i32, i32
  }
}

module attributes {stable_mosaic.version = 11 : i64} {
  func.func @_convT_bn_act_kernel(%arg0: i32, %arg1: memref<128x576xbf16, #tpu.memory_space<vmem>>, %arg2: memref<576x8xbf16, #tpu.memory_space<vmem>>, %arg3: memref<32x1xf32, #tpu.memory_space<vmem>>, %arg4: memref<32x1xf32, #tpu.memory_space<vmem>>, %arg5: memref<128x8xbf16, #tpu.memory_space<vmem>>) attributes {dimension_semantics = [#tpu.dimension_semantics<arbitrary>], iteration_bounds = array<i64: 1>, scalar_prefetch = 0 : i64, scratch_operands = 0 : i64, tpu.core_type = #tpu.core_type<tc>, window_params = [{pipeline_mode = #tpu.pipeline_mode<synchronous>, transform_indices = @transform_0, window_bounds = array<i64: 128, 576>}, {pipeline_mode = #tpu.pipeline_mode<synchronous>, transform_indices = @transform_1, window_bounds = array<i64: 576, 8>}, {pipeline_mode = #tpu.pipeline_mode<synchronous>, transform_indices = @transform_2, window_bounds = array<i64: 32, 1>}, {pipeline_mode = #tpu.pipeline_mode<synchronous>, transform_indices = @transform_3, window_bounds = array<i64: 32, 1>}, {pipeline_mode = #tpu.pipeline_mode<synchronous>, transform_indices = @transform_4, window_bounds = array<i64: 128, 8>}]} {
    %c0 = arith.constant 0 : index
    %c0_0 = arith.constant 0 : index
    %0 = vector.load %arg1[%c0, %c0_0] : memref<128x576xbf16, #tpu.memory_space<vmem>>, vector<128x576xbf16>
    %c0_1 = arith.constant 0 : index
    %c0_2 = arith.constant 0 : index
    %1 = vector.load %arg2[%c0_1, %c0_2] : memref<576x8xbf16, #tpu.memory_space<vmem>>, vector<576x8xbf16>
    %cst = arith.constant dense<0.000000e+00> : vector<128x8xf32>
    %2 = tpu.matmul %0, %1, %cst {dimension_numbers = #tpu.dot_dimension_numbers<[1], [0], [0], [1], [0, 0, 1, 1], [], []>} : vector<128x576xbf16>, vector<576x8xbf16>, vector<128x8xf32> -> vector<128x8xf32>
    %c0_3 = arith.constant 0 : index
    %c0_4 = arith.constant 0 : index
    %3 = vector.load %arg3[%c0_3, %c0_4] : memref<32x1xf32, #tpu.memory_space<vmem>>, vector<32x1xf32>
    %c0_5 = arith.constant 0 : index
    %c0_6 = arith.constant 0 : index
    %4 = vector.load %arg4[%c0_5, %c0_6] : memref<32x1xf32, #tpu.memory_space<vmem>>, vector<32x1xf32>
    %cst_7 = arith.constant dense<0.000000e+00> : vector<128xf32>
    %5 = vector.multi_reduction <add>, %2, %cst_7 [1] : vector<128x8xf32> to vector<128xf32>
    %6 = vector.shape_cast %5 : vector<128xf32> to vector<128x1xf32>
    %7 = vector.extract_strided_slice %6 {offsets = [0, 0], sizes = [32, 1], strides = [1, 1]} : vector<128x1xf32> to vector<32x1xf32>
    %8 = vector.extract_strided_slice %6 {offsets = [32, 0], sizes = [32, 1], strides = [1, 1]} : vector<128x1xf32> to vector<32x1xf32>
    %9 = arith.addf %7, %8 : vector<32x1xf32>
    %10 = vector.extract_strided_slice %6 {offsets = [64, 0], sizes = [32, 1], strides = [1, 1]} : vector<128x1xf32> to vector<32x1xf32>
    %11 = arith.addf %9, %10 : vector<32x1xf32>
    %12 = vector.extract_strided_slice %6 {offsets = [96, 0], sizes = [32, 1], strides = [1, 1]} : vector<128x1xf32> to vector<32x1xf32>
    %13 = arith.addf %11, %12 : vector<32x1xf32>
    %cst_8 = arith.constant 3.200000e+01 : f32
    %14 = vector.broadcast %cst_8 : f32 to vector<32x1xf32>
    %15 = arith.divf %13, %14 : vector<32x1xf32>
    %16 = tpu.concatenate %15, %15, %15, %15 in 0 : vector<32x1xf32>, vector<32x1xf32>, vector<32x1xf32>, vector<32x1xf32> -> vector<128x1xf32>
    %17 = vector.broadcast %16 : vector<128x1xf32> to vector<128x8xf32>
    %18 = arith.subf %2, %17 : vector<128x8xf32>
    %19 = arith.mulf %18, %18 : vector<128x8xf32>
    %cst_9 = arith.constant dense<0.000000e+00> : vector<128xf32>
    %20 = vector.multi_reduction <add>, %19, %cst_9 [1] : vector<128x8xf32> to vector<128xf32>
    %21 = vector.shape_cast %20 : vector<128xf32> to vector<128x1xf32>
    %22 = vector.extract_strided_slice %21 {offsets = [0, 0], sizes = [32, 1], strides = [1, 1]} : vector<128x1xf32> to vector<32x1xf32>
    %23 = vector.extract_strided_slice %21 {offsets = [32, 0], sizes = [32, 1], strides = [1, 1]} : vector<128x1xf32> to vector<32x1xf32>
    %24 = arith.addf %22, %23 : vector<32x1xf32>
    %25 = vector.extract_strided_slice %21 {offsets = [64, 0], sizes = [32, 1], strides = [1, 1]} : vector<128x1xf32> to vector<32x1xf32>
    %26 = arith.addf %24, %25 : vector<32x1xf32>
    %27 = vector.extract_strided_slice %21 {offsets = [96, 0], sizes = [32, 1], strides = [1, 1]} : vector<128x1xf32> to vector<32x1xf32>
    %28 = arith.addf %26, %27 : vector<32x1xf32>
    %cst_10 = arith.constant 3.200000e+01 : f32
    %29 = vector.broadcast %cst_10 : f32 to vector<32x1xf32>
    %30 = arith.divf %28, %29 : vector<32x1xf32>
    %cst_11 = arith.constant 9.99999974E-6 : f32
    %31 = vector.broadcast %cst_11 : f32 to vector<32x1xf32>
    %32 = arith.addf %30, %31 : vector<32x1xf32>
    %33 = math.rsqrt %32 : vector<32x1xf32>
    %34 = arith.mulf %33, %3 : vector<32x1xf32>
    %35 = tpu.concatenate %34, %34, %34, %34 in 0 : vector<32x1xf32>, vector<32x1xf32>, vector<32x1xf32>, vector<32x1xf32> -> vector<128x1xf32>
    %36 = tpu.concatenate %4, %4, %4, %4 in 0 : vector<32x1xf32>, vector<32x1xf32>, vector<32x1xf32>, vector<32x1xf32> -> vector<128x1xf32>
    %37 = vector.broadcast %35 : vector<128x1xf32> to vector<128x8xf32>
    %38 = arith.mulf %18, %37 : vector<128x8xf32>
    %39 = vector.broadcast %36 : vector<128x1xf32> to vector<128x8xf32>
    %40 = arith.addf %38, %39 : vector<128x8xf32>
    %cst_12 = arith.constant 0.000000e+00 : f32
    %41 = vector.broadcast %cst_12 : f32 to vector<128x8xf32>
    %42 = arith.maximumf %40, %41 : vector<128x8xf32>
    %43 = arith.truncf %42 : vector<128x8xf32> to vector<128x8xbf16>
    %c0_13 = arith.constant 0 : index
    %c0_14 = arith.constant 0 : index
    %44 = vector.load %arg5[%c0_13, %c0_14] : memref<128x8xbf16, #tpu.memory_space<vmem>>, vector<128x8xbf16>
    tpu.vector_store %arg5[%c0_13, %c0_14], %43 {strides = array<i32>} : memref<128x8xbf16, #tpu.memory_space<vmem>>, vector<128x8xbf16>,
    return
  }
  func.func @transform_0(%arg0: i32) -> (i32, i32) {
    %c0_i32 = arith.constant 0 : i32
    %c0_i32_0 = arith.constant 0 : i32
    %c0_i32_1 = arith.constant 0 : i32
    return %c0_i32, %c0_i32_0 : i32, i32
  }
  func.func @transform_1(%arg0: i32) -> (i32, i32) {
    %c0_i32 = arith.constant 0 : i32
    %c0_i32_0 = arith.constant 0 : i32
    %c0_i32_1 = arith.constant 0 : i32
    return %c0_i32, %c0_i32_0 : i32, i32
  }
  func.func @transform_2(%arg0: i32) -> (i32, i32) {
    %c0_i32 = arith.constant 0 : i32
    %c0_i32_0 = arith.constant 0 : i32
    %c0_i32_1 = arith.constant 0 : i32
    return %c0_i32, %c0_i32_0 : i32, i32
  }
  func.func @transform_3(%arg0: i32) -> (i32, i32) {
    %c0_i32 = arith.constant 0 : i32
    %c0_i32_0 = arith.constant 0 : i32
    %c0_i32_1 = arith.constant 0 : i32
    return %c0_i32, %c0_i32_0 : i32, i32
  }
  func.func @transform_4(%arg0: i32) -> (i32, i32) {
    %c0_i32 = arith.constant 0 : i32
    %c0_i32_0 = arith.constant 0 : i32
    %c0_i32_1 = arith.constant 0 : i32
    return %c0_i32, %c0_i32_0 : i32, i32
  }
}

module attributes {stable_mosaic.version = 11 : i64} {
  func.func @_convT_bn_act_kernel(%arg0: i32, %arg1: memref<64x288xbf16, #tpu.memory_space<vmem>>, %arg2: memref<288x32xbf16, #tpu.memory_space<vmem>>, %arg3: memref<16x1xf32, #tpu.memory_space<vmem>>, %arg4: memref<16x1xf32, #tpu.memory_space<vmem>>, %arg5: memref<64x32xbf16, #tpu.memory_space<vmem>>) attributes {dimension_semantics = [#tpu.dimension_semantics<arbitrary>], iteration_bounds = array<i64: 1>, scalar_prefetch = 0 : i64, scratch_operands = 0 : i64, tpu.core_type = #tpu.core_type<tc>, window_params = [{pipeline_mode = #tpu.pipeline_mode<synchronous>, transform_indices = @transform_0, window_bounds = array<i64: 64, 288>}, {pipeline_mode = #tpu.pipeline_mode<synchronous>, transform_indices = @transform_1, window_bounds = array<i64: 288, 32>}, {pipeline_mode = #tpu.pipeline_mode<synchronous>, transform_indices = @transform_2, window_bounds = array<i64: 16, 1>}, {pipeline_mode = #tpu.pipeline_mode<synchronous>, transform_indices = @transform_3, window_bounds = array<i64: 16, 1>}, {pipeline_mode = #tpu.pipeline_mode<synchronous>, transform_indices = @transform_4, window_bounds = array<i64: 64, 32>}]} {
    %c0 = arith.constant 0 : index
    %c0_0 = arith.constant 0 : index
    %0 = vector.load %arg1[%c0, %c0_0] : memref<64x288xbf16, #tpu.memory_space<vmem>>, vector<64x288xbf16>
    %c0_1 = arith.constant 0 : index
    %c0_2 = arith.constant 0 : index
    %1 = vector.load %arg2[%c0_1, %c0_2] : memref<288x32xbf16, #tpu.memory_space<vmem>>, vector<288x32xbf16>
    %cst = arith.constant dense<0.000000e+00> : vector<64x32xf32>
    %2 = tpu.matmul %0, %1, %cst {dimension_numbers = #tpu.dot_dimension_numbers<[1], [0], [0], [1], [0, 0, 1, 1], [], []>} : vector<64x288xbf16>, vector<288x32xbf16>, vector<64x32xf32> -> vector<64x32xf32>
    %c0_3 = arith.constant 0 : index
    %c0_4 = arith.constant 0 : index
    %3 = vector.load %arg3[%c0_3, %c0_4] : memref<16x1xf32, #tpu.memory_space<vmem>>, vector<16x1xf32>
    %c0_5 = arith.constant 0 : index
    %c0_6 = arith.constant 0 : index
    %4 = vector.load %arg4[%c0_5, %c0_6] : memref<16x1xf32, #tpu.memory_space<vmem>>, vector<16x1xf32>
    %cst_7 = arith.constant dense<0.000000e+00> : vector<64xf32>
    %5 = vector.multi_reduction <add>, %2, %cst_7 [1] : vector<64x32xf32> to vector<64xf32>
    %6 = vector.shape_cast %5 : vector<64xf32> to vector<64x1xf32>
    %7 = vector.extract_strided_slice %6 {offsets = [0, 0], sizes = [16, 1], strides = [1, 1]} : vector<64x1xf32> to vector<16x1xf32>
    %8 = vector.extract_strided_slice %6 {offsets = [16, 0], sizes = [16, 1], strides = [1, 1]} : vector<64x1xf32> to vector<16x1xf32>
    %9 = arith.addf %7, %8 : vector<16x1xf32>
    %10 = vector.extract_strided_slice %6 {offsets = [32, 0], sizes = [16, 1], strides = [1, 1]} : vector<64x1xf32> to vector<16x1xf32>
    %11 = arith.addf %9, %10 : vector<16x1xf32>
    %12 = vector.extract_strided_slice %6 {offsets = [48, 0], sizes = [16, 1], strides = [1, 1]} : vector<64x1xf32> to vector<16x1xf32>
    %13 = arith.addf %11, %12 : vector<16x1xf32>
    %cst_8 = arith.constant 1.280000e+02 : f32
    %14 = vector.broadcast %cst_8 : f32 to vector<16x1xf32>
    %15 = arith.divf %13, %14 : vector<16x1xf32>
    %16 = tpu.concatenate %15, %15, %15, %15 in 0 : vector<16x1xf32>, vector<16x1xf32>, vector<16x1xf32>, vector<16x1xf32> -> vector<64x1xf32>
    %17 = vector.broadcast %16 : vector<64x1xf32> to vector<64x32xf32>
    %18 = arith.subf %2, %17 : vector<64x32xf32>
    %19 = arith.mulf %18, %18 : vector<64x32xf32>
    %cst_9 = arith.constant dense<0.000000e+00> : vector<64xf32>
    %20 = vector.multi_reduction <add>, %19, %cst_9 [1] : vector<64x32xf32> to vector<64xf32>
    %21 = vector.shape_cast %20 : vector<64xf32> to vector<64x1xf32>
    %22 = vector.extract_strided_slice %21 {offsets = [0, 0], sizes = [16, 1], strides = [1, 1]} : vector<64x1xf32> to vector<16x1xf32>
    %23 = vector.extract_strided_slice %21 {offsets = [16, 0], sizes = [16, 1], strides = [1, 1]} : vector<64x1xf32> to vector<16x1xf32>
    %24 = arith.addf %22, %23 : vector<16x1xf32>
    %25 = vector.extract_strided_slice %21 {offsets = [32, 0], sizes = [16, 1], strides = [1, 1]} : vector<64x1xf32> to vector<16x1xf32>
    %26 = arith.addf %24, %25 : vector<16x1xf32>
    %27 = vector.extract_strided_slice %21 {offsets = [48, 0], sizes = [16, 1], strides = [1, 1]} : vector<64x1xf32> to vector<16x1xf32>
    %28 = arith.addf %26, %27 : vector<16x1xf32>
    %cst_10 = arith.constant 1.280000e+02 : f32
    %29 = vector.broadcast %cst_10 : f32 to vector<16x1xf32>
    %30 = arith.divf %28, %29 : vector<16x1xf32>
    %cst_11 = arith.constant 9.99999974E-6 : f32
    %31 = vector.broadcast %cst_11 : f32 to vector<16x1xf32>
    %32 = arith.addf %30, %31 : vector<16x1xf32>
    %33 = math.rsqrt %32 : vector<16x1xf32>
    %34 = arith.mulf %33, %3 : vector<16x1xf32>
    %35 = tpu.concatenate %34, %34, %34, %34 in 0 : vector<16x1xf32>, vector<16x1xf32>, vector<16x1xf32>, vector<16x1xf32> -> vector<64x1xf32>
    %36 = tpu.concatenate %4, %4, %4, %4 in 0 : vector<16x1xf32>, vector<16x1xf32>, vector<16x1xf32>, vector<16x1xf32> -> vector<64x1xf32>
    %37 = vector.broadcast %35 : vector<64x1xf32> to vector<64x32xf32>
    %38 = arith.mulf %18, %37 : vector<64x32xf32>
    %39 = vector.broadcast %36 : vector<64x1xf32> to vector<64x32xf32>
    %40 = arith.addf %38, %39 : vector<64x32xf32>
    %cst_12 = arith.constant 0.000000e+00 : f32
    %41 = vector.broadcast %cst_12 : f32 to vector<64x32xf32>
    %42 = arith.maximumf %40, %41 : vector<64x32xf32>
    %43 = arith.truncf %42 : vector<64x32xf32> to vector<64x32xbf16>
    %c0_13 = arith.constant 0 : index
    %c0_14 = arith.constant 0 : index
    %44 = vector.load %arg5[%c0_13, %c0_14] : memref<64x32xbf16, #tpu.memory_space<vmem>>, vector<64x32xbf16>
    tpu.vector_store %arg5[%c0_13, %c0_14], %43 {strides = array<i32>} : memref<64x32xbf16, #tpu.memory_space<vmem>>, vector<64x32xbf16>,
    return
  }
  func.func @transform_0(%arg0: i32) -> (i32, i32) {
    %c0_i32 = arith.constant 0 : i32
    %c0_i32_0 = arith.constant 0 : i32
    %c0_i32_1 = arith.constant 0 : i32
    return %c0_i32, %c0_i32_0 : i32, i32
  }
  func.func @transform_1(%arg0: i32) -> (i32, i32) {
    %c0_i32 = arith.constant 0 : i32
    %c0_i32_0 = arith.constant 0 : i32
    %c0_i32_1 = arith.constant 0 : i32
    return %c0_i32, %c0_i32_0 : i32, i32
  }
  func.func @transform_2(%arg0: i32) -> (i32, i32) {
    %c0_i32 = arith.constant 0 : i32
    %c0_i32_0 = arith.constant 0 : i32
    %c0_i32_1 = arith.constant 0 : i32
    return %c0_i32, %c0_i32_0 : i32, i32
  }
  func.func @transform_3(%arg0: i32) -> (i32, i32) {
    %c0_i32 = arith.constant 0 : i32
    %c0_i32_0 = arith.constant 0 : i32
    %c0_i32_1 = arith.constant 0 : i32
    return %c0_i32, %c0_i32_0 : i32, i32
  }
  func.func @transform_4(%arg0: i32) -> (i32, i32) {
    %c0_i32 = arith.constant 0 : i32
    %c0_i32_0 = arith.constant 0 : i32
    %c0_i32_1 = arith.constant 0 : i32
    return %c0_i32, %c0_i32_0 : i32, i32
  }
}

module attributes {stable_mosaic.version = 11 : i64} {
  func.func @_convT_bn_act_kernel(%arg0: i32, %arg1: memref<32x144xbf16, #tpu.memory_space<vmem>>, %arg2: memref<144x128xbf16, #tpu.memory_space<vmem>>, %arg3: memref<8x1xf32, #tpu.memory_space<vmem>>, %arg4: memref<8x1xf32, #tpu.memory_space<vmem>>, %arg5: memref<32x128xbf16, #tpu.memory_space<vmem>>) attributes {dimension_semantics = [#tpu.dimension_semantics<arbitrary>], iteration_bounds = array<i64: 1>, scalar_prefetch = 0 : i64, scratch_operands = 0 : i64, tpu.core_type = #tpu.core_type<tc>, window_params = [{pipeline_mode = #tpu.pipeline_mode<synchronous>, transform_indices = @transform_0, window_bounds = array<i64: 32, 144>}, {pipeline_mode = #tpu.pipeline_mode<synchronous>, transform_indices = @transform_1, window_bounds = array<i64: 144, 128>}, {pipeline_mode = #tpu.pipeline_mode<synchronous>, transform_indices = @transform_2, window_bounds = array<i64: 8, 1>}, {pipeline_mode = #tpu.pipeline_mode<synchronous>, transform_indices = @transform_3, window_bounds = array<i64: 8, 1>}, {pipeline_mode = #tpu.pipeline_mode<synchronous>, transform_indices = @transform_4, window_bounds = array<i64: 32, 128>}]} {
    %c0 = arith.constant 0 : index
    %c0_0 = arith.constant 0 : index
    %0 = vector.load %arg1[%c0, %c0_0] : memref<32x144xbf16, #tpu.memory_space<vmem>>, vector<32x144xbf16>
    %c0_1 = arith.constant 0 : index
    %c0_2 = arith.constant 0 : index
    %1 = vector.load %arg2[%c0_1, %c0_2] : memref<144x128xbf16, #tpu.memory_space<vmem>>, vector<144x128xbf16>
    %cst = arith.constant dense<0.000000e+00> : vector<32x128xf32>
    %2 = tpu.matmul %0, %1, %cst {dimension_numbers = #tpu.dot_dimension_numbers<[1], [0], [0], [1], [0, 0, 1, 1], [], []>} : vector<32x144xbf16>, vector<144x128xbf16>, vector<32x128xf32> -> vector<32x128xf32>
    %c0_3 = arith.constant 0 : index
    %c0_4 = arith.constant 0 : index
    %3 = vector.load %arg3[%c0_3, %c0_4] : memref<8x1xf32, #tpu.memory_space<vmem>>, vector<8x1xf32>
    %c0_5 = arith.constant 0 : index
    %c0_6 = arith.constant 0 : index
    %4 = vector.load %arg4[%c0_5, %c0_6] : memref<8x1xf32, #tpu.memory_space<vmem>>, vector<8x1xf32>
    %cst_7 = arith.constant dense<0.000000e+00> : vector<32xf32>
    %5 = vector.multi_reduction <add>, %2, %cst_7 [1] : vector<32x128xf32> to vector<32xf32>
    %6 = vector.shape_cast %5 : vector<32xf32> to vector<32x1xf32>
    %7 = vector.extract_strided_slice %6 {offsets = [0, 0], sizes = [8, 1], strides = [1, 1]} : vector<32x1xf32> to vector<8x1xf32>
    %8 = vector.extract_strided_slice %6 {offsets = [8, 0], sizes = [8, 1], strides = [1, 1]} : vector<32x1xf32> to vector<8x1xf32>
    %9 = arith.addf %7, %8 : vector<8x1xf32>
    %10 = vector.extract_strided_slice %6 {offsets = [16, 0], sizes = [8, 1], strides = [1, 1]} : vector<32x1xf32> to vector<8x1xf32>
    %11 = arith.addf %9, %10 : vector<8x1xf32>
    %12 = vector.extract_strided_slice %6 {offsets = [24, 0], sizes = [8, 1], strides = [1, 1]} : vector<32x1xf32> to vector<8x1xf32>
    %13 = arith.addf %11, %12 : vector<8x1xf32>
    %cst_8 = arith.constant 5.120000e+02 : f32
    %14 = vector.broadcast %cst_8 : f32 to vector<8x1xf32>
    %15 = arith.divf %13, %14 : vector<8x1xf32>
    %16 = tpu.concatenate %15, %15, %15, %15 in 0 : vector<8x1xf32>, vector<8x1xf32>, vector<8x1xf32>, vector<8x1xf32> -> vector<32x1xf32>
    %17 = vector.broadcast %16 : vector<32x1xf32> to vector<32x128xf32>
    %18 = arith.subf %2, %17 : vector<32x128xf32>
    %19 = arith.mulf %18, %18 : vector<32x128xf32>
    %cst_9 = arith.constant dense<0.000000e+00> : vector<32xf32>
    %20 = vector.multi_reduction <add>, %19, %cst_9 [1] : vector<32x128xf32> to vector<32xf32>
    %21 = vector.shape_cast %20 : vector<32xf32> to vector<32x1xf32>
    %22 = vector.extract_strided_slice %21 {offsets = [0, 0], sizes = [8, 1], strides = [1, 1]} : vector<32x1xf32> to vector<8x1xf32>
    %23 = vector.extract_strided_slice %21 {offsets = [8, 0], sizes = [8, 1], strides = [1, 1]} : vector<32x1xf32> to vector<8x1xf32>
    %24 = arith.addf %22, %23 : vector<8x1xf32>
    %25 = vector.extract_strided_slice %21 {offsets = [16, 0], sizes = [8, 1], strides = [1, 1]} : vector<32x1xf32> to vector<8x1xf32>
    %26 = arith.addf %24, %25 : vector<8x1xf32>
    %27 = vector.extract_strided_slice %21 {offsets = [24, 0], sizes = [8, 1], strides = [1, 1]} : vector<32x1xf32> to vector<8x1xf32>
    %28 = arith.addf %26, %27 : vector<8x1xf32>
    %cst_10 = arith.constant 5.120000e+02 : f32
    %29 = vector.broadcast %cst_10 : f32 to vector<8x1xf32>
    %30 = arith.divf %28, %29 : vector<8x1xf32>
    %cst_11 = arith.constant 9.99999974E-6 : f32
    %31 = vector.broadcast %cst_11 : f32 to vector<8x1xf32>
    %32 = arith.addf %30, %31 : vector<8x1xf32>
    %33 = math.rsqrt %32 : vector<8x1xf32>
    %34 = arith.mulf %33, %3 : vector<8x1xf32>
    %35 = tpu.concatenate %34, %34, %34, %34 in 0 : vector<8x1xf32>, vector<8x1xf32>, vector<8x1xf32>, vector<8x1xf32> -> vector<32x1xf32>
    %36 = tpu.concatenate %4, %4, %4, %4 in 0 : vector<8x1xf32>, vector<8x1xf32>, vector<8x1xf32>, vector<8x1xf32> -> vector<32x1xf32>
    %37 = vector.broadcast %35 : vector<32x1xf32> to vector<32x128xf32>
    %38 = arith.mulf %18, %37 : vector<32x128xf32>
    %39 = vector.broadcast %36 : vector<32x1xf32> to vector<32x128xf32>
    %40 = arith.addf %38, %39 : vector<32x128xf32>
    %cst_12 = arith.constant 0.000000e+00 : f32
    %41 = vector.broadcast %cst_12 : f32 to vector<32x128xf32>
    %42 = arith.maximumf %40, %41 : vector<32x128xf32>
    %43 = arith.truncf %42 : vector<32x128xf32> to vector<32x128xbf16>
    %c0_13 = arith.constant 0 : index
    %c0_14 = arith.constant 0 : index
    %44 = vector.load %arg5[%c0_13, %c0_14] : memref<32x128xbf16, #tpu.memory_space<vmem>>, vector<32x128xbf16>
    tpu.vector_store %arg5[%c0_13, %c0_14], %43 {strides = array<i32>} : memref<32x128xbf16, #tpu.memory_space<vmem>>, vector<32x128xbf16>,
    return
  }
  func.func @transform_0(%arg0: i32) -> (i32, i32) {
    %c0_i32 = arith.constant 0 : i32
    %c0_i32_0 = arith.constant 0 : i32
    %c0_i32_1 = arith.constant 0 : i32
    return %c0_i32, %c0_i32_0 : i32, i32
  }
  func.func @transform_1(%arg0: i32) -> (i32, i32) {
    %c0_i32 = arith.constant 0 : i32
    %c0_i32_0 = arith.constant 0 : i32
    %c0_i32_1 = arith.constant 0 : i32
    return %c0_i32, %c0_i32_0 : i32, i32
  }
  func.func @transform_2(%arg0: i32) -> (i32, i32) {
    %c0_i32 = arith.constant 0 : i32
    %c0_i32_0 = arith.constant 0 : i32
    %c0_i32_1 = arith.constant 0 : i32
    return %c0_i32, %c0_i32_0 : i32, i32
  }
  func.func @transform_3(%arg0: i32) -> (i32, i32) {
    %c0_i32 = arith.constant 0 : i32
    %c0_i32_0 = arith.constant 0 : i32
    %c0_i32_1 = arith.constant 0 : i32
    return %c0_i32, %c0_i32_0 : i32, i32
  }
  func.func @transform_4(%arg0: i32) -> (i32, i32) {
    %c0_i32 = arith.constant 0 : i32
    %c0_i32_0 = arith.constant 0 : i32
    %c0_i32_1 = arith.constant 0 : i32
    return %c0_i32, %c0_i32_0 : i32, i32
  }
}

module attributes {stable_mosaic.version = 11 : i64} {
  func.func @_convT_act_kernel(%arg0: i32, %arg1: memref<32x72xbf16, #tpu.memory_space<vmem>>, %arg2: memref<72x256xbf16, #tpu.memory_space<vmem>>, %arg3: memref<32x256xbf16, #tpu.memory_space<vmem>>) attributes {dimension_semantics = [#tpu.dimension_semantics<parallel>], iteration_bounds = array<i64: 2>, scalar_prefetch = 0 : i64, scratch_operands = 0 : i64, tpu.core_type = #tpu.core_type<tc>, window_params = [{pipeline_mode = #tpu.pipeline_mode<synchronous>, transform_indices = @transform_0, window_bounds = array<i64: 32, 72>}, {transform_indices = @transform_1, window_bounds = array<i64: 72, 256>}, {transform_indices = @transform_2, window_bounds = array<i64: 32, 256>}]} {
    %c0 = arith.constant 0 : index
    %c0_0 = arith.constant 0 : index
    %0 = vector.load %arg1[%c0, %c0_0] : memref<32x72xbf16, #tpu.memory_space<vmem>>, vector<32x72xbf16>
    %c0_1 = arith.constant 0 : index
    %c0_2 = arith.constant 0 : index
    %1 = vector.load %arg2[%c0_1, %c0_2] : memref<72x256xbf16, #tpu.memory_space<vmem>>, vector<72x256xbf16>
    %cst = arith.constant dense<0.000000e+00> : vector<32x256xf32>
    %2 = tpu.matmul %0, %1, %cst {dimension_numbers = #tpu.dot_dimension_numbers<[1], [0], [0], [1], [0, 0, 1, 1], [], []>} : vector<32x72xbf16>, vector<72x256xbf16>, vector<32x256xf32> -> vector<32x256xf32>
    %3 = arith.truncf %2 : vector<32x256xf32> to vector<32x256xbf16>
    %c0_3 = arith.constant 0 : index
    %c0_4 = arith.constant 0 : index
    %4 = vector.load %arg3[%c0_3, %c0_4] : memref<32x256xbf16, #tpu.memory_space<vmem>>, vector<32x256xbf16>
    tpu.vector_store %arg3[%c0_3, %c0_4], %3 {strides = array<i32>} : memref<32x256xbf16, #tpu.memory_space<vmem>>, vector<32x256xbf16>,
    return
  }
  func.func @transform_0(%arg0: i32) -> (i32, i32) {
    %c0_i32 = arith.constant 0 : i32
    %c0_i32_0 = arith.constant 0 : i32
    %c0_i32_1 = arith.constant 0 : i32
    return %c0_i32, %c0_i32_0 : i32, i32
  }
  func.func @transform_1(%arg0: i32) -> (i32, i32) {
    %c0_i32 = arith.constant 0 : i32
    %c0_i32_0 = arith.constant 0 : i32
    return %c0_i32, %arg0 : i32, i32
  }
  func.func @transform_2(%arg0: i32) -> (i32, i32) {
    %c0_i32 = arith.constant 0 : i32
    %c0_i32_0 = arith.constant 0 : i32
    return %c0_i32, %arg0 : i32, i32
  }
}

module attributes {stable_mosaic.version = 11 : i64} {
  func.func @_convT_act_kernel(%arg0: i32, %arg1: memref<32x72xbf16, #tpu.memory_space<vmem>>, %arg2: memref<72x1024xbf16, #tpu.memory_space<vmem>>, %arg3: memref<32x1024xbf16, #tpu.memory_space<vmem>>) attributes {dimension_semantics = [#tpu.dimension_semantics<parallel>], iteration_bounds = array<i64: 2>, scalar_prefetch = 0 : i64, scratch_operands = 0 : i64, tpu.core_type = #tpu.core_type<tc>, window_params = [{pipeline_mode = #tpu.pipeline_mode<synchronous>, transform_indices = @transform_0, window_bounds = array<i64: 32, 72>}, {transform_indices = @transform_1, window_bounds = array<i64: 72, 1024>}, {transform_indices = @transform_2, window_bounds = array<i64: 32, 1024>}]} {
    %c0 = arith.constant 0 : index
    %c0_0 = arith.constant 0 : index
    %0 = vector.load %arg1[%c0, %c0_0] : memref<32x72xbf16, #tpu.memory_space<vmem>>, vector<32x72xbf16>
    %c0_1 = arith.constant 0 : index
    %c0_2 = arith.constant 0 : index
    %1 = vector.load %arg2[%c0_1, %c0_2] : memref<72x1024xbf16, #tpu.memory_space<vmem>>, vector<72x1024xbf16>
    %cst = arith.constant dense<0.000000e+00> : vector<32x1024xf32>
    %2 = tpu.matmul %0, %1, %cst {dimension_numbers = #tpu.dot_dimension_numbers<[1], [0], [0], [1], [0, 0, 1, 1], [], []>} : vector<32x72xbf16>, vector<72x1024xbf16>, vector<32x1024xf32> -> vector<32x1024xf32>
    %3 = arith.truncf %2 : vector<32x1024xf32> to vector<32x1024xbf16>
    %c0_3 = arith.constant 0 : index
    %c0_4 = arith.constant 0 : index
    %4 = vector.load %arg3[%c0_3, %c0_4] : memref<32x1024xbf16, #tpu.memory_space<vmem>>, vector<32x1024xbf16>
    tpu.vector_store %arg3[%c0_3, %c0_4], %3 {strides = array<i32>} : memref<32x1024xbf16, #tpu.memory_space<vmem>>, vector<32x1024xbf16>,
    return
  }
  func.func @transform_0(%arg0: i32) -> (i32, i32) {
    %c0_i32 = arith.constant 0 : i32
    %c0_i32_0 = arith.constant 0 : i32
    %c0_i32_1 = arith.constant 0 : i32
    return %c0_i32, %c0_i32_0 : i32, i32
  }
  func.func @transform_1(%arg0: i32) -> (i32, i32) {
    %c0_i32 = arith.constant 0 : i32
    %c0_i32_0 = arith.constant 0 : i32
    return %c0_i32, %arg0 : i32, i32
  }
  func.func @transform_2(%arg0: i32) -> (i32, i32) {
    %c0_i32 = arith.constant 0 : i32
    %c0_i32_0 = arith.constant 0 : i32
    return %c0_i32, %arg0 : i32, i32
  }
}

module attributes {stable_mosaic.version = 11 : i64} {
  func.func @_convT_act_kernel(%arg0: i32, %arg1: memref<4x72xbf16, #tpu.memory_space<vmem>>, %arg2: memref<72x4096xbf16, #tpu.memory_space<vmem>>, %arg3: memref<4x4096xf32, #tpu.memory_space<vmem>>) attributes {dimension_semantics = [#tpu.dimension_semantics<parallel>], iteration_bounds = array<i64: 2>, scalar_prefetch = 0 : i64, scratch_operands = 0 : i64, tpu.core_type = #tpu.core_type<tc>, window_params = [{pipeline_mode = #tpu.pipeline_mode<synchronous>, transform_indices = @transform_0, window_bounds = array<i64: 4, 72>}, {transform_indices = @transform_1, window_bounds = array<i64: 72, 4096>}, {transform_indices = @transform_2, window_bounds = array<i64: 4, 4096>}]} {
    %c0 = arith.constant 0 : index
    %c0_0 = arith.constant 0 : index
    %0 = vector.load %arg1[%c0, %c0_0] : memref<4x72xbf16, #tpu.memory_space<vmem>>, vector<4x72xbf16>
    %c0_1 = arith.constant 0 : index
    %c0_2 = arith.constant 0 : index
    %1 = vector.load %arg2[%c0_1, %c0_2] : memref<72x4096xbf16, #tpu.memory_space<vmem>>, vector<72x4096xbf16>
    %cst = arith.constant dense<0.000000e+00> : vector<4x4096xf32>
    %2 = tpu.matmul %0, %1, %cst {dimension_numbers = #tpu.dot_dimension_numbers<[1], [0], [0], [1], [0, 0, 1, 1], [], []>} : vector<4x72xbf16>, vector<72x4096xbf16>, vector<4x4096xf32> -> vector<4x4096xf32>
    %3 = math.absf %2 : vector<4x4096xf32>
    %cst_3 = arith.constant 0.000000e+00 : f32
    %4 = vector.broadcast %cst_3 : f32 to vector<4x4096xf32>
    %5 = arith.subf %4, %3 : vector<4x4096xf32>
    %6 = math.exp %5 : vector<4x4096xf32>
    %cst_4 = arith.constant 1.000000e+00 : f32
    %7 = vector.broadcast %cst_4 : f32 to vector<4x4096xf32>
    %8 = arith.addf %7, %6 : vector<4x4096xf32>
    %9 = tpu.reciprocal %8 {approx = true} : vector<4x4096xf32> -> vector<4x4096xf32>
    %cst_5 = arith.constant 0.000000e+00 : f32
    %10 = vector.broadcast %cst_5 : f32 to vector<4x4096xf32>
    %11 = arith.cmpf oge, %2, %10 : vector<4x4096xf32>
    %12 = arith.mulf %6, %9 : vector<4x4096xf32>
    %cst_6 = arith.constant 1.000000e+00 : f32
    %13 = vector.broadcast %cst_6 : f32 to vector<4x4096xf32>
    %14 = arith.subf %13, %12 : vector<4x4096xf32>
    %15 = arith.mulf %6, %9 : vector<4x4096xf32>
    %16 = arith.select %11, %14, %15 : vector<4x4096xi1>, vector<4x4096xf32>
    %c0_7 = arith.constant 0 : index
    %c0_8 = arith.constant 0 : index
    %17 = vector.load %arg3[%c0_7, %c0_8] : memref<4x4096xf32, #tpu.memory_space<vmem>>, vector<4x4096xf32>
    tpu.vector_store %arg3[%c0_7, %c0_8], %16 {strides = array<i32>} : memref<4x4096xf32, #tpu.memory_space<vmem>>, vector<4x4096xf32>,
    return
  }
  func.func @transform_0(%arg0: i32) -> (i32, i32) {
    %c0_i32 = arith.constant 0 : i32
    %c0_i32_0 = arith.constant 0 : i32
    %c0_i32_1 = arith.constant 0 : i32
    return %c0_i32, %c0_i32_0 : i32, i32
  }
  func.func @transform_1(%arg0: i32) -> (i32, i32) {
    %c0_i32 = arith.constant 0 : i32
    %c0_i32_0 = arith.constant 0 : i32
    return %c0_i32, %arg0 : i32, i32
  }
  func.func @transform_2(%arg0: i32) -> (i32, i32) {
    %c0_i32 = arith.constant 0 : i32
    %c0_i32_0 = arith.constant 0 : i32
    return %c0_i32, %arg0 : i32, i32
  }
}

</mosaic_0001>

<llo_original>
// kernel: _lambda_.7
$region0: #{_lambda_.7}
  #allocation0 [shape = 'u32[]', space=smem, size = 0x4, offset = 0x4, fixed_abs, tag = 'smem constant byte address 0x4 - core index']
  #allocation1 [shape = 'u32[72,128]{1,0:T(1,128)}', space=vmem, size = 0x9000, scoped, tag = 'internal scratch']
  %s0 = inlined_call_operand.vmem [shape: bf16[8,2], index: 0, kind: input, shape index: {}]
  %s1 = inlined_call_operand.hbm [shape: bf16[32,8], index: 1, kind: input, shape index: {}]
  %s2 = inlined_call_operand.hbm [shape: bf16[256,32], index: 2, kind: input, shape index: {}]
  %s3 = inlined_call_operand.vmem [shape: f32[64,1], index: 3, kind: input, shape index: {}]
  %s4 = inlined_call_operand.vmem [shape: f32[64,1], index: 4, kind: input, shape index: {}]
  %s5 = inlined_call_operand.vmem [shape: bf16[256,2], index: 5, kind: output, shape index: {}]
  %s6 = sld [smem:[#allocation0]]
  $region38: #{_lambda_.7} parent=0
    _
  %s8 = ssub.s32 1, %s6
  %s9 = scalar_select 0, %s8, %s6
  $region1: #{_lambda_.7} parent=0
    #allocation2 [shape = 'u8[8192]{0}', space=vmem, size = 0x2000, scoped, tag = 'input window, operand 1, single buffered']
    #allocation3 [shape = 's32[1]{0}', space=sflag, size = 0x4, scoped, tag = 'scoped memory for _lambda_.7']
    #allocation4 [shape = 'u8[65536]{0}', space=vmem, size = 0x10000, scoped, tag = 'input window, operand 2, single buffered']
    #allocation5 [shape = 's32[1]{0}', space=sflag, size = 0x4, scoped, tag = 'scoped memory for _lambda_.7']
    %10 = vsyncpa [#allocation3], 0
    %11 = vsyncpa [#allocation5], 0
    // Predicated region
    $region2: #{_lambda_.7} parent=1 // pred_check
      _
    $region3: #{_lambda_.7} parent=1 // pred_check_branch
      %13 = sbr.rel (0) target = $region5
    $region4: #{_lambda_.7} parent=1 // pred_region
      _
    $region5: #{_lambda_.7} parent=1 // pred_fallthru
      _
    // Predicated region
    $region6: #{_lambda_.7} parent=1 // pred_check
      _
    $region7: #{_lambda_.7} parent=1 // pred_check_branch
      %15 = sbr.rel (0) target = $region9
    $region8: #{_lambda_.7} parent=1 // pred_region
      %17 = vsyncadd [#allocation3], 0
      %s18 = sshll.u32 %s1, 4
      %s19 = int_to_ptr.hbm [resolvable:$true] %s18
      %s20 = sshll.u32 [#allocation2], 4
      %s21 = int_to_ptr.vmem [resolvable:$true] %s20
      %26 = dma.hbm_to_vmem [thread:$0]  %s19, 256, %s21, [#allocation3], 64, 64, 4
    $region9: #{_lambda_.7} parent=1 // pred_fallthru
      _
    // Predicated region
    $region10: #{_lambda_.7} parent=1 // pred_check
      _
    $region11: #{_lambda_.7} parent=1 // pred_check_branch
      %28 = sbr.rel (0) target = $region13
    $region12: #{_lambda_.7} parent=1 // pred_region
      %30 = vsyncadd [#allocation5], 0
      %s31 = sshll.u32 %s2, 4
      %s32 = int_to_ptr.hbm [resolvable:$true] %s31
      %s33 = sshll.u32 [#allocation4], 4
      %s34 = int_to_ptr.vmem [resolvable:$true] %s33
      %39 = dma.hbm_to_vmem [thread:$0]  %s32, 2048, %s34, [#allocation5], 64, 64, 4
    $region13: #{_lambda_.7} parent=1 // pred_fallthru
      _
    // Predicated region
    $region14: #{_lambda_.7} parent=1 // pred_check
      _
    $region15: #{_lambda_.7} parent=1 // pred_check_branch
      %41 = sbr.rel (0) target = $region17
    $region16: #{_lambda_.7} parent=1 // pred_region
      _
    $region17: #{_lambda_.7} parent=1 // pred_fallthru
      _
    // Predicated region
    $region18: #{_lambda_.7} parent=1 // pred_check
      _
    $region19: #{_lambda_.7} parent=1 // pred_check_branch
      %43 = sbr.rel (0) target = $region21
    $region20: #{_lambda_.7} parent=1 // pred_region
      _
    $region21: #{_lambda_.7} parent=1 // pred_fallthru
      _
    // Predicated region
    $region22: #{_lambda_.7} parent=1 // pred_check
      _
    $region23: #{_lambda_.7} parent=1 // pred_check_branch
      %45 = sbr.rel (0) target = $region25
    $region24: #{_lambda_.7} parent=1 // pred_region
      %47 = dma.done [#allocation3], 256
    $region25: #{_lambda_.7} parent=1 // pred_fallthru
      _
    // Predicated region
    $region26: #{_lambda_.7} parent=1 // pred_check
      _
    $region27: #{_lambda_.7} parent=1 // pred_check_branch
      %49 = sbr.rel (0) target = $region29
    $region28: #{_lambda_.7} parent=1 // pred_region
      %51 = dma.done [#allocation5], 2048
    $region29: #{_lambda_.7} parent=1 // pred_fallthru
      _
    %v53 = vld [vmem:[#allocation2] sm:$0xf]
    %v54 = vld [vmem:[#allocation2 + $0x4] sm:$0xf]
    %v55 = vld [vmem:[#allocation2 + $0x8] sm:$0xf]
    %v56 = vld [vmem:[#allocation2 + $0xc] sm:$0xf]
    %v57 = vld [vmem:[%s0] sm:$0xf]
    %v62 = vunpack.c.l.b16 %v53
    %v63 = vunpack.c.l.b16 %v54
    %v64 = vunpack.c.l.b16 %v55
    %v65 = vunpack.c.l.b16 %v56
    %v66 = vpack.c.b16 %v63, %v62
    %v67 = vpack.c.b16 %v65, %v64
    %vm68 = vcmask 64512
    %v70 = vsel %vm68, %v66, 0
    %v73 = vsel %vm68, %v67, 0
    %vm75 = vcmask 1043456
    %v77 = vsel %vm75, %v57, 0
    %79 = vmatpush.bf16.msra.mxu0 0
    %80 = vmatpush.bf16.msra.mxu0 0
    %81 = vmatpush.bf16.msra.mxu0 0
    %82 = vmatpush.bf16.msra.mxu0 0
    %83 = vmatpush.bf16.msra.mxu0 0
    %84 = vmatpush.bf16.msra.mxu0 0
    %85 = vmatpush.bf16.msra.mxu0 0
    %86 = vmatpush.bf16.msra.mxu0 %v77
    %87 = vmatmul.bf16.gmra.mxu0 %v70
    %v88 = vpop.f32.mrf.mxu0
    %v89 = vadd.f32 0.0, %v88
    %v90 = vpop.f32.mrf.mxu0
    %v91 = vadd.f32 0.0, %v90
    %92 = vmatmul.bf16.gmra.mxu0 %v73
    %v93 = vpop.f32.mrf.mxu0
    %v94 = vadd.f32 0.0, %v93
    %v95 = vpop.f32.mrf.mxu0
    %v96 = vadd.f32 0.0, %v95
    %97 = vdwg.mxu0
    %v98 = vld [vmem:[#allocation4] sm:$0xf]
    %v99 = vld [vmem:[#allocation4 + $0x4] sm:$0xf]
    %v100 = vld [vmem:[#allocation4 + $0x8] sm:$0xf]
    %v101 = vld [vmem:[#allocation4 + $0xc] sm:$0xf]
    %v102 = vld [vmem:[#allocation4 + $0x10] sm:$0xf]
    %v103 = vld [vmem:[#allocation4 + $0x14] sm:$0xf]
    %v104 = vld [vmem:[#allocation4 + $0x18] sm:$0xf]
    %v105 = vld [vmem:[#allocation4 + $0x1c] sm:$0xf]
    %v106 = vld [vmem:[#allocation4 + $0x20] sm:$0xf]
    %v107 = vld [vmem:[#allocation4 + $0x24] sm:$0xf]
    %v108 = vld [vmem:[#allocation4 + $0x28] sm:$0xf]
    %v109 = vld [vmem:[#allocation4 + $0x2c] sm:$0xf]
    %v110 = vld [vmem:[#allocation4 + $0x30] sm:$0xf]
    %v111 = vld [vmem:[#allocation4 + $0x34] sm:$0xf]
    %v112 = vld [vmem:[#allocation4 + $0x38] sm:$0xf]
    %v113 = vld [vmem:[#allocation4 + $0x3c] sm:$0xf]
    %v114 = vld [vmem:[#allocation4 + $0x40] sm:$0xf]
    %v115 = vld [vmem:[#allocation4 + $0x44] sm:$0xf]
    %v116 = vld [vmem:[#allocation4 + $0x48] sm:$0xf]
    %v117 = vld [vmem:[#allocation4 + $0x4c] sm:$0xf]
    %v118 = vld [vmem:[#allocation4 + $0x50] sm:$0xf]
    %v119 = vld [vmem:[#allocation4 + $0x54] sm:$0xf]
    %v120 = vld [vmem:[#allocation4 + $0x58] sm:$0xf]
    %v121 = vld [vmem:[#allocation4 + $0x5c] sm:$0xf]
    %v122 = vld [vmem:[#allocation4 + $0x60] sm:$0xf]
    %v123 = vld [vmem:[#allocation4 + $0x64] sm:$0xf]
    %v124 = vld [vmem:[#allocation4 + $0x68] sm:$0xf]
    %v125 = vld [vmem:[#allocation4 + $0x6c] sm:$0xf]
    %v126 = vld [vmem:[#allocation4 + $0x70] sm:$0xf]
    %v127 = vld [vmem:[#allocation4 + $0x74] sm:$0xf]
    %v128 = vld [vmem:[#allocation4 + $0x78] sm:$0xf]
    %v129 = vld [vmem:[#allocation4 + $0x7c] sm:$0xf]
    %v130 = vpack.c.bf16 %v91, %v89
    %v131 = vpack.c.bf16 %v96, %v94
    %v164 = vunpack.c.l.b16 %v98
    %v165 = vunpack.c.l.b16 %v99
    %v166 = vunpack.c.l.b16 %v100
    %v167 = vunpack.c.l.b16 %v101
    %v168 = vunpack.c.l.b16 %v102
    %v169 = vunpack.c.l.b16 %v103
    %v170 = vunpack.c.l.b16 %v104
    %v171 = vunpack.c.l.b16 %v105
    %v172 = vunpack.c.l.b16 %v106
    %v173 = vunpack.c.l.b16 %v107
    %v174 = vunpack.c.l.b16 %v108
    %v175 = vunpack.c.l.b16 %v109
    %v176 = vunpack.c.l.b16 %v110
    %v177 = vunpack.c.l.b16 %v111
    %v178 = vunpack.c.l.b16 %v112
    %v179 = vunpack.c.l.b16 %v113
    %v180 = vunpack.c.l.b16 %v114
    %v181 = vunpack.c.l.b16 %v115
    %v182 = vunpack.c.l.b16 %v116
    %v183 = vunpack.c.l.b16 %v117
    %v184 = vunpack.c.l.b16 %v118
    %v185 = vunpack.c.l.b16 %v119
    %v186 = vunpack.c.l.b16 %v120
    %v187 = vunpack.c.l.b16 %v121
    %v188 = vunpack.c.l.b16 %v122
    %v189 = vunpack.c.l.b16 %v123
    %v190 = vunpack.c.l.b16 %v124
    %v191 = vunpack.c.l.b16 %v125
    %v192 = vunpack.c.l.b16 %v126
    %v193 = vunpack.c.l.b16 %v127
    %v194 = vunpack.c.l.b16 %v128
    %v195 = vunpack.c.l.b16 %v129
    %v196 = vpack.c.b16 %v165, %v164
    %v197 = vpack.c.b16 %v167, %v166
    %v198 = vpack.c.b16 %v169, %v168
    %v199 = vpack.c.b16 %v171, %v170
    %v200 = vpack.c.b16 %v173, %v172
    %v201 = vpack.c.b16 %v175, %v174
    %v202 = vpack.c.b16 %v177, %v176
    %v203 = vpack.c.b16 %v179, %v178
    %v204 = vpack.c.b16 %v181, %v180
    %v205 = vpack.c.b16 %v183, %v182
    %v206 = vpack.c.b16 %v185, %v184
    %v207 = vpack.c.b16 %v187, %v186
    %v208 = vpack.c.b16 %v189, %v188
    %v209 = vpack.c.b16 %v191, %v190
    %v210 = vpack.c.b16 %v193, %v192
    %v211 = vpack.c.b16 %v195, %v194
    %vm212 = vcmask 261120
    %v214 = vsel %vm212, %v196, 0
    %v217 = vsel %vm212, %v197, 0
    %v220 = vsel %vm212, %v198, 0
    %v223 = vsel %vm212, %v199, 0
    %v226 = vsel %vm212, %v200, 0
    %v229 = vsel %vm212, %v201, 0
    %v232 = vsel %vm212, %v202, 0
    %v235 = vsel %vm212, %v203, 0
    %v238 = vsel %vm212, %v204, 0
    %v241 = vsel %vm212, %v205, 0
    %v244 = vsel %vm212, %v206, 0
    %v247 = vsel %vm212, %v207, 0
    %v250 = vsel %vm212, %v208, 0
    %v253 = vsel %vm212, %v209, 0
    %v256 = vsel %vm212, %v210, 0
    %v259 = vsel %vm212, %v211, 0
    %261 = vmatpush.bf16.msra.mxu0 0
    %262 = vmatpush.bf16.msra.mxu0 0
    %263 = vmatpush.bf16.msra.mxu0 0
    %264 = vmatpush.bf16.msra.mxu0 0
    %265 = vmatpush.bf16.msra.mxu0 0
    %266 = vmatpush.bf16.msra.mxu0 0
    %267 = vmatpush.bf16.msra.mxu0 %v131
    %268 = vmatpush.bf16.msra.mxu0 %v130
    %269 = vmatmul.bf16.gmra.mxu0 %v214
    %v270 = vpop.f32.mrf.mxu0
    %v271 = vadd.f32 0.0, %v270
    %v272 = vpop.f32.mrf.mxu0
    %v273 = vadd.f32 0.0, %v272
    %274 = vmatmul.bf16.gmra.mxu0 %v217
    %v275 = vpop.f32.mrf.mxu0
    %v276 = vadd.f32 0.0, %v275
    %v277 = vpop.f32.mrf.mxu0
    %v278 = vadd.f32 0.0, %v277
    %279 = vmatmul.bf16.gmra.mxu0 %v220
    %v280 = vpop.f32.mrf.mxu0
    %v281 = vadd.f32 0.0, %v280
    %v282 = vpop.f32.mrf.mxu0
    %v283 = vadd.f32 0.0, %v282
    %284 = vmatmul.bf16.gmra.mxu0 %v223
    %v285 = vpop.f32.mrf.mxu0
    %v286 = vadd.f32 0.0, %v285
    %v287 = vpop.f32.mrf.mxu0
    %v288 = vadd.f32 0.0, %v287
    %289 = vmatmul.bf16.gmra.mxu0 %v226
    %v290 = vpop.f32.mrf.mxu0
    %v291 = vadd.f32 0.0, %v290
    %v292 = vpop.f32.mrf.mxu0
    %v293 = vadd.f32 0.0, %v292
    %294 = vmatmul.bf16.gmra.mxu0 %v229
    %v295 = vpop.f32.mrf.mxu0
    %v296 = vadd.f32 0.0, %v295
    %v297 = vpop.f32.mrf.mxu0
    %v298 = vadd.f32 0.0, %v297
    %299 = vmatmul.bf16.gmra.mxu0 %v232
    %v300 = vpop.f32.mrf.mxu0
    %v301 = vadd.f32 0.0, %v300
    %v302 = vpop.f32.mrf.mxu0
    %v303 = vadd.f32 0.0, %v302
    %304 = vmatmul.bf16.gmra.mxu0 %v235
    %v305 = vpop.f32.mrf.mxu0
    %v306 = vadd.f32 0.0, %v305
    %v307 = vpop.f32.mrf.mxu0
    %v308 = vadd.f32 0.0, %v307
    %309 = vmatmul.bf16.gmra.mxu0 %v238
    %v310 = vpop.f32.mrf.mxu0
    %v311 = vadd.f32 0.0, %v310
    %v312 = vpop.f32.mrf.mxu0
    %v313 = vadd.f32 0.0, %v312
    %314 = vmatmul.bf16.gmra.mxu0 %v241
    %v315 = vpop.f32.mrf.mxu0
    %v316 = vadd.f32 0.0, %v315
    %v317 = vpop.f32.mrf.mxu0
    %v318 = vadd.f32 0.0, %v317
    %319 = vmatmul.bf16.gmra.mxu0 %v244
    %v320 = vpop.f32.mrf.mxu0
    %v321 = vadd.f32 0.0, %v320
    %v322 = vpop.f32.mrf.mxu0
    %v323 = vadd.f32 0.0, %v322
    %324 = vmatmul.bf16.gmra.mxu0 %v247
    %v325 = vpop.f32.mrf.mxu0
    %v326 = vadd.f32 0.0, %v325
    %v327 = vpop.f32.mrf.mxu0
    %v328 = vadd.f32 0.0, %v327
    %329 = vmatmul.bf16.gmra.mxu0 %v250
    %v330 = vpop.f32.mrf.mxu0
    %v331 = vadd.f32 0.0, %v330
    %v332 = vpop.f32.mrf.mxu0
    %v333 = vadd.f32 0.0, %v332
    %334 = vmatmul.bf16.gmra.mxu0 %v253
    %v335 = vpop.f32.mrf.mxu0
    %v336 = vadd.f32 0.0, %v335
    %v337 = vpop.f32.mrf.mxu0
    %v338 = vadd.f32 0.0, %v337
    %339 = vmatmul.bf16.gmra.mxu0 %v256
    %v340 = vpop.f32.mrf.mxu0
    %v341 = vadd.f32 0.0, %v340
    %v342 = vpop.f32.mrf.mxu0
    %v343 = vadd.f32 0.0, %v342
    %344 = vmatmul.bf16.gmra.mxu0 %v259
    %v345 = vpop.f32.mrf.mxu0
    %v346 = vadd.f32 0.0, %v345
    %v347 = vpop.f32.mrf.mxu0
    %v348 = vadd.f32 0.0, %v347
    %349 = vdwg.mxu0
    %v350 = vld [vmem:[%s3] sm:$0xff]
    %v351 = vld [vmem:[%s3 + $0x8] sm:$0xff]
    %v352 = vld [vmem:[%s3 + $0x10] sm:$0xff]
    %v353 = vld [vmem:[%s3 + $0x18] sm:$0xff]
    %v354 = vld [vmem:[%s3 + $0x20] sm:$0xff]
    %v355 = vld [vmem:[%s3 + $0x28] sm:$0xff]
    %v356 = vld [vmem:[%s3 + $0x30] sm:$0xff]
    %v357 = vld [vmem:[%s3 + $0x38] sm:$0xff]
    %v358 = vld [vmem:[%s4] sm:$0xff]
    %v359 = vld [vmem:[%s4 + $0x8] sm:$0xff]
    %v360 = vld [vmem:[%s4 + $0x10] sm:$0xff]
    %v361 = vld [vmem:[%s4 + $0x18] sm:$0xff]
    %v362 = vld [vmem:[%s4 + $0x20] sm:$0xff]
    %v363 = vld [vmem:[%s4 + $0x28] sm:$0xff]
    %v364 = vld [vmem:[%s4 + $0x30] sm:$0xff]
    %v365 = vld [vmem:[%s4 + $0x38] sm:$0xff]
    %vm366 = vcmask 15360
    %v367 = vsel %vm366, %v271, 0.0
    %368 = vadd.xlane.f32.xlu0 %v367
    %v369 = vpop.xlane.xlu0 %368
    %v370 = vsel %vm366, %v273, 0.0
    %371 = vadd.xlane.f32.xlu0 %v370
    %v372 = vpop.xlane.xlu0 %371
    %v373 = vsel %vm366, %v276, 0.0
    %374 = vadd.xlane.f32.xlu0 %v373
    %v375 = vpop.xlane.xlu0 %374
    %v376 = vsel %vm366, %v278, 0.0
    %377 = vadd.xlane.f32.xlu0 %v376
    %v378 = vpop.xlane.xlu0 %377
    %v379 = vsel %vm366, %v281, 0.0
    %380 = vadd.xlane.f32.xlu0 %v379
    %v381 = vpop.xlane.xlu0 %380
    %v382 = vsel %vm366, %v283, 0.0
    %383 = vadd.xlane.f32.xlu0 %v382
    %v384 = vpop.xlane.xlu0 %383
    %v385 = vsel %vm366, %v286, 0.0
    %386 = vadd.xlane.f32.xlu0 %v385
    %v387 = vpop.xlane.xlu0 %386
    %v388 = vsel %vm366, %v288, 0.0
    %389 = vadd.xlane.f32.xlu0 %v388
    %v390 = vpop.xlane.xlu0 %389
    %v391 = vsel %vm366, %v291, 0.0
    %392 = vadd.xlane.f32.xlu0 %v391
    %v393 = vpop.xlane.xlu0 %392
    %v394 = vsel %vm366, %v293, 0.0
    %395 = vadd.xlane.f32.xlu0 %v394
    %v396 = vpop.xlane.xlu0 %395
    %v397 = vsel %vm366, %v296, 0.0
    %398 = vadd.xlane.f32.xlu0 %v397
    %v399 = vpop.xlane.xlu0 %398
    %v400 = vsel %vm366, %v298, 0.0
    %401 = vadd.xlane.f32.xlu0 %v400
    %v402 = vpop.xlane.xlu0 %401
    %v403 = vsel %vm366, %v301, 0.0
    %404 = vadd.xlane.f32.xlu0 %v403
    %v405 = vpop.xlane.xlu0 %404
    %v406 = vsel %vm366, %v303, 0.0
    %407 = vadd.xlane.f32.xlu0 %v406
    %v408 = vpop.xlane.xlu0 %407
    %v409 = vsel %vm366, %v306, 0.0
    %410 = vadd.xlane.f32.xlu0 %v409
    %v411 = vpop.xlane.xlu0 %410
    %v412 = vsel %vm366, %v308, 0.0
    %413 = vadd.xlane.f32.xlu0 %v412
    %v414 = vpop.xlane.xlu0 %413
    %v415 = vsel %vm366, %v311, 0.0
    %416 = vadd.xlane.f32.xlu0 %v415
    %v417 = vpop.xlane.xlu0 %416
    %v418 = vsel %vm366, %v313, 0.0
    %419 = vadd.xlane.f32.xlu0 %v418
    %v420 = vpop.xlane.xlu0 %419
    %v421 = vsel %vm366, %v316, 0.0
    %422 = vadd.xlane.f32.xlu0 %v421
    %v423 = vpop.xlane.xlu0 %422
    %v424 = vsel %vm366, %v318, 0.0
    %425 = vadd.xlane.f32.xlu0 %v424
    %v426 = vpop.xlane.xlu0 %425
    %v427 = vsel %vm366, %v321, 0.0
    %428 = vadd.xlane.f32.xlu0 %v427
    %v429 = vpop.xlane.xlu0 %428
    %v430 = vsel %vm366, %v323, 0.0
    %431 = vadd.xlane.f32.xlu0 %v430
    %v432 = vpop.xlane.xlu0 %431
    %v433 = vsel %vm366, %v326, 0.0
    %434 = vadd.xlane.f32.xlu0 %v433
    %v435 = vpop.xlane.xlu0 %434
    %v436 = vsel %vm366, %v328, 0.0
    %437 = vadd.xlane.f32.xlu0 %v436
    %v438 = vpop.xlane.xlu0 %437
    %v439 = vsel %vm366, %v331, 0.0
    %440 = vadd.xlane.f32.xlu0 %v439
    %v441 = vpop.xlane.xlu0 %440
    %v442 = vsel %vm366, %v333, 0.0
    %443 = vadd.xlane.f32.xlu0 %v442
    %v444 = vpop.xlane.xlu0 %443
    %v445 = vsel %vm366, %v336, 0.0
    %446 = vadd.xlane.f32.xlu0 %v445
    %v447 = vpop.xlane.xlu0 %446
    %v448 = vsel %vm366, %v338, 0.0
    %449 = vadd.xlane.f32.xlu0 %v448
    %v450 = vpop.xlane.xlu0 %449
    %v451 = vsel %vm366, %v341, 0.0
    %452 = vadd.xlane.f32.xlu0 %v451
    %v453 = vpop.xlane.xlu0 %452
    %v454 = vsel %vm366, %v343, 0.0
    %455 = vadd.xlane.f32.xlu0 %v454
    %v456 = vpop.xlane.xlu0 %455
    %v457 = vsel %vm366, %v346, 0.0
    %458 = vadd.xlane.f32.xlu0 %v457
    %v459 = vpop.xlane.xlu0 %458
    %v460 = vsel %vm366, %v348, 0.0
    %461 = vadd.xlane.f32.xlu0 %v460
    %v462 = vpop.xlane.xlu0 %461
    %v463 = vadd.f32 %v369, %v393
    %v464 = vadd.f32 %v372, %v396
    %v465 = vadd.f32 %v375, %v399
    %v466 = vadd.f32 %v378, %v402
    %v467 = vadd.f32 %v381, %v405
    %v468 = vadd.f32 %v384, %v408
    %v469 = vadd.f32 %v387, %v411
    %v470 = vadd.f32 %v390, %v414
    %v471 = vadd.f32 %v463, %v417
    %v472 = vadd.f32 %v464, %v420
    %v473 = vadd.f32 %v465, %v423
    %v474 = vadd.f32 %v466, %v426
    %v475 = vadd.f32 %v467, %v429
    %v476 = vadd.f32 %v468, %v432
    %v477 = vadd.f32 %v469, %v435
    %v478 = vadd.f32 %v470, %v438
    %v479 = vadd.f32 %v471, %v441
    %v480 = vadd.f32 %v472, %v444
    %v481 = vadd.f32 %v473, %v447
    %v482 = vadd.f32 %v474, %v450
    %v483 = vadd.f32 %v475, %v453
    %v484 = vadd.f32 %v476, %v456
    %v485 = vadd.f32 %v477, %v459
    %v486 = vadd.f32 %v478, %v462
    %v487 = vrcp.pop 8.0
    %v488 = vmul.f32 8.0, %v487
    %v489 = vsub.f32 1.0, %v488
    %v490 = vmul.f32 %v487, %v489
    %v491 = vadd.f32 %v487, %v490
    %vm492 = vweird.f32 %v487
    %v493 = vsel %vm492, %v487, %v491
    %v494 = vmul.f32 %v479, %v493
    %v495 = vmul.f32 %v480, %v493
    %v496 = vmul.f32 %v481, %v493
    %v497 = vmul.f32 %v482, %v493
    %v498 = vmul.f32 %v483, %v493
    %v499 = vmul.f32 %v484, %v493
    %v500 = vmul.f32 %v485, %v493
    %v501 = vmul.f32 %v486, %v493
    %503 = vset.pattern.permute.xlu0 0
    %504 = vperm.xlu0 %503, %v494
    %v505 = vpop.permute.xlu0 %504
    %508 = vset.pattern.permute.xlu0 0
    %509 = vperm.xlu0 %508, %v495
    %v510 = vpop.permute.xlu0 %509
    %513 = vset.pattern.permute.xlu0 0
    %514 = vperm.xlu0 %513, %v496
    %v515 = vpop.permute.xlu0 %514
    %518 = vset.pattern.permute.xlu0 0
    %519 = vperm.xlu0 %518, %v497
    %v520 = vpop.permute.xlu0 %519
    %523 = vset.pattern.permute.xlu0 0
    %524 = vperm.xlu0 %523, %v498
    %v525 = vpop.permute.xlu0 %524
    %528 = vset.pattern.permute.xlu0 0
    %529 = vperm.xlu0 %528, %v499
    %v530 = vpop.permute.xlu0 %529
    %533 = vset.pattern.permute.xlu0 0
    %534 = vperm.xlu0 %533, %v500
    %v535 = vpop.permute.xlu0 %534
    %538 = vset.pattern.permute.xlu0 0
    %539 = vperm.xlu0 %538, %v501
    %v540 = vpop.permute.xlu0 %539
    %v542 = vsub.f32 %v271, %v505
    %v543 = vsub.f32 %v273, %v510
    %v544 = vsub.f32 %v276, %v515
    %v545 = vsub.f32 %v278, %v520
    %v546 = vsub.f32 %v281, %v525
    %v547 = vsub.f32 %v283, %v530
    %v548 = vsub.f32 %v286, %v535
    %v549 = vsub.f32 %v288, %v540
    %v550 = vsub.f32 %v291, %v505
    %v551 = vsub.f32 %v293, %v510
    %v552 = vsub.f32 %v296, %v515
    %v553 = vsub.f32 %v298, %v520
    %v554 = vsub.f32 %v301, %v525
    %v555 = vsub.f32 %v303, %v530
    %v556 = vsub.f32 %v306, %v535
    %v557 = vsub.f32 %v308, %v540
    %v558 = vsub.f32 %v311, %v505
    %v559 = vsub.f32 %v313, %v510
    %v560 = vsub.f32 %v316, %v515
    %v561 = vsub.f32 %v318, %v520
    %v562 = vsub.f32 %v321, %v525
    %v563 = vsub.f32 %v323, %v530
    %v564 = vsub.f32 %v326, %v535
    %v565 = vsub.f32 %v328, %v540
    %v566 = vsub.f32 %v331, %v505
    %v567 = vsub.f32 %v333, %v510
    %v568 = vsub.f32 %v336, %v515
    %v569 = vsub.f32 %v338, %v520
    %v570 = vsub.f32 %v341, %v525
    %v571 = vsub.f32 %v343, %v530
    %v572 = vsub.f32 %v346, %v535
    %v573 = vsub.f32 %v348, %v540
    %v574 = vmul.f32 %v542, %v542
    %v575 = vmul.f32 %v543, %v543
    %v576 = vmul.f32 %v544, %v544
    %v577 = vmul.f32 %v545, %v545
    %v578 = vmul.f32 %v546, %v546
    %v579 = vmul.f32 %v547, %v547
    %v580 = vmul.f32 %v548, %v548
    %v581 = vmul.f32 %v549, %v549
    %v582 = vmul.f32 %v550, %v550
    %v583 = vmul.f32 %v551, %v551
    %v584 = vmul.f32 %v552, %v552
    %v585 = vmul.f32 %v553, %v553
    %v586 = vmul.f32 %v554, %v554
    %v587 = vmul.f32 %v555, %v555
    %v588 = vmul.f32 %v556, %v556
    %v589 = vmul.f32 %v557, %v557
    %v590 = vmul.f32 %v558, %v558
    %v591 = vmul.f32 %v559, %v559
    %v592 = vmul.f32 %v560, %v560
    %v593 = vmul.f32 %v561, %v561
    %v594 = vmul.f32 %v562, %v562
    %v595 = vmul.f32 %v563, %v563
    %v596 = vmul.f32 %v564, %v564
    %v597 = vmul.f32 %v565, %v565
    %v598 = vmul.f32 %v566, %v566
    %v599 = vmul.f32 %v567, %v567
    %v600 = vmul.f32 %v568, %v568
    %v601 = vmul.f32 %v569, %v569
    %v602 = vmul.f32 %v570, %v570
    %v603 = vmul.f32 %v571, %v571
    %v604 = vmul.f32 %v572, %v572
    %v605 = vmul.f32 %v573, %v573
    %v606 = vsel %vm366, %v574, 0.0
    %607 = vadd.xlane.f32.xlu0 %v606
    %v608 = vpop.xlane.xlu0 %607
    %v609 = vsel %vm366, %v575, 0.0
    %610 = vadd.xlane.f32.xlu0 %v609
    %v611 = vpop.xlane.xlu0 %610
    %v612 = vsel %vm366, %v576, 0.0
    %613 = vadd.xlane.f32.xlu0 %v612
    %v614 = vpop.xlane.xlu0 %613
    %v615 = vsel %vm366, %v577, 0.0
    %616 = vadd.xlane.f32.xlu0 %v615
    %v617 = vpop.xlane.xlu0 %616
    %v618 = vsel %vm366, %v578, 0.0
    %619 = vadd.xlane.f32.xlu0 %v618
    %v620 = vpop.xlane.xlu0 %619
    %v621 = vsel %vm366, %v579, 0.0
    %622 = vadd.xlane.f32.xlu0 %v621
    %v623 = vpop.xlane.xlu0 %622
    %v624 = vsel %vm366, %v580, 0.0
    %625 = vadd.xlane.f32.xlu0 %v624
    %v626 = vpop.xlane.xlu0 %625
    %v627 = vsel %vm366, %v581, 0.0
    %628 = vadd.xlane.f32.xlu0 %v627
    %v629 = vpop.xlane.xlu0 %628
    %v630 = vsel %vm366, %v582, 0.0
    %631 = vadd.xlane.f32.xlu0 %v630
    %v632 = vpop.xlane.xlu0 %631
    %v633 = vsel %vm366, %v583, 0.0
    %634 = vadd.xlane.f32.xlu0 %v633
    %v635 = vpop.xlane.xlu0 %634
    %v636 = vsel %vm366, %v584, 0.0
    %637 = vadd.xlane.f32.xlu0 %v636
    %v638 = vpop.xlane.xlu0 %637
    %v639 = vsel %vm366, %v585, 0.0
    %640 = vadd.xlane.f32.xlu0 %v639
    %v641 = vpop.xlane.xlu0 %640
    %v642 = vsel %vm366, %v586, 0.0
    %643 = vadd.xlane.f32.xlu0 %v642
    %v644 = vpop.xlane.xlu0 %643
    %v645 = vsel %vm366, %v587, 0.0
    %646 = vadd.xlane.f32.xlu0 %v645
    %v647 = vpop.xlane.xlu0 %646
    %v648 = vsel %vm366, %v588, 0.0
    %649 = vadd.xlane.f32.xlu0 %v648
    %v650 = vpop.xlane.xlu0 %649
    %v651 = vsel %vm366, %v589, 0.0
    %652 = vadd.xlane.f32.xlu0 %v651
    %v653 = vpop.xlane.xlu0 %652
    %v654 = vsel %vm366, %v590, 0.0
    %655 = vadd.xlane.f32.xlu0 %v654
    %v656 = vpop.xlane.xlu0 %655
    %v657 = vsel %vm366, %v591, 0.0
    %658 = vadd.xlane.f32.xlu0 %v657
    %v659 = vpop.xlane.xlu0 %658
    %v660 = vsel %vm366, %v592, 0.0
    %661 = vadd.xlane.f32.xlu0 %v660
    %v662 = vpop.xlane.xlu0 %661
    %v663 = vsel %vm366, %v593, 0.0
    %664 = vadd.xlane.f32.xlu0 %v663
    %v665 = vpop.xlane.xlu0 %664
    %v666 = vsel %vm366, %v594, 0.0
    %667 = vadd.xlane.f32.xlu0 %v666
    %v668 = vpop.xlane.xlu0 %667
    %v669 = vsel %vm366, %v595, 0.0
    %670 = vadd.xlane.f32.xlu0 %v669
    %v671 = vpop.xlane.xlu0 %670
    %v672 = vsel %vm366, %v596, 0.0
    %673 = vadd.xlane.f32.xlu0 %v672
    %v674 = vpop.xlane.xlu0 %673
    %v675 = vsel %vm366, %v597, 0.0
    %676 = vadd.xlane.f32.xlu0 %v675
    %v677 = vpop.xlane.xlu0 %676
    %v678 = vsel %vm366, %v598, 0.0
    %679 = vadd.xlane.f32.xlu0 %v678
    %v680 = vpop.xlane.xlu0 %679
    %v681 = vsel %vm366, %v599, 0.0
    %682 = vadd.xlane.f32.xlu0 %v681
    %v683 = vpop.xlane.xlu0 %682
    %v684 = vsel %vm366, %v600, 0.0
    %685 = vadd.xlane.f32.xlu0 %v684
    %v686 = vpop.xlane.xlu0 %685
    %v687 = vsel %vm366, %v601, 0.0
    %688 = vadd.xlane.f32.xlu0 %v687
    %v689 = vpop.xlane.xlu0 %688
    %v690 = vsel %vm366, %v602, 0.0
    %691 = vadd.xlane.f32.xlu0 %v690
    %v692 = vpop.xlane.xlu0 %691
    %v693 = vsel %vm366, %v603, 0.0
    %694 = vadd.xlane.f32.xlu0 %v693
    %v695 = vpop.xlane.xlu0 %694
    %v696 = vsel %vm366, %v604, 0.0
    %697 = vadd.xlane.f32.xlu0 %v696
    %v698 = vpop.xlane.xlu0 %697
    %v699 = vsel %vm366, %v605, 0.0
    %700 = vadd.xlane.f32.xlu0 %v699
    %v701 = vpop.xlane.xlu0 %700
    %v702 = vadd.f32 %v608, %v632
    %v703 = vadd.f32 %v611, %v635
    %v704 = vadd.f32 %v614, %v638
    %v705 = vadd.f32 %v617, %v641
    %v706 = vadd.f32 %v620, %v644
    %v707 = vadd.f32 %v623, %v647
    %v708 = vadd.f32 %v626, %v650
    %v709 = vadd.f32 %v629, %v653
    %v710 = vadd.f32 %v702, %v656
    %v711 = vadd.f32 %v703, %v659
    %v712 = vadd.f32 %v704, %v662
    %v713 = vadd.f32 %v705, %v665
    %v714 = vadd.f32 %v706, %v668
    %v715 = vadd.f32 %v707, %v671
    %v716 = vadd.f32 %v708, %v674
    %v717 = vadd.f32 %v709, %v677
    %v718 = vadd.f32 %v710, %v680
    %v719 = vadd.f32 %v711, %v683
    %v720 = vadd.f32 %v712, %v686
    %v721 = vadd.f32 %v713, %v689
    %v722 = vadd.f32 %v714, %v692
    %v723 = vadd.f32 %v715, %v695
    %v724 = vadd.f32 %v716, %v698
    %v725 = vadd.f32 %v717, %v701
    %v726 = vmul.f32 %v718, %v493
    %v727 = vmul.f32 %v719, %v493
    %v728 = vmul.f32 %v720, %v493
    %v729 = vmul.f32 %v721, %v493
    %v730 = vmul.f32 %v722, %v493
    %v731 = vmul.f32 %v723, %v493
    %v732 = vmul.f32 %v724, %v493
    %v733 = vmul.f32 %v725, %v493
    %v734 = vadd.f32 %v726, 1e-05
    %v735 = vadd.f32 %v727, 1e-05
    %v736 = vadd.f32 %v728, 1e-05
    %v737 = vadd.f32 %v729, 1e-05
    %v738 = vadd.f32 %v730, 1e-05
    %v739 = vadd.f32 %v731, 1e-05
    %v740 = vadd.f32 %v732, 1e-05
    %v741 = vadd.f32 %v733, 1e-05
    %v742 = vrsqrt.pop %v734
    %v743 = vmul.f32 %v742, %v734
    %v744 = vmul.f32 %v743, %v742
    %v745 = vmul.f32 0.5, %v744
    %v746 = vsub.f32 1.5, %v745
    %v747 = vmul.f32 %v742, %v746
    %vm748 = vweird.f32 %v734
    %vm749 = vweird.f32 %v742
    %vm750 = vmor %vm748, %vm749
    %v751 = vsel %vm750, %v742, %v747
    %v752 = vrsqrt.pop %v735
    %v753 = vmul.f32 %v752, %v735
    %v754 = vmul.f32 %v753, %v752
    %v755 = vmul.f32 0.5, %v754
    %v756 = vsub.f32 1.5, %v755
    %v757 = vmul.f32 %v752, %v756
    %vm758 = vweird.f32 %v735
    %vm759 = vweird.f32 %v752
    %vm760 = vmor %vm758, %vm759
    %v761 = vsel %vm760, %v752, %v757
    %v762 = vrsqrt.pop %v736
    %v763 = vmul.f32 %v762, %v736
    %v764 = vmul.f32 %v763, %v762
    %v765 = vmul.f32 0.5, %v764
    %v766 = vsub.f32 1.5, %v765
    %v767 = vmul.f32 %v762, %v766
    %vm768 = vweird.f32 %v736
    %vm769 = vweird.f32 %v762
    %vm770 = vmor %vm768, %vm769
    %v771 = vsel %vm770, %v762, %v767
    %v772 = vrsqrt.pop %v737
    %v773 = vmul.f32 %v772, %v737
    %v774 = vmul.f32 %v773, %v772
    %v775 = vmul.f32 0.5, %v774
    %v776 = vsub.f32 1.5, %v775
    %v777 = vmul.f32 %v772, %v776
    %vm778 = vweird.f32 %v737
    %vm779 = vweird.f32 %v772
    %vm780 = vmor %vm778, %vm779
    %v781 = vsel %vm780, %v772, %v777
    %v782 = vrsqrt.pop %v738
    %v783 = vmul.f32 %v782, %v738
    %v784 = vmul.f32 %v783, %v782
    %v785 = vmul.f32 0.5, %v784
    %v786 = vsub.f32 1.5, %v785
    %v787 = vmul.f32 %v782, %v786
    %vm788 = vweird.f32 %v738
    %vm789 = vweird.f32 %v782
    %vm790 = vmor %vm788, %vm789
    %v791 = vsel %vm790, %v782, %v787
    %v792 = vrsqrt.pop %v739
    %v793 = vmul.f32 %v792, %v739
    %v794 = vmul.f32 %v793, %v792
    %v795 = vmul.f32 0.5, %v794
    %v796 = vsub.f32 1.5, %v795
    %v797 = vmul.f32 %v792, %v796
    %vm798 = vweird.f32 %v739
    %vm799 = vweird.f32 %v792
    %vm800 = vmor %vm798, %vm799
    %v801 = vsel %vm800, %v792, %v797
    %v802 = vrsqrt.pop %v740
    %v803 = vmul.f32 %v802, %v740
    %v804 = vmul.f32 %v803, %v802
    %v805 = vmul.f32 0.5, %v804
    %v806 = vsub.f32 1.5, %v805
    %v807 = vmul.f32 %v802, %v806
    %vm808 = vweird.f32 %v740
    %vm809 = vweird.f32 %v802
    %vm810 = vmor %vm808, %vm809
    %v811 = vsel %vm810, %v802, %v807
    %v812 = vrsqrt.pop %v741
    %v813 = vmul.f32 %v812, %v741
    %v814 = vmul.f32 %v813, %v812
    %v815 = vmul.f32 0.5, %v814
    %v816 = vsub.f32 1.5, %v815
    %v817 = vmul.f32 %v812, %v816
    %vm818 = vweird.f32 %v741
    %vm819 = vweird.f32 %v812
    %vm820 = vmor %vm818, %vm819
    %v821 = vsel %vm820, %v812, %v817
    %v822 = vmul.f32 %v751, %v350
    %v823 = vmul.f32 %v761, %v351
    %v824 = vmul.f32 %v771, %v352
    %v825 = vmul.f32 %v781, %v353
    %v826 = vmul.f32 %v791, %v354
    %v827 = vmul.f32 %v801, %v355
    %v828 = vmul.f32 %v811, %v356
    %v829 = vmul.f32 %v821, %v357
    %831 = vset.pattern.permute.xlu0 0
    %832 = vperm.xlu0 %831, %v822
    %v833 = vpop.permute.xlu0 %832
    %836 = vset.pattern.permute.xlu0 0
    %837 = vperm.xlu0 %836, %v823
    %v838 = vpop.permute.xlu0 %837
    %841 = vset.pattern.permute.xlu0 0
    %842 = vperm.xlu0 %841, %v824
    %v843 = vpop.permute.xlu0 %842
    %846 = vset.pattern.permute.xlu0 0
    %847 = vperm.xlu0 %846, %v825
    %v848 = vpop.permute.xlu0 %847
    %851 = vset.pattern.permute.xlu0 0
    %852 = vperm.xlu0 %851, %v826
    %v853 = vpop.permute.xlu0 %852
    %856 = vset.pattern.permute.xlu0 0
    %857 = vperm.xlu0 %856, %v827
    %v858 = vpop.permute.xlu0 %857
    %861 = vset.pattern.permute.xlu0 0
    %862 = vperm.xlu0 %861, %v828
    %v863 = vpop.permute.xlu0 %862
    %866 = vset.pattern.permute.xlu0 0
    %867 = vperm.xlu0 %866, %v829
    %v868 = vpop.permute.xlu0 %867
    %v870 = vmul.f32 %v542, %v833
    %v871 = vmul.f32 %v543, %v838
    %v872 = vmul.f32 %v544, %v843
    %v873 = vmul.f32 %v545, %v848
    %v874 = vmul.f32 %v546, %v853
    %v875 = vmul.f32 %v547, %v858
    %v876 = vmul.f32 %v548, %v863
    %v877 = vmul.f32 %v549, %v868
    %v878 = vmul.f32 %v550, %v833
    %v879 = vmul.f32 %v551, %v838
    %v880 = vmul.f32 %v552, %v843
    %v881 = vmul.f32 %v553, %v848
    %v882 = vmul.f32 %v554, %v853
    %v883 = vmul.f32 %v555, %v858
    %v884 = vmul.f32 %v556, %v863
    %v885 = vmul.f32 %v557, %v868
    %v886 = vmul.f32 %v558, %v833
    %v887 = vmul.f32 %v559, %v838
    %v888 = vmul.f32 %v560, %v843
    %v889 = vmul.f32 %v561, %v848
    %v890 = vmul.f32 %v562, %v853
    %v891 = vmul.f32 %v563, %v858
    %v892 = vmul.f32 %v564, %v863
    %v893 = vmul.f32 %v565, %v868
    %v894 = vmul.f32 %v566, %v833
    %v895 = vmul.f32 %v567, %v838
    %v896 = vmul.f32 %v568, %v843
    %v897 = vmul.f32 %v569, %v848
    %v898 = vmul.f32 %v570, %v853
    %v899 = vmul.f32 %v571, %v858
    %v900 = vmul.f32 %v572, %v863
    %v901 = vmul.f32 %v573, %v868
    %903 = vset.pattern.permute.xlu0 0
    %904 = vperm.xlu0 %903, %v358
    %v905 = vpop.permute.xlu0 %904
    %908 = vset.pattern.permute.xlu0 0
    %909 = vperm.xlu0 %908, %v359
    %v910 = vpop.permute.xlu0 %909
    %913 = vset.pattern.permute.xlu0 0
    %914 = vperm.xlu0 %913, %v360
    %v915 = vpop.permute.xlu0 %914
    %918 = vset.pattern.permute.xlu0 0
    %919 = vperm.xlu0 %918, %v361
    %v920 = vpop.permute.xlu0 %919
    %923 = vset.pattern.permute.xlu0 0
    %924 = vperm.xlu0 %923, %v362
    %v925 = vpop.permute.xlu0 %924
    %928 = vset.pattern.permute.xlu0 0
    %929 = vperm.xlu0 %928, %v363
    %v930 = vpop.permute.xlu0 %929
    %933 = vset.pattern.permute.xlu0 0
    %934 = vperm.xlu0 %933, %v364
    %v935 = vpop.permute.xlu0 %934
    %938 = vset.pattern.permute.xlu0 0
    %939 = vperm.xlu0 %938, %v365
    %v940 = vpop.permute.xlu0 %939
    %v942 = vadd.f32 %v870, %v905
    %v943 = vadd.f32 %v871, %v910
    %v944 = vadd.f32 %v872, %v915
    %v945 = vadd.f32 %v873, %v920
    %v946 = vadd.f32 %v874, %v925
    %v947 = vadd.f32 %v875, %v930
    %v948 = vadd.f32 %v876, %v935
    %v949 = vadd.f32 %v877, %v940
    %v950 = vadd.f32 %v878, %v905
    %v951 = vadd.f32 %v879, %v910
    %v952 = vadd.f32 %v880, %v915
    %v953 = vadd.f32 %v881, %v920
    %v954 = vadd.f32 %v882, %v925
    %v955 = vadd.f32 %v883, %v930
    %v956 = vadd.f32 %v884, %v935
    %v957 = vadd.f32 %v885, %v940
    %v958 = vadd.f32 %v886, %v905
    %v959 = vadd.f32 %v887, %v910
    %v960 = vadd.f32 %v888, %v915
    %v961 = vadd.f32 %v889, %v920
    %v962 = vadd.f32 %v890, %v925
    %v963 = vadd.f32 %v891, %v930
    %v964 = vadd.f32 %v892, %v935
    %v965 = vadd.f32 %v893, %v940
    %v966 = vadd.f32 %v894, %v905
    %v967 = vadd.f32 %v895, %v910
    %v968 = vadd.f32 %v896, %v915
    %v969 = vadd.f32 %v897, %v920
    %v970 = vadd.f32 %v898, %v925
    %v971 = vadd.f32 %v899, %v930
    %v972 = vadd.f32 %v900, %v935
    %v973 = vadd.f32 %v901, %v940
    %vm974 = vcmp.gt.f32.partialorder %v942, 0.0
    %vm975 = vcmp.gt.f32.partialorder %v943, 0.0
    %vm976 = vcmp.gt.f32.partialorder %v944, 0.0
    %vm977 = vcmp.gt.f32.partialorder %v945, 0.0
    %vm978 = vcmp.gt.f32.partialorder %v946, 0.0
    %vm979 = vcmp.gt.f32.partialorder %v947, 0.0
    %vm980 = vcmp.gt.f32.partialorder %v948, 0.0
    %vm981 = vcmp.gt.f32.partialorder %v949, 0.0
    %vm982 = vcmp.gt.f32.partialorder %v950, 0.0
    %vm983 = vcmp.gt.f32.partialorder %v951, 0.0
    %vm984 = vcmp.gt.f32.partialorder %v952, 0.0
    %vm985 = vcmp.gt.f32.partialorder %v953, 0.0
    %vm986 = vcmp.gt.f32.partialorder %v954, 0.0
    %vm987 = vcmp.gt.f32.partialorder %v955, 0.0
    %vm988 = vcmp.gt.f32.partialorder %v956, 0.0
    %vm989 = vcmp.gt.f32.partialorder %v957, 0.0
    %vm990 = vcmp.gt.f32.partialorder %v958, 0.0
    %vm991 = vcmp.gt.f32.partialorder %v959, 0.0
    %vm992 = vcmp.gt.f32.partialorder %v960, 0.0
    %vm993 = vcmp.gt.f32.partialorder %v961, 0.0
    %vm994 = vcmp.gt.f32.partialorder %v962, 0.0
    %vm995 = vcmp.gt.f32.partialorder %v963, 0.0
    %vm996 = vcmp.gt.f32.partialorder %v964, 0.0
    %vm997 = vcmp.gt.f32.partialorder %v965, 0.0
    %vm998 = vcmp.gt.f32.partialorder %v966, 0.0
    %vm999 = vcmp.gt.f32.partialorder %v967, 0.0
    %vm1000 = vcmp.gt.f32.partialorder %v968, 0.0
    %vm1001 = vcmp.gt.f32.partialorder %v969, 0.0
    %vm1002 = vcmp.gt.f32.partialorder %v970, 0.0
    %vm1003 = vcmp.gt.f32.partialorder %v971, 0.0
    %vm1004 = vcmp.gt.f32.partialorder %v972, 0.0
    %vm1005 = vcmp.gt.f32.partialorder %v973, 0.0
    %v1006 = vmul.f32 %v942, 0.2
    %v1007 = vmul.f32 %v943, 0.2
    %v1008 = vmul.f32 %v944, 0.2
    %v1009 = vmul.f32 %v945, 0.2
    %v1010 = vmul.f32 %v946, 0.2
    %v1011 = vmul.f32 %v947, 0.2
    %v1012 = vmul.f32 %v948, 0.2
    %v1013 = vmul.f32 %v949, 0.2
    %v1014 = vmul.f32 %v950, 0.2
    %v1015 = vmul.f32 %v951, 0.2
    %v1016 = vmul.f32 %v952, 0.2
    %v1017 = vmul.f32 %v953, 0.2
    %v1018 = vmul.f32 %v954, 0.2
    %v1019 = vmul.f32 %v955, 0.2
    %v1020 = vmul.f32 %v956, 0.2
    %v1021 = vmul.f32 %v957, 0.2
    %v1022 = vmul.f32 %v958, 0.2
    %v1023 = vmul.f32 %v959, 0.2
    %v1024 = vmul.f32 %v960, 0.2
    %v1025 = vmul.f32 %v961, 0.2
    %v1026 = vmul.f32 %v962, 0.2
    %v1027 = vmul.f32 %v963, 0.2
    %v1028 = vmul.f32 %v964, 0.2
    %v1029 = vmul.f32 %v965, 0.2
    %v1030 = vmul.f32 %v966, 0.2
    %v1031 = vmul.f32 %v967, 0.2
    %v1032 = vmul.f32 %v968, 0.2
    %v1033 = vmul.f32 %v969, 0.2
    %v1034 = vmul.f32 %v970, 0.2
    %v1035 = vmul.f32 %v971, 0.2
    %v1036 = vmul.f32 %v972, 0.2
    %v1037 = vmul.f32 %v973, 0.2
    %v1038 = vsel %vm974, %v942, %v1006
    %v1039 = vsel %vm975, %v943, %v1007
    %v1040 = vsel %vm976, %v944, %v1008
    %v1041 = vsel %vm977, %v945, %v1009
    %v1042 = vsel %vm978, %v946, %v1010
    %v1043 = vsel %vm979, %v947, %v1011
    %v1044 = vsel %vm980, %v948, %v1012
    %v1045 = vsel %vm981, %v949, %v1013
    %v1046 = vsel %vm982, %v950, %v1014
    %v1047 = vsel %vm983, %v951, %v1015
    %v1048 = vsel %vm984, %v952, %v1016
    %v1049 = vsel %vm985, %v953, %v1017
    %v1050 = vsel %vm986, %v954, %v1018
    %v1051 = vsel %vm987, %v955, %v1019
    %v1052 = vsel %vm988, %v956, %v1020
    %v1053 = vsel %vm989, %v957, %v1021
    %v1054 = vsel %vm990, %v958, %v1022
    %v1055 = vsel %vm991, %v959, %v1023
    %v1056 = vsel %vm992, %v960, %v1024
    %v1057 = vsel %vm993, %v961, %v1025
    %v1058 = vsel %vm994, %v962, %v1026
    %v1059 = vsel %vm995, %v963, %v1027
    %v1060 = vsel %vm996, %v964, %v1028
    %v1061 = vsel %vm997, %v965, %v1029
    %v1062 = vsel %vm998, %v966, %v1030
    %v1063 = vsel %vm999, %v967, %v1031
    %v1064 = vsel %vm1000, %v968, %v1032
    %v1065 = vsel %vm1001, %v969, %v1033
    %v1066 = vsel %vm1002, %v970, %v1034
    %v1067 = vsel %vm1003, %v971, %v1035
    %v1068 = vsel %vm1004, %v972, %v1036
    %v1069 = vsel %vm1005, %v973, %v1037
    %v1070 = vpack.c.bf16 %v1038, %v1038
    %v1071 = vpack.c.bf16 %v1039, %v1039
    %v1072 = vpack.c.bf16 %v1040, %v1040
    %v1073 = vpack.c.bf16 %v1041, %v1041
    %v1074 = vpack.c.bf16 %v1042, %v1042
    %v1075 = vpack.c.bf16 %v1043, %v1043
    %v1076 = vpack.c.bf16 %v1044, %v1044
    %v1077 = vpack.c.bf16 %v1045, %v1045
    %v1078 = vpack.c.bf16 %v1046, %v1046
    %v1079 = vpack.c.bf16 %v1047, %v1047
    %v1080 = vpack.c.bf16 %v1048, %v1048
    %v1081 = vpack.c.bf16 %v1049, %v1049
    %v1082 = vpack.c.bf16 %v1050, %v1050
    %v1083 = vpack.c.bf16 %v1051, %v1051
    %v1084 = vpack.c.bf16 %v1052, %v1052
    %v1085 = vpack.c.bf16 %v1053, %v1053
    %v1086 = vpack.c.bf16 %v1054, %v1054
    %v1087 = vpack.c.bf16 %v1055, %v1055
    %v1088 = vpack.c.bf16 %v1056, %v1056
    %v1089 = vpack.c.bf16 %v1057, %v1057
    %v1090 = vpack.c.bf16 %v1058, %v1058
    %v1091 = vpack.c.bf16 %v1059, %v1059
    %v1092 = vpack.c.bf16 %v1060, %v1060
    %v1093 = vpack.c.bf16 %v1061, %v1061
    %v1094 = vpack.c.bf16 %v1062, %v1062
    %v1095 = vpack.c.bf16 %v1063, %v1063
    %v1096 = vpack.c.bf16 %v1064, %v1064
    %v1097 = vpack.c.bf16 %v1065, %v1065
    %v1098 = vpack.c.bf16 %v1066, %v1066
    %v1099 = vpack.c.bf16 %v1067, %v1067
    %v1100 = vpack.c.bf16 %v1068, %v1068
    %v1101 = vpack.c.bf16 %v1069, %v1069
    %vm1102 = vcmask 11264
    %1103 = vst.msk [vmem:[%s5] sm:$0xf] %vm1102, %v1070
    %1104 = vst.msk [vmem:[%s5 + $0x4] sm:$0xf] %vm1102, %v1071
    %1105 = vst.msk [vmem:[%s5 + $0x8] sm:$0xf] %vm1102, %v1072
    %1106 = vst.msk [vmem:[%s5 + $0xc] sm:$0xf] %vm1102, %v1073
    %1107 = vst.msk [vmem:[%s5 + $0x10] sm:$0xf] %vm1102, %v1074
    %1108 = vst.msk [vmem:[%s5 + $0x14] sm:$0xf] %vm1102, %v1075
    %1109 = vst.msk [vmem:[%s5 + $0x18] sm:$0xf] %vm1102, %v1076
    %1110 = vst.msk [vmem:[%s5 + $0x1c] sm:$0xf] %vm1102, %v1077
    %1111 = vst.msk [vmem:[%s5 + $0x20] sm:$0xf] %vm1102, %v1078
    %1112 = vst.msk [vmem:[%s5 + $0x24] sm:$0xf] %vm1102, %v1079
    %1113 = vst.msk [vmem:[%s5 + $0x28] sm:$0xf] %vm1102, %v1080
    %1114 = vst.msk [vmem:[%s5 + $0x2c] sm:$0xf] %vm1102, %v1081
    %1115 = vst.msk [vmem:[%s5 + $0x30] sm:$0xf] %vm1102, %v1082
    %1116 = vst.msk [vmem:[%s5 + $0x34] sm:$0xf] %vm1102, %v1083
    %1117 = vst.msk [vmem:[%s5 + $0x38] sm:$0xf] %vm1102, %v1084
    %1118 = vst.msk [vmem:[%s5 + $0x3c] sm:$0xf] %vm1102, %v1085
    %1119 = vst.msk [vmem:[%s5 + $0x40] sm:$0xf] %vm1102, %v1086
    %1120 = vst.msk [vmem:[%s5 + $0x44] sm:$0xf] %vm1102, %v1087
    %1121 = vst.msk [vmem:[%s5 + $0x48] sm:$0xf] %vm1102, %v1088
    %1122 = vst.msk [vmem:[%s5 + $0x4c] sm:$0xf] %vm1102, %v1089
    %1123 = vst.msk [vmem:[%s5 + $0x50] sm:$0xf] %vm1102, %v1090
    %1124 = vst.msk [vmem:[%s5 + $0x54] sm:$0xf] %vm1102, %v1091
    %1125 = vst.msk [vmem:[%s5 + $0x58] sm:$0xf] %vm1102, %v1092
    %1126 = vst.msk [vmem:[%s5 + $0x5c] sm:$0xf] %vm1102, %v1093
    %1127 = vst.msk [vmem:[%s5 + $0x60] sm:$0xf] %vm1102, %v1094
    %1128 = vst.msk [vmem:[%s5 + $0x64] sm:$0xf] %vm1102, %v1095
    %1129 = vst.msk [vmem:[%s5 + $0x68] sm:$0xf] %vm1102, %v1096
    %1130 = vst.msk [vmem:[%s5 + $0x6c] sm:$0xf] %vm1102, %v1097
    %1131 = vst.msk [vmem:[%s5 + $0x70] sm:$0xf] %vm1102, %v1098
    %1132 = vst.msk [vmem:[%s5 + $0x74] sm:$0xf] %vm1102, %v1099
    %1133 = vst.msk [vmem:[%s5 + $0x78] sm:$0xf] %vm1102, %v1100
    %1134 = vst.msk [vmem:[%s5 + $0x7c] sm:$0xf] %vm1102, %v1101
    // Predicated region
    $region30: #{_lambda_.7} parent=1 // pred_check
      _
    $region31: #{_lambda_.7} parent=1 // pred_check_branch
      %1136 = sbr.rel (0) target = $region33
    $region32: #{_lambda_.7} parent=1 // pred_region
      _
    $region33: #{_lambda_.7} parent=1 // pred_fallthru
      _
    // Predicated region
    $region34: #{_lambda_.7} parent=1 // pred_check
      _
    $region35: #{_lambda_.7} parent=1 // pred_check_branch
      %1138 = sbr.rel (0) target = $region37
    $region36: #{_lambda_.7} parent=1 // pred_region
      _
    $region37: #{_lambda_.7} parent=1 // pred_fallthru
      _
    %1139 = vsyncpa [#allocation3], 1
    %1140 = vsyncpa [#allocation5], 1

// kernel: _lambda_.8
$region0: #{_lambda_.8}
  #allocation0 [shape = 'u32[]', space=smem, size = 0x4, offset = 0x4, fixed_abs, tag = 'smem constant byte address 0x4 - core index']
  #allocation1 [shape = 'u32[72,128]{1,0:T(1,128)}', space=vmem, size = 0x9000, scoped, tag = 'internal scratch']
  %s0 = inlined_call_operand.hbm [shape: bf16[128,576], index: 0, kind: input, shape index: {}]
  %s1 = inlined_call_operand.vmem [shape: bf16[576,8], index: 1, kind: input, shape index: {}]
  %s2 = inlined_call_operand.vmem [shape: f32[32,1], index: 2, kind: input, shape index: {}]
  %s3 = inlined_call_operand.vmem [shape: f32[32,1], index: 3, kind: input, shape index: {}]
  %s4 = inlined_call_operand.vmem [shape: bf16[128,8], index: 4, kind: output, shape index: {}]
  %s5 = sld [smem:[#allocation0]]
  $region30: #{_lambda_.8} parent=0
    _
  %s7 = ssub.s32 1, %s5
  %s8 = scalar_select 0, %s7, %s5
  $region1: #{_lambda_.8} parent=0
    #allocation2 [shape = 'u8[163840]{0}', space=vmem, size = 0x28000, scoped, tag = 'input window, operand 0, single buffered']
    #allocation3 [shape = 's32[1]{0}', space=sflag, size = 0x4, scoped, tag = 'scoped memory for _lambda_.8']
    %9 = vsyncpa [#allocation3], 0
    // Predicated region
    $region2: #{_lambda_.8} parent=1 // pred_check
      _
    $region3: #{_lambda_.8} parent=1 // pred_check_branch
      %11 = sbr.rel (0) target = $region5
    $region4: #{_lambda_.8} parent=1 // pred_region
      %13 = vsyncadd [#allocation3], 0
      %s14 = sshll.u32 %s0, 4
      %s15 = int_to_ptr.hbm [resolvable:$true] %s14
      %s16 = sshll.u32 [#allocation2], 4
      %s17 = int_to_ptr.vmem [resolvable:$true] %s16
      %22 = dma.hbm_to_vmem [thread:$0]  %s15, 5120, %s17, [#allocation3], 320, 320, 20
    $region5: #{_lambda_.8} parent=1 // pred_fallthru
      _
    // Predicated region
    $region6: #{_lambda_.8} parent=1 // pred_check
      _
    $region7: #{_lambda_.8} parent=1 // pred_check_branch
      %24 = sbr.rel (0) target = $region9
    $region8: #{_lambda_.8} parent=1 // pred_region
      _
    $region9: #{_lambda_.8} parent=1 // pred_fallthru
      _
    // Predicated region
    $region10: #{_lambda_.8} parent=1 // pred_check
      _
    $region11: #{_lambda_.8} parent=1 // pred_check_branch
      %26 = sbr.rel (0) target = $region13
    $region12: #{_lambda_.8} parent=1 // pred_region
      _
    $region13: #{_lambda_.8} parent=1 // pred_fallthru
      _
    // Predicated region
    $region14: #{_lambda_.8} parent=1 // pred_check
      _
    $region15: #{_lambda_.8} parent=1 // pred_check_branch
      %28 = sbr.rel (0) target = $region17
    $region16: #{_lambda_.8} parent=1 // pred_region
      _
    $region17: #{_lambda_.8} parent=1 // pred_fallthru
      _
    // Predicated region
    $region18: #{_lambda_.8} parent=1 // pred_check
      _
    $region19: #{_lambda_.8} parent=1 // pred_check_branch
      %30 = sbr.rel (0) target = $region21
    $region20: #{_lambda_.8} parent=1 // pred_region
      %32 = dma.done [#allocation3], 5120
    $region21: #{_lambda_.8} parent=1 // pred_fallthru
      _
    %v34 = vld [vmem:[#allocation2] sm:$0xff]
    %v35 = vld [vmem:[#allocation2 + $0x8] sm:$0xff]
    %v36 = vld [vmem:[#allocation2 + $0x10] sm:$0xf]
    %v37 = vld [vmem:[#allocation2 + $0x14] sm:$0xff]
    %v38 = vld [vmem:[#allocation2 + $0x1c] sm:$0xff]
    %v39 = vld [vmem:[#allocation2 + $0x24] sm:$0xf]
    %v40 = vld [vmem:[#allocation2 + $0x28] sm:$0xff]
    %v41 = vld [vmem:[#allocation2 + $0x30] sm:$0xff]
    %v42 = vld [vmem:[#allocation2 + $0x38] sm:$0xf]
    %v43 = vld [vmem:[#allocation2 + $0x3c] sm:$0xff]
    %v44 = vld [vmem:[#allocation2 + $0x44] sm:$0xff]
    %v45 = vld [vmem:[#allocation2 + $0x4c] sm:$0xf]
    %v46 = vld [vmem:[#allocation2 + $0x50] sm:$0xff]
    %v47 = vld [vmem:[#allocation2 + $0x58] sm:$0xff]
    %v48 = vld [vmem:[#allocation2 + $0x60] sm:$0xf]
    %v49 = vld [vmem:[#allocation2 + $0x64] sm:$0xff]
    %v50 = vld [vmem:[#allocation2 + $0x6c] sm:$0xff]
    %v51 = vld [vmem:[#allocation2 + $0x74] sm:$0xf]
    %v52 = vld [vmem:[#allocation2 + $0x78] sm:$0xff]
    %v53 = vld [vmem:[#allocation2 + $0x80] sm:$0xff]
    %v54 = vld [vmem:[#allocation2 + $0x88] sm:$0xf]
    %v55 = vld [vmem:[#allocation2 + $0x8c] sm:$0xff]
    %v56 = vld [vmem:[#allocation2 + $0x94] sm:$0xff]
    %v57 = vld [vmem:[#allocation2 + $0x9c] sm:$0xf]
    %v58 = vld [vmem:[#allocation2 + $0xa0] sm:$0xff]
    %v59 = vld [vmem:[#allocation2 + $0xa8] sm:$0xff]
    %v60 = vld [vmem:[#allocation2 + $0xb0] sm:$0xf]
    %v61 = vld [vmem:[#allocation2 + $0xb4] sm:$0xff]
    %v62 = vld [vmem:[#allocation2 + $0xbc] sm:$0xff]
    %v63 = vld [vmem:[#allocation2 + $0xc4] sm:$0xf]
    %v64 = vld [vmem:[#allocation2 + $0xc8] sm:$0xff]
    %v65 = vld [vmem:[#allocation2 + $0xd0] sm:$0xff]
    %v66 = vld [vmem:[#allocation2 + $0xd8] sm:$0xf]
    %v67 = vld [vmem:[#allocation2 + $0xdc] sm:$0xff]
    %v68 = vld [vmem:[#allocation2 + $0xe4] sm:$0xff]
    %v69 = vld [vmem:[#allocation2 + $0xec] sm:$0xf]
    %v70 = vld [vmem:[#allocation2 + $0xf0] sm:$0xff]
    %v71 = vld [vmem:[#allocation2 + $0xf8] sm:$0xff]
    %v72 = vld [vmem:[#allocation2 + $0x100] sm:$0xf]
    %v73 = vld [vmem:[#allocation2 + $0x104] sm:$0xff]
    %v74 = vld [vmem:[#allocation2 + $0x10c] sm:$0xff]
    %v75 = vld [vmem:[#allocation2 + $0x114] sm:$0xf]
    %v76 = vld [vmem:[#allocation2 + $0x118] sm:$0xff]
    %v77 = vld [vmem:[#allocation2 + $0x120] sm:$0xff]
    %v78 = vld [vmem:[#allocation2 + $0x128] sm:$0xf]
    %v79 = vld [vmem:[#allocation2 + $0x12c] sm:$0xff]
    %v80 = vld [vmem:[#allocation2 + $0x134] sm:$0xff]
    %v81 = vld [vmem:[#allocation2 + $0x13c] sm:$0xf]
    %v82 = vld [vmem:[%s1] sm:$0xf]
    %v83 = vld [vmem:[%s1 + $0x4] sm:$0xf]
    %v84 = vld [vmem:[%s1 + $0x8] sm:$0xf]
    %v85 = vld [vmem:[%s1 + $0xc] sm:$0xf]
    %v86 = vld [vmem:[%s1 + $0x10] sm:$0xf]
    %v87 = vld [vmem:[%s1 + $0x14] sm:$0xf]
    %v88 = vld [vmem:[%s1 + $0x18] sm:$0xf]
    %v89 = vld [vmem:[%s1 + $0x1c] sm:$0xf]
    %v90 = vld [vmem:[%s1 + $0x20] sm:$0xf]
    %v91 = vld [vmem:[%s1 + $0x24] sm:$0xf]
    %v92 = vld [vmem:[%s1 + $0x28] sm:$0xf]
    %v93 = vld [vmem:[%s1 + $0x2c] sm:$0xf]
    %v94 = vld [vmem:[%s1 + $0x30] sm:$0xf]
    %v95 = vld [vmem:[%s1 + $0x34] sm:$0xf]
    %v96 = vld [vmem:[%s1 + $0x38] sm:$0xf]
    %v97 = vld [vmem:[%s1 + $0x3c] sm:$0xf]
    %v98 = vld [vmem:[%s1 + $0x40] sm:$0xf]
    %v99 = vld [vmem:[%s1 + $0x44] sm:$0xf]
    %v100 = vld [vmem:[%s1 + $0x48] sm:$0xf]
    %v101 = vld [vmem:[%s1 + $0x4c] sm:$0xf]
    %v102 = vld [vmem:[%s1 + $0x50] sm:$0xf]
    %v103 = vld [vmem:[%s1 + $0x54] sm:$0xf]
    %v104 = vld [vmem:[%s1 + $0x58] sm:$0xf]
    %v105 = vld [vmem:[%s1 + $0x5c] sm:$0xf]
    %v106 = vld [vmem:[%s1 + $0x60] sm:$0xf]
    %v107 = vld [vmem:[%s1 + $0x64] sm:$0xf]
    %v108 = vld [vmem:[%s1 + $0x68] sm:$0xf]
    %v109 = vld [vmem:[%s1 + $0x6c] sm:$0xf]
    %v110 = vld [vmem:[%s1 + $0x70] sm:$0xf]
    %v111 = vld [vmem:[%s1 + $0x74] sm:$0xf]
    %v112 = vld [vmem:[%s1 + $0x78] sm:$0xf]
    %v113 = vld [vmem:[%s1 + $0x7c] sm:$0xf]
    %v114 = vld [vmem:[%s1 + $0x80] sm:$0xf]
    %v115 = vld [vmem:[%s1 + $0x84] sm:$0xf]
    %v116 = vld [vmem:[%s1 + $0x88] sm:$0xf]
    %v117 = vld [vmem:[%s1 + $0x8c] sm:$0xf]
    %v118 = vld [vmem:[%s1 + $0x90] sm:$0xf]
    %v119 = vld [vmem:[%s1 + $0x94] sm:$0xf]
    %v120 = vld [vmem:[%s1 + $0x98] sm:$0xf]
    %v121 = vld [vmem:[%s1 + $0x9c] sm:$0xf]
    %v122 = vld [vmem:[%s1 + $0xa0] sm:$0xf]
    %v123 = vld [vmem:[%s1 + $0xa4] sm:$0xf]
    %v124 = vld [vmem:[%s1 + $0xa8] sm:$0xf]
    %v125 = vld [vmem:[%s1 + $0xac] sm:$0xf]
    %v126 = vld [vmem:[%s1 + $0xb0] sm:$0xf]
    %v127 = vld [vmem:[%s1 + $0xb4] sm:$0xf]
    %v128 = vld [vmem:[%s1 + $0xb8] sm:$0xf]
    %v129 = vld [vmem:[%s1 + $0xbc] sm:$0xf]
    %v130 = vld [vmem:[%s1 + $0xc0] sm:$0xf]
    %v131 = vld [vmem:[%s1 + $0xc4] sm:$0xf]
    %v132 = vld [vmem:[%s1 + $0xc8] sm:$0xf]
    %v133 = vld [vmem:[%s1 + $0xcc] sm:$0xf]
    %v134 = vld [vmem:[%s1 + $0xd0] sm:$0xf]
    %v135 = vld [vmem:[%s1 + $0xd4] sm:$0xf]
    %v136 = vld [vmem:[%s1 + $0xd8] sm:$0xf]
    %v137 = vld [vmem:[%s1 + $0xdc] sm:$0xf]
    %v138 = vld [vmem:[%s1 + $0xe0] sm:$0xf]
    %v139 = vld [vmem:[%s1 + $0xe4] sm:$0xf]
    %v140 = vld [vmem:[%s1 + $0xe8] sm:$0xf]
    %v141 = vld [vmem:[%s1 + $0xec] sm:$0xf]
    %v142 = vld [vmem:[%s1 + $0xf0] sm:$0xf]
    %v143 = vld [vmem:[%s1 + $0xf4] sm:$0xf]
    %v144 = vld [vmem:[%s1 + $0xf8] sm:$0xf]
    %v145 = vld [vmem:[%s1 + $0xfc] sm:$0xf]
    %v146 = vld [vmem:[%s1 + $0x100] sm:$0xf]
    %v147 = vld [vmem:[%s1 + $0x104] sm:$0xf]
    %v148 = vld [vmem:[%s1 + $0x108] sm:$0xf]
    %v149 = vld [vmem:[%s1 + $0x10c] sm:$0xf]
    %v150 = vld [vmem:[%s1 + $0x110] sm:$0xf]
    %v151 = vld [vmem:[%s1 + $0x114] sm:$0xf]
    %v152 = vld [vmem:[%s1 + $0x118] sm:$0xf]
    %v153 = vld [vmem:[%s1 + $0x11c] sm:$0xf]
    %v202 = vunpack.c.l.b16 %v34
    %v203 = vunpack.c.h.b16 %v34
    %v204 = vunpack.c.l.b16 %v35
    %v205 = vunpack.c.h.b16 %v35
    %v206 = vunpack.c.l.b16 %v36
    %v207 = vunpack.c.l.b16 %v37
    %v208 = vunpack.c.h.b16 %v37
    %v209 = vunpack.c.l.b16 %v38
    %v210 = vunpack.c.h.b16 %v38
    %v211 = vunpack.c.l.b16 %v39
    %v212 = vunpack.c.l.b16 %v40
    %v213 = vunpack.c.h.b16 %v40
    %v214 = vunpack.c.l.b16 %v41
    %v215 = vunpack.c.h.b16 %v41
    %v216 = vunpack.c.l.b16 %v42
    %v217 = vunpack.c.l.b16 %v43
    %v218 = vunpack.c.h.b16 %v43
    %v219 = vunpack.c.l.b16 %v44
    %v220 = vunpack.c.h.b16 %v44
    %v221 = vunpack.c.l.b16 %v45
    %v222 = vunpack.c.l.b16 %v46
    %v223 = vunpack.c.h.b16 %v46
    %v224 = vunpack.c.l.b16 %v47
    %v225 = vunpack.c.h.b16 %v47
    %v226 = vunpack.c.l.b16 %v48
    %v227 = vunpack.c.l.b16 %v49
    %v228 = vunpack.c.h.b16 %v49
    %v229 = vunpack.c.l.b16 %v50
    %v230 = vunpack.c.h.b16 %v50
    %v231 = vunpack.c.l.b16 %v51
    %v232 = vunpack.c.l.b16 %v52
    %v233 = vunpack.c.h.b16 %v52
    %v234 = vunpack.c.l.b16 %v53
    %v235 = vunpack.c.h.b16 %v53
    %v236 = vunpack.c.l.b16 %v54
    %v237 = vunpack.c.l.b16 %v55
    %v238 = vunpack.c.h.b16 %v55
    %v239 = vunpack.c.l.b16 %v56
    %v240 = vunpack.c.h.b16 %v56
    %v241 = vunpack.c.l.b16 %v57
    %v242 = vunpack.c.l.b16 %v58
    %v243 = vunpack.c.h.b16 %v58
    %v244 = vunpack.c.l.b16 %v59
    %v245 = vunpack.c.h.b16 %v59
    %v246 = vunpack.c.l.b16 %v60
    %v247 = vunpack.c.l.b16 %v61
    %v248 = vunpack.c.h.b16 %v61
    %v249 = vunpack.c.l.b16 %v62
    %v250 = vunpack.c.h.b16 %v62
    %v251 = vunpack.c.l.b16 %v63
    %v252 = vunpack.c.l.b16 %v64
    %v253 = vunpack.c.h.b16 %v64
    %v254 = vunpack.c.l.b16 %v65
    %v255 = vunpack.c.h.b16 %v65
    %v256 = vunpack.c.l.b16 %v66
    %v257 = vunpack.c.l.b16 %v67
    %v258 = vunpack.c.h.b16 %v67
    %v259 = vunpack.c.l.b16 %v68
    %v260 = vunpack.c.h.b16 %v68
    %v261 = vunpack.c.l.b16 %v69
    %v262 = vunpack.c.l.b16 %v70
    %v263 = vunpack.c.h.b16 %v70
    %v264 = vunpack.c.l.b16 %v71
    %v265 = vunpack.c.h.b16 %v71
    %v266 = vunpack.c.l.b16 %v72
    %v267 = vunpack.c.l.b16 %v73
    %v268 = vunpack.c.h.b16 %v73
    %v269 = vunpack.c.l.b16 %v74
    %v270 = vunpack.c.h.b16 %v74
    %v271 = vunpack.c.l.b16 %v75
    %v272 = vunpack.c.l.b16 %v76
    %v273 = vunpack.c.h.b16 %v76
    %v274 = vunpack.c.l.b16 %v77
    %v275 = vunpack.c.h.b16 %v77
    %v276 = vunpack.c.l.b16 %v78
    %v277 = vunpack.c.l.b16 %v79
    %v278 = vunpack.c.h.b16 %v79
    %v279 = vunpack.c.l.b16 %v80
    %v280 = vunpack.c.h.b16 %v80
    %v281 = vunpack.c.l.b16 %v81
    %v282 = vpack.c.b16 %v207, %v202
    %v283 = vpack.c.b16 %v208, %v203
    %v284 = vpack.c.b16 %v209, %v204
    %v285 = vpack.c.b16 %v210, %v205
    %v286 = vpack.c.b16 %v211, %v206
    %v287 = vpack.c.b16 %v217, %v212
    %v288 = vpack.c.b16 %v218, %v213
    %v289 = vpack.c.b16 %v219, %v214
    %v290 = vpack.c.b16 %v220, %v215
    %v291 = vpack.c.b16 %v221, %v216
    %v292 = vpack.c.b16 %v227, %v222
    %v293 = vpack.c.b16 %v228, %v223
    %v294 = vpack.c.b16 %v229, %v224
    %v295 = vpack.c.b16 %v230, %v225
    %v296 = vpack.c.b16 %v231, %v226
    %v297 = vpack.c.b16 %v237, %v232
    %v298 = vpack.c.b16 %v238, %v233
    %v299 = vpack.c.b16 %v239, %v234
    %v300 = vpack.c.b16 %v240, %v235
    %v301 = vpack.c.b16 %v241, %v236
    %v302 = vpack.c.b16 %v247, %v242
    %v303 = vpack.c.b16 %v248, %v243
    %v304 = vpack.c.b16 %v249, %v244
    %v305 = vpack.c.b16 %v250, %v245
    %v306 = vpack.c.b16 %v251, %v246
    %v307 = vpack.c.b16 %v257, %v252
    %v308 = vpack.c.b16 %v258, %v253
    %v309 = vpack.c.b16 %v259, %v254
    %v310 = vpack.c.b16 %v260, %v255
    %v311 = vpack.c.b16 %v261, %v256
    %v312 = vpack.c.b16 %v267, %v262
    %v313 = vpack.c.b16 %v268, %v263
    %v314 = vpack.c.b16 %v269, %v264
    %v315 = vpack.c.b16 %v270, %v265
    %v316 = vpack.c.b16 %v271, %v266
    %v317 = vpack.c.b16 %v277, %v272
    %v318 = vpack.c.b16 %v278, %v273
    %v319 = vpack.c.b16 %v279, %v274
    %v320 = vpack.c.b16 %v280, %v275
    %v321 = vpack.c.b16 %v281, %v276
    %v426 = vunpack.c.l.b16 %v82
    %v427 = vunpack.c.l.b16 %v83
    %v428 = vunpack.c.l.b16 %v84
    %v429 = vunpack.c.l.b16 %v85
    %v430 = vunpack.c.l.b16 %v86
    %v431 = vunpack.c.l.b16 %v87
    %v432 = vunpack.c.l.b16 %v88
    %v433 = vunpack.c.l.b16 %v89
    %v434 = vunpack.c.l.b16 %v90
    %v435 = vunpack.c.l.b16 %v91
    %v436 = vunpack.c.l.b16 %v92
    %v437 = vunpack.c.l.b16 %v93
    %v438 = vunpack.c.l.b16 %v94
    %v439 = vunpack.c.l.b16 %v95
    %v440 = vunpack.c.l.b16 %v96
    %v441 = vunpack.c.l.b16 %v97
    %v442 = vunpack.c.l.b16 %v98
    %v443 = vunpack.c.l.b16 %v99
    %v444 = vunpack.c.l.b16 %v100
    %v445 = vunpack.c.l.b16 %v101
    %v446 = vunpack.c.l.b16 %v102
    %v447 = vunpack.c.l.b16 %v103
    %v448 = vunpack.c.l.b16 %v104
    %v449 = vunpack.c.l.b16 %v105
    %v450 = vunpack.c.l.b16 %v106
    %v451 = vunpack.c.l.b16 %v107
    %v452 = vunpack.c.l.b16 %v108
    %v453 = vunpack.c.l.b16 %v109
    %v454 = vunpack.c.l.b16 %v110
    %v455 = vunpack.c.l.b16 %v111
    %v456 = vunpack.c.l.b16 %v112
    %v457 = vunpack.c.l.b16 %v113
    %v458 = vunpack.c.l.b16 %v114
    %v459 = vunpack.c.l.b16 %v115
    %v460 = vunpack.c.l.b16 %v116
    %v461 = vunpack.c.l.b16 %v117
    %v462 = vunpack.c.l.b16 %v118
    %v463 = vunpack.c.l.b16 %v119
    %v464 = vunpack.c.l.b16 %v120
    %v465 = vunpack.c.l.b16 %v121
    %v466 = vunpack.c.l.b16 %v122
    %v467 = vunpack.c.l.b16 %v123
    %v468 = vunpack.c.l.b16 %v124
    %v469 = vunpack.c.l.b16 %v125
    %v470 = vunpack.c.l.b16 %v126
    %v471 = vunpack.c.l.b16 %v127
    %v472 = vunpack.c.l.b16 %v128
    %v473 = vunpack.c.l.b16 %v129
    %v474 = vunpack.c.l.b16 %v130
    %v475 = vunpack.c.l.b16 %v131
    %v476 = vunpack.c.l.b16 %v132
    %v477 = vunpack.c.l.b16 %v133
    %v478 = vunpack.c.l.b16 %v134
    %v479 = vunpack.c.l.b16 %v135
    %v480 = vunpack.c.l.b16 %v136
    %v481 = vunpack.c.l.b16 %v137
    %v482 = vunpack.c.l.b16 %v138
    %v483 = vunpack.c.l.b16 %v139
    %v484 = vunpack.c.l.b16 %v140
    %v485 = vunpack.c.l.b16 %v141
    %v486 = vunpack.c.l.b16 %v142
    %v487 = vunpack.c.l.b16 %v143
    %v488 = vunpack.c.l.b16 %v144
    %v489 = vunpack.c.l.b16 %v145
    %v490 = vunpack.c.l.b16 %v146
    %v491 = vunpack.c.l.b16 %v147
    %v492 = vunpack.c.l.b16 %v148
    %v493 = vunpack.c.l.b16 %v149
    %v494 = vunpack.c.l.b16 %v150
    %v495 = vunpack.c.l.b16 %v151
    %v496 = vunpack.c.l.b16 %v152
    %v497 = vunpack.c.l.b16 %v153
    %v498 = vpack.c.b16 %v427, %v426
    %v499 = vpack.c.b16 %v429, %v428
    %v500 = vpack.c.b16 %v431, %v430
    %v501 = vpack.c.b16 %v433, %v432
    %v502 = vpack.c.b16 %v435, %v434
    %v503 = vpack.c.b16 %v437, %v436
    %v504 = vpack.c.b16 %v439, %v438
    %v505 = vpack.c.b16 %v441, %v440
    %v506 = vpack.c.b16 %v443, %v442
    %v507 = vpack.c.b16 %v445, %v444
    %v508 = vpack.c.b16 %v447, %v446
    %v509 = vpack.c.b16 %v449, %v448
    %v510 = vpack.c.b16 %v451, %v450
    %v511 = vpack.c.b16 %v453, %v452
    %v512 = vpack.c.b16 %v455, %v454
    %v513 = vpack.c.b16 %v457, %v456
    %v514 = vpack.c.b16 %v459, %v458
    %v515 = vpack.c.b16 %v461, %v460
    %v516 = vpack.c.b16 %v463, %v462
    %v517 = vpack.c.b16 %v465, %v464
    %v518 = vpack.c.b16 %v467, %v466
    %v519 = vpack.c.b16 %v469, %v468
    %v520 = vpack.c.b16 %v471, %v470
    %v521 = vpack.c.b16 %v473, %v472
    %v522 = vpack.c.b16 %v475, %v474
    %v523 = vpack.c.b16 %v477, %v476
    %v524 = vpack.c.b16 %v479, %v478
    %v525 = vpack.c.b16 %v481, %v480
    %v526 = vpack.c.b16 %v483, %v482
    %v527 = vpack.c.b16 %v485, %v484
    %v528 = vpack.c.b16 %v487, %v486
    %v529 = vpack.c.b16 %v489, %v488
    %v530 = vpack.c.b16 %v491, %v490
    %v531 = vpack.c.b16 %v493, %v492
    %v532 = vpack.c.b16 %v495, %v494
    %v533 = vpack.c.b16 %v497, %v496
    %vm570 = vcmask 523264
    %v572 = vsel %vm570, %v286, 0
    %v575 = vsel %vm570, %v291, 0
    %v578 = vsel %vm570, %v296, 0
    %v581 = vsel %vm570, %v301, 0
    %v584 = vsel %vm570, %v306, 0
    %v587 = vsel %vm570, %v311, 0
    %v590 = vsel %vm570, %v316, 0
    %v593 = vsel %vm570, %v321, 0
    %595 = vmatpush.bf16.msra.mxu0 %v505
    %596 = vmatpush.bf16.msra.mxu0 %v504
    %597 = vmatpush.bf16.msra.mxu0 %v503
    %598 = vmatpush.bf16.msra.mxu0 %v502
    %599 = vmatpush.bf16.msra.mxu0 %v501
    %600 = vmatpush.bf16.msra.mxu0 %v500
    %601 = vmatpush.bf16.msra.mxu0 %v499
    %602 = vmatpush.bf16.msra.mxu0 %v498
    %603 = vmatmul.bf16.gmra.mxu0 %v282
    %v604 = vpop.f32.mrf.mxu0
    %v605 = vadd.f32 0.0, %v604
    %v606 = vpop.f32.mrf.mxu0
    %v607 = vadd.f32 0.0, %v606
    %608 = vmatmul.bf16.gmra.mxu0 %v287
    %v609 = vpop.f32.mrf.mxu0
    %v610 = vadd.f32 0.0, %v609
    %v611 = vpop.f32.mrf.mxu0
    %v612 = vadd.f32 0.0, %v611
    %613 = vmatmul.bf16.gmra.mxu0 %v292
    %v614 = vpop.f32.mrf.mxu0
    %v615 = vadd.f32 0.0, %v614
    %v616 = vpop.f32.mrf.mxu0
    %v617 = vadd.f32 0.0, %v616
    %618 = vmatmul.bf16.gmra.mxu0 %v297
    %v619 = vpop.f32.mrf.mxu0
    %v620 = vadd.f32 0.0, %v619
    %v621 = vpop.f32.mrf.mxu0
    %v622 = vadd.f32 0.0, %v621
    %623 = vmatmul.bf16.gmra.mxu0 %v302
    %v624 = vpop.f32.mrf.mxu0
    %v625 = vadd.f32 0.0, %v624
    %v626 = vpop.f32.mrf.mxu0
    %v627 = vadd.f32 0.0, %v626
    %628 = vmatmul.bf16.gmra.mxu0 %v307
    %v629 = vpop.f32.mrf.mxu0
    %v630 = vadd.f32 0.0, %v629
    %v631 = vpop.f32.mrf.mxu0
    %v632 = vadd.f32 0.0, %v631
    %633 = vmatmul.bf16.gmra.mxu0 %v312
    %v634 = vpop.f32.mrf.mxu0
    %v635 = vadd.f32 0.0, %v634
    %v636 = vpop.f32.mrf.mxu0
    %v637 = vadd.f32 0.0, %v636
    %638 = vmatmul.bf16.gmra.mxu0 %v317
    %v639 = vpop.f32.mrf.mxu0
    %v640 = vadd.f32 0.0, %v639
    %v641 = vpop.f32.mrf.mxu0
    %v642 = vadd.f32 0.0, %v641
    %643 = vdwg.mxu0
    %644 = vmatpush.bf16.msra.mxu0 %v513
    %645 = vmatpush.bf16.msra.mxu0 %v512
    %646 = vmatpush.bf16.msra.mxu0 %v511
    %647 = vmatpush.bf16.msra.mxu0 %v510
    %648 = vmatpush.bf16.msra.mxu0 %v509
    %649 = vmatpush.bf16.msra.mxu0 %v508
    %650 = vmatpush.bf16.msra.mxu0 %v507
    %651 = vmatpush.bf16.msra.mxu0 %v506
    %652 = vmatmul.bf16.gmra.mxu0 %v283
    %v653 = vpop.f32.mrf.mxu0
    %v654 = vadd.f32 %v605, %v653
    %v655 = vpop.f32.mrf.mxu0
    %v656 = vadd.f32 %v607, %v655
    %657 = vmatmul.bf16.gmra.mxu0 %v288
    %v658 = vpop.f32.mrf.mxu0
    %v659 = vadd.f32 %v610, %v658
    %v660 = vpop.f32.mrf.mxu0
    %v661 = vadd.f32 %v612, %v660
    %662 = vmatmul.bf16.gmra.mxu0 %v293
    %v663 = vpop.f32.mrf.mxu0
    %v664 = vadd.f32 %v615, %v663
    %v665 = vpop.f32.mrf.mxu0
    %v666 = vadd.f32 %v617, %v665
    %667 = vmatmul.bf16.gmra.mxu0 %v298
    %v668 = vpop.f32.mrf.mxu0
    %v669 = vadd.f32 %v620, %v668
    %v670 = vpop.f32.mrf.mxu0
    %v671 = vadd.f32 %v622, %v670
    %672 = vmatmul.bf16.gmra.mxu0 %v303
    %v673 = vpop.f32.mrf.mxu0
    %v674 = vadd.f32 %v625, %v673
    %v675 = vpop.f32.mrf.mxu0
    %v676 = vadd.f32 %v627, %v675
    %677 = vmatmul.bf16.gmra.mxu0 %v308
    %v678 = vpop.f32.mrf.mxu0
    %v679 = vadd.f32 %v630, %v678
    %v680 = vpop.f32.mrf.mxu0
    %v681 = vadd.f32 %v632, %v680
    %682 = vmatmul.bf16.gmra.mxu0 %v313
    %v683 = vpop.f32.mrf.mxu0
    %v684 = vadd.f32 %v635, %v683
    %v685 = vpop.f32.mrf.mxu0
    %v686 = vadd.f32 %v637, %v685
    %687 = vmatmul.bf16.gmra.mxu0 %v318
    %v688 = vpop.f32.mrf.mxu0
    %v689 = vadd.f32 %v640, %v688
    %v690 = vpop.f32.mrf.mxu0
    %v691 = vadd.f32 %v642, %v690
    %692 = vdwg.mxu0
    %693 = vmatpush.bf16.msra.mxu0 %v521
    %694 = vmatpush.bf16.msra.mxu0 %v520
    %695 = vmatpush.bf16.msra.mxu0 %v519
    %696 = vmatpush.bf16.msra.mxu0 %v518
    %697 = vmatpush.bf16.msra.mxu0 %v517
    %698 = vmatpush.bf16.msra.mxu0 %v516
    %699 = vmatpush.bf16.msra.mxu0 %v515
    %700 = vmatpush.bf16.msra.mxu0 %v514
    %701 = vmatmul.bf16.gmra.mxu0 %v284
    %v702 = vpop.f32.mrf.mxu0
    %v703 = vadd.f32 %v654, %v702
    %v704 = vpop.f32.mrf.mxu0
    %v705 = vadd.f32 %v656, %v704
    %706 = vmatmul.bf16.gmra.mxu0 %v289
    %v707 = vpop.f32.mrf.mxu0
    %v708 = vadd.f32 %v659, %v707
    %v709 = vpop.f32.mrf.mxu0
    %v710 = vadd.f32 %v661, %v709
    %711 = vmatmul.bf16.gmra.mxu0 %v294
    %v712 = vpop.f32.mrf.mxu0
    %v713 = vadd.f32 %v664, %v712
    %v714 = vpop.f32.mrf.mxu0
    %v715 = vadd.f32 %v666, %v714
    %716 = vmatmul.bf16.gmra.mxu0 %v299
    %v717 = vpop.f32.mrf.mxu0
    %v718 = vadd.f32 %v669, %v717
    %v719 = vpop.f32.mrf.mxu0
    %v720 = vadd.f32 %v671, %v719
    %721 = vmatmul.bf16.gmra.mxu0 %v304
    %v722 = vpop.f32.mrf.mxu0
    %v723 = vadd.f32 %v674, %v722
    %v724 = vpop.f32.mrf.mxu0
    %v725 = vadd.f32 %v676, %v724
    %726 = vmatmul.bf16.gmra.mxu0 %v309
    %v727 = vpop.f32.mrf.mxu0
    %v728 = vadd.f32 %v679, %v727
    %v729 = vpop.f32.mrf.mxu0
    %v730 = vadd.f32 %v681, %v729
    %731 = vmatmul.bf16.gmra.mxu0 %v314
    %v732 = vpop.f32.mrf.mxu0
    %v733 = vadd.f32 %v684, %v732
    %v734 = vpop.f32.mrf.mxu0
    %v735 = vadd.f32 %v686, %v734
    %736 = vmatmul.bf16.gmra.mxu0 %v319
    %v737 = vpop.f32.mrf.mxu0
    %v738 = vadd.f32 %v689, %v737
    %v739 = vpop.f32.mrf.mxu0
    %v740 = vadd.f32 %v691, %v739
    %741 = vdwg.mxu0
    %742 = vmatpush.bf16.msra.mxu0 %v529
    %743 = vmatpush.bf16.msra.mxu0 %v528
    %744 = vmatpush.bf16.msra.mxu0 %v527
    %745 = vmatpush.bf16.msra.mxu0 %v526
    %746 = vmatpush.bf16.msra.mxu0 %v525
    %747 = vmatpush.bf16.msra.mxu0 %v524
    %748 = vmatpush.bf16.msra.mxu0 %v523
    %749 = vmatpush.bf16.msra.mxu0 %v522
    %750 = vmatmul.bf16.gmra.mxu0 %v285
    %v751 = vpop.f32.mrf.mxu0
    %v752 = vadd.f32 %v703, %v751
    %v753 = vpop.f32.mrf.mxu0
    %v754 = vadd.f32 %v705, %v753
    %755 = vmatmul.bf16.gmra.mxu0 %v290
    %v756 = vpop.f32.mrf.mxu0
    %v757 = vadd.f32 %v708, %v756
    %v758 = vpop.f32.mrf.mxu0
    %v759 = vadd.f32 %v710, %v758
    %760 = vmatmul.bf16.gmra.mxu0 %v295
    %v761 = vpop.f32.mrf.mxu0
    %v762 = vadd.f32 %v713, %v761
    %v763 = vpop.f32.mrf.mxu0
    %v764 = vadd.f32 %v715, %v763
    %765 = vmatmul.bf16.gmra.mxu0 %v300
    %v766 = vpop.f32.mrf.mxu0
    %v767 = vadd.f32 %v718, %v766
    %v768 = vpop.f32.mrf.mxu0
    %v769 = vadd.f32 %v720, %v768
    %770 = vmatmul.bf16.gmra.mxu0 %v305
    %v771 = vpop.f32.mrf.mxu0
    %v772 = vadd.f32 %v723, %v771
    %v773 = vpop.f32.mrf.mxu0
    %v774 = vadd.f32 %v725, %v773
    %775 = vmatmul.bf16.gmra.mxu0 %v310
    %v776 = vpop.f32.mrf.mxu0
    %v777 = vadd.f32 %v728, %v776
    %v778 = vpop.f32.mrf.mxu0
    %v779 = vadd.f32 %v730, %v778
    %780 = vmatmul.bf16.gmra.mxu0 %v315
    %v781 = vpop.f32.mrf.mxu0
    %v782 = vadd.f32 %v733, %v781
    %v783 = vpop.f32.mrf.mxu0
    %v784 = vadd.f32 %v735, %v783
    %785 = vmatmul.bf16.gmra.mxu0 %v320
    %v786 = vpop.f32.mrf.mxu0
    %v787 = vadd.f32 %v738, %v786
    %v788 = vpop.f32.mrf.mxu0
    %v789 = vadd.f32 %v740, %v788
    %790 = vdwg.mxu0
    %791 = vmatpush.bf16.msra.mxu0 0
    %792 = vmatpush.bf16.msra.mxu0 0
    %793 = vmatpush.bf16.msra.mxu0 0
    %794 = vmatpush.bf16.msra.mxu0 0
    %795 = vmatpush.bf16.msra.mxu0 %v533
    %796 = vmatpush.bf16.msra.mxu0 %v532
    %797 = vmatpush.bf16.msra.mxu0 %v531
    %798 = vmatpush.bf16.msra.mxu0 %v530
    %799 = vmatmul.bf16.gmra.mxu0 %v572
    %v800 = vpop.f32.mrf.mxu0
    %v801 = vadd.f32 %v752, %v800
    %v802 = vpop.f32.mrf.mxu0
    %v803 = vadd.f32 %v754, %v802
    %804 = vmatmul.bf16.gmra.mxu0 %v575
    %v805 = vpop.f32.mrf.mxu0
    %v806 = vadd.f32 %v757, %v805
    %v807 = vpop.f32.mrf.mxu0
    %v808 = vadd.f32 %v759, %v807
    %809 = vmatmul.bf16.gmra.mxu0 %v578
    %v810 = vpop.f32.mrf.mxu0
    %v811 = vadd.f32 %v762, %v810
    %v812 = vpop.f32.mrf.mxu0
    %v813 = vadd.f32 %v764, %v812
    %814 = vmatmul.bf16.gmra.mxu0 %v581
    %v815 = vpop.f32.mrf.mxu0
    %v816 = vadd.f32 %v767, %v815
    %v817 = vpop.f32.mrf.mxu0
    %v818 = vadd.f32 %v769, %v817
    %819 = vmatmul.bf16.gmra.mxu0 %v584
    %v820 = vpop.f32.mrf.mxu0
    %v821 = vadd.f32 %v772, %v820
    %v822 = vpop.f32.mrf.mxu0
    %v823 = vadd.f32 %v774, %v822
    %824 = vmatmul.bf16.gmra.mxu0 %v587
    %v825 = vpop.f32.mrf.mxu0
    %v826 = vadd.f32 %v777, %v825
    %v827 = vpop.f32.mrf.mxu0
    %v828 = vadd.f32 %v779, %v827
    %829 = vmatmul.bf16.gmra.mxu0 %v590
    %v830 = vpop.f32.mrf.mxu0
    %v831 = vadd.f32 %v782, %v830
    %v832 = vpop.f32.mrf.mxu0
    %v833 = vadd.f32 %v784, %v832
    %834 = vmatmul.bf16.gmra.mxu0 %v593
    %v835 = vpop.f32.mrf.mxu0
    %v836 = vadd.f32 %v787, %v835
    %v837 = vpop.f32.mrf.mxu0
    %v838 = vadd.f32 %v789, %v837
    %839 = vdwg.mxu0
    %v840 = vld [vmem:[%s2] sm:$0xff]
    %v841 = vld [vmem:[%s2 + $0x8] sm:$0xff]
    %v842 = vld [vmem:[%s2 + $0x10] sm:$0xff]
    %v843 = vld [vmem:[%s2 + $0x18] sm:$0xff]
    %v844 = vld [vmem:[%s3] sm:$0xff]
    %v845 = vld [vmem:[%s3 + $0x8] sm:$0xff]
    %v846 = vld [vmem:[%s3 + $0x10] sm:$0xff]
    %v847 = vld [vmem:[%s3 + $0x18] sm:$0xff]
    %vm848 = vcmask 64512
    %v849 = vsel %vm848, %v801, 0.0
    %850 = vadd.xlane.f32.xlu0 %v849
    %v851 = vpop.xlane.xlu0 %850
    %v852 = vsel %vm848, %v803, 0.0
    %853 = vadd.xlane.f32.xlu0 %v852
    %v854 = vpop.xlane.xlu0 %853
    %v855 = vsel %vm848, %v806, 0.0
    %856 = vadd.xlane.f32.xlu0 %v855
    %v857 = vpop.xlane.xlu0 %856
    %v858 = vsel %vm848, %v808, 0.0
    %859 = vadd.xlane.f32.xlu0 %v858
    %v860 = vpop.xlane.xlu0 %859
    %v861 = vsel %vm848, %v811, 0.0
    %862 = vadd.xlane.f32.xlu0 %v861
    %v863 = vpop.xlane.xlu0 %862
    %v864 = vsel %vm848, %v813, 0.0
    %865 = vadd.xlane.f32.xlu0 %v864
    %v866 = vpop.xlane.xlu0 %865
    %v867 = vsel %vm848, %v816, 0.0
    %868 = vadd.xlane.f32.xlu0 %v867
    %v869 = vpop.xlane.xlu0 %868
    %v870 = vsel %vm848, %v818, 0.0
    %871 = vadd.xlane.f32.xlu0 %v870
    %v872 = vpop.xlane.xlu0 %871
    %v873 = vsel %vm848, %v821, 0.0
    %874 = vadd.xlane.f32.xlu0 %v873
    %v875 = vpop.xlane.xlu0 %874
    %v876 = vsel %vm848, %v823, 0.0
    %877 = vadd.xlane.f32.xlu0 %v876
    %v878 = vpop.xlane.xlu0 %877
    %v879 = vsel %vm848, %v826, 0.0
    %880 = vadd.xlane.f32.xlu0 %v879
    %v881 = vpop.xlane.xlu0 %880
    %v882 = vsel %vm848, %v828, 0.0
    %883 = vadd.xlane.f32.xlu0 %v882
    %v884 = vpop.xlane.xlu0 %883
    %v885 = vsel %vm848, %v831, 0.0
    %886 = vadd.xlane.f32.xlu0 %v885
    %v887 = vpop.xlane.xlu0 %886
    %v888 = vsel %vm848, %v833, 0.0
    %889 = vadd.xlane.f32.xlu0 %v888
    %v890 = vpop.xlane.xlu0 %889
    %v891 = vsel %vm848, %v836, 0.0
    %892 = vadd.xlane.f32.xlu0 %v891
    %v893 = vpop.xlane.xlu0 %892
    %v894 = vsel %vm848, %v838, 0.0
    %895 = vadd.xlane.f32.xlu0 %v894
    %v896 = vpop.xlane.xlu0 %895
    %v897 = vadd.f32 %v851, %v863
    %v898 = vadd.f32 %v854, %v866
    %v899 = vadd.f32 %v857, %v869
    %v900 = vadd.f32 %v860, %v872
    %v901 = vadd.f32 %v897, %v875
    %v902 = vadd.f32 %v898, %v878
    %v903 = vadd.f32 %v899, %v881
    %v904 = vadd.f32 %v900, %v884
    %v905 = vadd.f32 %v901, %v887
    %v906 = vadd.f32 %v902, %v890
    %v907 = vadd.f32 %v903, %v893
    %v908 = vadd.f32 %v904, %v896
    %v909 = vrcp.pop 32.0
    %v910 = vmul.f32 32.0, %v909
    %v911 = vsub.f32 1.0, %v910
    %v912 = vmul.f32 %v909, %v911
    %v913 = vadd.f32 %v909, %v912
    %vm914 = vweird.f32 %v909
    %v915 = vsel %vm914, %v909, %v913
    %v916 = vmul.f32 %v905, %v915
    %v917 = vmul.f32 %v906, %v915
    %v918 = vmul.f32 %v907, %v915
    %v919 = vmul.f32 %v908, %v915
    %921 = vset.pattern.permute.xlu0 0
    %922 = vperm.xlu0 %921, %v916
    %v923 = vpop.permute.xlu0 %922
    %926 = vset.pattern.permute.xlu0 0
    %927 = vperm.xlu0 %926, %v917
    %v928 = vpop.permute.xlu0 %927
    %931 = vset.pattern.permute.xlu0 0
    %932 = vperm.xlu0 %931, %v918
    %v933 = vpop.permute.xlu0 %932
    %936 = vset.pattern.permute.xlu0 0
    %937 = vperm.xlu0 %936, %v919
    %v938 = vpop.permute.xlu0 %937
    %v940 = vsub.f32 %v801, %v923
    %v941 = vsub.f32 %v803, %v928
    %v942 = vsub.f32 %v806, %v933
    %v943 = vsub.f32 %v808, %v938
    %v944 = vsub.f32 %v811, %v923
    %v945 = vsub.f32 %v813, %v928
    %v946 = vsub.f32 %v816, %v933
    %v947 = vsub.f32 %v818, %v938
    %v948 = vsub.f32 %v821, %v923
    %v949 = vsub.f32 %v823, %v928
    %v950 = vsub.f32 %v826, %v933
    %v951 = vsub.f32 %v828, %v938
    %v952 = vsub.f32 %v831, %v923
    %v953 = vsub.f32 %v833, %v928
    %v954 = vsub.f32 %v836, %v933
    %v955 = vsub.f32 %v838, %v938
    %v956 = vmul.f32 %v940, %v940
    %v957 = vmul.f32 %v941, %v941
    %v958 = vmul.f32 %v942, %v942
    %v959 = vmul.f32 %v943, %v943
    %v960 = vmul.f32 %v944, %v944
    %v961 = vmul.f32 %v945, %v945
    %v962 = vmul.f32 %v946, %v946
    %v963 = vmul.f32 %v947, %v947
    %v964 = vmul.f32 %v948, %v948
    %v965 = vmul.f32 %v949, %v949
    %v966 = vmul.f32 %v950, %v950
    %v967 = vmul.f32 %v951, %v951
    %v968 = vmul.f32 %v952, %v952
    %v969 = vmul.f32 %v953, %v953
    %v970 = vmul.f32 %v954, %v954
    %v971 = vmul.f32 %v955, %v955
    %v972 = vsel %vm848, %v956, 0.0
    %973 = vadd.xlane.f32.xlu0 %v972
    %v974 = vpop.xlane.xlu0 %973
    %v975 = vsel %vm848, %v957, 0.0
    %976 = vadd.xlane.f32.xlu0 %v975
    %v977 = vpop.xlane.xlu0 %976
    %v978 = vsel %vm848, %v958, 0.0
    %979 = vadd.xlane.f32.xlu0 %v978
    %v980 = vpop.xlane.xlu0 %979
    %v981 = vsel %vm848, %v959, 0.0
    %982 = vadd.xlane.f32.xlu0 %v981
    %v983 = vpop.xlane.xlu0 %982
    %v984 = vsel %vm848, %v960, 0.0
    %985 = vadd.xlane.f32.xlu0 %v984
    %v986 = vpop.xlane.xlu0 %985
    %v987 = vsel %vm848, %v961, 0.0
    %988 = vadd.xlane.f32.xlu0 %v987
    %v989 = vpop.xlane.xlu0 %988
    %v990 = vsel %vm848, %v962, 0.0
    %991 = vadd.xlane.f32.xlu0 %v990
    %v992 = vpop.xlane.xlu0 %991
    %v993 = vsel %vm848, %v963, 0.0
    %994 = vadd.xlane.f32.xlu0 %v993
    %v995 = vpop.xlane.xlu0 %994
    %v996 = vsel %vm848, %v964, 0.0
    %997 = vadd.xlane.f32.xlu0 %v996
    %v998 = vpop.xlane.xlu0 %997
    %v999 = vsel %vm848, %v965, 0.0
    %1000 = vadd.xlane.f32.xlu0 %v999
    %v1001 = vpop.xlane.xlu0 %1000
    %v1002 = vsel %vm848, %v966, 0.0
    %1003 = vadd.xlane.f32.xlu0 %v1002
    %v1004 = vpop.xlane.xlu0 %1003
    %v1005 = vsel %vm848, %v967, 0.0
    %1006 = vadd.xlane.f32.xlu0 %v1005
    %v1007 = vpop.xlane.xlu0 %1006
    %v1008 = vsel %vm848, %v968, 0.0
    %1009 = vadd.xlane.f32.xlu0 %v1008
    %v1010 = vpop.xlane.xlu0 %1009
    %v1011 = vsel %vm848, %v969, 0.0
    %1012 = vadd.xlane.f32.xlu0 %v1011
    %v1013 = vpop.xlane.xlu0 %1012
    %v1014 = vsel %vm848, %v970, 0.0
    %1015 = vadd.xlane.f32.xlu0 %v1014
    %v1016 = vpop.xlane.xlu0 %1015
    %v1017 = vsel %vm848, %v971, 0.0
    %1018 = vadd.xlane.f32.xlu0 %v1017
    %v1019 = vpop.xlane.xlu0 %1018
    %v1020 = vadd.f32 %v974, %v986
    %v1021 = vadd.f32 %v977, %v989
    %v1022 = vadd.f32 %v980, %v992
    %v1023 = vadd.f32 %v983, %v995
    %v1024 = vadd.f32 %v1020, %v998
    %v1025 = vadd.f32 %v1021, %v1001
    %v1026 = vadd.f32 %v1022, %v1004
    %v1027 = vadd.f32 %v1023, %v1007
    %v1028 = vadd.f32 %v1024, %v1010
    %v1029 = vadd.f32 %v1025, %v1013
    %v1030 = vadd.f32 %v1026, %v1016
    %v1031 = vadd.f32 %v1027, %v1019
    %v1032 = vmul.f32 %v1028, %v915
    %v1033 = vmul.f32 %v1029, %v915
    %v1034 = vmul.f32 %v1030, %v915
    %v1035 = vmul.f32 %v1031, %v915
    %v1036 = vadd.f32 %v1032, 1e-05
    %v1037 = vadd.f32 %v1033, 1e-05
    %v1038 = vadd.f32 %v1034, 1e-05
    %v1039 = vadd.f32 %v1035, 1e-05
    %v1040 = vrsqrt.pop %v1036
    %v1041 = vmul.f32 %v1040, %v1036
    %v1042 = vmul.f32 %v1041, %v1040
    %v1043 = vmul.f32 0.5, %v1042
    %v1044 = vsub.f32 1.5, %v1043
    %v1045 = vmul.f32 %v1040, %v1044
    %vm1046 = vweird.f32 %v1036
    %vm1047 = vweird.f32 %v1040
    %vm1048 = vmor %vm1046, %vm1047
    %v1049 = vsel %vm1048, %v1040, %v1045
    %v1050 = vrsqrt.pop %v1037
    %v1051 = vmul.f32 %v1050, %v1037
    %v1052 = vmul.f32 %v1051, %v1050
    %v1053 = vmul.f32 0.5, %v1052
    %v1054 = vsub.f32 1.5, %v1053
    %v1055 = vmul.f32 %v1050, %v1054
    %vm1056 = vweird.f32 %v1037
    %vm1057 = vweird.f32 %v1050
    %vm1058 = vmor %vm1056, %vm1057
    %v1059 = vsel %vm1058, %v1050, %v1055
    %v1060 = vrsqrt.pop %v1038
    %v1061 = vmul.f32 %v1060, %v1038
    %v1062 = vmul.f32 %v1061, %v1060
    %v1063 = vmul.f32 0.5, %v1062
    %v1064 = vsub.f32 1.5, %v1063
    %v1065 = vmul.f32 %v1060, %v1064
    %vm1066 = vweird.f32 %v1038
    %vm1067 = vweird.f32 %v1060
    %vm1068 = vmor %vm1066, %vm1067
    %v1069 = vsel %vm1068, %v1060, %v1065
    %v1070 = vrsqrt.pop %v1039
    %v1071 = vmul.f32 %v1070, %v1039
    %v1072 = vmul.f32 %v1071, %v1070
    %v1073 = vmul.f32 0.5, %v1072
    %v1074 = vsub.f32 1.5, %v1073
    %v1075 = vmul.f32 %v1070, %v1074
    %vm1076 = vweird.f32 %v1039
    %vm1077 = vweird.f32 %v1070
    %vm1078 = vmor %vm1076, %vm1077
    %v1079 = vsel %vm1078, %v1070, %v1075
    %v1080 = vmul.f32 %v1049, %v840
    %v1081 = vmul.f32 %v1059, %v841
    %v1082 = vmul.f32 %v1069, %v842
    %v1083 = vmul.f32 %v1079, %v843
    %1085 = vset.pattern.permute.xlu0 0
    %1086 = vperm.xlu0 %1085, %v1080
    %v1087 = vpop.permute.xlu0 %1086
    %1090 = vset.pattern.permute.xlu0 0
    %1091 = vperm.xlu0 %1090, %v1081
    %v1092 = vpop.permute.xlu0 %1091
    %1095 = vset.pattern.permute.xlu0 0
    %1096 = vperm.xlu0 %1095, %v1082
    %v1097 = vpop.permute.xlu0 %1096
    %1100 = vset.pattern.permute.xlu0 0
    %1101 = vperm.xlu0 %1100, %v1083
    %v1102 = vpop.permute.xlu0 %1101
    %v1104 = vmul.f32 %v940, %v1087
    %v1105 = vmul.f32 %v941, %v1092
    %v1106 = vmul.f32 %v942, %v1097
    %v1107 = vmul.f32 %v943, %v1102
    %v1108 = vmul.f32 %v944, %v1087
    %v1109 = vmul.f32 %v945, %v1092
    %v1110 = vmul.f32 %v946, %v1097
    %v1111 = vmul.f32 %v947, %v1102
    %v1112 = vmul.f32 %v948, %v1087
    %v1113 = vmul.f32 %v949, %v1092
    %v1114 = vmul.f32 %v950, %v1097
    %v1115 = vmul.f32 %v951, %v1102
    %v1116 = vmul.f32 %v952, %v1087
    %v1117 = vmul.f32 %v953, %v1092
    %v1118 = vmul.f32 %v954, %v1097
    %v1119 = vmul.f32 %v955, %v1102
    %1121 = vset.pattern.permute.xlu0 0
    %1122 = vperm.xlu0 %1121, %v844
    %v1123 = vpop.permute.xlu0 %1122
    %1126 = vset.pattern.permute.xlu0 0
    %1127 = vperm.xlu0 %1126, %v845
    %v1128 = vpop.permute.xlu0 %1127
    %1131 = vset.pattern.permute.xlu0 0
    %1132 = vperm.xlu0 %1131, %v846
    %v1133 = vpop.permute.xlu0 %1132
    %1136 = vset.pattern.permute.xlu0 0
    %1137 = vperm.xlu0 %1136, %v847
    %v1138 = vpop.permute.xlu0 %1137
    %v1140 = vadd.f32 %v1104, %v1123
    %v1141 = vadd.f32 %v1105, %v1128
    %v1142 = vadd.f32 %v1106, %v1133
    %v1143 = vadd.f32 %v1107, %v1138
    %v1144 = vadd.f32 %v1108, %v1123
    %v1145 = vadd.f32 %v1109, %v1128
    %v1146 = vadd.f32 %v1110, %v1133
    %v1147 = vadd.f32 %v1111, %v1138
    %v1148 = vadd.f32 %v1112, %v1123
    %v1149 = vadd.f32 %v1113, %v1128
    %v1150 = vadd.f32 %v1114, %v1133
    %v1151 = vadd.f32 %v1115, %v1138
    %v1152 = vadd.f32 %v1116, %v1123
    %v1153 = vadd.f32 %v1117, %v1128
    %v1154 = vadd.f32 %v1118, %v1133
    %v1155 = vadd.f32 %v1119, %v1138
    %v1156 = vmax.f32 %v1140, 0.0
    %v1157 = vmax.f32 %v1141, 0.0
    %v1158 = vmax.f32 %v1142, 0.0
    %v1159 = vmax.f32 %v1143, 0.0
    %v1160 = vmax.f32 %v1144, 0.0
    %v1161 = vmax.f32 %v1145, 0.0
    %v1162 = vmax.f32 %v1146, 0.0
    %v1163 = vmax.f32 %v1147, 0.0
    %v1164 = vmax.f32 %v1148, 0.0
    %v1165 = vmax.f32 %v1149, 0.0
    %v1166 = vmax.f32 %v1150, 0.0
    %v1167 = vmax.f32 %v1151, 0.0
    %v1168 = vmax.f32 %v1152, 0.0
    %v1169 = vmax.f32 %v1153, 0.0
    %v1170 = vmax.f32 %v1154, 0.0
    %v1171 = vmax.f32 %v1155, 0.0
    %v1172 = vpack.c.bf16 %v1156, %v1156
    %v1173 = vpack.c.bf16 %v1157, %v1157
    %v1174 = vpack.c.bf16 %v1158, %v1158
    %v1175 = vpack.c.bf16 %v1159, %v1159
    %v1176 = vpack.c.bf16 %v1160, %v1160
    %v1177 = vpack.c.bf16 %v1161, %v1161
    %v1178 = vpack.c.bf16 %v1162, %v1162
    %v1179 = vpack.c.bf16 %v1163, %v1163
    %v1180 = vpack.c.bf16 %v1164, %v1164
    %v1181 = vpack.c.bf16 %v1165, %v1165
    %v1182 = vpack.c.bf16 %v1166, %v1166
    %v1183 = vpack.c.bf16 %v1167, %v1167
    %v1184 = vpack.c.bf16 %v1168, %v1168
    %v1185 = vpack.c.bf16 %v1169, %v1169
    %v1186 = vpack.c.bf16 %v1170, %v1170
    %v1187 = vpack.c.bf16 %v1171, %v1171
    %vm1188 = vcmask 60416
    %1189 = vst.msk [vmem:[%s4] sm:$0xf] %vm1188, %v1172
    %1190 = vst.msk [vmem:[%s4 + $0x4] sm:$0xf] %vm1188, %v1173
    %1191 = vst.msk [vmem:[%s4 + $0x8] sm:$0xf] %vm1188, %v1174
    %1192 = vst.msk [vmem:[%s4 + $0xc] sm:$0xf] %vm1188, %v1175
    %1193 = vst.msk [vmem:[%s4 + $0x10] sm:$0xf] %vm1188, %v1176
    %1194 = vst.msk [vmem:[%s4 + $0x14] sm:$0xf] %vm1188, %v1177
    %1195 = vst.msk [vmem:[%s4 + $0x18] sm:$0xf] %vm1188, %v1178
    %1196 = vst.msk [vmem:[%s4 + $0x1c] sm:$0xf] %vm1188, %v1179
    %1197 = vst.msk [vmem:[%s4 + $0x20] sm:$0xf] %vm1188, %v1180
    %1198 = vst.msk [vmem:[%s4 + $0x24] sm:$0xf] %vm1188, %v1181
    %1199 = vst.msk [vmem:[%s4 + $0x28] sm:$0xf] %vm1188, %v1182
    %1200 = vst.msk [vmem:[%s4 + $0x2c] sm:$0xf] %vm1188, %v1183
    %1201 = vst.msk [vmem:[%s4 + $0x30] sm:$0xf] %vm1188, %v1184
    %1202 = vst.msk [vmem:[%s4 + $0x34] sm:$0xf] %vm1188, %v1185
    %1203 = vst.msk [vmem:[%s4 + $0x38] sm:$0xf] %vm1188, %v1186
    %1204 = vst.msk [vmem:[%s4 + $0x3c] sm:$0xf] %vm1188, %v1187
    // Predicated region
    $region22: #{_lambda_.8} parent=1 // pred_check
      _
    $region23: #{_lambda_.8} parent=1 // pred_check_branch
      %1206 = sbr.rel (0) target = $region25
    $region24: #{_lambda_.8} parent=1 // pred_region
      _
    $region25: #{_lambda_.8} parent=1 // pred_fallthru
      _
    // Predicated region
    $region26: #{_lambda_.8} parent=1 // pred_check
      _
    $region27: #{_lambda_.8} parent=1 // pred_check_branch
      %1208 = sbr.rel (0) target = $region29
    $region28: #{_lambda_.8} parent=1 // pred_region
      _
    $region29: #{_lambda_.8} parent=1 // pred_fallthru
      _
    %1209 = vsyncpa [#allocation3], 1

// kernel: _lambda_.9
$region0: #{_lambda_.9}
  #allocation0 [shape = 'u32[]', space=smem, size = 0x4, offset = 0x4, fixed_abs, tag = 'smem constant byte address 0x4 - core index']
  #allocation1 [shape = 'u32[72,128]{1,0:T(1,128)}', space=vmem, size = 0x9000, scoped, tag = 'internal scratch']
  %s0 = inlined_call_operand.hbm [shape: bf16[64,288], index: 0, kind: input, shape index: {}]
  %s1 = inlined_call_operand.vmem [shape: bf16[288,32], index: 1, kind: input, shape index: {}]
  %s2 = inlined_call_operand.vmem [shape: f32[16,1], index: 2, kind: input, shape index: {}]
  %s3 = inlined_call_operand.vmem [shape: f32[16,1], index: 3, kind: input, shape index: {}]
  %s4 = inlined_call_operand.vmem [shape: bf16[64,32], index: 4, kind: output, shape index: {}]
  %s5 = sld [smem:[#allocation0]]
  $region30: #{_lambda_.9} parent=0
    _
  %s7 = ssub.s32 1, %s5
  %s8 = scalar_select 0, %s7, %s5
  $region1: #{_lambda_.9} parent=0
    #allocation2 [shape = 'u8[49152]{0}', space=vmem, size = 0xc000, scoped, tag = 'input window, operand 0, single buffered']
    #allocation3 [shape = 's32[1]{0}', space=sflag, size = 0x4, scoped, tag = 'scoped memory for _lambda_.9']
    %9 = vsyncpa [#allocation3], 0
    // Predicated region
    $region2: #{_lambda_.9} parent=1 // pred_check
      _
    $region3: #{_lambda_.9} parent=1 // pred_check_branch
      %11 = sbr.rel (0) target = $region5
    $region4: #{_lambda_.9} parent=1 // pred_region
      %13 = vsyncadd [#allocation3], 0
      %s14 = sshll.u32 %s0, 4
      %s15 = int_to_ptr.hbm [resolvable:$true] %s14
      %s16 = sshll.u32 [#allocation2], 4
      %s17 = int_to_ptr.vmem [resolvable:$true] %s16
      %22 = dma.hbm_to_vmem [thread:$0]  %s15, 1536, %s17, [#allocation3], 192, 192, 12
    $region5: #{_lambda_.9} parent=1 // pred_fallthru
      _
    // Predicated region
    $region6: #{_lambda_.9} parent=1 // pred_check
      _
    $region7: #{_lambda_.9} parent=1 // pred_check_branch
      %24 = sbr.rel (0) target = $region9
    $region8: #{_lambda_.9} parent=1 // pred_region
      _
    $region9: #{_lambda_.9} parent=1 // pred_fallthru
      _
    // Predicated region
    $region10: #{_lambda_.9} parent=1 // pred_check
      _
    $region11: #{_lambda_.9} parent=1 // pred_check_branch
      %26 = sbr.rel (0) target = $region13
    $region12: #{_lambda_.9} parent=1 // pred_region
      _
    $region13: #{_lambda_.9} parent=1 // pred_fallthru
      _
    // Predicated region
    $region14: #{_lambda_.9} parent=1 // pred_check
      _
    $region15: #{_lambda_.9} parent=1 // pred_check_branch
      %28 = sbr.rel (0) target = $region17
    $region16: #{_lambda_.9} parent=1 // pred_region
      _
    $region17: #{_lambda_.9} parent=1 // pred_fallthru
      _
    // Predicated region
    $region18: #{_lambda_.9} parent=1 // pred_check
      _
    $region19: #{_lambda_.9} parent=1 // pred_check_branch
      %30 = sbr.rel (0) target = $region21
    $region20: #{_lambda_.9} parent=1 // pred_region
      %32 = dma.done [#allocation3], 1536
    $region21: #{_lambda_.9} parent=1 // pred_fallthru
      _
    %v34 = vld [vmem:[#allocation2] sm:$0xff]
    %v35 = vld [vmem:[#allocation2 + $0x8] sm:$0xf]
    %v36 = vld [vmem:[#allocation2 + $0xc] sm:$0xff]
    %v37 = vld [vmem:[#allocation2 + $0x14] sm:$0xf]
    %v38 = vld [vmem:[#allocation2 + $0x18] sm:$0xff]
    %v39 = vld [vmem:[#allocation2 + $0x20] sm:$0xf]
    %v40 = vld [vmem:[#allocation2 + $0x24] sm:$0xff]
    %v41 = vld [vmem:[#allocation2 + $0x2c] sm:$0xf]
    %v42 = vld [vmem:[#allocation2 + $0x30] sm:$0xff]
    %v43 = vld [vmem:[#allocation2 + $0x38] sm:$0xf]
    %v44 = vld [vmem:[#allocation2 + $0x3c] sm:$0xff]
    %v45 = vld [vmem:[#allocation2 + $0x44] sm:$0xf]
    %v46 = vld [vmem:[#allocation2 + $0x48] sm:$0xff]
    %v47 = vld [vmem:[#allocation2 + $0x50] sm:$0xf]
    %v48 = vld [vmem:[#allocation2 + $0x54] sm:$0xff]
    %v49 = vld [vmem:[#allocation2 + $0x5c] sm:$0xf]
    %v50 = vld [vmem:[%s1] sm:$0xf]
    %v51 = vld [vmem:[%s1 + $0x4] sm:$0xf]
    %v52 = vld [vmem:[%s1 + $0x8] sm:$0xf]
    %v53 = vld [vmem:[%s1 + $0xc] sm:$0xf]
    %v54 = vld [vmem:[%s1 + $0x10] sm:$0xf]
    %v55 = vld [vmem:[%s1 + $0x14] sm:$0xf]
    %v56 = vld [vmem:[%s1 + $0x18] sm:$0xf]
    %v57 = vld [vmem:[%s1 + $0x1c] sm:$0xf]
    %v58 = vld [vmem:[%s1 + $0x20] sm:$0xf]
    %v59 = vld [vmem:[%s1 + $0x24] sm:$0xf]
    %v60 = vld [vmem:[%s1 + $0x28] sm:$0xf]
    %v61 = vld [vmem:[%s1 + $0x2c] sm:$0xf]
    %v62 = vld [vmem:[%s1 + $0x30] sm:$0xf]
    %v63 = vld [vmem:[%s1 + $0x34] sm:$0xf]
    %v64 = vld [vmem:[%s1 + $0x38] sm:$0xf]
    %v65 = vld [vmem:[%s1 + $0x3c] sm:$0xf]
    %v66 = vld [vmem:[%s1 + $0x40] sm:$0xf]
    %v67 = vld [vmem:[%s1 + $0x44] sm:$0xf]
    %v68 = vld [vmem:[%s1 + $0x48] sm:$0xf]
    %v69 = vld [vmem:[%s1 + $0x4c] sm:$0xf]
    %v70 = vld [vmem:[%s1 + $0x50] sm:$0xf]
    %v71 = vld [vmem:[%s1 + $0x54] sm:$0xf]
    %v72 = vld [vmem:[%s1 + $0x58] sm:$0xf]
    %v73 = vld [vmem:[%s1 + $0x5c] sm:$0xf]
    %v74 = vld [vmem:[%s1 + $0x60] sm:$0xf]
    %v75 = vld [vmem:[%s1 + $0x64] sm:$0xf]
    %v76 = vld [vmem:[%s1 + $0x68] sm:$0xf]
    %v77 = vld [vmem:[%s1 + $0x6c] sm:$0xf]
    %v78 = vld [vmem:[%s1 + $0x70] sm:$0xf]
    %v79 = vld [vmem:[%s1 + $0x74] sm:$0xf]
    %v80 = vld [vmem:[%s1 + $0x78] sm:$0xf]
    %v81 = vld [vmem:[%s1 + $0x7c] sm:$0xf]
    %v82 = vld [vmem:[%s1 + $0x80] sm:$0xf]
    %v83 = vld [vmem:[%s1 + $0x84] sm:$0xf]
    %v84 = vld [vmem:[%s1 + $0x88] sm:$0xf]
    %v85 = vld [vmem:[%s1 + $0x8c] sm:$0xf]
    %v102 = vunpack.c.l.b16 %v34
    %v103 = vunpack.c.h.b16 %v34
    %v104 = vunpack.c.l.b16 %v35
    %v105 = vunpack.c.l.b16 %v36
    %v106 = vunpack.c.h.b16 %v36
    %v107 = vunpack.c.l.b16 %v37
    %v108 = vunpack.c.l.b16 %v38
    %v109 = vunpack.c.h.b16 %v38
    %v110 = vunpack.c.l.b16 %v39
    %v111 = vunpack.c.l.b16 %v40
    %v112 = vunpack.c.h.b16 %v40
    %v113 = vunpack.c.l.b16 %v41
    %v114 = vunpack.c.l.b16 %v42
    %v115 = vunpack.c.h.b16 %v42
    %v116 = vunpack.c.l.b16 %v43
    %v117 = vunpack.c.l.b16 %v44
    %v118 = vunpack.c.h.b16 %v44
    %v119 = vunpack.c.l.b16 %v45
    %v120 = vunpack.c.l.b16 %v46
    %v121 = vunpack.c.h.b16 %v46
    %v122 = vunpack.c.l.b16 %v47
    %v123 = vunpack.c.l.b16 %v48
    %v124 = vunpack.c.h.b16 %v48
    %v125 = vunpack.c.l.b16 %v49
    %v126 = vpack.c.b16 %v105, %v102
    %v127 = vpack.c.b16 %v106, %v103
    %v128 = vpack.c.b16 %v107, %v104
    %v129 = vpack.c.b16 %v111, %v108
    %v130 = vpack.c.b16 %v112, %v109
    %v131 = vpack.c.b16 %v113, %v110
    %v132 = vpack.c.b16 %v117, %v114
    %v133 = vpack.c.b16 %v118, %v115
    %v134 = vpack.c.b16 %v119, %v116
    %v135 = vpack.c.b16 %v123, %v120
    %v136 = vpack.c.b16 %v124, %v121
    %v137 = vpack.c.b16 %v125, %v122
    %v182 = vunpack.c.l.b16 %v50
    %v183 = vunpack.c.l.b16 %v51
    %v184 = vunpack.c.l.b16 %v52
    %v185 = vunpack.c.l.b16 %v53
    %v186 = vunpack.c.l.b16 %v54
    %v187 = vunpack.c.l.b16 %v55
    %v188 = vunpack.c.l.b16 %v56
    %v189 = vunpack.c.l.b16 %v57
    %v190 = vunpack.c.l.b16 %v58
    %v191 = vunpack.c.l.b16 %v59
    %v192 = vunpack.c.l.b16 %v60
    %v193 = vunpack.c.l.b16 %v61
    %v194 = vunpack.c.l.b16 %v62
    %v195 = vunpack.c.l.b16 %v63
    %v196 = vunpack.c.l.b16 %v64
    %v197 = vunpack.c.l.b16 %v65
    %v198 = vunpack.c.l.b16 %v66
    %v199 = vunpack.c.l.b16 %v67
    %v200 = vunpack.c.l.b16 %v68
    %v201 = vunpack.c.l.b16 %v69
    %v202 = vunpack.c.l.b16 %v70
    %v203 = vunpack.c.l.b16 %v71
    %v204 = vunpack.c.l.b16 %v72
    %v205 = vunpack.c.l.b16 %v73
    %v206 = vunpack.c.l.b16 %v74
    %v207 = vunpack.c.l.b16 %v75
    %v208 = vunpack.c.l.b16 %v76
    %v209 = vunpack.c.l.b16 %v77
    %v210 = vunpack.c.l.b16 %v78
    %v211 = vunpack.c.l.b16 %v79
    %v212 = vunpack.c.l.b16 %v80
    %v213 = vunpack.c.l.b16 %v81
    %v214 = vunpack.c.l.b16 %v82
    %v215 = vunpack.c.l.b16 %v83
    %v216 = vunpack.c.l.b16 %v84
    %v217 = vunpack.c.l.b16 %v85
    %v218 = vpack.c.b16 %v183, %v182
    %v219 = vpack.c.b16 %v185, %v184
    %v220 = vpack.c.b16 %v187, %v186
    %v221 = vpack.c.b16 %v189, %v188
    %v222 = vpack.c.b16 %v191, %v190
    %v223 = vpack.c.b16 %v193, %v192
    %v224 = vpack.c.b16 %v195, %v194
    %v225 = vpack.c.b16 %v197, %v196
    %v226 = vpack.c.b16 %v199, %v198
    %v227 = vpack.c.b16 %v201, %v200
    %v228 = vpack.c.b16 %v203, %v202
    %v229 = vpack.c.b16 %v205, %v204
    %v230 = vpack.c.b16 %v207, %v206
    %v231 = vpack.c.b16 %v209, %v208
    %v232 = vpack.c.b16 %v211, %v210
    %v233 = vpack.c.b16 %v213, %v212
    %v234 = vpack.c.b16 %v215, %v214
    %v235 = vpack.c.b16 %v217, %v216
    %vm254 = vcmask 261120
    %v256 = vsel %vm254, %v128, 0
    %v259 = vsel %vm254, %v131, 0
    %v262 = vsel %vm254, %v134, 0
    %v265 = vsel %vm254, %v137, 0
    %267 = vmatpush.bf16.msra.mxu0 %v225
    %268 = vmatpush.bf16.msra.mxu0 %v224
    %269 = vmatpush.bf16.msra.mxu0 %v223
    %270 = vmatpush.bf16.msra.mxu0 %v222
    %271 = vmatpush.bf16.msra.mxu0 %v221
    %272 = vmatpush.bf16.msra.mxu0 %v220
    %273 = vmatpush.bf16.msra.mxu0 %v219
    %274 = vmatpush.bf16.msra.mxu0 %v218
    %275 = vmatmul.bf16.gmra.mxu0 %v126
    %v276 = vpop.f32.mrf.mxu0
    %v277 = vadd.f32 0.0, %v276
    %v278 = vpop.f32.mrf.mxu0
    %v279 = vadd.f32 0.0, %v278
    %280 = vmatmul.bf16.gmra.mxu0 %v129
    %v281 = vpop.f32.mrf.mxu0
    %v282 = vadd.f32 0.0, %v281
    %v283 = vpop.f32.mrf.mxu0
    %v284 = vadd.f32 0.0, %v283
    %285 = vmatmul.bf16.gmra.mxu0 %v132
    %v286 = vpop.f32.mrf.mxu0
    %v287 = vadd.f32 0.0, %v286
    %v288 = vpop.f32.mrf.mxu0
    %v289 = vadd.f32 0.0, %v288
    %290 = vmatmul.bf16.gmra.mxu0 %v135
    %v291 = vpop.f32.mrf.mxu0
    %v292 = vadd.f32 0.0, %v291
    %v293 = vpop.f32.mrf.mxu0
    %v294 = vadd.f32 0.0, %v293
    %295 = vdwg.mxu0
    %296 = vmatpush.bf16.msra.mxu0 %v233
    %297 = vmatpush.bf16.msra.mxu0 %v232
    %298 = vmatpush.bf16.msra.mxu0 %v231
    %299 = vmatpush.bf16.msra.mxu0 %v230
    %300 = vmatpush.bf16.msra.mxu0 %v229
    %301 = vmatpush.bf16.msra.mxu0 %v228
    %302 = vmatpush.bf16.msra.mxu0 %v227
    %303 = vmatpush.bf16.msra.mxu0 %v226
    %304 = vmatmul.bf16.gmra.mxu0 %v127
    %v305 = vpop.f32.mrf.mxu0
    %v306 = vadd.f32 %v277, %v305
    %v307 = vpop.f32.mrf.mxu0
    %v308 = vadd.f32 %v279, %v307
    %309 = vmatmul.bf16.gmra.mxu0 %v130
    %v310 = vpop.f32.mrf.mxu0
    %v311 = vadd.f32 %v282, %v310
    %v312 = vpop.f32.mrf.mxu0
    %v313 = vadd.f32 %v284, %v312
    %314 = vmatmul.bf16.gmra.mxu0 %v133
    %v315 = vpop.f32.mrf.mxu0
    %v316 = vadd.f32 %v287, %v315
    %v317 = vpop.f32.mrf.mxu0
    %v318 = vadd.f32 %v289, %v317
    %319 = vmatmul.bf16.gmra.mxu0 %v136
    %v320 = vpop.f32.mrf.mxu0
    %v321 = vadd.f32 %v292, %v320
    %v322 = vpop.f32.mrf.mxu0
    %v323 = vadd.f32 %v294, %v322
    %324 = vdwg.mxu0
    %325 = vmatpush.bf16.msra.mxu0 0
    %326 = vmatpush.bf16.msra.mxu0 0
    %327 = vmatpush.bf16.msra.mxu0 0
    %328 = vmatpush.bf16.msra.mxu0 0
    %329 = vmatpush.bf16.msra.mxu0 0
    %330 = vmatpush.bf16.msra.mxu0 0
    %331 = vmatpush.bf16.msra.mxu0 %v235
    %332 = vmatpush.bf16.msra.mxu0 %v234
    %333 = vmatmul.bf16.gmra.mxu0 %v256
    %v334 = vpop.f32.mrf.mxu0
    %v335 = vadd.f32 %v306, %v334
    %v336 = vpop.f32.mrf.mxu0
    %v337 = vadd.f32 %v308, %v336
    %338 = vmatmul.bf16.gmra.mxu0 %v259
    %v339 = vpop.f32.mrf.mxu0
    %v340 = vadd.f32 %v311, %v339
    %v341 = vpop.f32.mrf.mxu0
    %v342 = vadd.f32 %v313, %v341
    %343 = vmatmul.bf16.gmra.mxu0 %v262
    %v344 = vpop.f32.mrf.mxu0
    %v345 = vadd.f32 %v316, %v344
    %v346 = vpop.f32.mrf.mxu0
    %v347 = vadd.f32 %v318, %v346
    %348 = vmatmul.bf16.gmra.mxu0 %v265
    %v349 = vpop.f32.mrf.mxu0
    %v350 = vadd.f32 %v321, %v349
    %v351 = vpop.f32.mrf.mxu0
    %v352 = vadd.f32 %v323, %v351
    %353 = vdwg.mxu0
    %v354 = vld [vmem:[%s2] sm:$0xff]
    %v355 = vld [vmem:[%s2 + $0x8] sm:$0xff]
    %v356 = vld [vmem:[%s3] sm:$0xff]
    %v357 = vld [vmem:[%s3 + $0x8] sm:$0xff]
    %v358 = vsel %vm254, %v335, 0.0
    %359 = vadd.xlane.f32.xlu0 %v358
    %v360 = vpop.xlane.xlu0 %359
    %v361 = vsel %vm254, %v337, 0.0
    %362 = vadd.xlane.f32.xlu0 %v361
    %v363 = vpop.xlane.xlu0 %362
    %v364 = vsel %vm254, %v340, 0.0
    %365 = vadd.xlane.f32.xlu0 %v364
    %v366 = vpop.xlane.xlu0 %365
    %v367 = vsel %vm254, %v342, 0.0
    %368 = vadd.xlane.f32.xlu0 %v367
    %v369 = vpop.xlane.xlu0 %368
    %v370 = vsel %vm254, %v345, 0.0
    %371 = vadd.xlane.f32.xlu0 %v370
    %v372 = vpop.xlane.xlu0 %371
    %v373 = vsel %vm254, %v347, 0.0
    %374 = vadd.xlane.f32.xlu0 %v373
    %v375 = vpop.xlane.xlu0 %374
    %v376 = vsel %vm254, %v350, 0.0
    %377 = vadd.xlane.f32.xlu0 %v376
    %v378 = vpop.xlane.xlu0 %377
    %v379 = vsel %vm254, %v352, 0.0
    %380 = vadd.xlane.f32.xlu0 %v379
    %v381 = vpop.xlane.xlu0 %380
    %v382 = vadd.f32 %v360, %v366
    %v383 = vadd.f32 %v363, %v369
    %v384 = vadd.f32 %v382, %v372
    %v385 = vadd.f32 %v383, %v375
    %v386 = vadd.f32 %v384, %v378
    %v387 = vadd.f32 %v385, %v381
    %v388 = vrcp.pop 128.0
    %v389 = vmul.f32 128.0, %v388
    %v390 = vsub.f32 1.0, %v389
    %v391 = vmul.f32 %v388, %v390
    %v392 = vadd.f32 %v388, %v391
    %vm393 = vweird.f32 %v388
    %v394 = vsel %vm393, %v388, %v392
    %v395 = vmul.f32 %v386, %v394
    %v396 = vmul.f32 %v387, %v394
    %398 = vset.pattern.permute.xlu0 0
    %399 = vperm.xlu0 %398, %v395
    %v400 = vpop.permute.xlu0 %399
    %403 = vset.pattern.permute.xlu0 0
    %404 = vperm.xlu0 %403, %v396
    %v405 = vpop.permute.xlu0 %404
    %v407 = vsub.f32 %v335, %v400
    %v408 = vsub.f32 %v337, %v405
    %v409 = vsub.f32 %v340, %v400
    %v410 = vsub.f32 %v342, %v405
    %v411 = vsub.f32 %v345, %v400
    %v412 = vsub.f32 %v347, %v405
    %v413 = vsub.f32 %v350, %v400
    %v414 = vsub.f32 %v352, %v405
    %v415 = vmul.f32 %v407, %v407
    %v416 = vmul.f32 %v408, %v408
    %v417 = vmul.f32 %v409, %v409
    %v418 = vmul.f32 %v410, %v410
    %v419 = vmul.f32 %v411, %v411
    %v420 = vmul.f32 %v412, %v412
    %v421 = vmul.f32 %v413, %v413
    %v422 = vmul.f32 %v414, %v414
    %v423 = vsel %vm254, %v415, 0.0
    %424 = vadd.xlane.f32.xlu0 %v423
    %v425 = vpop.xlane.xlu0 %424
    %v426 = vsel %vm254, %v416, 0.0
    %427 = vadd.xlane.f32.xlu0 %v426
    %v428 = vpop.xlane.xlu0 %427
    %v429 = vsel %vm254, %v417, 0.0
    %430 = vadd.xlane.f32.xlu0 %v429
    %v431 = vpop.xlane.xlu0 %430
    %v432 = vsel %vm254, %v418, 0.0
    %433 = vadd.xlane.f32.xlu0 %v432
    %v434 = vpop.xlane.xlu0 %433
    %v435 = vsel %vm254, %v419, 0.0
    %436 = vadd.xlane.f32.xlu0 %v435
    %v437 = vpop.xlane.xlu0 %436
    %v438 = vsel %vm254, %v420, 0.0
    %439 = vadd.xlane.f32.xlu0 %v438
    %v440 = vpop.xlane.xlu0 %439
    %v441 = vsel %vm254, %v421, 0.0
    %442 = vadd.xlane.f32.xlu0 %v441
    %v443 = vpop.xlane.xlu0 %442
    %v444 = vsel %vm254, %v422, 0.0
    %445 = vadd.xlane.f32.xlu0 %v444
    %v446 = vpop.xlane.xlu0 %445
    %v447 = vadd.f32 %v425, %v431
    %v448 = vadd.f32 %v428, %v434
    %v449 = vadd.f32 %v447, %v437
    %v450 = vadd.f32 %v448, %v440
    %v451 = vadd.f32 %v449, %v443
    %v452 = vadd.f32 %v450, %v446
    %v453 = vmul.f32 %v451, %v394
    %v454 = vmul.f32 %v452, %v394
    %v455 = vadd.f32 %v453, 1e-05
    %v456 = vadd.f32 %v454, 1e-05
    %v457 = vrsqrt.pop %v455
    %v458 = vmul.f32 %v457, %v455
    %v459 = vmul.f32 %v458, %v457
    %v460 = vmul.f32 0.5, %v459
    %v461 = vsub.f32 1.5, %v460
    %v462 = vmul.f32 %v457, %v461
    %vm463 = vweird.f32 %v455
    %vm464 = vweird.f32 %v457
    %vm465 = vmor %vm463, %vm464
    %v466 = vsel %vm465, %v457, %v462
    %v467 = vrsqrt.pop %v456
    %v468 = vmul.f32 %v467, %v456
    %v469 = vmul.f32 %v468, %v467
    %v470 = vmul.f32 0.5, %v469
    %v471 = vsub.f32 1.5, %v470
    %v472 = vmul.f32 %v467, %v471
    %vm473 = vweird.f32 %v456
    %vm474 = vweird.f32 %v467
    %vm475 = vmor %vm473, %vm474
    %v476 = vsel %vm475, %v467, %v472
    %v477 = vmul.f32 %v466, %v354
    %v478 = vmul.f32 %v476, %v355
    %480 = vset.pattern.permute.xlu0 0
    %481 = vperm.xlu0 %480, %v477
    %v482 = vpop.permute.xlu0 %481
    %485 = vset.pattern.permute.xlu0 0
    %486 = vperm.xlu0 %485, %v478
    %v487 = vpop.permute.xlu0 %486
    %v489 = vmul.f32 %v407, %v482
    %v490 = vmul.f32 %v408, %v487
    %v491 = vmul.f32 %v409, %v482
    %v492 = vmul.f32 %v410, %v487
    %v493 = vmul.f32 %v411, %v482
    %v494 = vmul.f32 %v412, %v487
    %v495 = vmul.f32 %v413, %v482
    %v496 = vmul.f32 %v414, %v487
    %498 = vset.pattern.permute.xlu0 0
    %499 = vperm.xlu0 %498, %v356
    %v500 = vpop.permute.xlu0 %499
    %503 = vset.pattern.permute.xlu0 0
    %504 = vperm.xlu0 %503, %v357
    %v505 = vpop.permute.xlu0 %504
    %v507 = vadd.f32 %v489, %v500
    %v508 = vadd.f32 %v490, %v505
    %v509 = vadd.f32 %v491, %v500
    %v510 = vadd.f32 %v492, %v505
    %v511 = vadd.f32 %v493, %v500
    %v512 = vadd.f32 %v494, %v505
    %v513 = vadd.f32 %v495, %v500
    %v514 = vadd.f32 %v496, %v505
    %v515 = vmax.f32 %v507, 0.0
    %v516 = vmax.f32 %v508, 0.0
    %v517 = vmax.f32 %v509, 0.0
    %v518 = vmax.f32 %v510, 0.0
    %v519 = vmax.f32 %v511, 0.0
    %v520 = vmax.f32 %v512, 0.0
    %v521 = vmax.f32 %v513, 0.0
    %v522 = vmax.f32 %v514, 0.0
    %v523 = vpack.c.bf16 %v515, %v515
    %v524 = vpack.c.bf16 %v516, %v516
    %v525 = vpack.c.bf16 %v517, %v517
    %v526 = vpack.c.bf16 %v518, %v518
    %v527 = vpack.c.bf16 %v519, %v519
    %v528 = vpack.c.bf16 %v520, %v520
    %v529 = vpack.c.bf16 %v521, %v521
    %v530 = vpack.c.bf16 %v522, %v522
    %vm531 = vcmask 257024
    %532 = vst.msk [vmem:[%s4] sm:$0xf] %vm531, %v523
    %533 = vst.msk [vmem:[%s4 + $0x4] sm:$0xf] %vm531, %v524
    %534 = vst.msk [vmem:[%s4 + $0x8] sm:$0xf] %vm531, %v525
    %535 = vst.msk [vmem:[%s4 + $0xc] sm:$0xf] %vm531, %v526
    %536 = vst.msk [vmem:[%s4 + $0x10] sm:$0xf] %vm531, %v527
    %537 = vst.msk [vmem:[%s4 + $0x14] sm:$0xf] %vm531, %v528
    %538 = vst.msk [vmem:[%s4 + $0x18] sm:$0xf] %vm531, %v529
    %539 = vst.msk [vmem:[%s4 + $0x1c] sm:$0xf] %vm531, %v530
    // Predicated region
    $region22: #{_lambda_.9} parent=1 // pred_check
      _
    $region23: #{_lambda_.9} parent=1 // pred_check_branch
      %541 = sbr.rel (0) target = $region25
    $region24: #{_lambda_.9} parent=1 // pred_region
      _
    $region25: #{_lambda_.9} parent=1 // pred_fallthru
      _
    // Predicated region
    $region26: #{_lambda_.9} parent=1 // pred_check
      _
    $region27: #{_lambda_.9} parent=1 // pred_check_branch
      %543 = sbr.rel (0) target = $region29
    $region28: #{_lambda_.9} parent=1 // pred_region
      _
    $region29: #{_lambda_.9} parent=1 // pred_fallthru
      _
    %544 = vsyncpa [#allocation3], 1

// kernel: _lambda_.10
$region0: #{_lambda_.10}
  #allocation0 [shape = 'u32[]', space=smem, size = 0x4, offset = 0x4, fixed_abs, tag = 'smem constant byte address 0x4 - core index']
  #allocation1 [shape = 'u32[72,128]{1,0:T(1,128)}', space=vmem, size = 0x9000, scoped, tag = 'internal scratch']
  %s0 = inlined_call_operand.vmem [shape: bf16[32,144], index: 0, kind: input, shape index: {}]
  %s1 = inlined_call_operand.vmem [shape: bf16[144,128], index: 1, kind: input, shape index: {}]
  %s2 = inlined_call_operand.vmem [shape: f32[8,1], index: 2, kind: input, shape index: {}]
  %s3 = inlined_call_operand.vmem [shape: f32[8,1], index: 3, kind: input, shape index: {}]
  %s4 = inlined_call_operand.vmem [shape: bf16[32,128], index: 4, kind: output, shape index: {}]
  %s5 = sld [smem:[#allocation0]]
  $region26: #{_lambda_.10} parent=0
    _
  %s7 = ssub.s32 1, %s5
  %s8 = scalar_select 0, %s7, %s5
  // Predicated region
  $region2: #{_lambda_.10} parent=0 // pred_check
    _
  $region3: #{_lambda_.10} parent=0 // pred_check_branch
    %10 = sbr.rel (0) target = $region5
  $region4: #{_lambda_.10} parent=0 // pred_region
    _
  $region5: #{_lambda_.10} parent=0 // pred_fallthru
    _
  // Predicated region
  $region6: #{_lambda_.10} parent=0 // pred_check
    _
  $region7: #{_lambda_.10} parent=0 // pred_check_branch
    %12 = sbr.rel (0) target = $region9
  $region8: #{_lambda_.10} parent=0 // pred_region
    _
  $region9: #{_lambda_.10} parent=0 // pred_fallthru
    _
  // Predicated region
  $region10: #{_lambda_.10} parent=0 // pred_check
    _
  $region11: #{_lambda_.10} parent=0 // pred_check_branch
    %14 = sbr.rel (0) target = $region13
  $region12: #{_lambda_.10} parent=0 // pred_region
    _
  $region13: #{_lambda_.10} parent=0 // pred_fallthru
    _
  // Predicated region
  $region14: #{_lambda_.10} parent=0 // pred_check
    _
  $region15: #{_lambda_.10} parent=0 // pred_check_branch
    %16 = sbr.rel (0) target = $region17
  $region16: #{_lambda_.10} parent=0 // pred_region
    _
  $region17: #{_lambda_.10} parent=0 // pred_fallthru
    _
  %v18 = vld [vmem:[%s0] sm:$0xff]
  %v19 = vld [vmem:[%s0 + $0x8] sm:$0xff]
  %v20 = vld [vmem:[%s0 + $0x10] sm:$0xff]
  %v21 = vld [vmem:[%s0 + $0x18] sm:$0xff]
  %v22 = vld [vmem:[%s1] sm:$0xf]
  %v23 = vld [vmem:[%s1 + $0x4] sm:$0xf]
  %v24 = vld [vmem:[%s1 + $0x8] sm:$0xf]
  %v25 = vld [vmem:[%s1 + $0xc] sm:$0xf]
  %v26 = vld [vmem:[%s1 + $0x10] sm:$0xf]
  %v27 = vld [vmem:[%s1 + $0x14] sm:$0xf]
  %v28 = vld [vmem:[%s1 + $0x18] sm:$0xf]
  %v29 = vld [vmem:[%s1 + $0x1c] sm:$0xf]
  %v30 = vld [vmem:[%s1 + $0x20] sm:$0xf]
  %v31 = vld [vmem:[%s1 + $0x24] sm:$0xf]
  %v32 = vld [vmem:[%s1 + $0x28] sm:$0xf]
  %v33 = vld [vmem:[%s1 + $0x2c] sm:$0xf]
  %v34 = vld [vmem:[%s1 + $0x30] sm:$0xf]
  %v35 = vld [vmem:[%s1 + $0x34] sm:$0xf]
  %v36 = vld [vmem:[%s1 + $0x38] sm:$0xf]
  %v37 = vld [vmem:[%s1 + $0x3c] sm:$0xf]
  %v38 = vld [vmem:[%s1 + $0x40] sm:$0xf]
  %v39 = vld [vmem:[%s1 + $0x44] sm:$0xf]
  %v44 = vunpack.c.l.b16 %v18
  %v45 = vunpack.c.h.b16 %v18
  %v46 = vunpack.c.l.b16 %v19
  %v47 = vunpack.c.h.b16 %v19
  %v48 = vunpack.c.l.b16 %v20
  %v49 = vunpack.c.h.b16 %v20
  %v50 = vunpack.c.l.b16 %v21
  %v51 = vunpack.c.h.b16 %v21
  %v52 = vpack.c.b16 %v46, %v44
  %v53 = vpack.c.b16 %v47, %v45
  %v54 = vpack.c.b16 %v50, %v48
  %v55 = vpack.c.b16 %v51, %v49
  %v76 = vunpack.c.l.b16 %v22
  %v77 = vunpack.c.l.b16 %v23
  %v78 = vunpack.c.l.b16 %v24
  %v79 = vunpack.c.l.b16 %v25
  %v80 = vunpack.c.l.b16 %v26
  %v81 = vunpack.c.l.b16 %v27
  %v82 = vunpack.c.l.b16 %v28
  %v83 = vunpack.c.l.b16 %v29
  %v84 = vunpack.c.l.b16 %v30
  %v85 = vunpack.c.l.b16 %v31
  %v86 = vunpack.c.l.b16 %v32
  %v87 = vunpack.c.l.b16 %v33
  %v88 = vunpack.c.l.b16 %v34
  %v89 = vunpack.c.l.b16 %v35
  %v90 = vunpack.c.l.b16 %v36
  %v91 = vunpack.c.l.b16 %v37
  %v92 = vunpack.c.l.b16 %v38
  %v93 = vunpack.c.l.b16 %v39
  %v94 = vpack.c.b16 %v77, %v76
  %v95 = vpack.c.b16 %v79, %v78
  %v96 = vpack.c.b16 %v81, %v80
  %v97 = vpack.c.b16 %v83, %v82
  %v98 = vpack.c.b16 %v85, %v84
  %v99 = vpack.c.b16 %v87, %v86
  %v100 = vpack.c.b16 %v89, %v88
  %v101 = vpack.c.b16 %v91, %v90
  %v102 = vpack.c.b16 %v93, %v92
  %vm112 = vcmask 130048
  %v114 = vsel %vm112, %v53, 0
  %v117 = vsel %vm112, %v55, 0
  %119 = vmatpush.bf16.msra.mxu0 %v101
  %120 = vmatpush.bf16.msra.mxu0 %v100
  %121 = vmatpush.bf16.msra.mxu0 %v99
  %122 = vmatpush.bf16.msra.mxu0 %v98
  %123 = vmatpush.bf16.msra.mxu0 %v97
  %124 = vmatpush.bf16.msra.mxu0 %v96
  %125 = vmatpush.bf16.msra.mxu0 %v95
  %126 = vmatpush.bf16.msra.mxu0 %v94
  %127 = vmatmul.bf16.gmra.mxu0 %v52
  %v128 = vpop.f32.mrf.mxu0
  %v129 = vadd.f32 0.0, %v128
  %v130 = vpop.f32.mrf.mxu0
  %v131 = vadd.f32 0.0, %v130
  %132 = vmatmul.bf16.gmra.mxu0 %v54
  %v133 = vpop.f32.mrf.mxu0
  %v134 = vadd.f32 0.0, %v133
  %v135 = vpop.f32.mrf.mxu0
  %v136 = vadd.f32 0.0, %v135
  %137 = vdwg.mxu0
  %138 = vmatpush.bf16.msra.mxu0 0
  %139 = vmatpush.bf16.msra.mxu0 0
  %140 = vmatpush.bf16.msra.mxu0 0
  %141 = vmatpush.bf16.msra.mxu0 0
  %142 = vmatpush.bf16.msra.mxu0 0
  %143 = vmatpush.bf16.msra.mxu0 0
  %144 = vmatpush.bf16.msra.mxu0 0
  %145 = vmatpush.bf16.msra.mxu0 %v102
  %146 = vmatmul.bf16.gmra.mxu0 %v114
  %v147 = vpop.f32.mrf.mxu0
  %v148 = vadd.f32 %v129, %v147
  %v149 = vpop.f32.mrf.mxu0
  %v150 = vadd.f32 %v131, %v149
  %151 = vmatmul.bf16.gmra.mxu0 %v117
  %v152 = vpop.f32.mrf.mxu0
  %v153 = vadd.f32 %v134, %v152
  %v154 = vpop.f32.mrf.mxu0
  %v155 = vadd.f32 %v136, %v154
  %156 = vdwg.mxu0
  %v157 = vld [vmem:[%s2] sm:$0xff]
  %v158 = vld [vmem:[%s3] sm:$0xff]
  %159 = vadd.xlane.f32.xlu0 %v148
  %v160 = vpop.xlane.xlu0 %159
  %161 = vadd.xlane.f32.xlu0 %v150
  %v162 = vpop.xlane.xlu0 %161
  %163 = vadd.xlane.f32.xlu0 %v153
  %v164 = vpop.xlane.xlu0 %163
  %165 = vadd.xlane.f32.xlu0 %v155
  %v166 = vpop.xlane.xlu0 %165
  %v167 = vadd.f32 %v160, %v162
  %v168 = vadd.f32 %v167, %v164
  %v169 = vadd.f32 %v168, %v166
  %v170 = vrcp.pop 512.0
  %v171 = vmul.f32 512.0, %v170
  %v172 = vsub.f32 1.0, %v171
  %v173 = vmul.f32 %v170, %v172
  %v174 = vadd.f32 %v170, %v173
  %vm175 = vweird.f32 %v170
  %v176 = vsel %vm175, %v170, %v174
  %v177 = vmul.f32 %v169, %v176
  %179 = vset.pattern.permute.xlu0 0
  %180 = vperm.xlu0 %179, %v177
  %v181 = vpop.permute.xlu0 %180
  %v183 = vsub.f32 %v148, %v181
  %v184 = vsub.f32 %v150, %v181
  %v185 = vsub.f32 %v153, %v181
  %v186 = vsub.f32 %v155, %v181
  %v187 = vmul.f32 %v183, %v183
  %v188 = vmul.f32 %v184, %v184
  %v189 = vmul.f32 %v185, %v185
  %v190 = vmul.f32 %v186, %v186
  %191 = vadd.xlane.f32.xlu0 %v187
  %v192 = vpop.xlane.xlu0 %191
  %193 = vadd.xlane.f32.xlu0 %v188
  %v194 = vpop.xlane.xlu0 %193
  %195 = vadd.xlane.f32.xlu0 %v189
  %v196 = vpop.xlane.xlu0 %195
  %197 = vadd.xlane.f32.xlu0 %v190
  %v198 = vpop.xlane.xlu0 %197
  %v199 = vadd.f32 %v192, %v194
  %v200 = vadd.f32 %v199, %v196
  %v201 = vadd.f32 %v200, %v198
  %v202 = vmul.f32 %v201, %v176
  %v203 = vadd.f32 %v202, 1e-05
  %v204 = vrsqrt.pop %v203
  %v205 = vmul.f32 %v204, %v203
  %v206 = vmul.f32 %v205, %v204
  %v207 = vmul.f32 0.5, %v206
  %v208 = vsub.f32 1.5, %v207
  %v209 = vmul.f32 %v204, %v208
  %vm210 = vweird.f32 %v203
  %vm211 = vweird.f32 %v204
  %vm212 = vmor %vm210, %vm211
  %v213 = vsel %vm212, %v204, %v209
  %v214 = vmul.f32 %v213, %v157
  %216 = vset.pattern.permute.xlu0 0
  %217 = vperm.xlu0 %216, %v214
  %v218 = vpop.permute.xlu0 %217
  %v220 = vmul.f32 %v183, %v218
  %v221 = vmul.f32 %v184, %v218
  %v222 = vmul.f32 %v185, %v218
  %v223 = vmul.f32 %v186, %v218
  %225 = vset.pattern.permute.xlu0 0
  %226 = vperm.xlu0 %225, %v158
  %v227 = vpop.permute.xlu0 %226
  %v229 = vadd.f32 %v220, %v227
  %v230 = vadd.f32 %v221, %v227
  %v231 = vadd.f32 %v222, %v227
  %v232 = vadd.f32 %v223, %v227
  %v233 = vmax.f32 %v229, 0.0
  %v234 = vmax.f32 %v230, 0.0
  %v235 = vmax.f32 %v231, 0.0
  %v236 = vmax.f32 %v232, 0.0
  %v237 = vpack.c.bf16 %v233, %v233
  %v238 = vpack.c.bf16 %v234, %v234
  %v239 = vpack.c.bf16 %v235, %v235
  %v240 = vpack.c.bf16 %v236, %v236
  %241 = vst [vmem:[%s4] sm:$0xf] %v237
  %242 = vst [vmem:[%s4 + $0x4] sm:$0xf] %v238
  %243 = vst [vmem:[%s4 + $0x8] sm:$0xf] %v239
  %244 = vst [vmem:[%s4 + $0xc] sm:$0xf] %v240
  // Predicated region
  $region18: #{_lambda_.10} parent=0 // pred_check
    _
  $region19: #{_lambda_.10} parent=0 // pred_check_branch
    %246 = sbr.rel (0) target = $region21
  $region20: #{_lambda_.10} parent=0 // pred_region
    _
  $region21: #{_lambda_.10} parent=0 // pred_fallthru
    _
  // Predicated region
  $region22: #{_lambda_.10} parent=0 // pred_check
    _
  $region23: #{_lambda_.10} parent=0 // pred_check_branch
    %248 = sbr.rel (0) target = $region25
  $region24: #{_lambda_.10} parent=0 // pred_region
    _
  $region25: #{_lambda_.10} parent=0 // pred_fallthru
    _

// kernel: _lambda_.11
$region0: #{_lambda_.11}
  #allocation0 [shape = 'u32[]', space=smem, size = 0x4, offset = 0x4, fixed_abs, tag = 'smem constant byte address 0x4 - core index']
  #allocation1 [shape = 'u32[72,128]{1,0:T(1,128)}', space=vmem, size = 0x9000, scoped, tag = 'internal scratch']
  %s0 = inlined_call_operand.vmem [shape: bf16[32,72], index: 0, kind: input, shape index: {}]
  %s1 = inlined_call_operand.vmem [shape: bf16[72,512], index: 1, kind: input, shape index: {}]
  %s2 = inlined_call_operand.vmem [shape: bf16[32,512], index: 2, kind: output, shape index: {}]
  %s3 = sld [smem:[#allocation0]]
  $region113: #{_lambda_.11} parent=0
    _
  %s5 = ssub.s32 1, %s3
  %s6 = scalar_select 0, %s5, %s3
  $region1: #{_lambda_.11} parent=0
    #allocation2 [shape = 'u8[73728]{0}', space=vmem, size = 0x12000, scoped, tag = 'input window, operand 1']
    #allocation3 [shape = 'u8[32768]{0}', space=vmem, size = 0x8000, scoped, tag = 'output window, operand 0']
    loop: start=0, step=1, limit=4
    $region2: #{_lambda_.11} parent=1 // loop_pre_header
      _
    $region3: #{_lambda_.11} parent=1 // loop_header
      %s8 = sphi 0, %s12
      %p9 = scmp.ge.s32.totalorder %s8, 4
      %s16 = sphi 0, %s16
      %s18 = sphi 0, %s16
      %s19 = sphi 0, %s18
      %s33 = sphi 0, %s19
      %s39 = sphi 0, %s41
      %s42 = sphi 0, %s39
      %s43 = sphi 0, %s42
      %s59 = sphi 0, %s43
      %s65 = sphi 0, %s67
      %s68 = sphi 0, %s65
      %s69 = sphi 0, %s68
      %s85 = sphi 0, %s69
    $region4: #{_lambda_.11} parent=1 // loop_header_branch
      %11 = sbr.rel (%p9) target = $region8
    $region5: #{_lambda_.11} parent=1 // loop_body
      %s13 = ssub.s32 %s8, 1
      %s14 = ssub.s32 %s8, 2
      %s15 = sadd.s32 %s8, 1
      %s17 = sadd.s32 %s16, 1
      %p20 = scmp.eq.s32.totalorder %s8, 1
      %p21 = scmp.ne.s32.totalorder %s16, %s18
      %p22 = scmp.eq.s32.totalorder %s8, 0
      %p23 = por %p21, %p22
      %p24 = scmp.ne.s32.totalorder %s16, %s18
      %p25 = scmp.eq.s32.totalorder %s13, 1
      %p26 = por %p24, %p25
      %p27 = scmp.ne.s32.totalorder %s18, %s19
      %p28 = scmp.eq.s32.totalorder %s13, 0
      %p29 = por %p27, %p28
      %p30 = scmp.ne.s32.totalorder %s18, %s19
      %p31 = scmp.eq.s32.totalorder %s14, 1
      %p32 = por %p30, %p31
      %p34 = scmp.ne.s32.totalorder %s19, %s33
      %p35 = scmp.eq.s32.totalorder %s14, 0
      %p36 = por %p34, %p35
      %s37 = ssub.s32 %s8, %s15
      %p38 = scmp.eq.s32.totalorder %s37, 0
      %s40 = sadd.s32 %s39, 1
      %s41 = scalar_select %p38, %s39, %s40
      %p44 = pneg %p38
      %p45 = scmp.eq.s32.totalorder %s8, 1
      %p46 = por %p44, %p45
      %p47 = scmp.ne.s32.totalorder %s39, %s42
      %p48 = scmp.eq.s32.totalorder %s8, 0
      %p49 = por %p47, %p48
      %p50 = scmp.ne.s32.totalorder %s39, %s42
      %p51 = scmp.eq.s32.totalorder %s13, 1
      %p52 = por %p50, %p51
      %p53 = scmp.ne.s32.totalorder %s42, %s43
      %p54 = scmp.eq.s32.totalorder %s13, 0
      %p55 = por %p53, %p54
      %p56 = scmp.ne.s32.totalorder %s42, %s43
      %p57 = scmp.eq.s32.totalorder %s14, 1
      %p58 = por %p56, %p57
      %p60 = scmp.ne.s32.totalorder %s43, %s59
      %p61 = scmp.eq.s32.totalorder %s14, 0
      %p62 = por %p60, %p61
      %s63 = ssub.s32 %s8, %s15
      %p64 = scmp.eq.s32.totalorder %s63, 0
      %s66 = sadd.s32 %s65, 1
      %s67 = scalar_select %p64, %s65, %s66
      %p70 = pneg %p64
      %p71 = scmp.eq.s32.totalorder %s8, 1
      %p72 = por %p70, %p71
      %p73 = scmp.ne.s32.totalorder %s65, %s68
      %p74 = scmp.eq.s32.totalorder %s8, 0
      %p75 = por %p73, %p74
      %p76 = scmp.ne.s32.totalorder %s65, %s68
      %p77 = scmp.eq.s32.totalorder %s13, 1
      %p78 = por %p76, %p77
      %p79 = scmp.ne.s32.totalorder %s68, %s69
      %p80 = scmp.eq.s32.totalorder %s13, 0
      %p81 = por %p79, %p80
      %p82 = scmp.ne.s32.totalorder %s68, %s69
      %p83 = scmp.eq.s32.totalorder %s14, 1
      %p84 = por %p82, %p83
      %p86 = scmp.ne.s32.totalorder %s69, %s85
      %p87 = scmp.eq.s32.totalorder %s14, 0
      %p88 = por %p86, %p87
      %p89 = scmp.le.s32.totalorder 1, %s8
      %p90 = scmp.lt.s32.totalorder %s8, 3
      %p91 = pnand %p89, %p90
      %p92 = pneg %p91
      // Predicated region
      $region9: #{_lambda_.11} parent=5 // pred_check
        _
      $region10: #{_lambda_.11} parent=5 // pred_check_branch
        %94 = sbr.rel (%p91) target = $region12
      $region11: #{_lambda_.11} parent=5 // pred_region
        %s95 = ssub.s32 %s8, 1
        // Predicated region
        $region13: #{_lambda_.11} parent=11 // pred_check
          %p96 = pneg %p29
        $region14: #{_lambda_.11} parent=11 // pred_check_branch
          %98 = sbr.rel (%p96) target = $region16
        $region15: #{_lambda_.11} parent=11 // pred_region
          _
        $region16: #{_lambda_.11} parent=11 // pred_fallthru
          _
      $region12: #{_lambda_.11} parent=5 // pred_fallthru
        _
      %p99 = scmp.lt.s32.totalorder %s8, 2
      // Predicated region
      $region17: #{_lambda_.11} parent=5 // pred_check
        %p100 = pneg %p99
      $region18: #{_lambda_.11} parent=5 // pred_check_branch
        %102 = sbr.rel (%p100) target = $region20
      $region19: #{_lambda_.11} parent=5 // pred_region
        // Predicated region
        $region21: #{_lambda_.11} parent=19 // pred_check
          %p103 = pneg %p49
        $region22: #{_lambda_.11} parent=19 // pred_check_branch
          %105 = sbr.rel (%p103) target = $region24
        $region23: #{_lambda_.11} parent=19 // pred_region
          %s106 = sand.u32 %s39, 1
          %s107 = sand.u32 %s39, 1
          %s108 = smul.addr %s107, 72
          %s109 = scalar_lea.vmem [#allocation2], %s108
          %s110 = smul.u32 2, %s8
          %s111 = smul.addr %s110, 4
          %s112 = scalar_lea.vmem %s1, %s111
          // Predicated region
          $region25: #{_lambda_.11} parent=23 // pred_check
            _
          $region26: #{_lambda_.11} parent=23 // pred_check_branch
            %114 = sbr.rel (0) target = $region28
          $region27: #{_lambda_.11} parent=23 // pred_region
            // Predicated region
            $region29: #{_lambda_.11} parent=27 // pred_check
              _
            $region30: #{_lambda_.11} parent=27 // pred_check_branch
              %116 = sbr.rel (0) target = $region32
            $region31: #{_lambda_.11} parent=27 // pred_region
              // Predicated region
              $region44: #{_lambda_.11} parent=31 // pred_check
                _
              $region45: #{_lambda_.11} parent=31 // pred_check_branch
                %148 = sbr.rel (0) target = $region47
              $region46: #{_lambda_.11} parent=31 // pred_region
                loop: start=0, step=1, limit=1
                $region48: #{_lambda_.11} parent=46 // loop_pre_header
                  _
                $region49: #{_lambda_.11} parent=46 // loop_header
                  %s150 = sphi 0, %s154
                  %p151 = scmp.ge.s32.totalorder %s150, 1
                  %s155 = sphi %s112, %s112
                  %s156 = sphi %s109, %s109
                $region50: #{_lambda_.11} parent=46 // loop_header_branch
                  %153 = sbr.rel (%p151) target = $region54
                $region51: #{_lambda_.11} parent=46 // loop_body
                  %v157 = vld [vmem:[%s155] sm:$0xff]
                  %158 = vst [vmem:[%s156] sm:$0xff] %v157
                  %v159 = vld [vmem:[%s155 + $0x10] sm:$0xff]
                  %160 = vst [vmem:[%s156 + $0x8] sm:$0xff] %v159
                  %v161 = vld [vmem:[%s155 + $0x20] sm:$0xff]
                  %162 = vst [vmem:[%s156 + $0x10] sm:$0xff] %v161
                  %v163 = vld [vmem:[%s155 + $0x30] sm:$0xff]
                  %164 = vst [vmem:[%s156 + $0x18] sm:$0xff] %v163
                  %v165 = vld [vmem:[%s155 + $0x40] sm:$0xff]
                  %166 = vst [vmem:[%s156 + $0x20] sm:$0xff] %v165
                  %v167 = vld [vmem:[%s155 + $0x50] sm:$0xff]
                  %168 = vst [vmem:[%s156 + $0x28] sm:$0xff] %v167
                  %v169 = vld [vmem:[%s155 + $0x60] sm:$0xff]
                  %170 = vst [vmem:[%s156 + $0x30] sm:$0xff] %v169
                  %v171 = vld [vmem:[%s155 + $0x70] sm:$0xff]
                  %172 = vst [vmem:[%s156 + $0x38] sm:$0xff] %v171
                  %v173 = vld [vmem:[%s155 + $0x80] sm:$0xff]
                  %174 = vst [vmem:[%s156 + $0x40] sm:$0xff] %v173
                $region52: #{_lambda_.11} parent=46 // loop_footer
                  %s154 = sadd.s32 1, %s150
                $region53: #{_lambda_.11} parent=46 // loop_footer_branch
                  %149 = sbr.rel target = $region49
                $region54: #{_lambda_.11} parent=46 // loop_exit
                  _
              $region47: #{_lambda_.11} parent=31 // pred_fallthru
                _
              // Predicated region
              $region55: #{_lambda_.11} parent=31 // pred_check
                _
              $region56: #{_lambda_.11} parent=31 // pred_check_branch
                %176 = sbr.rel target = $region58
              $region57: #{_lambda_.11} parent=31 // pred_region
                _
              $region58: #{_lambda_.11} parent=31 // pred_fallthru
                _
            $region32: #{_lambda_.11} parent=27 // pred_fallthru
              _
            // Predicated region
            $region33: #{_lambda_.11} parent=27 // pred_check
              _
            $region34: #{_lambda_.11} parent=27 // pred_check_branch
              %118 = sbr.rel target = $region36
            $region35: #{_lambda_.11} parent=27 // pred_region
              %s120 = ssub.s32 256, 1
              loop: start=0, step=1, limit=1
              $region37: #{_lambda_.11} parent=35 // loop_pre_header
                _
              $region38: #{_lambda_.11} parent=35 // loop_header
                %s122 = sphi 0, %s126
                %p123 = scmp.ge.s32.totalorder %s122, 1
                %s127 = sphi %s112, %s112
                %s128 = sphi %s109, %s109
              $region39: #{_lambda_.11} parent=35 // loop_header_branch
                %125 = sbr.rel (%p123) target = $region43
              $region40: #{_lambda_.11} parent=35 // loop_body
                %v129 = vld [vmem:[%s127] sm:%s120]
                %130 = vst [vmem:[%s128] sm:%s120] %v129
                %v131 = vld [vmem:[%s127 + $0x10] sm:%s120]
                %132 = vst [vmem:[%s128 + $0x8] sm:%s120] %v131
                %v133 = vld [vmem:[%s127 + $0x20] sm:%s120]
                %134 = vst [vmem:[%s128 + $0x10] sm:%s120] %v133
                %v135 = vld [vmem:[%s127 + $0x30] sm:%s120]
                %136 = vst [vmem:[%s128 + $0x18] sm:%s120] %v135
                %v137 = vld [vmem:[%s127 + $0x40] sm:%s120]
                %138 = vst [vmem:[%s128 + $0x20] sm:%s120] %v137
                %v139 = vld [vmem:[%s127 + $0x50] sm:%s120]
                %140 = vst [vmem:[%s128 + $0x28] sm:%s120] %v139
                %v141 = vld [vmem:[%s127 + $0x60] sm:%s120]
                %142 = vst [vmem:[%s128 + $0x30] sm:%s120] %v141
                %v143 = vld [vmem:[%s127 + $0x70] sm:%s120]
                %144 = vst [vmem:[%s128 + $0x38] sm:%s120] %v143
                %v145 = vld [vmem:[%s127 + $0x80] sm:%s120]
                %146 = vst [vmem:[%s128 + $0x40] sm:%s120] %v145
              $region41: #{_lambda_.11} parent=35 // loop_footer
                %s126 = sadd.s32 1, %s122
              $region42: #{_lambda_.11} parent=35 // loop_footer_branch
                %121 = sbr.rel target = $region38
              $region43: #{_lambda_.11} parent=35 // loop_exit
                _
            $region36: #{_lambda_.11} parent=27 // pred_fallthru
              _
          $region28: #{_lambda_.11} parent=23 // pred_fallthru
            _
          %177 = vnop
        $region24: #{_lambda_.11} parent=19 // pred_fallthru
          _
      $region20: #{_lambda_.11} parent=5 // pred_fallthru
        _
      %p178 = scmp.le.s32.totalorder 1, %s8
      %p179 = scmp.lt.s32.totalorder %s8, 3
      %p180 = pnand %p178, %p179
      %p181 = pneg %p180
      // Predicated region
      $region59: #{_lambda_.11} parent=5 // pred_check
        _
      $region60: #{_lambda_.11} parent=5 // pred_check_branch
        %183 = sbr.rel (%p180) target = $region62
      $region61: #{_lambda_.11} parent=5 // pred_region
        %s184 = ssub.s32 %s8, 1
        %s185 = sand.u32 %s42, 1
        %s186 = sand.u32 %s42, 1
        %s187 = smul.addr %s186, 72
        %s188 = scalar_lea.vmem [#allocation2], %s187
        // Predicated region
        $region63: #{_lambda_.11} parent=61 // pred_check
          %p189 = pneg %p55
        $region64: #{_lambda_.11} parent=61 // pred_check_branch
          %191 = sbr.rel (%p189) target = $region66
        $region65: #{_lambda_.11} parent=61 // pred_region
          _
        $region66: #{_lambda_.11} parent=61 // pred_fallthru
          _
        %p192 = pneg %p29
        %p193 = pneg %p26
        %s194 = sand.u32 %s42, 1
        %s195 = sand.u32 %s42, 1
        %s196 = smul.addr %s195, 72
        %s197 = scalar_lea.vmem [#allocation2], %s196
        %p198 = pneg %p55
        %p199 = pneg %p52
        %p200 = pneg %p81
        %p201 = pneg %p78
        %s202 = sand.u32 %s68, 1
        %s203 = sand.u32 %s68, 1
        %s204 = smul.addr %s203, 32
        %s205 = scalar_lea.vmem [#allocation3], %s204
        %s206 = smul.u32 2, %s13
        %s207 = smul.u32 2, %s13
        %v209 = vld [vmem:[%s0] sm:$0xf]
        %v210 = vld [vmem:[%s0 + $0x4] sm:$0xf]
        %v211 = vld [vmem:[%s0 + $0x8] sm:$0xf]
        %v212 = vld [vmem:[%s0 + $0xc] sm:$0xf]
        %v213 = vld [vmem:[%s188] sm:$0xff]
        %v214 = vld [vmem:[%s188 + $0x8] sm:$0xff]
        %v215 = vld [vmem:[%s188 + $0x10] sm:$0xff]
        %v216 = vld [vmem:[%s188 + $0x18] sm:$0xff]
        %v217 = vld [vmem:[%s188 + $0x20] sm:$0xff]
        %v218 = vld [vmem:[%s188 + $0x28] sm:$0xff]
        %v219 = vld [vmem:[%s188 + $0x30] sm:$0xff]
        %v220 = vld [vmem:[%s188 + $0x38] sm:$0xff]
        %v221 = vld [vmem:[%s188 + $0x40] sm:$0xff]
        %v226 = vunpack.c.l.b16 %v209
        %v227 = vunpack.c.l.b16 %v210
        %v228 = vunpack.c.l.b16 %v211
        %v229 = vunpack.c.l.b16 %v212
        %v230 = vpack.c.b16 %v227, %v226
        %v231 = vpack.c.b16 %v229, %v228
        %v241 = vunpack.c.l.b16 %v213
        %v242 = vunpack.c.h.b16 %v213
        %v243 = vunpack.c.l.b16 %v214
        %v244 = vunpack.c.h.b16 %v214
        %v245 = vunpack.c.l.b16 %v215
        %v246 = vunpack.c.h.b16 %v215
        %v247 = vunpack.c.l.b16 %v216
        %v248 = vunpack.c.h.b16 %v216
        %v249 = vunpack.c.l.b16 %v217
        %v250 = vunpack.c.h.b16 %v217
        %v251 = vunpack.c.l.b16 %v218
        %v252 = vunpack.c.h.b16 %v218
        %v253 = vunpack.c.l.b16 %v219
        %v254 = vunpack.c.h.b16 %v219
        %v255 = vunpack.c.l.b16 %v220
        %v256 = vunpack.c.h.b16 %v220
        %v257 = vunpack.c.l.b16 %v221
        %v258 = vunpack.c.h.b16 %v221
        %v259 = vpack.c.b16 %v243, %v241
        %v260 = vpack.c.b16 %v244, %v242
        %v261 = vpack.c.b16 %v247, %v245
        %v262 = vpack.c.b16 %v248, %v246
        %v263 = vpack.c.b16 %v251, %v249
        %v264 = vpack.c.b16 %v252, %v250
        %v265 = vpack.c.b16 %v255, %v253
        %v266 = vpack.c.b16 %v256, %v254
        %v267 = vpack.c.b16 %v257, %v257
        %v268 = vpack.c.b16 %v258, %v258
        %vm277 = vcmask 588800
        %v279 = vsel %vm277, %v230, 0
        %v282 = vsel %vm277, %v231, 0
        %vm284 = vcmask 1043456
        %v286 = vsel %vm284, %v267, 0
        %v289 = vsel %vm284, %v268, 0
        %291 = vmatpush.bf16.msra.mxu0 0
        %292 = vmatpush.bf16.msra.mxu0 0
        %293 = vmatpush.bf16.msra.mxu0 0
        %294 = vmatpush.bf16.msra.mxu0 %v286
        %295 = vmatpush.bf16.msra.mxu0 %v265
        %296 = vmatpush.bf16.msra.mxu0 %v263
        %297 = vmatpush.bf16.msra.mxu0 %v261
        %298 = vmatpush.bf16.msra.mxu0 %v259
        %299 = vmatmul.bf16.gmra.mxu0 %v279
        %v300 = vpop.f32.mrf.mxu0
        %v301 = vadd.f32 0.0, %v300
        %v302 = vpop.f32.mrf.mxu0
        %v303 = vadd.f32 0.0, %v302
        %304 = vmatmul.bf16.gmra.mxu0 %v282
        %v305 = vpop.f32.mrf.mxu0
        %v306 = vadd.f32 0.0, %v305
        %v307 = vpop.f32.mrf.mxu0
        %v308 = vadd.f32 0.0, %v307
        %309 = vdwg.mxu0
        %310 = vmatpush.bf16.msra.mxu0 0
        %311 = vmatpush.bf16.msra.mxu0 0
        %312 = vmatpush.bf16.msra.mxu0 0
        %313 = vmatpush.bf16.msra.mxu0 %v289
        %314 = vmatpush.bf16.msra.mxu0 %v266
        %315 = vmatpush.bf16.msra.mxu0 %v264
        %316 = vmatpush.bf16.msra.mxu0 %v262
        %317 = vmatpush.bf16.msra.mxu0 %v260
        %318 = vmatmul.bf16.gmra.mxu0 %v279
        %v319 = vpop.f32.mrf.mxu0
        %v320 = vadd.f32 0.0, %v319
        %v321 = vpop.f32.mrf.mxu0
        %v322 = vadd.f32 0.0, %v321
        %323 = vmatmul.bf16.gmra.mxu0 %v282
        %v324 = vpop.f32.mrf.mxu0
        %v325 = vadd.f32 0.0, %v324
        %v326 = vpop.f32.mrf.mxu0
        %v327 = vadd.f32 0.0, %v326
        %328 = vdwg.mxu0
        %v329 = vpack.c.bf16 %v320, %v301
        %v330 = vpack.c.bf16 %v322, %v303
        %v331 = vpack.c.bf16 %v325, %v306
        %v332 = vpack.c.bf16 %v327, %v308
        %333 = vst [vmem:[%s205] sm:$0xff] %v329
        %334 = vst [vmem:[%s205 + $0x8] sm:$0xff] %v330
        %335 = vst [vmem:[%s205 + $0x10] sm:$0xff] %v331
        %336 = vst [vmem:[%s205 + $0x18] sm:$0xff] %v332
        %s337 = sand.u32 %s68, 1
        %s338 = sand.u32 %s68, 1
        %s339 = smul.addr %s338, 32
        %s340 = scalar_lea.vmem [#allocation3], %s339
        // Predicated region
        $region67: #{_lambda_.11} parent=61 // pred_check
          %p341 = pneg %p78
        $region68: #{_lambda_.11} parent=61 // pred_check_branch
          %343 = sbr.rel (%p341) target = $region70
        $region69: #{_lambda_.11} parent=61 // pred_region
          %s344 = smul.u32 2, %s13
          %s345 = smul.addr %s344, 4
          %s346 = scalar_lea.vmem %s2, %s345
          // Predicated region
          $region71: #{_lambda_.11} parent=69 // pred_check
            _
          $region72: #{_lambda_.11} parent=69 // pred_check_branch
            %348 = sbr.rel (0) target = $region74
          $region73: #{_lambda_.11} parent=69 // pred_region
            // Predicated region
            $region75: #{_lambda_.11} parent=73 // pred_check
              _
            $region76: #{_lambda_.11} parent=73 // pred_check_branch
              %350 = sbr.rel (0) target = $region78
            $region77: #{_lambda_.11} parent=73 // pred_region
              // Predicated region
              $region90: #{_lambda_.11} parent=77 // pred_check
                _
              $region91: #{_lambda_.11} parent=77 // pred_check_branch
                %372 = sbr.rel (0) target = $region93
              $region92: #{_lambda_.11} parent=77 // pred_region
                loop: start=0, step=1, limit=1
                $region94: #{_lambda_.11} parent=92 // loop_pre_header
                  _
                $region95: #{_lambda_.11} parent=92 // loop_header
                  %s374 = sphi 0, %s378
                  %p375 = scmp.ge.s32.totalorder %s374, 1
                  %s379 = sphi %s340, %s340
                  %s380 = sphi %s346, %s346
                $region96: #{_lambda_.11} parent=92 // loop_header_branch
                  %377 = sbr.rel (%p375) target = $region100
                $region97: #{_lambda_.11} parent=92 // loop_body
                  %v381 = vld [vmem:[%s379] sm:$0xff]
                  %382 = vst [vmem:[%s380] sm:$0xff] %v381
                  %v383 = vld [vmem:[%s379 + $0x8] sm:$0xff]
                  %384 = vst [vmem:[%s380 + $0x10] sm:$0xff] %v383
                  %v385 = vld [vmem:[%s379 + $0x10] sm:$0xff]
                  %386 = vst [vmem:[%s380 + $0x20] sm:$0xff] %v385
                  %v387 = vld [vmem:[%s379 + $0x18] sm:$0xff]
                  %388 = vst [vmem:[%s380 + $0x30] sm:$0xff] %v387
                $region98: #{_lambda_.11} parent=92 // loop_footer
                  %s378 = sadd.s32 1, %s374
                $region99: #{_lambda_.11} parent=92 // loop_footer_branch
                  %373 = sbr.rel target = $region95
                $region100: #{_lambda_.11} parent=92 // loop_exit
                  _
              $region93: #{_lambda_.11} parent=77 // pred_fallthru
                _
              // Predicated region
              $region101: #{_lambda_.11} parent=77 // pred_check
                _
              $region102: #{_lambda_.11} parent=77 // pred_check_branch
                %390 = sbr.rel target = $region104
              $region103: #{_lambda_.11} parent=77 // pred_region
                _
              $region104: #{_lambda_.11} parent=77 // pred_fallthru
                _
            $region78: #{_lambda_.11} parent=73 // pred_fallthru
              _
            // Predicated region
            $region79: #{_lambda_.11} parent=73 // pred_check
              _
            $region80: #{_lambda_.11} parent=73 // pred_check_branch
              %352 = sbr.rel target = $region82
            $region81: #{_lambda_.11} parent=73 // pred_region
              %s354 = ssub.s32 256, 1
              loop: start=0, step=1, limit=1
              $region83: #{_lambda_.11} parent=81 // loop_pre_header
                _
              $region84: #{_lambda_.11} parent=81 // loop_header
                %s356 = sphi 0, %s360
                %p357 = scmp.ge.s32.totalorder %s356, 1
                %s361 = sphi %s340, %s340
                %s362 = sphi %s346, %s346
              $region85: #{_lambda_.11} parent=81 // loop_header_branch
                %359 = sbr.rel (%p357) target = $region89
              $region86: #{_lambda_.11} parent=81 // loop_body
                %v363 = vld [vmem:[%s361] sm:%s354]
                %364 = vst [vmem:[%s362] sm:%s354] %v363
                %v365 = vld [vmem:[%s361 + $0x8] sm:%s354]
                %366 = vst [vmem:[%s362 + $0x10] sm:%s354] %v365
                %v367 = vld [vmem:[%s361 + $0x10] sm:%s354]
                %368 = vst [vmem:[%s362 + $0x20] sm:%s354] %v367
                %v369 = vld [vmem:[%s361 + $0x18] sm:%s354]
                %370 = vst [vmem:[%s362 + $0x30] sm:%s354] %v369
              $region87: #{_lambda_.11} parent=81 // loop_footer
                %s360 = sadd.s32 1, %s356
              $region88: #{_lambda_.11} parent=81 // loop_footer_branch
                %355 = sbr.rel target = $region84
              $region89: #{_lambda_.11} parent=81 // loop_exit
                _
            $region82: #{_lambda_.11} parent=73 // pred_fallthru
              _
          $region74: #{_lambda_.11} parent=69 // pred_fallthru
            _
          %391 = vnop
        $region70: #{_lambda_.11} parent=61 // pred_fallthru
          _
      $region62: #{_lambda_.11} parent=5 // pred_fallthru
        _
      %p392 = scmp.le.s32.totalorder 2, %s8
      // Predicated region
      $region105: #{_lambda_.11} parent=5 // pred_check
        %p393 = pneg %p392
      $region106: #{_lambda_.11} parent=5 // pred_check_branch
        %395 = sbr.rel (%p393) target = $region108
      $region107: #{_lambda_.11} parent=5 // pred_region
        %s396 = ssub.s32 %s8, 2
        // Predicated region
        $region109: #{_lambda_.11} parent=107 // pred_check
          %p397 = pneg %p84
        $region110: #{_lambda_.11} parent=107 // pred_check_branch
          %399 = sbr.rel (%p397) target = $region112
        $region111: #{_lambda_.11} parent=107 // pred_region
          %s400 = sand.u32 %s69, 1
          %s401 = sand.u32 %s69, 1
          %s402 = smul.addr %s401, 32
          %s403 = scalar_lea.vmem [#allocation3], %s402
        $region112: #{_lambda_.11} parent=107 // pred_fallthru
          _
      $region108: #{_lambda_.11} parent=5 // pred_fallthru
        _
    $region6: #{_lambda_.11} parent=1 // loop_footer
      %s12 = sadd.s32 1, %s8
    $region7: #{_lambda_.11} parent=1 // loop_footer_branch
      %7 = sbr.rel target = $region3
    $region8: #{_lambda_.11} parent=1 // loop_exit
      _

// kernel: _lambda_.12
$region0: #{_lambda_.12}
  #allocation0 [shape = 'u32[]', space=smem, size = 0x4, offset = 0x4, fixed_abs, tag = 'smem constant byte address 0x4 - core index']
  #allocation1 [shape = 'u32[72,128]{1,0:T(1,128)}', space=vmem, size = 0x9000, scoped, tag = 'internal scratch']
  %s0 = inlined_call_operand.vmem [shape: bf16[32,72], index: 0, kind: input, shape index: {}]
  %s1 = inlined_call_operand.vmem [shape: bf16[72,2048], index: 1, kind: input, shape index: {}]
  %s2 = inlined_call_operand.vmem [shape: bf16[32,2048], index: 2, kind: output, shape index: {}]
  %s3 = sld [smem:[#allocation0]]
  $region83: #{_lambda_.12} parent=0
    _
  %s5 = ssub.s32 1, %s3
  %s6 = scalar_select 0, %s5, %s3
  $region1: #{_lambda_.12} parent=0
    #allocation2 [shape = 'u8[294912]{0}', space=vmem, size = 0x48000, scoped, tag = 'input window, operand 1']
    #allocation3 [shape = 'u8[131072]{0}', space=vmem, size = 0x20000, scoped, tag = 'output window, operand 0']
    loop: start=0, step=1, limit=4
    $region2: #{_lambda_.12} parent=1 // loop_pre_header
      _
    $region3: #{_lambda_.12} parent=1 // loop_header
      %s8 = sphi 0, %s12
      %p9 = scmp.ge.s32.totalorder %s8, 4
      %s16 = sphi 0, %s16
      %s18 = sphi 0, %s16
      %s19 = sphi 0, %s18
      %s33 = sphi 0, %s19
      %s39 = sphi 0, %s41
      %s42 = sphi 0, %s39
      %s43 = sphi 0, %s42
      %s59 = sphi 0, %s43
      %s65 = sphi 0, %s67
      %s68 = sphi 0, %s65
      %s69 = sphi 0, %s68
      %s85 = sphi 0, %s69
    $region4: #{_lambda_.12} parent=1 // loop_header_branch
      %11 = sbr.rel (%p9) target = $region8
    $region5: #{_lambda_.12} parent=1 // loop_body
      %s13 = ssub.s32 %s8, 1
      %s14 = ssub.s32 %s8, 2
      %s15 = sadd.s32 %s8, 1
      %s17 = sadd.s32 %s16, 1
      %p20 = scmp.eq.s32.totalorder %s8, 1
      %p21 = scmp.ne.s32.totalorder %s16, %s18
      %p22 = scmp.eq.s32.totalorder %s8, 0
      %p23 = por %p21, %p22
      %p24 = scmp.ne.s32.totalorder %s16, %s18
      %p25 = scmp.eq.s32.totalorder %s13, 1
      %p26 = por %p24, %p25
      %p27 = scmp.ne.s32.totalorder %s18, %s19
      %p28 = scmp.eq.s32.totalorder %s13, 0
      %p29 = por %p27, %p28
      %p30 = scmp.ne.s32.totalorder %s18, %s19
      %p31 = scmp.eq.s32.totalorder %s14, 1
      %p32 = por %p30, %p31
      %p34 = scmp.ne.s32.totalorder %s19, %s33
      %p35 = scmp.eq.s32.totalorder %s14, 0
      %p36 = por %p34, %p35
      %s37 = ssub.s32 %s8, %s15
      %p38 = scmp.eq.s32.totalorder %s37, 0
      %s40 = sadd.s32 %s39, 1
      %s41 = scalar_select %p38, %s39, %s40
      %p44 = pneg %p38
      %p45 = scmp.eq.s32.totalorder %s8, 1
      %p46 = por %p44, %p45
      %p47 = scmp.ne.s32.totalorder %s39, %s42
      %p48 = scmp.eq.s32.totalorder %s8, 0
      %p49 = por %p47, %p48
      %p50 = scmp.ne.s32.totalorder %s39, %s42
      %p51 = scmp.eq.s32.totalorder %s13, 1
      %p52 = por %p50, %p51
      %p53 = scmp.ne.s32.totalorder %s42, %s43
      %p54 = scmp.eq.s32.totalorder %s13, 0
      %p55 = por %p53, %p54
      %p56 = scmp.ne.s32.totalorder %s42, %s43
      %p57 = scmp.eq.s32.totalorder %s14, 1
      %p58 = por %p56, %p57
      %p60 = scmp.ne.s32.totalorder %s43, %s59
      %p61 = scmp.eq.s32.totalorder %s14, 0
      %p62 = por %p60, %p61
      %s63 = ssub.s32 %s8, %s15
      %p64 = scmp.eq.s32.totalorder %s63, 0
      %s66 = sadd.s32 %s65, 1
      %s67 = scalar_select %p64, %s65, %s66
      %p70 = pneg %p64
      %p71 = scmp.eq.s32.totalorder %s8, 1
      %p72 = por %p70, %p71
      %p73 = scmp.ne.s32.totalorder %s65, %s68
      %p74 = scmp.eq.s32.totalorder %s8, 0
      %p75 = por %p73, %p74
      %p76 = scmp.ne.s32.totalorder %s65, %s68
      %p77 = scmp.eq.s32.totalorder %s13, 1
      %p78 = por %p76, %p77
      %p79 = scmp.ne.s32.totalorder %s68, %s69
      %p80 = scmp.eq.s32.totalorder %s13, 0
      %p81 = por %p79, %p80
      %p82 = scmp.ne.s32.totalorder %s68, %s69
      %p83 = scmp.eq.s32.totalorder %s14, 1
      %p84 = por %p82, %p83
      %p86 = scmp.ne.s32.totalorder %s69, %s85
      %p87 = scmp.eq.s32.totalorder %s14, 0
      %p88 = por %p86, %p87
      %p89 = scmp.le.s32.totalorder 1, %s8
      %p90 = scmp.lt.s32.totalorder %s8, 3
      %p91 = pnand %p89, %p90
      %p92 = pneg %p91
      // Predicated region
      $region9: #{_lambda_.12} parent=5 // pred_check
        _
      $region10: #{_lambda_.12} parent=5 // pred_check_branch
        %94 = sbr.rel (%p91) target = $region12
      $region11: #{_lambda_.12} parent=5 // pred_region
        %s95 = ssub.s32 %s8, 1
        // Predicated region
        $region13: #{_lambda_.12} parent=11 // pred_check
          %p96 = pneg %p29
        $region14: #{_lambda_.12} parent=11 // pred_check_branch
          %98 = sbr.rel (%p96) target = $region16
        $region15: #{_lambda_.12} parent=11 // pred_region
          _
        $region16: #{_lambda_.12} parent=11 // pred_fallthru
          _
      $region12: #{_lambda_.12} parent=5 // pred_fallthru
        _
      %p99 = scmp.lt.s32.totalorder %s8, 2
      // Predicated region
      $region17: #{_lambda_.12} parent=5 // pred_check
        %p100 = pneg %p99
      $region18: #{_lambda_.12} parent=5 // pred_check_branch
        %102 = sbr.rel (%p100) target = $region20
      $region19: #{_lambda_.12} parent=5 // pred_region
        // Predicated region
        $region21: #{_lambda_.12} parent=19 // pred_check
          %p103 = pneg %p49
        $region22: #{_lambda_.12} parent=19 // pred_check_branch
          %105 = sbr.rel (%p103) target = $region24
        $region23: #{_lambda_.12} parent=19 // pred_region
          %s106 = sand.u32 %s39, 1
          %s107 = sand.u32 %s39, 1
          %s108 = smul.addr %s107, 288
          %s109 = scalar_lea.vmem [#allocation2], %s108
          %s110 = smul.u32 8, %s8
          %s111 = smul.addr %s110, 4
          %s112 = scalar_lea.vmem %s1, %s111
          // Predicated region
          $region25: #{_lambda_.12} parent=23 // pred_check
            _
          $region26: #{_lambda_.12} parent=23 // pred_check_branch
            %114 = sbr.rel (0) target = $region28
          $region27: #{_lambda_.12} parent=23 // pred_region
            // Predicated region
            $region29: #{_lambda_.12} parent=27 // pred_check
              _
            $region30: #{_lambda_.12} parent=27 // pred_check_branch
              %116 = sbr.rel (0) target = $region32
            $region31: #{_lambda_.12} parent=27 // pred_region
              loop: start=0, step=1, limit=1
              $region33: #{_lambda_.12} parent=31 // loop_pre_header
                _
              $region34: #{_lambda_.12} parent=31 // loop_header
                %s118 = sphi 0, %s122
                %p119 = scmp.ge.s32.totalorder %s118, 1
                %s123 = sphi %s112, %s112
                %s124 = sphi %s109, %s109
              $region35: #{_lambda_.12} parent=31 // loop_header_branch
                %121 = sbr.rel (%p119) target = $region39
              $region36: #{_lambda_.12} parent=31 // loop_body
                %v125 = vld [vmem:[%s123] sm:$0xff]
                %126 = vst [vmem:[%s124] sm:$0xff] %v125
                %v127 = vld [vmem:[%s123 + $0x8] sm:$0xff]
                %128 = vst [vmem:[%s124 + $0x8] sm:$0xff] %v127
                %v129 = vld [vmem:[%s123 + $0x10] sm:$0xff]
                %130 = vst [vmem:[%s124 + $0x10] sm:$0xff] %v129
                %v131 = vld [vmem:[%s123 + $0x18] sm:$0xff]
                %132 = vst [vmem:[%s124 + $0x18] sm:$0xff] %v131
                %v133 = vld [vmem:[%s123 + $0x40] sm:$0xff]
                %134 = vst [vmem:[%s124 + $0x20] sm:$0xff] %v133
                %v135 = vld [vmem:[%s123 + $0x48] sm:$0xff]
                %136 = vst [vmem:[%s124 + $0x28] sm:$0xff] %v135
                %v137 = vld [vmem:[%s123 + $0x50] sm:$0xff]
                %138 = vst [vmem:[%s124 + $0x30] sm:$0xff] %v137
                %v139 = vld [vmem:[%s123 + $0x58] sm:$0xff]
                %140 = vst [vmem:[%s124 + $0x38] sm:$0xff] %v139
                %v141 = vld [vmem:[%s123 + $0x80] sm:$0xff]
                %142 = vst [vmem:[%s124 + $0x40] sm:$0xff] %v141
                %v143 = vld [vmem:[%s123 + $0x88] sm:$0xff]
                %144 = vst [vmem:[%s124 + $0x48] sm:$0xff] %v143
                %v145 = vld [vmem:[%s123 + $0x90] sm:$0xff]
                %146 = vst [vmem:[%s124 + $0x50] sm:$0xff] %v145
                %v147 = vld [vmem:[%s123 + $0x98] sm:$0xff]
                %148 = vst [vmem:[%s124 + $0x58] sm:$0xff] %v147
                %v149 = vld [vmem:[%s123 + $0xc0] sm:$0xff]
                %150 = vst [vmem:[%s124 + $0x60] sm:$0xff] %v149
                %v151 = vld [vmem:[%s123 + $0xc8] sm:$0xff]
                %152 = vst [vmem:[%s124 + $0x68] sm:$0xff] %v151
                %v153 = vld [vmem:[%s123 + $0xd0] sm:$0xff]
                %154 = vst [vmem:[%s124 + $0x70] sm:$0xff] %v153
                %v155 = vld [vmem:[%s123 + $0xd8] sm:$0xff]
                %156 = vst [vmem:[%s124 + $0x78] sm:$0xff] %v155
                %v157 = vld [vmem:[%s123 + $0x100] sm:$0xff]
                %158 = vst [vmem:[%s124 + $0x80] sm:$0xff] %v157
                %v159 = vld [vmem:[%s123 + $0x108] sm:$0xff]
                %160 = vst [vmem:[%s124 + $0x88] sm:$0xff] %v159
                %v161 = vld [vmem:[%s123 + $0x110] sm:$0xff]
                %162 = vst [vmem:[%s124 + $0x90] sm:$0xff] %v161
                %v163 = vld [vmem:[%s123 + $0x118] sm:$0xff]
                %164 = vst [vmem:[%s124 + $0x98] sm:$0xff] %v163
                %v165 = vld [vmem:[%s123 + $0x140] sm:$0xff]
                %166 = vst [vmem:[%s124 + $0xa0] sm:$0xff] %v165
                %v167 = vld [vmem:[%s123 + $0x148] sm:$0xff]
                %168 = vst [vmem:[%s124 + $0xa8] sm:$0xff] %v167
                %v169 = vld [vmem:[%s123 + $0x150] sm:$0xff]
                %170 = vst [vmem:[%s124 + $0xb0] sm:$0xff] %v169
                %v171 = vld [vmem:[%s123 + $0x158] sm:$0xff]
                %172 = vst [vmem:[%s124 + $0xb8] sm:$0xff] %v171
                %v173 = vld [vmem:[%s123 + $0x180] sm:$0xff]
                %174 = vst [vmem:[%s124 + $0xc0] sm:$0xff] %v173
                %v175 = vld [vmem:[%s123 + $0x188] sm:$0xff]
                %176 = vst [vmem:[%s124 + $0xc8] sm:$0xff] %v175
                %v177 = vld [vmem:[%s123 + $0x190] sm:$0xff]
                %178 = vst [vmem:[%s124 + $0xd0] sm:$0xff] %v177
                %v179 = vld [vmem:[%s123 + $0x198] sm:$0xff]
                %180 = vst [vmem:[%s124 + $0xd8] sm:$0xff] %v179
                %v181 = vld [vmem:[%s123 + $0x1c0] sm:$0xff]
                %182 = vst [vmem:[%s124 + $0xe0] sm:$0xff] %v181
                %v183 = vld [vmem:[%s123 + $0x1c8] sm:$0xff]
                %184 = vst [vmem:[%s124 + $0xe8] sm:$0xff] %v183
                %v185 = vld [vmem:[%s123 + $0x1d0] sm:$0xff]
                %186 = vst [vmem:[%s124 + $0xf0] sm:$0xff] %v185
                %v187 = vld [vmem:[%s123 + $0x1d8] sm:$0xff]
                %188 = vst [vmem:[%s124 + $0xf8] sm:$0xff] %v187
                %v189 = vld [vmem:[%s123 + $0x200] sm:$0xff]
                %190 = vst [vmem:[%s124 + $0x100] sm:$0xff] %v189
                %v191 = vld [vmem:[%s123 + $0x208] sm:$0xff]
                %192 = vst [vmem:[%s124 + $0x108] sm:$0xff] %v191
                %v193 = vld [vmem:[%s123 + $0x210] sm:$0xff]
                %194 = vst [vmem:[%s124 + $0x110] sm:$0xff] %v193
                %v195 = vld [vmem:[%s123 + $0x218] sm:$0xff]
                %196 = vst [vmem:[%s124 + $0x118] sm:$0xff] %v195
              $region37: #{_lambda_.12} parent=31 // loop_footer
                %s122 = sadd.s32 1, %s118
              $region38: #{_lambda_.12} parent=31 // loop_footer_branch
                %117 = sbr.rel target = $region34
              $region39: #{_lambda_.12} parent=31 // loop_exit
                _
            $region32: #{_lambda_.12} parent=27 // pred_fallthru
              _
            // Predicated region
            $region40: #{_lambda_.12} parent=27 // pred_check
              _
            $region41: #{_lambda_.12} parent=27 // pred_check_branch
              %198 = sbr.rel target = $region43
            $region42: #{_lambda_.12} parent=27 // pred_region
              _
            $region43: #{_lambda_.12} parent=27 // pred_fallthru
              _
          $region28: #{_lambda_.12} parent=23 // pred_fallthru
            _
          %199 = vnop
        $region24: #{_lambda_.12} parent=19 // pred_fallthru
          _
      $region20: #{_lambda_.12} parent=5 // pred_fallthru
        _
      %p200 = scmp.le.s32.totalorder 1, %s8
      %p201 = scmp.lt.s32.totalorder %s8, 3
      %p202 = pnand %p200, %p201
      %p203 = pneg %p202
      // Predicated region
      $region44: #{_lambda_.12} parent=5 // pred_check
        _
      $region45: #{_lambda_.12} parent=5 // pred_check_branch
        %205 = sbr.rel (%p202) target = $region47
      $region46: #{_lambda_.12} parent=5 // pred_region
        %s206 = ssub.s32 %s8, 1
        %s207 = sand.u32 %s42, 1
        %s208 = sand.u32 %s42, 1
        %s209 = smul.addr %s208, 288
        %s210 = scalar_lea.vmem [#allocation2], %s209
        // Predicated region
        $region48: #{_lambda_.12} parent=46 // pred_check
          %p211 = pneg %p55
        $region49: #{_lambda_.12} parent=46 // pred_check_branch
          %213 = sbr.rel (%p211) target = $region51
        $region50: #{_lambda_.12} parent=46 // pred_region
          _
        $region51: #{_lambda_.12} parent=46 // pred_fallthru
          _
        %p214 = pneg %p29
        %p215 = pneg %p26
        %s216 = sand.u32 %s42, 1
        %s217 = sand.u32 %s42, 1
        %s218 = smul.addr %s217, 288
        %s219 = scalar_lea.vmem [#allocation2], %s218
        %p220 = pneg %p55
        %p221 = pneg %p52
        %p222 = pneg %p81
        %p223 = pneg %p78
        %s224 = sand.u32 %s68, 1
        %s225 = sand.u32 %s68, 1
        %s226 = smul.addr %s225, 128
        %s227 = scalar_lea.vmem [#allocation3], %s226
        %s228 = smul.u32 8, %s13
        %s229 = smul.u32 8, %s13
        %v231 = vld [vmem:[%s0] sm:$0xf]
        %v232 = vld [vmem:[%s0 + $0x4] sm:$0xf]
        %v233 = vld [vmem:[%s0 + $0x8] sm:$0xf]
        %v234 = vld [vmem:[%s0 + $0xc] sm:$0xf]
        %v235 = vld [vmem:[%s210] sm:$0xff]
        %v236 = vld [vmem:[%s210 + $0x8] sm:$0xff]
        %v237 = vld [vmem:[%s210 + $0x10] sm:$0xff]
        %v238 = vld [vmem:[%s210 + $0x18] sm:$0xff]
        %v239 = vld [vmem:[%s210 + $0x20] sm:$0xff]
        %v240 = vld [vmem:[%s210 + $0x28] sm:$0xff]
        %v241 = vld [vmem:[%s210 + $0x30] sm:$0xff]
        %v242 = vld [vmem:[%s210 + $0x38] sm:$0xff]
        %v243 = vld [vmem:[%s210 + $0x40] sm:$0xff]
        %v244 = vld [vmem:[%s210 + $0x48] sm:$0xff]
        %v245 = vld [vmem:[%s210 + $0x50] sm:$0xff]
        %v246 = vld [vmem:[%s210 + $0x58] sm:$0xff]
        %v247 = vld [vmem:[%s210 + $0x60] sm:$0xff]
        %v248 = vld [vmem:[%s210 + $0x68] sm:$0xff]
        %v249 = vld [vmem:[%s210 + $0x70] sm:$0xff]
        %v250 = vld [vmem:[%s210 + $0x78] sm:$0xff]
        %v251 = vld [vmem:[%s210 + $0x80] sm:$0xff]
        %v252 = vld [vmem:[%s210 + $0x88] sm:$0xff]
        %v253 = vld [vmem:[%s210 + $0x90] sm:$0xff]
        %v254 = vld [vmem:[%s210 + $0x98] sm:$0xff]
        %v255 = vld [vmem:[%s210 + $0xa0] sm:$0xff]
        %v256 = vld [vmem:[%s210 + $0xa8] sm:$0xff]
        %v257 = vld [vmem:[%s210 + $0xb0] sm:$0xff]
        %v258 = vld [vmem:[%s210 + $0xb8] sm:$0xff]
        %v259 = vld [vmem:[%s210 + $0xc0] sm:$0xff]
        %v260 = vld [vmem:[%s210 + $0xc8] sm:$0xff]
        %v261 = vld [vmem:[%s210 + $0xd0] sm:$0xff]
        %v262 = vld [vmem:[%s210 + $0xd8] sm:$0xff]
        %v263 = vld [vmem:[%s210 + $0xe0] sm:$0xff]
        %v264 = vld [vmem:[%s210 + $0xe8] sm:$0xff]
        %v265 = vld [vmem:[%s210 + $0xf0] sm:$0xff]
        %v266 = vld [vmem:[%s210 + $0xf8] sm:$0xff]
        %v267 = vld [vmem:[%s210 + $0x100] sm:$0xff]
        %v268 = vld [vmem:[%s210 + $0x108] sm:$0xff]
        %v269 = vld [vmem:[%s210 + $0x110] sm:$0xff]
        %v270 = vld [vmem:[%s210 + $0x118] sm:$0xff]
        %v275 = vunpack.c.l.b16 %v231
        %v276 = vunpack.c.l.b16 %v232
        %v277 = vunpack.c.l.b16 %v233
        %v278 = vunpack.c.l.b16 %v234
        %v279 = vpack.c.b16 %v276, %v275
        %v280 = vpack.c.b16 %v278, %v277
        %v317 = vunpack.c.l.b16 %v235
        %v318 = vunpack.c.h.b16 %v235
        %v319 = vunpack.c.l.b16 %v236
        %v320 = vunpack.c.h.b16 %v236
        %v321 = vunpack.c.l.b16 %v237
        %v322 = vunpack.c.h.b16 %v237
        %v323 = vunpack.c.l.b16 %v238
        %v324 = vunpack.c.h.b16 %v238
        %v325 = vunpack.c.l.b16 %v239
        %v326 = vunpack.c.h.b16 %v239
        %v327 = vunpack.c.l.b16 %v240
        %v328 = vunpack.c.h.b16 %v240
        %v329 = vunpack.c.l.b16 %v241
        %v330 = vunpack.c.h.b16 %v241
        %v331 = vunpack.c.l.b16 %v242
        %v332 = vunpack.c.h.b16 %v242
        %v333 = vunpack.c.l.b16 %v243
        %v334 = vunpack.c.h.b16 %v243
        %v335 = vunpack.c.l.b16 %v244
        %v336 = vunpack.c.h.b16 %v244
        %v337 = vunpack.c.l.b16 %v245
        %v338 = vunpack.c.h.b16 %v245
        %v339 = vunpack.c.l.b16 %v246
        %v340 = vunpack.c.h.b16 %v246
        %v341 = vunpack.c.l.b16 %v247
        %v342 = vunpack.c.h.b16 %v247
        %v343 = vunpack.c.l.b16 %v248
        %v344 = vunpack.c.h.b16 %v248
        %v345 = vunpack.c.l.b16 %v249
        %v346 = vunpack.c.h.b16 %v249
        %v347 = vunpack.c.l.b16 %v250
        %v348 = vunpack.c.h.b16 %v250
        %v349 = vunpack.c.l.b16 %v251
        %v350 = vunpack.c.h.b16 %v251
        %v351 = vunpack.c.l.b16 %v252
        %v352 = vunpack.c.h.b16 %v252
        %v353 = vunpack.c.l.b16 %v253
        %v354 = vunpack.c.h.b16 %v253
        %v355 = vunpack.c.l.b16 %v254
        %v356 = vunpack.c.h.b16 %v254
        %v357 = vunpack.c.l.b16 %v255
        %v358 = vunpack.c.h.b16 %v255
        %v359 = vunpack.c.l.b16 %v256
        %v360 = vunpack.c.h.b16 %v256
        %v361 = vunpack.c.l.b16 %v257
        %v362 = vunpack.c.h.b16 %v257
        %v363 = vunpack.c.l.b16 %v258
        %v364 = vunpack.c.h.b16 %v258
        %v365 = vunpack.c.l.b16 %v259
        %v366 = vunpack.c.h.b16 %v259
        %v367 = vunpack.c.l.b16 %v260
        %v368 = vunpack.c.h.b16 %v260
        %v369 = vunpack.c.l.b16 %v261
        %v370 = vunpack.c.h.b16 %v261
        %v371 = vunpack.c.l.b16 %v262
        %v372 = vunpack.c.h.b16 %v262
        %v373 = vunpack.c.l.b16 %v263
        %v374 = vunpack.c.h.b16 %v263
        %v375 = vunpack.c.l.b16 %v264
        %v376 = vunpack.c.h.b16 %v264
        %v377 = vunpack.c.l.b16 %v265
        %v378 = vunpack.c.h.b16 %v265
        %v379 = vunpack.c.l.b16 %v266
        %v380 = vunpack.c.h.b16 %v266
        %v381 = vunpack.c.l.b16 %v267
        %v382 = vunpack.c.h.b16 %v267
        %v383 = vunpack.c.l.b16 %v268
        %v384 = vunpack.c.h.b16 %v268
        %v385 = vunpack.c.l.b16 %v269
        %v386 = vunpack.c.h.b16 %v269
        %v387 = vunpack.c.l.b16 %v270
        %v388 = vunpack.c.h.b16 %v270
        %v389 = vpack.c.b16 %v325, %v317
        %v390 = vpack.c.b16 %v326, %v318
        %v391 = vpack.c.b16 %v327, %v319
        %v392 = vpack.c.b16 %v328, %v320
        %v393 = vpack.c.b16 %v329, %v321
        %v394 = vpack.c.b16 %v330, %v322
        %v395 = vpack.c.b16 %v331, %v323
        %v396 = vpack.c.b16 %v332, %v324
        %v397 = vpack.c.b16 %v341, %v333
        %v398 = vpack.c.b16 %v342, %v334
        %v399 = vpack.c.b16 %v343, %v335
        %v400 = vpack.c.b16 %v344, %v336
        %v401 = vpack.c.b16 %v345, %v337
        %v402 = vpack.c.b16 %v346, %v338
        %v403 = vpack.c.b16 %v347, %v339
        %v404 = vpack.c.b16 %v348, %v340
        %v405 = vpack.c.b16 %v357, %v349
        %v406 = vpack.c.b16 %v358, %v350
        %v407 = vpack.c.b16 %v359, %v351
        %v408 = vpack.c.b16 %v360, %v352
        %v409 = vpack.c.b16 %v361, %v353
        %v410 = vpack.c.b16 %v362, %v354
        %v411 = vpack.c.b16 %v363, %v355
        %v412 = vpack.c.b16 %v364, %v356
        %v413 = vpack.c.b16 %v373, %v365
        %v414 = vpack.c.b16 %v374, %v366
        %v415 = vpack.c.b16 %v375, %v367
        %v416 = vpack.c.b16 %v376, %v368
        %v417 = vpack.c.b16 %v377, %v369
        %v418 = vpack.c.b16 %v378, %v370
        %v419 = vpack.c.b16 %v379, %v371
        %v420 = vpack.c.b16 %v380, %v372
        %v421 = vpack.c.b16 %v381, %v381
        %v422 = vpack.c.b16 %v382, %v382
        %v423 = vpack.c.b16 %v383, %v383
        %v424 = vpack.c.b16 %v384, %v384
        %v425 = vpack.c.b16 %v385, %v385
        %v426 = vpack.c.b16 %v386, %v386
        %v427 = vpack.c.b16 %v387, %v387
        %v428 = vpack.c.b16 %v388, %v388
        %vm461 = vcmask 588800
        %v463 = vsel %vm461, %v279, 0
        %v466 = vsel %vm461, %v280, 0
        %vm468 = vcmask 1043456
        %v470 = vsel %vm468, %v421, 0
        %v473 = vsel %vm468, %v422, 0
        %v476 = vsel %vm468, %v423, 0
        %v479 = vsel %vm468, %v424, 0
        %v482 = vsel %vm468, %v425, 0
        %v485 = vsel %vm468, %v426, 0
        %v488 = vsel %vm468, %v427, 0
        %v491 = vsel %vm468, %v428, 0
        %493 = vmatpush.bf16.msra.mxu0 0
        %494 = vmatpush.bf16.msra.mxu0 0
        %495 = vmatpush.bf16.msra.mxu0 0
        %496 = vmatpush.bf16.msra.mxu0 %v470
        %497 = vmatpush.bf16.msra.mxu0 %v413
        %498 = vmatpush.bf16.msra.mxu0 %v405
        %499 = vmatpush.bf16.msra.mxu0 %v397
        %500 = vmatpush.bf16.msra.mxu0 %v389
        %501 = vmatmul.bf16.gmra.mxu0 %v463
        %v502 = vpop.f32.mrf.mxu0
        %v503 = vadd.f32 0.0, %v502
        %v504 = vpop.f32.mrf.mxu0
        %v505 = vadd.f32 0.0, %v504
        %506 = vmatmul.bf16.gmra.mxu0 %v466
        %v507 = vpop.f32.mrf.mxu0
        %v508 = vadd.f32 0.0, %v507
        %v509 = vpop.f32.mrf.mxu0
        %v510 = vadd.f32 0.0, %v509
        %511 = vdwg.mxu0
        %512 = vmatpush.bf16.msra.mxu0 0
        %513 = vmatpush.bf16.msra.mxu0 0
        %514 = vmatpush.bf16.msra.mxu0 0
        %515 = vmatpush.bf16.msra.mxu0 %v473
        %516 = vmatpush.bf16.msra.mxu0 %v414
        %517 = vmatpush.bf16.msra.mxu0 %v406
        %518 = vmatpush.bf16.msra.mxu0 %v398
        %519 = vmatpush.bf16.msra.mxu0 %v390
        %520 = vmatmul.bf16.gmra.mxu0 %v463
        %v521 = vpop.f32.mrf.mxu0
        %v522 = vadd.f32 0.0, %v521
        %v523 = vpop.f32.mrf.mxu0
        %v524 = vadd.f32 0.0, %v523
        %525 = vmatmul.bf16.gmra.mxu0 %v466
        %v526 = vpop.f32.mrf.mxu0
        %v527 = vadd.f32 0.0, %v526
        %v528 = vpop.f32.mrf.mxu0
        %v529 = vadd.f32 0.0, %v528
        %530 = vdwg.mxu0
        %531 = vmatpush.bf16.msra.mxu0 0
        %532 = vmatpush.bf16.msra.mxu0 0
        %533 = vmatpush.bf16.msra.mxu0 0
        %534 = vmatpush.bf16.msra.mxu0 %v476
        %535 = vmatpush.bf16.msra.mxu0 %v415
        %536 = vmatpush.bf16.msra.mxu0 %v407
        %537 = vmatpush.bf16.msra.mxu0 %v399
        %538 = vmatpush.bf16.msra.mxu0 %v391
        %539 = vmatmul.bf16.gmra.mxu0 %v463
        %v540 = vpop.f32.mrf.mxu0
        %v541 = vadd.f32 0.0, %v540
        %v542 = vpop.f32.mrf.mxu0
        %v543 = vadd.f32 0.0, %v542
        %544 = vmatmul.bf16.gmra.mxu0 %v466
        %v545 = vpop.f32.mrf.mxu0
        %v546 = vadd.f32 0.0, %v545
        %v547 = vpop.f32.mrf.mxu0
        %v548 = vadd.f32 0.0, %v547
        %549 = vdwg.mxu0
        %550 = vmatpush.bf16.msra.mxu0 0
        %551 = vmatpush.bf16.msra.mxu0 0
        %552 = vmatpush.bf16.msra.mxu0 0
        %553 = vmatpush.bf16.msra.mxu0 %v479
        %554 = vmatpush.bf16.msra.mxu0 %v416
        %555 = vmatpush.bf16.msra.mxu0 %v408
        %556 = vmatpush.bf16.msra.mxu0 %v400
        %557 = vmatpush.bf16.msra.mxu0 %v392
        %558 = vmatmul.bf16.gmra.mxu0 %v463
        %v559 = vpop.f32.mrf.mxu0
        %v560 = vadd.f32 0.0, %v559
        %v561 = vpop.f32.mrf.mxu0
        %v562 = vadd.f32 0.0, %v561
        %563 = vmatmul.bf16.gmra.mxu0 %v466
        %v564 = vpop.f32.mrf.mxu0
        %v565 = vadd.f32 0.0, %v564
        %v566 = vpop.f32.mrf.mxu0
        %v567 = vadd.f32 0.0, %v566
        %568 = vdwg.mxu0
        %569 = vmatpush.bf16.msra.mxu0 0
        %570 = vmatpush.bf16.msra.mxu0 0
        %571 = vmatpush.bf16.msra.mxu0 0
        %572 = vmatpush.bf16.msra.mxu0 %v482
        %573 = vmatpush.bf16.msra.mxu0 %v417
        %574 = vmatpush.bf16.msra.mxu0 %v409
        %575 = vmatpush.bf16.msra.mxu0 %v401
        %576 = vmatpush.bf16.msra.mxu0 %v393
        %577 = vmatmul.bf16.gmra.mxu0 %v463
        %v578 = vpop.f32.mrf.mxu0
        %v579 = vadd.f32 0.0, %v578
        %v580 = vpop.f32.mrf.mxu0
        %v581 = vadd.f32 0.0, %v580
        %582 = vmatmul.bf16.gmra.mxu0 %v466
        %v583 = vpop.f32.mrf.mxu0
        %v584 = vadd.f32 0.0, %v583
        %v585 = vpop.f32.mrf.mxu0
        %v586 = vadd.f32 0.0, %v585
        %587 = vdwg.mxu0
        %588 = vmatpush.bf16.msra.mxu0 0
        %589 = vmatpush.bf16.msra.mxu0 0
        %590 = vmatpush.bf16.msra.mxu0 0
        %591 = vmatpush.bf16.msra.mxu0 %v485
        %592 = vmatpush.bf16.msra.mxu0 %v418
        %593 = vmatpush.bf16.msra.mxu0 %v410
        %594 = vmatpush.bf16.msra.mxu0 %v402
        %595 = vmatpush.bf16.msra.mxu0 %v394
        %596 = vmatmul.bf16.gmra.mxu0 %v463
        %v597 = vpop.f32.mrf.mxu0
        %v598 = vadd.f32 0.0, %v597
        %v599 = vpop.f32.mrf.mxu0
        %v600 = vadd.f32 0.0, %v599
        %601 = vmatmul.bf16.gmra.mxu0 %v466
        %v602 = vpop.f32.mrf.mxu0
        %v603 = vadd.f32 0.0, %v602
        %v604 = vpop.f32.mrf.mxu0
        %v605 = vadd.f32 0.0, %v604
        %606 = vdwg.mxu0
        %607 = vmatpush.bf16.msra.mxu0 0
        %608 = vmatpush.bf16.msra.mxu0 0
        %609 = vmatpush.bf16.msra.mxu0 0
        %610 = vmatpush.bf16.msra.mxu0 %v488
        %611 = vmatpush.bf16.msra.mxu0 %v419
        %612 = vmatpush.bf16.msra.mxu0 %v411
        %613 = vmatpush.bf16.msra.mxu0 %v403
        %614 = vmatpush.bf16.msra.mxu0 %v395
        %615 = vmatmul.bf16.gmra.mxu0 %v463
        %v616 = vpop.f32.mrf.mxu0
        %v617 = vadd.f32 0.0, %v616
        %v618 = vpop.f32.mrf.mxu0
        %v619 = vadd.f32 0.0, %v618
        %620 = vmatmul.bf16.gmra.mxu0 %v466
        %v621 = vpop.f32.mrf.mxu0
        %v622 = vadd.f32 0.0, %v621
        %v623 = vpop.f32.mrf.mxu0
        %v624 = vadd.f32 0.0, %v623
        %625 = vdwg.mxu0
        %626 = vmatpush.bf16.msra.mxu0 0
        %627 = vmatpush.bf16.msra.mxu0 0
        %628 = vmatpush.bf16.msra.mxu0 0
        %629 = vmatpush.bf16.msra.mxu0 %v491
        %630 = vmatpush.bf16.msra.mxu0 %v420
        %631 = vmatpush.bf16.msra.mxu0 %v412
        %632 = vmatpush.bf16.msra.mxu0 %v404
        %633 = vmatpush.bf16.msra.mxu0 %v396
        %634 = vmatmul.bf16.gmra.mxu0 %v463
        %v635 = vpop.f32.mrf.mxu0
        %v636 = vadd.f32 0.0, %v635
        %v637 = vpop.f32.mrf.mxu0
        %v638 = vadd.f32 0.0, %v637
        %639 = vmatmul.bf16.gmra.mxu0 %v466
        %v640 = vpop.f32.mrf.mxu0
        %v641 = vadd.f32 0.0, %v640
        %v642 = vpop.f32.mrf.mxu0
        %v643 = vadd.f32 0.0, %v642
        %644 = vdwg.mxu0
        %v645 = vpack.c.bf16 %v522, %v503
        %v646 = vpack.c.bf16 %v560, %v541
        %v647 = vpack.c.bf16 %v598, %v579
        %v648 = vpack.c.bf16 %v636, %v617
        %v649 = vpack.c.bf16 %v524, %v505
        %v650 = vpack.c.bf16 %v562, %v543
        %v651 = vpack.c.bf16 %v600, %v581
        %v652 = vpack.c.bf16 %v638, %v619
        %v653 = vpack.c.bf16 %v527, %v508
        %v654 = vpack.c.bf16 %v565, %v546
        %v655 = vpack.c.bf16 %v603, %v584
        %v656 = vpack.c.bf16 %v641, %v622
        %v657 = vpack.c.bf16 %v529, %v510
        %v658 = vpack.c.bf16 %v567, %v548
        %v659 = vpack.c.bf16 %v605, %v586
        %v660 = vpack.c.bf16 %v643, %v624
        %661 = vst [vmem:[%s227] sm:$0xff] %v645
        %662 = vst [vmem:[%s227 + $0x8] sm:$0xff] %v646
        %663 = vst [vmem:[%s227 + $0x10] sm:$0xff] %v647
        %664 = vst [vmem:[%s227 + $0x18] sm:$0xff] %v648
        %665 = vst [vmem:[%s227 + $0x20] sm:$0xff] %v649
        %666 = vst [vmem:[%s227 + $0x28] sm:$0xff] %v650
        %667 = vst [vmem:[%s227 + $0x30] sm:$0xff] %v651
        %668 = vst [vmem:[%s227 + $0x38] sm:$0xff] %v652
        %669 = vst [vmem:[%s227 + $0x40] sm:$0xff] %v653
        %670 = vst [vmem:[%s227 + $0x48] sm:$0xff] %v654
        %671 = vst [vmem:[%s227 + $0x50] sm:$0xff] %v655
        %672 = vst [vmem:[%s227 + $0x58] sm:$0xff] %v656
        %673 = vst [vmem:[%s227 + $0x60] sm:$0xff] %v657
        %674 = vst [vmem:[%s227 + $0x68] sm:$0xff] %v658
        %675 = vst [vmem:[%s227 + $0x70] sm:$0xff] %v659
        %676 = vst [vmem:[%s227 + $0x78] sm:$0xff] %v660
        %s677 = sand.u32 %s68, 1
        %s678 = sand.u32 %s68, 1
        %s679 = smul.addr %s678, 128
        %s680 = scalar_lea.vmem [#allocation3], %s679
        // Predicated region
        $region52: #{_lambda_.12} parent=46 // pred_check
          %p681 = pneg %p78
        $region53: #{_lambda_.12} parent=46 // pred_check_branch
          %683 = sbr.rel (%p681) target = $region55
        $region54: #{_lambda_.12} parent=46 // pred_region
          %s684 = smul.u32 8, %s13
          %s685 = smul.addr %s684, 4
          %s686 = scalar_lea.vmem %s2, %s685
          // Predicated region
          $region56: #{_lambda_.12} parent=54 // pred_check
            _
          $region57: #{_lambda_.12} parent=54 // pred_check_branch
            %688 = sbr.rel (0) target = $region59
          $region58: #{_lambda_.12} parent=54 // pred_region
            // Predicated region
            $region60: #{_lambda_.12} parent=58 // pred_check
              _
            $region61: #{_lambda_.12} parent=58 // pred_check_branch
              %690 = sbr.rel (0) target = $region63
            $region62: #{_lambda_.12} parent=58 // pred_region
              loop: start=0, step=1, limit=1
              $region64: #{_lambda_.12} parent=62 // loop_pre_header
                _
              $region65: #{_lambda_.12} parent=62 // loop_header
                %s692 = sphi 0, %s696
                %p693 = scmp.ge.s32.totalorder %s692, 1
                %s697 = sphi %s680, %s680
                %s698 = sphi %s686, %s686
              $region66: #{_lambda_.12} parent=62 // loop_header_branch
                %695 = sbr.rel (%p693) target = $region70
              $region67: #{_lambda_.12} parent=62 // loop_body
                %v699 = vld [vmem:[%s697] sm:$0xff]
                %700 = vst [vmem:[%s698] sm:$0xff] %v699
                %v701 = vld [vmem:[%s697 + $0x8] sm:$0xff]
                %702 = vst [vmem:[%s698 + $0x8] sm:$0xff] %v701
                %v703 = vld [vmem:[%s697 + $0x10] sm:$0xff]
                %704 = vst [vmem:[%s698 + $0x10] sm:$0xff] %v703
                %v705 = vld [vmem:[%s697 + $0x18] sm:$0xff]
                %706 = vst [vmem:[%s698 + $0x18] sm:$0xff] %v705
                %v707 = vld [vmem:[%s697 + $0x20] sm:$0xff]
                %708 = vst [vmem:[%s698 + $0x40] sm:$0xff] %v707
                %v709 = vld [vmem:[%s697 + $0x28] sm:$0xff]
                %710 = vst [vmem:[%s698 + $0x48] sm:$0xff] %v709
                %v711 = vld [vmem:[%s697 + $0x30] sm:$0xff]
                %712 = vst [vmem:[%s698 + $0x50] sm:$0xff] %v711
                %v713 = vld [vmem:[%s697 + $0x38] sm:$0xff]
                %714 = vst [vmem:[%s698 + $0x58] sm:$0xff] %v713
                %v715 = vld [vmem:[%s697 + $0x40] sm:$0xff]
                %716 = vst [vmem:[%s698 + $0x80] sm:$0xff] %v715
                %v717 = vld [vmem:[%s697 + $0x48] sm:$0xff]
                %718 = vst [vmem:[%s698 + $0x88] sm:$0xff] %v717
                %v719 = vld [vmem:[%s697 + $0x50] sm:$0xff]
                %720 = vst [vmem:[%s698 + $0x90] sm:$0xff] %v719
                %v721 = vld [vmem:[%s697 + $0x58] sm:$0xff]
                %722 = vst [vmem:[%s698 + $0x98] sm:$0xff] %v721
                %v723 = vld [vmem:[%s697 + $0x60] sm:$0xff]
                %724 = vst [vmem:[%s698 + $0xc0] sm:$0xff] %v723
                %v725 = vld [vmem:[%s697 + $0x68] sm:$0xff]
                %726 = vst [vmem:[%s698 + $0xc8] sm:$0xff] %v725
                %v727 = vld [vmem:[%s697 + $0x70] sm:$0xff]
                %728 = vst [vmem:[%s698 + $0xd0] sm:$0xff] %v727
                %v729 = vld [vmem:[%s697 + $0x78] sm:$0xff]
                %730 = vst [vmem:[%s698 + $0xd8] sm:$0xff] %v729
              $region68: #{_lambda_.12} parent=62 // loop_footer
                %s696 = sadd.s32 1, %s692
              $region69: #{_lambda_.12} parent=62 // loop_footer_branch
                %691 = sbr.rel target = $region65
              $region70: #{_lambda_.12} parent=62 // loop_exit
                _
            $region63: #{_lambda_.12} parent=58 // pred_fallthru
              _
            // Predicated region
            $region71: #{_lambda_.12} parent=58 // pred_check
              _
            $region72: #{_lambda_.12} parent=58 // pred_check_branch
              %732 = sbr.rel target = $region74
            $region73: #{_lambda_.12} parent=58 // pred_region
              _
            $region74: #{_lambda_.12} parent=58 // pred_fallthru
              _
          $region59: #{_lambda_.12} parent=54 // pred_fallthru
            _
          %733 = vnop
        $region55: #{_lambda_.12} parent=46 // pred_fallthru
          _
      $region47: #{_lambda_.12} parent=5 // pred_fallthru
        _
      %p734 = scmp.le.s32.totalorder 2, %s8
      // Predicated region
      $region75: #{_lambda_.12} parent=5 // pred_check
        %p735 = pneg %p734
      $region76: #{_lambda_.12} parent=5 // pred_check_branch
        %737 = sbr.rel (%p735) target = $region78
      $region77: #{_lambda_.12} parent=5 // pred_region
        %s738 = ssub.s32 %s8, 2
        // Predicated region
        $region79: #{_lambda_.12} parent=77 // pred_check
          %p739 = pneg %p84
        $region80: #{_lambda_.12} parent=77 // pred_check_branch
          %741 = sbr.rel (%p739) target = $region82
        $region81: #{_lambda_.12} parent=77 // pred_region
          %s742 = sand.u32 %s69, 1
          %s743 = sand.u32 %s69, 1
          %s744 = smul.addr %s743, 128
          %s745 = scalar_lea.vmem [#allocation3], %s744
        $region82: #{_lambda_.12} parent=77 // pred_fallthru
          _
      $region78: #{_lambda_.12} parent=5 // pred_fallthru
        _
    $region6: #{_lambda_.12} parent=1 // loop_footer
      %s12 = sadd.s32 1, %s8
    $region7: #{_lambda_.12} parent=1 // loop_footer_branch
      %7 = sbr.rel target = $region3
    $region8: #{_lambda_.12} parent=1 // loop_exit
      _

// kernel: _lambda_.13
$region0: #{_lambda_.13}
  #allocation0 [shape = 'u32[]', space=smem, size = 0x4, offset = 0x4, fixed_abs, tag = 'smem constant byte address 0x4 - core index']
  #allocation1 [shape = 'u32[72,128]{1,0:T(1,128)}', space=vmem, size = 0x9000, scoped, tag = 'internal scratch']
  %s0 = inlined_call_operand.vmem [shape: bf16[4,72], index: 0, kind: input, shape index: {}]
  %s1 = inlined_call_operand.vmem [shape: bf16[72,8192], index: 1, kind: input, shape index: {}]
  %s2 = inlined_call_operand.vmem [shape: f32[4,8192], index: 2, kind: output, shape index: {}]
  %s3 = sld [smem:[#allocation0]]
  $region64: #{_lambda_.13} parent=0
    _
  %s5 = ssub.s32 1, %s3
  %s6 = scalar_select 0, %s5, %s3
  $region1: #{_lambda_.13} parent=0
    #allocation2 [shape = 'u8[1179648]{0}', space=vmem, size = 0x120000, scoped, tag = 'input window, operand 1']
    loop: start=0, step=1, limit=4
    $region2: #{_lambda_.13} parent=1 // loop_pre_header
      _
    $region3: #{_lambda_.13} parent=1 // loop_header
      %s8 = sphi 0, %s12
      %p9 = scmp.ge.s32.totalorder %s8, 4
      %s16 = sphi 0, %s16
      %s18 = sphi 0, %s16
      %s19 = sphi 0, %s18
      %s33 = sphi 0, %s19
      %s39 = sphi 0, %s41
      %s42 = sphi 0, %s39
      %s43 = sphi 0, %s42
      %s59 = sphi 0, %s43
      %s65 = sphi 0, %s67
      %s68 = sphi 0, %s65
      %s69 = sphi 0, %s68
      %s85 = sphi 0, %s69
    $region4: #{_lambda_.13} parent=1 // loop_header_branch
      %11 = sbr.rel (%p9) target = $region8
    $region5: #{_lambda_.13} parent=1 // loop_body
      %s13 = ssub.s32 %s8, 1
      %s14 = ssub.s32 %s8, 2
      %s15 = sadd.s32 %s8, 1
      %s17 = sadd.s32 %s16, 1
      %p20 = scmp.eq.s32.totalorder %s8, 1
      %p21 = scmp.ne.s32.totalorder %s16, %s18
      %p22 = scmp.eq.s32.totalorder %s8, 0
      %p23 = por %p21, %p22
      %p24 = scmp.ne.s32.totalorder %s16, %s18
      %p25 = scmp.eq.s32.totalorder %s13, 1
      %p26 = por %p24, %p25
      %p27 = scmp.ne.s32.totalorder %s18, %s19
      %p28 = scmp.eq.s32.totalorder %s13, 0
      %p29 = por %p27, %p28
      %p30 = scmp.ne.s32.totalorder %s18, %s19
      %p31 = scmp.eq.s32.totalorder %s14, 1
      %p32 = por %p30, %p31
      %p34 = scmp.ne.s32.totalorder %s19, %s33
      %p35 = scmp.eq.s32.totalorder %s14, 0
      %p36 = por %p34, %p35
      %s37 = ssub.s32 %s8, %s15
      %p38 = scmp.eq.s32.totalorder %s37, 0
      %s40 = sadd.s32 %s39, 1
      %s41 = scalar_select %p38, %s39, %s40
      %p44 = pneg %p38
      %p45 = scmp.eq.s32.totalorder %s8, 1
      %p46 = por %p44, %p45
      %p47 = scmp.ne.s32.totalorder %s39, %s42
      %p48 = scmp.eq.s32.totalorder %s8, 0
      %p49 = por %p47, %p48
      %p50 = scmp.ne.s32.totalorder %s39, %s42
      %p51 = scmp.eq.s32.totalorder %s13, 1
      %p52 = por %p50, %p51
      %p53 = scmp.ne.s32.totalorder %s42, %s43
      %p54 = scmp.eq.s32.totalorder %s13, 0
      %p55 = por %p53, %p54
      %p56 = scmp.ne.s32.totalorder %s42, %s43
      %p57 = scmp.eq.s32.totalorder %s14, 1
      %p58 = por %p56, %p57
      %p60 = scmp.ne.s32.totalorder %s43, %s59
      %p61 = scmp.eq.s32.totalorder %s14, 0
      %p62 = por %p60, %p61
      %s63 = ssub.s32 %s8, %s15
      %p64 = scmp.eq.s32.totalorder %s63, 0
      %s66 = sadd.s32 %s65, 1
      %s67 = scalar_select %p64, %s65, %s66
      %p70 = pneg %p64
      %p71 = scmp.eq.s32.totalorder %s8, 1
      %p72 = por %p70, %p71
      %p73 = scmp.ne.s32.totalorder %s65, %s68
      %p74 = scmp.eq.s32.totalorder %s8, 0
      %p75 = por %p73, %p74
      %p76 = scmp.ne.s32.totalorder %s65, %s68
      %p77 = scmp.eq.s32.totalorder %s13, 1
      %p78 = por %p76, %p77
      %p79 = scmp.ne.s32.totalorder %s68, %s69
      %p80 = scmp.eq.s32.totalorder %s13, 0
      %p81 = por %p79, %p80
      %p82 = scmp.ne.s32.totalorder %s68, %s69
      %p83 = scmp.eq.s32.totalorder %s14, 1
      %p84 = por %p82, %p83
      %p86 = scmp.ne.s32.totalorder %s69, %s85
      %p87 = scmp.eq.s32.totalorder %s14, 0
      %p88 = por %p86, %p87
      %p89 = scmp.le.s32.totalorder 1, %s8
      %p90 = scmp.lt.s32.totalorder %s8, 3
      %p91 = pnand %p89, %p90
      %p92 = pneg %p91
      // Predicated region
      $region9: #{_lambda_.13} parent=5 // pred_check
        _
      $region10: #{_lambda_.13} parent=5 // pred_check_branch
        %94 = sbr.rel (%p91) target = $region12
      $region11: #{_lambda_.13} parent=5 // pred_region
        %s95 = ssub.s32 %s8, 1
        // Predicated region
        $region13: #{_lambda_.13} parent=11 // pred_check
          %p96 = pneg %p29
        $region14: #{_lambda_.13} parent=11 // pred_check_branch
          %98 = sbr.rel (%p96) target = $region16
        $region15: #{_lambda_.13} parent=11 // pred_region
          _
        $region16: #{_lambda_.13} parent=11 // pred_fallthru
          _
      $region12: #{_lambda_.13} parent=5 // pred_fallthru
        _
      %p99 = scmp.lt.s32.totalorder %s8, 2
      // Predicated region
      $region17: #{_lambda_.13} parent=5 // pred_check
        %p100 = pneg %p99
      $region18: #{_lambda_.13} parent=5 // pred_check_branch
        %102 = sbr.rel (%p100) target = $region20
      $region19: #{_lambda_.13} parent=5 // pred_region
        // Predicated region
        $region21: #{_lambda_.13} parent=19 // pred_check
          %p103 = pneg %p49
        $region22: #{_lambda_.13} parent=19 // pred_check_branch
          %105 = sbr.rel (%p103) target = $region24
        $region23: #{_lambda_.13} parent=19 // pred_region
          %s106 = sand.u32 %s39, 1
          %s107 = sand.u32 %s39, 1
          %s108 = smul.addr %s107, 1152
          %s109 = scalar_lea.vmem [#allocation2], %s108
          %s110 = smul.u32 32, %s8
          %s111 = smul.addr %s110, 4
          %s112 = scalar_lea.vmem %s1, %s111
          // Predicated region
          $region25: #{_lambda_.13} parent=23 // pred_check
            _
          $region26: #{_lambda_.13} parent=23 // pred_check_branch
            %114 = sbr.rel (0) target = $region28
          $region27: #{_lambda_.13} parent=23 // pred_region
            // Predicated region
            $region29: #{_lambda_.13} parent=27 // pred_check
              _
            $region30: #{_lambda_.13} parent=27 // pred_check_branch
              %116 = sbr.rel (0) target = $region32
            $region31: #{_lambda_.13} parent=27 // pred_region
              loop: start=0, step=1, limit=1
              $region33: #{_lambda_.13} parent=31 // loop_pre_header
                _
              $region34: #{_lambda_.13} parent=31 // loop_header
                %s118 = sphi 0, %s122
                %p119 = scmp.ge.s32.totalorder %s118, 1
                %s123 = sphi %s112, %s112
                %s124 = sphi %s109, %s109
              $region35: #{_lambda_.13} parent=31 // loop_header_branch
                %121 = sbr.rel (%p119) target = $region39
              $region36: #{_lambda_.13} parent=31 // loop_body
                %v125 = vld [vmem:[%s123] sm:$0xff]
                %126 = vst [vmem:[%s124] sm:$0xff] %v125
                %v127 = vld [vmem:[%s123 + $0x8] sm:$0xff]
                %128 = vst [vmem:[%s124 + $0x8] sm:$0xff] %v127
                %v129 = vld [vmem:[%s123 + $0x10] sm:$0xff]
                %130 = vst [vmem:[%s124 + $0x10] sm:$0xff] %v129
                %v131 = vld [vmem:[%s123 + $0x18] sm:$0xff]
                %132 = vst [vmem:[%s124 + $0x18] sm:$0xff] %v131
                %v133 = vld [vmem:[%s123 + $0x20] sm:$0xff]
                %134 = vst [vmem:[%s124 + $0x20] sm:$0xff] %v133
                %v135 = vld [vmem:[%s123 + $0x28] sm:$0xff]
                %136 = vst [vmem:[%s124 + $0x28] sm:$0xff] %v135
                %v137 = vld [vmem:[%s123 + $0x30] sm:$0xff]
                %138 = vst [vmem:[%s124 + $0x30] sm:$0xff] %v137
                %v139 = vld [vmem:[%s123 + $0x38] sm:$0xff]
                %140 = vst [vmem:[%s124 + $0x38] sm:$0xff] %v139
                %v141 = vld [vmem:[%s123 + $0x40] sm:$0xff]
                %142 = vst [vmem:[%s124 + $0x40] sm:$0xff] %v141
                %v143 = vld [vmem:[%s123 + $0x48] sm:$0xff]
                %144 = vst [vmem:[%s124 + $0x48] sm:$0xff] %v143
                %v145 = vld [vmem:[%s123 + $0x50] sm:$0xff]
                %146 = vst [vmem:[%s124 + $0x50] sm:$0xff] %v145
                %v147 = vld [vmem:[%s123 + $0x58] sm:$0xff]
                %148 = vst [vmem:[%s124 + $0x58] sm:$0xff] %v147
                %v149 = vld [vmem:[%s123 + $0x60] sm:$0xff]
                %150 = vst [vmem:[%s124 + $0x60] sm:$0xff] %v149
                %v151 = vld [vmem:[%s123 + $0x68] sm:$0xff]
                %152 = vst [vmem:[%s124 + $0x68] sm:$0xff] %v151
                %v153 = vld [vmem:[%s123 + $0x70] sm:$0xff]
                %154 = vst [vmem:[%s124 + $0x70] sm:$0xff] %v153
                %v155 = vld [vmem:[%s123 + $0x78] sm:$0xff]
                %156 = vst [vmem:[%s124 + $0x78] sm:$0xff] %v155
                %v157 = vld [vmem:[%s123 + $0x100] sm:$0xff]
                %158 = vst [vmem:[%s124 + $0x80] sm:$0xff] %v157
                %v159 = vld [vmem:[%s123 + $0x108] sm:$0xff]
                %160 = vst [vmem:[%s124 + $0x88] sm:$0xff] %v159
                %v161 = vld [vmem:[%s123 + $0x110] sm:$0xff]
                %162 = vst [vmem:[%s124 + $0x90] sm:$0xff] %v161
                %v163 = vld [vmem:[%s123 + $0x118] sm:$0xff]
                %164 = vst [vmem:[%s124 + $0x98] sm:$0xff] %v163
                %v165 = vld [vmem:[%s123 + $0x120] sm:$0xff]
                %166 = vst [vmem:[%s124 + $0xa0] sm:$0xff] %v165
                %v167 = vld [vmem:[%s123 + $0x128] sm:$0xff]
                %168 = vst [vmem:[%s124 + $0xa8] sm:$0xff] %v167
                %v169 = vld [vmem:[%s123 + $0x130] sm:$0xff]
                %170 = vst [vmem:[%s124 + $0xb0] sm:$0xff] %v169
                %v171 = vld [vmem:[%s123 + $0x138] sm:$0xff]
                %172 = vst [vmem:[%s124 + $0xb8] sm:$0xff] %v171
                %v173 = vld [vmem:[%s123 + $0x140] sm:$0xff]
                %174 = vst [vmem:[%s124 + $0xc0] sm:$0xff] %v173
                %v175 = vld [vmem:[%s123 + $0x148] sm:$0xff]
                %176 = vst [vmem:[%s124 + $0xc8] sm:$0xff] %v175
                %v177 = vld [vmem:[%s123 + $0x150] sm:$0xff]
                %178 = vst [vmem:[%s124 + $0xd0] sm:$0xff] %v177
                %v179 = vld [vmem:[%s123 + $0x158] sm:$0xff]
                %180 = vst [vmem:[%s124 + $0xd8] sm:$0xff] %v179
                %v181 = vld [vmem:[%s123 + $0x160] sm:$0xff]
                %182 = vst [vmem:[%s124 + $0xe0] sm:$0xff] %v181
                %v183 = vld [vmem:[%s123 + $0x168] sm:$0xff]
                %184 = vst [vmem:[%s124 + $0xe8] sm:$0xff] %v183
                %v185 = vld [vmem:[%s123 + $0x170] sm:$0xff]
                %186 = vst [vmem:[%s124 + $0xf0] sm:$0xff] %v185
                %v187 = vld [vmem:[%s123 + $0x178] sm:$0xff]
                %188 = vst [vmem:[%s124 + $0xf8] sm:$0xff] %v187
                %v189 = vld [vmem:[%s123 + $0x200] sm:$0xff]
                %190 = vst [vmem:[%s124 + $0x100] sm:$0xff] %v189
                %v191 = vld [vmem:[%s123 + $0x208] sm:$0xff]
                %192 = vst [vmem:[%s124 + $0x108] sm:$0xff] %v191
                %v193 = vld [vmem:[%s123 + $0x210] sm:$0xff]
                %194 = vst [vmem:[%s124 + $0x110] sm:$0xff] %v193
                %v195 = vld [vmem:[%s123 + $0x218] sm:$0xff]
                %196 = vst [vmem:[%s124 + $0x118] sm:$0xff] %v195
                %v197 = vld [vmem:[%s123 + $0x220] sm:$0xff]
                %198 = vst [vmem:[%s124 + $0x120] sm:$0xff] %v197
                %v199 = vld [vmem:[%s123 + $0x228] sm:$0xff]
                %200 = vst [vmem:[%s124 + $0x128] sm:$0xff] %v199
                %v201 = vld [vmem:[%s123 + $0x230] sm:$0xff]
                %202 = vst [vmem:[%s124 + $0x130] sm:$0xff] %v201
                %v203 = vld [vmem:[%s123 + $0x238] sm:$0xff]
                %204 = vst [vmem:[%s124 + $0x138] sm:$0xff] %v203
                %v205 = vld [vmem:[%s123 + $0x240] sm:$0xff]
                %206 = vst [vmem:[%s124 + $0x140] sm:$0xff] %v205
                %v207 = vld [vmem:[%s123 + $0x248] sm:$0xff]
                %208 = vst [vmem:[%s124 + $0x148] sm:$0xff] %v207
                %v209 = vld [vmem:[%s123 + $0x250] sm:$0xff]
                %210 = vst [vmem:[%s124 + $0x150] sm:$0xff] %v209
                %v211 = vld [vmem:[%s123 + $0x258] sm:$0xff]
                %212 = vst [vmem:[%s124 + $0x158] sm:$0xff] %v211
                %v213 = vld [vmem:[%s123 + $0x260] sm:$0xff]
                %214 = vst [vmem:[%s124 + $0x160] sm:$0xff] %v213
                %v215 = vld [vmem:[%s123 + $0x268] sm:$0xff]
                %216 = vst [vmem:[%s124 + $0x168] sm:$0xff] %v215
                %v217 = vld [vmem:[%s123 + $0x270] sm:$0xff]
                %218 = vst [vmem:[%s124 + $0x170] sm:$0xff] %v217
                %v219 = vld [vmem:[%s123 + $0x278] sm:$0xff]
                %220 = vst [vmem:[%s124 + $0x178] sm:$0xff] %v219
                %v221 = vld [vmem:[%s123 + $0x300] sm:$0xff]
                %222 = vst [vmem:[%s124 + $0x180] sm:$0xff] %v221
                %v223 = vld [vmem:[%s123 + $0x308] sm:$0xff]
                %224 = vst [vmem:[%s124 + $0x188] sm:$0xff] %v223
                %v225 = vld [vmem:[%s123 + $0x310] sm:$0xff]
                %226 = vst [vmem:[%s124 + $0x190] sm:$0xff] %v225
                %v227 = vld [vmem:[%s123 + $0x318] sm:$0xff]
                %228 = vst [vmem:[%s124 + $0x198] sm:$0xff] %v227
                %v229 = vld [vmem:[%s123 + $0x320] sm:$0xff]
                %230 = vst [vmem:[%s124 + $0x1a0] sm:$0xff] %v229
                %v231 = vld [vmem:[%s123 + $0x328] sm:$0xff]
                %232 = vst [vmem:[%s124 + $0x1a8] sm:$0xff] %v231
                %v233 = vld [vmem:[%s123 + $0x330] sm:$0xff]
                %234 = vst [vmem:[%s124 + $0x1b0] sm:$0xff] %v233
                %v235 = vld [vmem:[%s123 + $0x338] sm:$0xff]
                %236 = vst [vmem:[%s124 + $0x1b8] sm:$0xff] %v235
                %v237 = vld [vmem:[%s123 + $0x340] sm:$0xff]
                %238 = vst [vmem:[%s124 + $0x1c0] sm:$0xff] %v237
                %v239 = vld [vmem:[%s123 + $0x348] sm:$0xff]
                %240 = vst [vmem:[%s124 + $0x1c8] sm:$0xff] %v239
                %v241 = vld [vmem:[%s123 + $0x350] sm:$0xff]
                %242 = vst [vmem:[%s124 + $0x1d0] sm:$0xff] %v241
                %v243 = vld [vmem:[%s123 + $0x358] sm:$0xff]
                %244 = vst [vmem:[%s124 + $0x1d8] sm:$0xff] %v243
                %v245 = vld [vmem:[%s123 + $0x360] sm:$0xff]
                %246 = vst [vmem:[%s124 + $0x1e0] sm:$0xff] %v245
                %v247 = vld [vmem:[%s123 + $0x368] sm:$0xff]
                %248 = vst [vmem:[%s124 + $0x1e8] sm:$0xff] %v247
                %v249 = vld [vmem:[%s123 + $0x370] sm:$0xff]
                %250 = vst [vmem:[%s124 + $0x1f0] sm:$0xff] %v249
                %v251 = vld [vmem:[%s123 + $0x378] sm:$0xff]
                %252 = vst [vmem:[%s124 + $0x1f8] sm:$0xff] %v251
                %v253 = vld [vmem:[%s123 + $0x400] sm:$0xff]
                %254 = vst [vmem:[%s124 + $0x200] sm:$0xff] %v253
                %v255 = vld [vmem:[%s123 + $0x408] sm:$0xff]
                %256 = vst [vmem:[%s124 + $0x208] sm:$0xff] %v255
                %v257 = vld [vmem:[%s123 + $0x410] sm:$0xff]
                %258 = vst [vmem:[%s124 + $0x210] sm:$0xff] %v257
                %v259 = vld [vmem:[%s123 + $0x418] sm:$0xff]
                %260 = vst [vmem:[%s124 + $0x218] sm:$0xff] %v259
                %v261 = vld [vmem:[%s123 + $0x420] sm:$0xff]
                %262 = vst [vmem:[%s124 + $0x220] sm:$0xff] %v261
                %v263 = vld [vmem:[%s123 + $0x428] sm:$0xff]
                %264 = vst [vmem:[%s124 + $0x228] sm:$0xff] %v263
                %v265 = vld [vmem:[%s123 + $0x430] sm:$0xff]
                %266 = vst [vmem:[%s124 + $0x230] sm:$0xff] %v265
                %v267 = vld [vmem:[%s123 + $0x438] sm:$0xff]
                %268 = vst [vmem:[%s124 + $0x238] sm:$0xff] %v267
                %v269 = vld [vmem:[%s123 + $0x440] sm:$0xff]
                %270 = vst [vmem:[%s124 + $0x240] sm:$0xff] %v269
                %v271 = vld [vmem:[%s123 + $0x448] sm:$0xff]
                %272 = vst [vmem:[%s124 + $0x248] sm:$0xff] %v271
                %v273 = vld [vmem:[%s123 + $0x450] sm:$0xff]
                %274 = vst [vmem:[%s124 + $0x250] sm:$0xff] %v273
                %v275 = vld [vmem:[%s123 + $0x458] sm:$0xff]
                %276 = vst [vmem:[%s124 + $0x258] sm:$0xff] %v275
                %v277 = vld [vmem:[%s123 + $0x460] sm:$0xff]
                %278 = vst [vmem:[%s124 + $0x260] sm:$0xff] %v277
                %v279 = vld [vmem:[%s123 + $0x468] sm:$0xff]
                %280 = vst [vmem:[%s124 + $0x268] sm:$0xff] %v279
                %v281 = vld [vmem:[%s123 + $0x470] sm:$0xff]
                %282 = vst [vmem:[%s124 + $0x270] sm:$0xff] %v281
                %v283 = vld [vmem:[%s123 + $0x478] sm:$0xff]
                %284 = vst [vmem:[%s124 + $0x278] sm:$0xff] %v283
                %v285 = vld [vmem:[%s123 + $0x500] sm:$0xff]
                %286 = vst [vmem:[%s124 + $0x280] sm:$0xff] %v285
                %v287 = vld [vmem:[%s123 + $0x508] sm:$0xff]
                %288 = vst [vmem:[%s124 + $0x288] sm:$0xff] %v287
                %v289 = vld [vmem:[%s123 + $0x510] sm:$0xff]
                %290 = vst [vmem:[%s124 + $0x290] sm:$0xff] %v289
                %v291 = vld [vmem:[%s123 + $0x518] sm:$0xff]
                %292 = vst [vmem:[%s124 + $0x298] sm:$0xff] %v291
                %v293 = vld [vmem:[%s123 + $0x520] sm:$0xff]
                %294 = vst [vmem:[%s124 + $0x2a0] sm:$0xff] %v293
                %v295 = vld [vmem:[%s123 + $0x528] sm:$0xff]
                %296 = vst [vmem:[%s124 + $0x2a8] sm:$0xff] %v295
                %v297 = vld [vmem:[%s123 + $0x530] sm:$0xff]
                %298 = vst [vmem:[%s124 + $0x2b0] sm:$0xff] %v297
                %v299 = vld [vmem:[%s123 + $0x538] sm:$0xff]
                %300 = vst [vmem:[%s124 + $0x2b8] sm:$0xff] %v299
                %v301 = vld [vmem:[%s123 + $0x540] sm:$0xff]
                %302 = vst [vmem:[%s124 + $0x2c0] sm:$0xff] %v301
                %v303 = vld [vmem:[%s123 + $0x548] sm:$0xff]
                %304 = vst [vmem:[%s124 + $0x2c8] sm:$0xff] %v303
                %v305 = vld [vmem:[%s123 + $0x550] sm:$0xff]
                %306 = vst [vmem:[%s124 + $0x2d0] sm:$0xff] %v305
                %v307 = vld [vmem:[%s123 + $0x558] sm:$0xff]
                %308 = vst [vmem:[%s124 + $0x2d8] sm:$0xff] %v307
                %v309 = vld [vmem:[%s123 + $0x560] sm:$0xff]
                %310 = vst [vmem:[%s124 + $0x2e0] sm:$0xff] %v309
                %v311 = vld [vmem:[%s123 + $0x568] sm:$0xff]
                %312 = vst [vmem:[%s124 + $0x2e8] sm:$0xff] %v311
                %v313 = vld [vmem:[%s123 + $0x570] sm:$0xff]
                %314 = vst [vmem:[%s124 + $0x2f0] sm:$0xff] %v313
                %v315 = vld [vmem:[%s123 + $0x578] sm:$0xff]
                %316 = vst [vmem:[%s124 + $0x2f8] sm:$0xff] %v315
                %v317 = vld [vmem:[%s123 + $0x600] sm:$0xff]
                %318 = vst [vmem:[%s124 + $0x300] sm:$0xff] %v317
                %v319 = vld [vmem:[%s123 + $0x608] sm:$0xff]
                %320 = vst [vmem:[%s124 + $0x308] sm:$0xff] %v319
                %v321 = vld [vmem:[%s123 + $0x610] sm:$0xff]
                %322 = vst [vmem:[%s124 + $0x310] sm:$0xff] %v321
                %v323 = vld [vmem:[%s123 + $0x618] sm:$0xff]
                %324 = vst [vmem:[%s124 + $0x318] sm:$0xff] %v323
                %v325 = vld [vmem:[%s123 + $0x620] sm:$0xff]
                %326 = vst [vmem:[%s124 + $0x320] sm:$0xff] %v325
                %v327 = vld [vmem:[%s123 + $0x628] sm:$0xff]
                %328 = vst [vmem:[%s124 + $0x328] sm:$0xff] %v327
                %v329 = vld [vmem:[%s123 + $0x630] sm:$0xff]
                %330 = vst [vmem:[%s124 + $0x330] sm:$0xff] %v329
                %v331 = vld [vmem:[%s123 + $0x638] sm:$0xff]
                %332 = vst [vmem:[%s124 + $0x338] sm:$0xff] %v331
                %v333 = vld [vmem:[%s123 + $0x640] sm:$0xff]
                %334 = vst [vmem:[%s124 + $0x340] sm:$0xff] %v333
                %v335 = vld [vmem:[%s123 + $0x648] sm:$0xff]
                %336 = vst [vmem:[%s124 + $0x348] sm:$0xff] %v335
                %v337 = vld [vmem:[%s123 + $0x650] sm:$0xff]
                %338 = vst [vmem:[%s124 + $0x350] sm:$0xff] %v337
                %v339 = vld [vmem:[%s123 + $0x658] sm:$0xff]
                %340 = vst [vmem:[%s124 + $0x358] sm:$0xff] %v339
                %v341 = vld [vmem:[%s123 + $0x660] sm:$0xff]
                %342 = vst [vmem:[%s124 + $0x360] sm:$0xff] %v341
                %v343 = vld [vmem:[%s123 + $0x668] sm:$0xff]
                %344 = vst [vmem:[%s124 + $0x368] sm:$0xff] %v343
                %v345 = vld [vmem:[%s123 + $0x670] sm:$0xff]
                %346 = vst [vmem:[%s124 + $0x370] sm:$0xff] %v345
                %v347 = vld [vmem:[%s123 + $0x678] sm:$0xff]
                %348 = vst [vmem:[%s124 + $0x378] sm:$0xff] %v347
                %v349 = vld [vmem:[%s123 + $0x700] sm:$0xff]
                %350 = vst [vmem:[%s124 + $0x380] sm:$0xff] %v349
                %v351 = vld [vmem:[%s123 + $0x708] sm:$0xff]
                %352 = vst [vmem:[%s124 + $0x388] sm:$0xff] %v351
                %v353 = vld [vmem:[%s123 + $0x710] sm:$0xff]
                %354 = vst [vmem:[%s124 + $0x390] sm:$0xff] %v353
                %v355 = vld [vmem:[%s123 + $0x718] sm:$0xff]
                %356 = vst [vmem:[%s124 + $0x398] sm:$0xff] %v355
                %v357 = vld [vmem:[%s123 + $0x720] sm:$0xff]
                %358 = vst [vmem:[%s124 + $0x3a0] sm:$0xff] %v357
                %v359 = vld [vmem:[%s123 + $0x728] sm:$0xff]
                %360 = vst [vmem:[%s124 + $0x3a8] sm:$0xff] %v359
                %v361 = vld [vmem:[%s123 + $0x730] sm:$0xff]
                %362 = vst [vmem:[%s124 + $0x3b0] sm:$0xff] %v361
                %v363 = vld [vmem:[%s123 + $0x738] sm:$0xff]
                %364 = vst [vmem:[%s124 + $0x3b8] sm:$0xff] %v363
                %v365 = vld [vmem:[%s123 + $0x740] sm:$0xff]
                %366 = vst [vmem:[%s124 + $0x3c0] sm:$0xff] %v365
                %v367 = vld [vmem:[%s123 + $0x748] sm:$0xff]
                %368 = vst [vmem:[%s124 + $0x3c8] sm:$0xff] %v367
                %v369 = vld [vmem:[%s123 + $0x750] sm:$0xff]
                %370 = vst [vmem:[%s124 + $0x3d0] sm:$0xff] %v369
                %v371 = vld [vmem:[%s123 + $0x758] sm:$0xff]
                %372 = vst [vmem:[%s124 + $0x3d8] sm:$0xff] %v371
                %v373 = vld [vmem:[%s123 + $0x760] sm:$0xff]
                %374 = vst [vmem:[%s124 + $0x3e0] sm:$0xff] %v373
                %v375 = vld [vmem:[%s123 + $0x768] sm:$0xff]
                %376 = vst [vmem:[%s124 + $0x3e8] sm:$0xff] %v375
                %v377 = vld [vmem:[%s123 + $0x770] sm:$0xff]
                %378 = vst [vmem:[%s124 + $0x3f0] sm:$0xff] %v377
                %v379 = vld [vmem:[%s123 + $0x778] sm:$0xff]
                %380 = vst [vmem:[%s124 + $0x3f8] sm:$0xff] %v379
                %v381 = vld [vmem:[%s123 + $0x800] sm:$0xff]
                %382 = vst [vmem:[%s124 + $0x400] sm:$0xff] %v381
                %v383 = vld [vmem:[%s123 + $0x808] sm:$0xff]
                %384 = vst [vmem:[%s124 + $0x408] sm:$0xff] %v383
                %v385 = vld [vmem:[%s123 + $0x810] sm:$0xff]
                %386 = vst [vmem:[%s124 + $0x410] sm:$0xff] %v385
                %v387 = vld [vmem:[%s123 + $0x818] sm:$0xff]
                %388 = vst [vmem:[%s124 + $0x418] sm:$0xff] %v387
                %v389 = vld [vmem:[%s123 + $0x820] sm:$0xff]
                %390 = vst [vmem:[%s124 + $0x420] sm:$0xff] %v389
                %v391 = vld [vmem:[%s123 + $0x828] sm:$0xff]
                %392 = vst [vmem:[%s124 + $0x428] sm:$0xff] %v391
                %v393 = vld [vmem:[%s123 + $0x830] sm:$0xff]
                %394 = vst [vmem:[%s124 + $0x430] sm:$0xff] %v393
                %v395 = vld [vmem:[%s123 + $0x838] sm:$0xff]
                %396 = vst [vmem:[%s124 + $0x438] sm:$0xff] %v395
                %v397 = vld [vmem:[%s123 + $0x840] sm:$0xff]
                %398 = vst [vmem:[%s124 + $0x440] sm:$0xff] %v397
                %v399 = vld [vmem:[%s123 + $0x848] sm:$0xff]
                %400 = vst [vmem:[%s124 + $0x448] sm:$0xff] %v399
                %v401 = vld [vmem:[%s123 + $0x850] sm:$0xff]
                %402 = vst [vmem:[%s124 + $0x450] sm:$0xff] %v401
                %v403 = vld [vmem:[%s123 + $0x858] sm:$0xff]
                %404 = vst [vmem:[%s124 + $0x458] sm:$0xff] %v403
                %v405 = vld [vmem:[%s123 + $0x860] sm:$0xff]
                %406 = vst [vmem:[%s124 + $0x460] sm:$0xff] %v405
                %v407 = vld [vmem:[%s123 + $0x868] sm:$0xff]
                %408 = vst [vmem:[%s124 + $0x468] sm:$0xff] %v407
                %v409 = vld [vmem:[%s123 + $0x870] sm:$0xff]
                %410 = vst [vmem:[%s124 + $0x470] sm:$0xff] %v409
                %v411 = vld [vmem:[%s123 + $0x878] sm:$0xff]
                %412 = vst [vmem:[%s124 + $0x478] sm:$0xff] %v411
              $region37: #{_lambda_.13} parent=31 // loop_footer
                %s122 = sadd.s32 1, %s118
              $region38: #{_lambda_.13} parent=31 // loop_footer_branch
                %117 = sbr.rel target = $region34
              $region39: #{_lambda_.13} parent=31 // loop_exit
                _
            $region32: #{_lambda_.13} parent=27 // pred_fallthru
              _
            // Predicated region
            $region40: #{_lambda_.13} parent=27 // pred_check
              _
            $region41: #{_lambda_.13} parent=27 // pred_check_branch
              %414 = sbr.rel target = $region43
            $region42: #{_lambda_.13} parent=27 // pred_region
              _
            $region43: #{_lambda_.13} parent=27 // pred_fallthru
              _
          $region28: #{_lambda_.13} parent=23 // pred_fallthru
            _
          %415 = vnop
        $region24: #{_lambda_.13} parent=19 // pred_fallthru
          _
      $region20: #{_lambda_.13} parent=5 // pred_fallthru
        _
      %p416 = scmp.le.s32.totalorder 1, %s8
      %p417 = scmp.lt.s32.totalorder %s8, 3
      %p418 = pnand %p416, %p417
      %p419 = pneg %p418
      // Predicated region
      $region44: #{_lambda_.13} parent=5 // pred_check
        _
      $region45: #{_lambda_.13} parent=5 // pred_check_branch
        %421 = sbr.rel (%p418) target = $region47
      $region46: #{_lambda_.13} parent=5 // pred_region
        %s422 = ssub.s32 %s8, 1
        %s423 = sand.u32 %s42, 1
        %s424 = sand.u32 %s42, 1
        %s425 = smul.addr %s424, 1152
        %s426 = scalar_lea.vmem [#allocation2], %s425
        // Predicated region
        $region48: #{_lambda_.13} parent=46 // pred_check
          %p427 = pneg %p55
        $region49: #{_lambda_.13} parent=46 // pred_check_branch
          %429 = sbr.rel (%p427) target = $region51
        $region50: #{_lambda_.13} parent=46 // pred_region
          _
        $region51: #{_lambda_.13} parent=46 // pred_fallthru
          _
        %p430 = pneg %p29
        %p431 = pneg %p26
        %s432 = sand.u32 %s42, 1
        %s433 = sand.u32 %s42, 1
        %s434 = smul.addr %s433, 1152
        %s435 = scalar_lea.vmem [#allocation2], %s434
        %p436 = pneg %p55
        %p437 = pneg %p52
        %p438 = pneg %p81
        %p439 = pneg %p78
        %s440 = smul.u32 32, %s13
        %p441 = scmp.lt.s32.totalorder %s440, 63
        %s442 = scalar_select %p441, %s440, 63
        %s443 = smul.addr %s442, 4
        %s444 = scalar_lea.vmem %s2, %s443
        %s445 = smul.u32 32, %s13
        %s446 = smul.u32 32, %s13
        %p447 = scmp.lt.s32.totalorder %s446, 63
        %s448 = scalar_select %p447, %s446, 63
        %s449 = smul.addr %s448, 4
        %s450 = scalar_lea.vmem %s2, %s449
        %s451 = smul.u32 32, %s13
        %v453 = vld [vmem:[%s0] sm:$0x3]
        %v454 = vld [vmem:[%s426] sm:$0xff]
        %v455 = vld [vmem:[%s426 + $0x8] sm:$0xff]
        %v456 = vld [vmem:[%s426 + $0x10] sm:$0xff]
        %v457 = vld [vmem:[%s426 + $0x18] sm:$0xff]
        %v458 = vld [vmem:[%s426 + $0x20] sm:$0xff]
        %v459 = vld [vmem:[%s426 + $0x28] sm:$0xff]
        %v460 = vld [vmem:[%s426 + $0x30] sm:$0xff]
        %v461 = vld [vmem:[%s426 + $0x38] sm:$0xff]
        %v462 = vld [vmem:[%s426 + $0x40] sm:$0xff]
        %v463 = vld [vmem:[%s426 + $0x48] sm:$0xff]
        %v464 = vld [vmem:[%s426 + $0x50] sm:$0xff]
        %v465 = vld [vmem:[%s426 + $0x58] sm:$0xff]
        %v466 = vld [vmem:[%s426 + $0x60] sm:$0xff]
        %v467 = vld [vmem:[%s426 + $0x68] sm:$0xff]
        %v468 = vld [vmem:[%s426 + $0x70] sm:$0xff]
        %v469 = vld [vmem:[%s426 + $0x78] sm:$0xff]
        %v470 = vld [vmem:[%s426 + $0x80] sm:$0xff]
        %v471 = vld [vmem:[%s426 + $0x88] sm:$0xff]
        %v472 = vld [vmem:[%s426 + $0x90] sm:$0xff]
        %v473 = vld [vmem:[%s426 + $0x98] sm:$0xff]
        %v474 = vld [vmem:[%s426 + $0xa0] sm:$0xff]
        %v475 = vld [vmem:[%s426 + $0xa8] sm:$0xff]
        %v476 = vld [vmem:[%s426 + $0xb0] sm:$0xff]
        %v477 = vld [vmem:[%s426 + $0xb8] sm:$0xff]
        %v478 = vld [vmem:[%s426 + $0xc0] sm:$0xff]
        %v479 = vld [vmem:[%s426 + $0xc8] sm:$0xff]
        %v480 = vld [vmem:[%s426 + $0xd0] sm:$0xff]
        %v481 = vld [vmem:[%s426 + $0xd8] sm:$0xff]
        %v482 = vld [vmem:[%s426 + $0xe0] sm:$0xff]
        %v483 = vld [vmem:[%s426 + $0xe8] sm:$0xff]
        %v484 = vld [vmem:[%s426 + $0xf0] sm:$0xff]
        %v485 = vld [vmem:[%s426 + $0xf8] sm:$0xff]
        %v486 = vld [vmem:[%s426 + $0x100] sm:$0xff]
        %v487 = vld [vmem:[%s426 + $0x108] sm:$0xff]
        %v488 = vld [vmem:[%s426 + $0x110] sm:$0xff]
        %v489 = vld [vmem:[%s426 + $0x118] sm:$0xff]
        %v490 = vld [vmem:[%s426 + $0x120] sm:$0xff]
        %v491 = vld [vmem:[%s426 + $0x128] sm:$0xff]
        %v492 = vld [vmem:[%s426 + $0x130] sm:$0xff]
        %v493 = vld [vmem:[%s426 + $0x138] sm:$0xff]
        %v494 = vld [vmem:[%s426 + $0x140] sm:$0xff]
        %v495 = vld [vmem:[%s426 + $0x148] sm:$0xff]
        %v496 = vld [vmem:[%s426 + $0x150] sm:$0xff]
        %v497 = vld [vmem:[%s426 + $0x158] sm:$0xff]
        %v498 = vld [vmem:[%s426 + $0x160] sm:$0xff]
        %v499 = vld [vmem:[%s426 + $0x168] sm:$0xff]
        %v500 = vld [vmem:[%s426 + $0x170] sm:$0xff]
        %v501 = vld [vmem:[%s426 + $0x178] sm:$0xff]
        %v502 = vld [vmem:[%s426 + $0x180] sm:$0xff]
        %v503 = vld [vmem:[%s426 + $0x188] sm:$0xff]
        %v504 = vld [vmem:[%s426 + $0x190] sm:$0xff]
        %v505 = vld [vmem:[%s426 + $0x198] sm:$0xff]
        %v506 = vld [vmem:[%s426 + $0x1a0] sm:$0xff]
        %v507 = vld [vmem:[%s426 + $0x1a8] sm:$0xff]
        %v508 = vld [vmem:[%s426 + $0x1b0] sm:$0xff]
        %v509 = vld [vmem:[%s426 + $0x1b8] sm:$0xff]
        %v510 = vld [vmem:[%s426 + $0x1c0] sm:$0xff]
        %v511 = vld [vmem:[%s426 + $0x1c8] sm:$0xff]
        %v512 = vld [vmem:[%s426 + $0x1d0] sm:$0xff]
        %v513 = vld [vmem:[%s426 + $0x1d8] sm:$0xff]
        %v514 = vld [vmem:[%s426 + $0x1e0] sm:$0xff]
        %v515 = vld [vmem:[%s426 + $0x1e8] sm:$0xff]
        %v516 = vld [vmem:[%s426 + $0x1f0] sm:$0xff]
        %v517 = vld [vmem:[%s426 + $0x1f8] sm:$0xff]
        %v518 = vld [vmem:[%s426 + $0x200] sm:$0xff]
        %v519 = vld [vmem:[%s426 + $0x208] sm:$0xff]
        %v520 = vld [vmem:[%s426 + $0x210] sm:$0xff]
        %v521 = vld [vmem:[%s426 + $0x218] sm:$0xff]
        %v522 = vld [vmem:[%s426 + $0x220] sm:$0xff]
        %v523 = vld [vmem:[%s426 + $0x228] sm:$0xff]
        %v524 = vld [vmem:[%s426 + $0x230] sm:$0xff]
        %v525 = vld [vmem:[%s426 + $0x238] sm:$0xff]
        %v526 = vld [vmem:[%s426 + $0x240] sm:$0xff]
        %v527 = vld [vmem:[%s426 + $0x248] sm:$0xff]
        %v528 = vld [vmem:[%s426 + $0x250] sm:$0xff]
        %v529 = vld [vmem:[%s426 + $0x258] sm:$0xff]
        %v530 = vld [vmem:[%s426 + $0x260] sm:$0xff]
        %v531 = vld [vmem:[%s426 + $0x268] sm:$0xff]
        %v532 = vld [vmem:[%s426 + $0x270] sm:$0xff]
        %v533 = vld [vmem:[%s426 + $0x278] sm:$0xff]
        %v534 = vld [vmem:[%s426 + $0x280] sm:$0xff]
        %v535 = vld [vmem:[%s426 + $0x288] sm:$0xff]
        %v536 = vld [vmem:[%s426 + $0x290] sm:$0xff]
        %v537 = vld [vmem:[%s426 + $0x298] sm:$0xff]
        %v538 = vld [vmem:[%s426 + $0x2a0] sm:$0xff]
        %v539 = vld [vmem:[%s426 + $0x2a8] sm:$0xff]
        %v540 = vld [vmem:[%s426 + $0x2b0] sm:$0xff]
        %v541 = vld [vmem:[%s426 + $0x2b8] sm:$0xff]
        %v542 = vld [vmem:[%s426 + $0x2c0] sm:$0xff]
        %v543 = vld [vmem:[%s426 + $0x2c8] sm:$0xff]
        %v544 = vld [vmem:[%s426 + $0x2d0] sm:$0xff]
        %v545 = vld [vmem:[%s426 + $0x2d8] sm:$0xff]
        %v546 = vld [vmem:[%s426 + $0x2e0] sm:$0xff]
        %v547 = vld [vmem:[%s426 + $0x2e8] sm:$0xff]
        %v548 = vld [vmem:[%s426 + $0x2f0] sm:$0xff]
        %v549 = vld [vmem:[%s426 + $0x2f8] sm:$0xff]
        %v550 = vld [vmem:[%s426 + $0x300] sm:$0xff]
        %v551 = vld [vmem:[%s426 + $0x308] sm:$0xff]
        %v552 = vld [vmem:[%s426 + $0x310] sm:$0xff]
        %v553 = vld [vmem:[%s426 + $0x318] sm:$0xff]
        %v554 = vld [vmem:[%s426 + $0x320] sm:$0xff]
        %v555 = vld [vmem:[%s426 + $0x328] sm:$0xff]
        %v556 = vld [vmem:[%s426 + $0x330] sm:$0xff]
        %v557 = vld [vmem:[%s426 + $0x338] sm:$0xff]
        %v558 = vld [vmem:[%s426 + $0x340] sm:$0xff]
        %v559 = vld [vmem:[%s426 + $0x348] sm:$0xff]
        %v560 = vld [vmem:[%s426 + $0x350] sm:$0xff]
        %v561 = vld [vmem:[%s426 + $0x358] sm:$0xff]
        %v562 = vld [vmem:[%s426 + $0x360] sm:$0xff]
        %v563 = vld [vmem:[%s426 + $0x368] sm:$0xff]
        %v564 = vld [vmem:[%s426 + $0x370] sm:$0xff]
        %v565 = vld [vmem:[%s426 + $0x378] sm:$0xff]
        %v566 = vld [vmem:[%s426 + $0x380] sm:$0xff]
        %v567 = vld [vmem:[%s426 + $0x388] sm:$0xff]
        %v568 = vld [vmem:[%s426 + $0x390] sm:$0xff]
        %v569 = vld [vmem:[%s426 + $0x398] sm:$0xff]
        %v570 = vld [vmem:[%s426 + $0x3a0] sm:$0xff]
        %v571 = vld [vmem:[%s426 + $0x3a8] sm:$0xff]
        %v572 = vld [vmem:[%s426 + $0x3b0] sm:$0xff]
        %v573 = vld [vmem:[%s426 + $0x3b8] sm:$0xff]
        %v574 = vld [vmem:[%s426 + $0x3c0] sm:$0xff]
        %v575 = vld [vmem:[%s426 + $0x3c8] sm:$0xff]
        %v576 = vld [vmem:[%s426 + $0x3d0] sm:$0xff]
        %v577 = vld [vmem:[%s426 + $0x3d8] sm:$0xff]
        %v578 = vld [vmem:[%s426 + $0x3e0] sm:$0xff]
        %v579 = vld [vmem:[%s426 + $0x3e8] sm:$0xff]
        %v580 = vld [vmem:[%s426 + $0x3f0] sm:$0xff]
        %v581 = vld [vmem:[%s426 + $0x3f8] sm:$0xff]
        %v582 = vld [vmem:[%s426 + $0x400] sm:$0xff]
        %v583 = vld [vmem:[%s426 + $0x408] sm:$0xff]
        %v584 = vld [vmem:[%s426 + $0x410] sm:$0xff]
        %v585 = vld [vmem:[%s426 + $0x418] sm:$0xff]
        %v586 = vld [vmem:[%s426 + $0x420] sm:$0xff]
        %v587 = vld [vmem:[%s426 + $0x428] sm:$0xff]
        %v588 = vld [vmem:[%s426 + $0x430] sm:$0xff]
        %v589 = vld [vmem:[%s426 + $0x438] sm:$0xff]
        %v590 = vld [vmem:[%s426 + $0x440] sm:$0xff]
        %v591 = vld [vmem:[%s426 + $0x448] sm:$0xff]
        %v592 = vld [vmem:[%s426 + $0x450] sm:$0xff]
        %v593 = vld [vmem:[%s426 + $0x458] sm:$0xff]
        %v594 = vld [vmem:[%s426 + $0x460] sm:$0xff]
        %v595 = vld [vmem:[%s426 + $0x468] sm:$0xff]
        %v596 = vld [vmem:[%s426 + $0x470] sm:$0xff]
        %v597 = vld [vmem:[%s426 + $0x478] sm:$0xff]
        %v742 = vunpack.c.l.b16 %v454
        %v743 = vunpack.c.h.b16 %v454
        %v744 = vunpack.c.l.b16 %v455
        %v745 = vunpack.c.h.b16 %v455
        %v746 = vunpack.c.l.b16 %v456
        %v747 = vunpack.c.h.b16 %v456
        %v748 = vunpack.c.l.b16 %v457
        %v749 = vunpack.c.h.b16 %v457
        %v750 = vunpack.c.l.b16 %v458
        %v751 = vunpack.c.h.b16 %v458
        %v752 = vunpack.c.l.b16 %v459
        %v753 = vunpack.c.h.b16 %v459
        %v754 = vunpack.c.l.b16 %v460
        %v755 = vunpack.c.h.b16 %v460
        %v756 = vunpack.c.l.b16 %v461
        %v757 = vunpack.c.h.b16 %v461
        %v758 = vunpack.c.l.b16 %v462
        %v759 = vunpack.c.h.b16 %v462
        %v760 = vunpack.c.l.b16 %v463
        %v761 = vunpack.c.h.b16 %v463
        %v762 = vunpack.c.l.b16 %v464
        %v763 = vunpack.c.h.b16 %v464
        %v764 = vunpack.c.l.b16 %v465
        %v765 = vunpack.c.h.b16 %v465
        %v766 = vunpack.c.l.b16 %v466
        %v767 = vunpack.c.h.b16 %v466
        %v768 = vunpack.c.l.b16 %v467
        %v769 = vunpack.c.h.b16 %v467
        %v770 = vunpack.c.l.b16 %v468
        %v771 = vunpack.c.h.b16 %v468
        %v772 = vunpack.c.l.b16 %v469
        %v773 = vunpack.c.h.b16 %v469
        %v774 = vunpack.c.l.b16 %v470
        %v775 = vunpack.c.h.b16 %v470
        %v776 = vunpack.c.l.b16 %v471
        %v777 = vunpack.c.h.b16 %v471
        %v778 = vunpack.c.l.b16 %v472
        %v779 = vunpack.c.h.b16 %v472
        %v780 = vunpack.c.l.b16 %v473
        %v781 = vunpack.c.h.b16 %v473
        %v782 = vunpack.c.l.b16 %v474
        %v783 = vunpack.c.h.b16 %v474
        %v784 = vunpack.c.l.b16 %v475
        %v785 = vunpack.c.h.b16 %v475
        %v786 = vunpack.c.l.b16 %v476
        %v787 = vunpack.c.h.b16 %v476
        %v788 = vunpack.c.l.b16 %v477
        %v789 = vunpack.c.h.b16 %v477
        %v790 = vunpack.c.l.b16 %v478
        %v791 = vunpack.c.h.b16 %v478
        %v792 = vunpack.c.l.b16 %v479
        %v793 = vunpack.c.h.b16 %v479
        %v794 = vunpack.c.l.b16 %v480
        %v795 = vunpack.c.h.b16 %v480
        %v796 = vunpack.c.l.b16 %v481
        %v797 = vunpack.c.h.b16 %v481
        %v798 = vunpack.c.l.b16 %v482
        %v799 = vunpack.c.h.b16 %v482
        %v800 = vunpack.c.l.b16 %v483
        %v801 = vunpack.c.h.b16 %v483
        %v802 = vunpack.c.l.b16 %v484
        %v803 = vunpack.c.h.b16 %v484
        %v804 = vunpack.c.l.b16 %v485
        %v805 = vunpack.c.h.b16 %v485
        %v806 = vunpack.c.l.b16 %v486
        %v807 = vunpack.c.h.b16 %v486
        %v808 = vunpack.c.l.b16 %v487
        %v809 = vunpack.c.h.b16 %v487
        %v810 = vunpack.c.l.b16 %v488
        %v811 = vunpack.c.h.b16 %v488
        %v812 = vunpack.c.l.b16 %v489
        %v813 = vunpack.c.h.b16 %v489
        %v814 = vunpack.c.l.b16 %v490
        %v815 = vunpack.c.h.b16 %v490
        %v816 = vunpack.c.l.b16 %v491
        %v817 = vunpack.c.h.b16 %v491
        %v818 = vunpack.c.l.b16 %v492
        %v819 = vunpack.c.h.b16 %v492
        %v820 = vunpack.c.l.b16 %v493
        %v821 = vunpack.c.h.b16 %v493
        %v822 = vunpack.c.l.b16 %v494
        %v823 = vunpack.c.h.b16 %v494
        %v824 = vunpack.c.l.b16 %v495
        %v825 = vunpack.c.h.b16 %v495
        %v826 = vunpack.c.l.b16 %v496
        %v827 = vunpack.c.h.b16 %v496
        %v828 = vunpack.c.l.b16 %v497
        %v829 = vunpack.c.h.b16 %v497
        %v830 = vunpack.c.l.b16 %v498
        %v831 = vunpack.c.h.b16 %v498
        %v832 = vunpack.c.l.b16 %v499
        %v833 = vunpack.c.h.b16 %v499
        %v834 = vunpack.c.l.b16 %v500
        %v835 = vunpack.c.h.b16 %v500
        %v836 = vunpack.c.l.b16 %v501
        %v837 = vunpack.c.h.b16 %v501
        %v838 = vunpack.c.l.b16 %v502
        %v839 = vunpack.c.h.b16 %v502
        %v840 = vunpack.c.l.b16 %v503
        %v841 = vunpack.c.h.b16 %v503
        %v842 = vunpack.c.l.b16 %v504
        %v843 = vunpack.c.h.b16 %v504
        %v844 = vunpack.c.l.b16 %v505
        %v845 = vunpack.c.h.b16 %v505
        %v846 = vunpack.c.l.b16 %v506
        %v847 = vunpack.c.h.b16 %v506
        %v848 = vunpack.c.l.b16 %v507
        %v849 = vunpack.c.h.b16 %v507
        %v850 = vunpack.c.l.b16 %v508
        %v851 = vunpack.c.h.b16 %v508
        %v852 = vunpack.c.l.b16 %v509
        %v853 = vunpack.c.h.b16 %v509
        %v854 = vunpack.c.l.b16 %v510
        %v855 = vunpack.c.h.b16 %v510
        %v856 = vunpack.c.l.b16 %v511
        %v857 = vunpack.c.h.b16 %v511
        %v858 = vunpack.c.l.b16 %v512
        %v859 = vunpack.c.h.b16 %v512
        %v860 = vunpack.c.l.b16 %v513
        %v861 = vunpack.c.h.b16 %v513
        %v862 = vunpack.c.l.b16 %v514
        %v863 = vunpack.c.h.b16 %v514
        %v864 = vunpack.c.l.b16 %v515
        %v865 = vunpack.c.h.b16 %v515
        %v866 = vunpack.c.l.b16 %v516
        %v867 = vunpack.c.h.b16 %v516
        %v868 = vunpack.c.l.b16 %v517
        %v869 = vunpack.c.h.b16 %v517
        %v870 = vunpack.c.l.b16 %v518
        %v871 = vunpack.c.h.b16 %v518
        %v872 = vunpack.c.l.b16 %v519
        %v873 = vunpack.c.h.b16 %v519
        %v874 = vunpack.c.l.b16 %v520
        %v875 = vunpack.c.h.b16 %v520
        %v876 = vunpack.c.l.b16 %v521
        %v877 = vunpack.c.h.b16 %v521
        %v878 = vunpack.c.l.b16 %v522
        %v879 = vunpack.c.h.b16 %v522
        %v880 = vunpack.c.l.b16 %v523
        %v881 = vunpack.c.h.b16 %v523
        %v882 = vunpack.c.l.b16 %v524
        %v883 = vunpack.c.h.b16 %v524
        %v884 = vunpack.c.l.b16 %v525
        %v885 = vunpack.c.h.b16 %v525
        %v886 = vunpack.c.l.b16 %v526
        %v887 = vunpack.c.h.b16 %v526
        %v888 = vunpack.c.l.b16 %v527
        %v889 = vunpack.c.h.b16 %v527
        %v890 = vunpack.c.l.b16 %v528
        %v891 = vunpack.c.h.b16 %v528
        %v892 = vunpack.c.l.b16 %v529
        %v893 = vunpack.c.h.b16 %v529
        %v894 = vunpack.c.l.b16 %v530
        %v895 = vunpack.c.h.b16 %v530
        %v896 = vunpack.c.l.b16 %v531
        %v897 = vunpack.c.h.b16 %v531
        %v898 = vunpack.c.l.b16 %v532
        %v899 = vunpack.c.h.b16 %v532
        %v900 = vunpack.c.l.b16 %v533
        %v901 = vunpack.c.h.b16 %v533
        %v902 = vunpack.c.l.b16 %v534
        %v903 = vunpack.c.h.b16 %v534
        %v904 = vunpack.c.l.b16 %v535
        %v905 = vunpack.c.h.b16 %v535
        %v906 = vunpack.c.l.b16 %v536
        %v907 = vunpack.c.h.b16 %v536
        %v908 = vunpack.c.l.b16 %v537
        %v909 = vunpack.c.h.b16 %v537
        %v910 = vunpack.c.l.b16 %v538
        %v911 = vunpack.c.h.b16 %v538
        %v912 = vunpack.c.l.b16 %v539
        %v913 = vunpack.c.h.b16 %v539
        %v914 = vunpack.c.l.b16 %v540
        %v915 = vunpack.c.h.b16 %v540
        %v916 = vunpack.c.l.b16 %v541
        %v917 = vunpack.c.h.b16 %v541
        %v918 = vunpack.c.l.b16 %v542
        %v919 = vunpack.c.h.b16 %v542
        %v920 = vunpack.c.l.b16 %v543
        %v921 = vunpack.c.h.b16 %v543
        %v922 = vunpack.c.l.b16 %v544
        %v923 = vunpack.c.h.b16 %v544
        %v924 = vunpack.c.l.b16 %v545
        %v925 = vunpack.c.h.b16 %v545
        %v926 = vunpack.c.l.b16 %v546
        %v927 = vunpack.c.h.b16 %v546
        %v928 = vunpack.c.l.b16 %v547
        %v929 = vunpack.c.h.b16 %v547
        %v930 = vunpack.c.l.b16 %v548
        %v931 = vunpack.c.h.b16 %v548
        %v932 = vunpack.c.l.b16 %v549
        %v933 = vunpack.c.h.b16 %v549
        %v934 = vunpack.c.l.b16 %v550
        %v935 = vunpack.c.h.b16 %v550
        %v936 = vunpack.c.l.b16 %v551
        %v937 = vunpack.c.h.b16 %v551
        %v938 = vunpack.c.l.b16 %v552
        %v939 = vunpack.c.h.b16 %v552
        %v940 = vunpack.c.l.b16 %v553
        %v941 = vunpack.c.h.b16 %v553
        %v942 = vunpack.c.l.b16 %v554
        %v943 = vunpack.c.h.b16 %v554
        %v944 = vunpack.c.l.b16 %v555
        %v945 = vunpack.c.h.b16 %v555
        %v946 = vunpack.c.l.b16 %v556
        %v947 = vunpack.c.h.b16 %v556
        %v948 = vunpack.c.l.b16 %v557
        %v949 = vunpack.c.h.b16 %v557
        %v950 = vunpack.c.l.b16 %v558
        %v951 = vunpack.c.h.b16 %v558
        %v952 = vunpack.c.l.b16 %v559
        %v953 = vunpack.c.h.b16 %v559
        %v954 = vunpack.c.l.b16 %v560
        %v955 = vunpack.c.h.b16 %v560
        %v956 = vunpack.c.l.b16 %v561
        %v957 = vunpack.c.h.b16 %v561
        %v958 = vunpack.c.l.b16 %v562
        %v959 = vunpack.c.h.b16 %v562
        %v960 = vunpack.c.l.b16 %v563
        %v961 = vunpack.c.h.b16 %v563
        %v962 = vunpack.c.l.b16 %v564
        %v963 = vunpack.c.h.b16 %v564
        %v964 = vunpack.c.l.b16 %v565
        %v965 = vunpack.c.h.b16 %v565
        %v966 = vunpack.c.l.b16 %v566
        %v967 = vunpack.c.h.b16 %v566
        %v968 = vunpack.c.l.b16 %v567
        %v969 = vunpack.c.h.b16 %v567
        %v970 = vunpack.c.l.b16 %v568
        %v971 = vunpack.c.h.b16 %v568
        %v972 = vunpack.c.l.b16 %v569
        %v973 = vunpack.c.h.b16 %v569
        %v974 = vunpack.c.l.b16 %v570
        %v975 = vunpack.c.h.b16 %v570
        %v976 = vunpack.c.l.b16 %v571
        %v977 = vunpack.c.h.b16 %v571
        %v978 = vunpack.c.l.b16 %v572
        %v979 = vunpack.c.h.b16 %v572
        %v980 = vunpack.c.l.b16 %v573
        %v981 = vunpack.c.h.b16 %v573
        %v982 = vunpack.c.l.b16 %v574
        %v983 = vunpack.c.h.b16 %v574
        %v984 = vunpack.c.l.b16 %v575
        %v985 = vunpack.c.h.b16 %v575
        %v986 = vunpack.c.l.b16 %v576
        %v987 = vunpack.c.h.b16 %v576
        %v988 = vunpack.c.l.b16 %v577
        %v989 = vunpack.c.h.b16 %v577
        %v990 = vunpack.c.l.b16 %v578
        %v991 = vunpack.c.h.b16 %v578
        %v992 = vunpack.c.l.b16 %v579
        %v993 = vunpack.c.h.b16 %v579
        %v994 = vunpack.c.l.b16 %v580
        %v995 = vunpack.c.h.b16 %v580
        %v996 = vunpack.c.l.b16 %v581
        %v997 = vunpack.c.h.b16 %v581
        %v998 = vunpack.c.l.b16 %v582
        %v999 = vunpack.c.h.b16 %v582
        %v1000 = vunpack.c.l.b16 %v583
        %v1001 = vunpack.c.h.b16 %v583
        %v1002 = vunpack.c.l.b16 %v584
        %v1003 = vunpack.c.h.b16 %v584
        %v1004 = vunpack.c.l.b16 %v585
        %v1005 = vunpack.c.h.b16 %v585
        %v1006 = vunpack.c.l.b16 %v586
        %v1007 = vunpack.c.h.b16 %v586
        %v1008 = vunpack.c.l.b16 %v587
        %v1009 = vunpack.c.h.b16 %v587
        %v1010 = vunpack.c.l.b16 %v588
        %v1011 = vunpack.c.h.b16 %v588
        %v1012 = vunpack.c.l.b16 %v589
        %v1013 = vunpack.c.h.b16 %v589
        %v1014 = vunpack.c.l.b16 %v590
        %v1015 = vunpack.c.h.b16 %v590
        %v1016 = vunpack.c.l.b16 %v591
        %v1017 = vunpack.c.h.b16 %v591
        %v1018 = vunpack.c.l.b16 %v592
        %v1019 = vunpack.c.h.b16 %v592
        %v1020 = vunpack.c.l.b16 %v593
        %v1021 = vunpack.c.h.b16 %v593
        %v1022 = vunpack.c.l.b16 %v594
        %v1023 = vunpack.c.h.b16 %v594
        %v1024 = vunpack.c.l.b16 %v595
        %v1025 = vunpack.c.h.b16 %v595
        %v1026 = vunpack.c.l.b16 %v596
        %v1027 = vunpack.c.h.b16 %v596
        %v1028 = vunpack.c.l.b16 %v597
        %v1029 = vunpack.c.h.b16 %v597
        %v1030 = vpack.c.b16 %v774, %v742
        %v1031 = vpack.c.b16 %v775, %v743
        %v1032 = vpack.c.b16 %v776, %v744
        %v1033 = vpack.c.b16 %v777, %v745
        %v1034 = vpack.c.b16 %v778, %v746
        %v1035 = vpack.c.b16 %v779, %v747
        %v1036 = vpack.c.b16 %v780, %v748
        %v1037 = vpack.c.b16 %v781, %v749
        %v1038 = vpack.c.b16 %v782, %v750
        %v1039 = vpack.c.b16 %v783, %v751
        %v1040 = vpack.c.b16 %v784, %v752
        %v1041 = vpack.c.b16 %v785, %v753
        %v1042 = vpack.c.b16 %v786, %v754
        %v1043 = vpack.c.b16 %v787, %v755
        %v1044 = vpack.c.b16 %v788, %v756
        %v1045 = vpack.c.b16 %v789, %v757
        %v1046 = vpack.c.b16 %v790, %v758
        %v1047 = vpack.c.b16 %v791, %v759
        %v1048 = vpack.c.b16 %v792, %v760
        %v1049 = vpack.c.b16 %v793, %v761
        %v1050 = vpack.c.b16 %v794, %v762
        %v1051 = vpack.c.b16 %v795, %v763
        %v1052 = vpack.c.b16 %v796, %v764
        %v1053 = vpack.c.b16 %v797, %v765
        %v1054 = vpack.c.b16 %v798, %v766
        %v1055 = vpack.c.b16 %v799, %v767
        %v1056 = vpack.c.b16 %v800, %v768
        %v1057 = vpack.c.b16 %v801, %v769
        %v1058 = vpack.c.b16 %v802, %v770
        %v1059 = vpack.c.b16 %v803, %v771
        %v1060 = vpack.c.b16 %v804, %v772
        %v1061 = vpack.c.b16 %v805, %v773
        %v1062 = vpack.c.b16 %v838, %v806
        %v1063 = vpack.c.b16 %v839, %v807
        %v1064 = vpack.c.b16 %v840, %v808
        %v1065 = vpack.c.b16 %v841, %v809
        %v1066 = vpack.c.b16 %v842, %v810
        %v1067 = vpack.c.b16 %v843, %v811
        %v1068 = vpack.c.b16 %v844, %v812
        %v1069 = vpack.c.b16 %v845, %v813
        %v1070 = vpack.c.b16 %v846, %v814
        %v1071 = vpack.c.b16 %v847, %v815
        %v1072 = vpack.c.b16 %v848, %v816
        %v1073 = vpack.c.b16 %v849, %v817
        %v1074 = vpack.c.b16 %v850, %v818
        %v1075 = vpack.c.b16 %v851, %v819
        %v1076 = vpack.c.b16 %v852, %v820
        %v1077 = vpack.c.b16 %v853, %v821
        %v1078 = vpack.c.b16 %v854, %v822
        %v1079 = vpack.c.b16 %v855, %v823
        %v1080 = vpack.c.b16 %v856, %v824
        %v1081 = vpack.c.b16 %v857, %v825
        %v1082 = vpack.c.b16 %v858, %v826
        %v1083 = vpack.c.b16 %v859, %v827
        %v1084 = vpack.c.b16 %v860, %v828
        %v1085 = vpack.c.b16 %v861, %v829
        %v1086 = vpack.c.b16 %v862, %v830
        %v1087 = vpack.c.b16 %v863, %v831
        %v1088 = vpack.c.b16 %v864, %v832
        %v1089 = vpack.c.b16 %v865, %v833
        %v1090 = vpack.c.b16 %v866, %v834
        %v1091 = vpack.c.b16 %v867, %v835
        %v1092 = vpack.c.b16 %v868, %v836
        %v1093 = vpack.c.b16 %v869, %v837
        %v1094 = vpack.c.b16 %v902, %v870
        %v1095 = vpack.c.b16 %v903, %v871
        %v1096 = vpack.c.b16 %v904, %v872
        %v1097 = vpack.c.b16 %v905, %v873
        %v1098 = vpack.c.b16 %v906, %v874
        %v1099 = vpack.c.b16 %v907, %v875
        %v1100 = vpack.c.b16 %v908, %v876
        %v1101 = vpack.c.b16 %v909, %v877
        %v1102 = vpack.c.b16 %v910, %v878
        %v1103 = vpack.c.b16 %v911, %v879
        %v1104 = vpack.c.b16 %v912, %v880
        %v1105 = vpack.c.b16 %v913, %v881
        %v1106 = vpack.c.b16 %v914, %v882
        %v1107 = vpack.c.b16 %v915, %v883
        %v1108 = vpack.c.b16 %v916, %v884
        %v1109 = vpack.c.b16 %v917, %v885
        %v1110 = vpack.c.b16 %v918, %v886
        %v1111 = vpack.c.b16 %v919, %v887
        %v1112 = vpack.c.b16 %v920, %v888
        %v1113 = vpack.c.b16 %v921, %v889
        %v1114 = vpack.c.b16 %v922, %v890
        %v1115 = vpack.c.b16 %v923, %v891
        %v1116 = vpack.c.b16 %v924, %v892
        %v1117 = vpack.c.b16 %v925, %v893
        %v1118 = vpack.c.b16 %v926, %v894
        %v1119 = vpack.c.b16 %v927, %v895
        %v1120 = vpack.c.b16 %v928, %v896
        %v1121 = vpack.c.b16 %v929, %v897
        %v1122 = vpack.c.b16 %v930, %v898
        %v1123 = vpack.c.b16 %v931, %v899
        %v1124 = vpack.c.b16 %v932, %v900
        %v1125 = vpack.c.b16 %v933, %v901
        %v1126 = vpack.c.b16 %v966, %v934
        %v1127 = vpack.c.b16 %v967, %v935
        %v1128 = vpack.c.b16 %v968, %v936
        %v1129 = vpack.c.b16 %v969, %v937
        %v1130 = vpack.c.b16 %v970, %v938
        %v1131 = vpack.c.b16 %v971, %v939
        %v1132 = vpack.c.b16 %v972, %v940
        %v1133 = vpack.c.b16 %v973, %v941
        %v1134 = vpack.c.b16 %v974, %v942
        %v1135 = vpack.c.b16 %v975, %v943
        %v1136 = vpack.c.b16 %v976, %v944
        %v1137 = vpack.c.b16 %v977, %v945
        %v1138 = vpack.c.b16 %v978, %v946
        %v1139 = vpack.c.b16 %v979, %v947
        %v1140 = vpack.c.b16 %v980, %v948
        %v1141 = vpack.c.b16 %v981, %v949
        %v1142 = vpack.c.b16 %v982, %v950
        %v1143 = vpack.c.b16 %v983, %v951
        %v1144 = vpack.c.b16 %v984, %v952
        %v1145 = vpack.c.b16 %v985, %v953
        %v1146 = vpack.c.b16 %v986, %v954
        %v1147 = vpack.c.b16 %v987, %v955
        %v1148 = vpack.c.b16 %v988, %v956
        %v1149 = vpack.c.b16 %v989, %v957
        %v1150 = vpack.c.b16 %v990, %v958
        %v1151 = vpack.c.b16 %v991, %v959
        %v1152 = vpack.c.b16 %v992, %v960
        %v1153 = vpack.c.b16 %v993, %v961
        %v1154 = vpack.c.b16 %v994, %v962
        %v1155 = vpack.c.b16 %v995, %v963
        %v1156 = vpack.c.b16 %v996, %v964
        %v1157 = vpack.c.b16 %v997, %v965
        %v1158 = vpack.c.b16 %v998, %v998
        %v1159 = vpack.c.b16 %v999, %v999
        %v1160 = vpack.c.b16 %v1000, %v1000
        %v1161 = vpack.c.b16 %v1001, %v1001
        %v1162 = vpack.c.b16 %v1002, %v1002
        %v1163 = vpack.c.b16 %v1003, %v1003
        %v1164 = vpack.c.b16 %v1004, %v1004
        %v1165 = vpack.c.b16 %v1005, %v1005
        %v1166 = vpack.c.b16 %v1006, %v1006
        %v1167 = vpack.c.b16 %v1007, %v1007
        %v1168 = vpack.c.b16 %v1008, %v1008
        %v1169 = vpack.c.b16 %v1009, %v1009
        %v1170 = vpack.c.b16 %v1010, %v1010
        %v1171 = vpack.c.b16 %v1011, %v1011
        %v1172 = vpack.c.b16 %v1012, %v1012
        %v1173 = vpack.c.b16 %v1013, %v1013
        %v1174 = vpack.c.b16 %v1014, %v1014
        %v1175 = vpack.c.b16 %v1015, %v1015
        %v1176 = vpack.c.b16 %v1016, %v1016
        %v1177 = vpack.c.b16 %v1017, %v1017
        %v1178 = vpack.c.b16 %v1018, %v1018
        %v1179 = vpack.c.b16 %v1019, %v1019
        %v1180 = vpack.c.b16 %v1020, %v1020
        %v1181 = vpack.c.b16 %v1021, %v1021
        %v1182 = vpack.c.b16 %v1022, %v1022
        %v1183 = vpack.c.b16 %v1023, %v1023
        %v1184 = vpack.c.b16 %v1024, %v1024
        %v1185 = vpack.c.b16 %v1025, %v1025
        %v1186 = vpack.c.b16 %v1026, %v1026
        %v1187 = vpack.c.b16 %v1027, %v1027
        %v1188 = vpack.c.b16 %v1028, %v1028
        %v1189 = vpack.c.b16 %v1029, %v1029
        %vm1318 = vcmask 588800
        %v1320 = vsel %vm1318, %v453, 0
        %vm1322 = vcmask 1043456
        %v1324 = vsel %vm1322, %v1158, 0
        %v1327 = vsel %vm1322, %v1159, 0
        %v1330 = vsel %vm1322, %v1160, 0
        %v1333 = vsel %vm1322, %v1161, 0
        %v1336 = vsel %vm1322, %v1162, 0
        %v1339 = vsel %vm1322, %v1163, 0
        %v1342 = vsel %vm1322, %v1164, 0
        %v1345 = vsel %vm1322, %v1165, 0
        %v1348 = vsel %vm1322, %v1166, 0
        %v1351 = vsel %vm1322, %v1167, 0
        %v1354 = vsel %vm1322, %v1168, 0
        %v1357 = vsel %vm1322, %v1169, 0
        %v1360 = vsel %vm1322, %v1170, 0
        %v1363 = vsel %vm1322, %v1171, 0
        %v1366 = vsel %vm1322, %v1172, 0
        %v1369 = vsel %vm1322, %v1173, 0
        %v1372 = vsel %vm1322, %v1174, 0
        %v1375 = vsel %vm1322, %v1175, 0
        %v1378 = vsel %vm1322, %v1176, 0
        %v1381 = vsel %vm1322, %v1177, 0
        %v1384 = vsel %vm1322, %v1178, 0
        %v1387 = vsel %vm1322, %v1179, 0
        %v1390 = vsel %vm1322, %v1180, 0
        %v1393 = vsel %vm1322, %v1181, 0
        %v1396 = vsel %vm1322, %v1182, 0
        %v1399 = vsel %vm1322, %v1183, 0
        %v1402 = vsel %vm1322, %v1184, 0
        %v1405 = vsel %vm1322, %v1185, 0
        %v1408 = vsel %vm1322, %v1186, 0
        %v1411 = vsel %vm1322, %v1187, 0
        %v1414 = vsel %vm1322, %v1188, 0
        %v1417 = vsel %vm1322, %v1189, 0
        %1419 = vmatpush.bf16.msra.mxu0 0
        %1420 = vmatpush.bf16.msra.mxu0 0
        %1421 = vmatpush.bf16.msra.mxu0 0
        %1422 = vmatpush.bf16.msra.mxu0 %v1324
        %1423 = vmatpush.bf16.msra.mxu0 %v1126
        %1424 = vmatpush.bf16.msra.mxu0 %v1094
        %1425 = vmatpush.bf16.msra.mxu0 %v1062
        %1426 = vmatpush.bf16.msra.mxu0 %v1030
        %1427 = vmatmul.bf16.gmra.mxu0 %v1320
        %v1428 = vpop.f32.mrf.mxu0
        %v1429 = vadd.f32 0.0, %v1428
        %v1430 = vpop.f32.mrf.mxu0
        %1431 = vdwg.mxu0
        %1432 = vmatpush.bf16.msra.mxu0 0
        %1433 = vmatpush.bf16.msra.mxu0 0
        %1434 = vmatpush.bf16.msra.mxu0 0
        %1435 = vmatpush.bf16.msra.mxu0 %v1327
        %1436 = vmatpush.bf16.msra.mxu0 %v1127
        %1437 = vmatpush.bf16.msra.mxu0 %v1095
        %1438 = vmatpush.bf16.msra.mxu0 %v1063
        %1439 = vmatpush.bf16.msra.mxu0 %v1031
        %1440 = vmatmul.bf16.gmra.mxu0 %v1320
        %v1441 = vpop.f32.mrf.mxu0
        %v1442 = vadd.f32 0.0, %v1441
        %v1443 = vpop.f32.mrf.mxu0
        %1444 = vdwg.mxu0
        %1445 = vmatpush.bf16.msra.mxu0 0
        %1446 = vmatpush.bf16.msra.mxu0 0
        %1447 = vmatpush.bf16.msra.mxu0 0
        %1448 = vmatpush.bf16.msra.mxu0 %v1330
        %1449 = vmatpush.bf16.msra.mxu0 %v1128
        %1450 = vmatpush.bf16.msra.mxu0 %v1096
        %1451 = vmatpush.bf16.msra.mxu0 %v1064
        %1452 = vmatpush.bf16.msra.mxu0 %v1032
        %1453 = vmatmul.bf16.gmra.mxu0 %v1320
        %v1454 = vpop.f32.mrf.mxu0
        %v1455 = vadd.f32 0.0, %v1454
        %v1456 = vpop.f32.mrf.mxu0
        %1457 = vdwg.mxu0
        %1458 = vmatpush.bf16.msra.mxu0 0
        %1459 = vmatpush.bf16.msra.mxu0 0
        %1460 = vmatpush.bf16.msra.mxu0 0
        %1461 = vmatpush.bf16.msra.mxu0 %v1333
        %1462 = vmatpush.bf16.msra.mxu0 %v1129
        %1463 = vmatpush.bf16.msra.mxu0 %v1097
        %1464 = vmatpush.bf16.msra.mxu0 %v1065
        %1465 = vmatpush.bf16.msra.mxu0 %v1033
        %1466 = vmatmul.bf16.gmra.mxu0 %v1320
        %v1467 = vpop.f32.mrf.mxu0
        %v1468 = vadd.f32 0.0, %v1467
        %v1469 = vpop.f32.mrf.mxu0
        %1470 = vdwg.mxu0
        %1471 = vmatpush.bf16.msra.mxu0 0
        %1472 = vmatpush.bf16.msra.mxu0 0
        %1473 = vmatpush.bf16.msra.mxu0 0
        %1474 = vmatpush.bf16.msra.mxu0 %v1336
        %1475 = vmatpush.bf16.msra.mxu0 %v1130
        %1476 = vmatpush.bf16.msra.mxu0 %v1098
        %1477 = vmatpush.bf16.msra.mxu0 %v1066
        %1478 = vmatpush.bf16.msra.mxu0 %v1034
        %1479 = vmatmul.bf16.gmra.mxu0 %v1320
        %v1480 = vpop.f32.mrf.mxu0
        %v1481 = vadd.f32 0.0, %v1480
        %v1482 = vpop.f32.mrf.mxu0
        %1483 = vdwg.mxu0
        %1484 = vmatpush.bf16.msra.mxu0 0
        %1485 = vmatpush.bf16.msra.mxu0 0
        %1486 = vmatpush.bf16.msra.mxu0 0
        %1487 = vmatpush.bf16.msra.mxu0 %v1339
        %1488 = vmatpush.bf16.msra.mxu0 %v1131
        %1489 = vmatpush.bf16.msra.mxu0 %v1099
        %1490 = vmatpush.bf16.msra.mxu0 %v1067
        %1491 = vmatpush.bf16.msra.mxu0 %v1035
        %1492 = vmatmul.bf16.gmra.mxu0 %v1320
        %v1493 = vpop.f32.mrf.mxu0
        %v1494 = vadd.f32 0.0, %v1493
        %v1495 = vpop.f32.mrf.mxu0
        %1496 = vdwg.mxu0
        %1497 = vmatpush.bf16.msra.mxu0 0
        %1498 = vmatpush.bf16.msra.mxu0 0
        %1499 = vmatpush.bf16.msra.mxu0 0
        %1500 = vmatpush.bf16.msra.mxu0 %v1342
        %1501 = vmatpush.bf16.msra.mxu0 %v1132
        %1502 = vmatpush.bf16.msra.mxu0 %v1100
        %1503 = vmatpush.bf16.msra.mxu0 %v1068
        %1504 = vmatpush.bf16.msra.mxu0 %v1036
        %1505 = vmatmul.bf16.gmra.mxu0 %v1320
        %v1506 = vpop.f32.mrf.mxu0
        %v1507 = vadd.f32 0.0, %v1506
        %v1508 = vpop.f32.mrf.mxu0
        %1509 = vdwg.mxu0
        %1510 = vmatpush.bf16.msra.mxu0 0
        %1511 = vmatpush.bf16.msra.mxu0 0
        %1512 = vmatpush.bf16.msra.mxu0 0
        %1513 = vmatpush.bf16.msra.mxu0 %v1345
        %1514 = vmatpush.bf16.msra.mxu0 %v1133
        %1515 = vmatpush.bf16.msra.mxu0 %v1101
        %1516 = vmatpush.bf16.msra.mxu0 %v1069
        %1517 = vmatpush.bf16.msra.mxu0 %v1037
        %1518 = vmatmul.bf16.gmra.mxu0 %v1320
        %v1519 = vpop.f32.mrf.mxu0
        %v1520 = vadd.f32 0.0, %v1519
        %v1521 = vpop.f32.mrf.mxu0
        %1522 = vdwg.mxu0
        %1523 = vmatpush.bf16.msra.mxu0 0
        %1524 = vmatpush.bf16.msra.mxu0 0
        %1525 = vmatpush.bf16.msra.mxu0 0
        %1526 = vmatpush.bf16.msra.mxu0 %v1348
        %1527 = vmatpush.bf16.msra.mxu0 %v1134
        %1528 = vmatpush.bf16.msra.mxu0 %v1102
        %1529 = vmatpush.bf16.msra.mxu0 %v1070
        %1530 = vmatpush.bf16.msra.mxu0 %v1038
        %1531 = vmatmul.bf16.gmra.mxu0 %v1320
        %v1532 = vpop.f32.mrf.mxu0
        %v1533 = vadd.f32 0.0, %v1532
        %v1534 = vpop.f32.mrf.mxu0
        %1535 = vdwg.mxu0
        %1536 = vmatpush.bf16.msra.mxu0 0
        %1537 = vmatpush.bf16.msra.mxu0 0
        %1538 = vmatpush.bf16.msra.mxu0 0
        %1539 = vmatpush.bf16.msra.mxu0 %v1351
        %1540 = vmatpush.bf16.msra.mxu0 %v1135
        %1541 = vmatpush.bf16.msra.mxu0 %v1103
        %1542 = vmatpush.bf16.msra.mxu0 %v1071
        %1543 = vmatpush.bf16.msra.mxu0 %v1039
        %1544 = vmatmul.bf16.gmra.mxu0 %v1320
        %v1545 = vpop.f32.mrf.mxu0
        %v1546 = vadd.f32 0.0, %v1545
        %v1547 = vpop.f32.mrf.mxu0
        %1548 = vdwg.mxu0
        %1549 = vmatpush.bf16.msra.mxu0 0
        %1550 = vmatpush.bf16.msra.mxu0 0
        %1551 = vmatpush.bf16.msra.mxu0 0
        %1552 = vmatpush.bf16.msra.mxu0 %v1354
        %1553 = vmatpush.bf16.msra.mxu0 %v1136
        %1554 = vmatpush.bf16.msra.mxu0 %v1104
        %1555 = vmatpush.bf16.msra.mxu0 %v1072
        %1556 = vmatpush.bf16.msra.mxu0 %v1040
        %1557 = vmatmul.bf16.gmra.mxu0 %v1320
        %v1558 = vpop.f32.mrf.mxu0
        %v1559 = vadd.f32 0.0, %v1558
        %v1560 = vpop.f32.mrf.mxu0
        %1561 = vdwg.mxu0
        %1562 = vmatpush.bf16.msra.mxu0 0
        %1563 = vmatpush.bf16.msra.mxu0 0
        %1564 = vmatpush.bf16.msra.mxu0 0
        %1565 = vmatpush.bf16.msra.mxu0 %v1357
        %1566 = vmatpush.bf16.msra.mxu0 %v1137
        %1567 = vmatpush.bf16.msra.mxu0 %v1105
        %1568 = vmatpush.bf16.msra.mxu0 %v1073
        %1569 = vmatpush.bf16.msra.mxu0 %v1041
        %1570 = vmatmul.bf16.gmra.mxu0 %v1320
        %v1571 = vpop.f32.mrf.mxu0
        %v1572 = vadd.f32 0.0, %v1571
        %v1573 = vpop.f32.mrf.mxu0
        %1574 = vdwg.mxu0
        %1575 = vmatpush.bf16.msra.mxu0 0
        %1576 = vmatpush.bf16.msra.mxu0 0
        %1577 = vmatpush.bf16.msra.mxu0 0
        %1578 = vmatpush.bf16.msra.mxu0 %v1360
        %1579 = vmatpush.bf16.msra.mxu0 %v1138
        %1580 = vmatpush.bf16.msra.mxu0 %v1106
        %1581 = vmatpush.bf16.msra.mxu0 %v1074
        %1582 = vmatpush.bf16.msra.mxu0 %v1042
        %1583 = vmatmul.bf16.gmra.mxu0 %v1320
        %v1584 = vpop.f32.mrf.mxu0
        %v1585 = vadd.f32 0.0, %v1584
        %v1586 = vpop.f32.mrf.mxu0
        %1587 = vdwg.mxu0
        %1588 = vmatpush.bf16.msra.mxu0 0
        %1589 = vmatpush.bf16.msra.mxu0 0
        %1590 = vmatpush.bf16.msra.mxu0 0
        %1591 = vmatpush.bf16.msra.mxu0 %v1363
        %1592 = vmatpush.bf16.msra.mxu0 %v1139
        %1593 = vmatpush.bf16.msra.mxu0 %v1107
        %1594 = vmatpush.bf16.msra.mxu0 %v1075
        %1595 = vmatpush.bf16.msra.mxu0 %v1043
        %1596 = vmatmul.bf16.gmra.mxu0 %v1320
        %v1597 = vpop.f32.mrf.mxu0
        %v1598 = vadd.f32 0.0, %v1597
        %v1599 = vpop.f32.mrf.mxu0
        %1600 = vdwg.mxu0
        %1601 = vmatpush.bf16.msra.mxu0 0
        %1602 = vmatpush.bf16.msra.mxu0 0
        %1603 = vmatpush.bf16.msra.mxu0 0
        %1604 = vmatpush.bf16.msra.mxu0 %v1366
        %1605 = vmatpush.bf16.msra.mxu0 %v1140
        %1606 = vmatpush.bf16.msra.mxu0 %v1108
        %1607 = vmatpush.bf16.msra.mxu0 %v1076
        %1608 = vmatpush.bf16.msra.mxu0 %v1044
        %1609 = vmatmul.bf16.gmra.mxu0 %v1320
        %v1610 = vpop.f32.mrf.mxu0
        %v1611 = vadd.f32 0.0, %v1610
        %v1612 = vpop.f32.mrf.mxu0
        %1613 = vdwg.mxu0
        %1614 = vmatpush.bf16.msra.mxu0 0
        %1615 = vmatpush.bf16.msra.mxu0 0
        %1616 = vmatpush.bf16.msra.mxu0 0
        %1617 = vmatpush.bf16.msra.mxu0 %v1369
        %1618 = vmatpush.bf16.msra.mxu0 %v1141
        %1619 = vmatpush.bf16.msra.mxu0 %v1109
        %1620 = vmatpush.bf16.msra.mxu0 %v1077
        %1621 = vmatpush.bf16.msra.mxu0 %v1045
        %1622 = vmatmul.bf16.gmra.mxu0 %v1320
        %v1623 = vpop.f32.mrf.mxu0
        %v1624 = vadd.f32 0.0, %v1623
        %v1625 = vpop.f32.mrf.mxu0
        %1626 = vdwg.mxu0
        %1627 = vmatpush.bf16.msra.mxu0 0
        %1628 = vmatpush.bf16.msra.mxu0 0
        %1629 = vmatpush.bf16.msra.mxu0 0
        %1630 = vmatpush.bf16.msra.mxu0 %v1372
        %1631 = vmatpush.bf16.msra.mxu0 %v1142
        %1632 = vmatpush.bf16.msra.mxu0 %v1110
        %1633 = vmatpush.bf16.msra.mxu0 %v1078
        %1634 = vmatpush.bf16.msra.mxu0 %v1046
        %1635 = vmatmul.bf16.gmra.mxu0 %v1320
        %v1636 = vpop.f32.mrf.mxu0
        %v1637 = vadd.f32 0.0, %v1636
        %v1638 = vpop.f32.mrf.mxu0
        %1639 = vdwg.mxu0
        %1640 = vmatpush.bf16.msra.mxu0 0
        %1641 = vmatpush.bf16.msra.mxu0 0
        %1642 = vmatpush.bf16.msra.mxu0 0
        %1643 = vmatpush.bf16.msra.mxu0 %v1375
        %1644 = vmatpush.bf16.msra.mxu0 %v1143
        %1645 = vmatpush.bf16.msra.mxu0 %v1111
        %1646 = vmatpush.bf16.msra.mxu0 %v1079
        %1647 = vmatpush.bf16.msra.mxu0 %v1047
        %1648 = vmatmul.bf16.gmra.mxu0 %v1320
        %v1649 = vpop.f32.mrf.mxu0
        %v1650 = vadd.f32 0.0, %v1649
        %v1651 = vpop.f32.mrf.mxu0
        %1652 = vdwg.mxu0
        %1653 = vmatpush.bf16.msra.mxu0 0
        %1654 = vmatpush.bf16.msra.mxu0 0
        %1655 = vmatpush.bf16.msra.mxu0 0
        %1656 = vmatpush.bf16.msra.mxu0 %v1378
        %1657 = vmatpush.bf16.msra.mxu0 %v1144
        %1658 = vmatpush.bf16.msra.mxu0 %v1112
        %1659 = vmatpush.bf16.msra.mxu0 %v1080
        %1660 = vmatpush.bf16.msra.mxu0 %v1048
        %1661 = vmatmul.bf16.gmra.mxu0 %v1320
        %v1662 = vpop.f32.mrf.mxu0
        %v1663 = vadd.f32 0.0, %v1662
        %v1664 = vpop.f32.mrf.mxu0
        %1665 = vdwg.mxu0
        %1666 = vmatpush.bf16.msra.mxu0 0
        %1667 = vmatpush.bf16.msra.mxu0 0
        %1668 = vmatpush.bf16.msra.mxu0 0
        %1669 = vmatpush.bf16.msra.mxu0 %v1381
        %1670 = vmatpush.bf16.msra.mxu0 %v1145
        %1671 = vmatpush.bf16.msra.mxu0 %v1113
        %1672 = vmatpush.bf16.msra.mxu0 %v1081
        %1673 = vmatpush.bf16.msra.mxu0 %v1049
        %1674 = vmatmul.bf16.gmra.mxu0 %v1320
        %v1675 = vpop.f32.mrf.mxu0
        %v1676 = vadd.f32 0.0, %v1675
        %v1677 = vpop.f32.mrf.mxu0
        %1678 = vdwg.mxu0
        %1679 = vmatpush.bf16.msra.mxu0 0
        %1680 = vmatpush.bf16.msra.mxu0 0
        %1681 = vmatpush.bf16.msra.mxu0 0
        %1682 = vmatpush.bf16.msra.mxu0 %v1384
        %1683 = vmatpush.bf16.msra.mxu0 %v1146
        %1684 = vmatpush.bf16.msra.mxu0 %v1114
        %1685 = vmatpush.bf16.msra.mxu0 %v1082
        %1686 = vmatpush.bf16.msra.mxu0 %v1050
        %1687 = vmatmul.bf16.gmra.mxu0 %v1320
        %v1688 = vpop.f32.mrf.mxu0
        %v1689 = vadd.f32 0.0, %v1688
        %v1690 = vpop.f32.mrf.mxu0
        %1691 = vdwg.mxu0
        %1692 = vmatpush.bf16.msra.mxu0 0
        %1693 = vmatpush.bf16.msra.mxu0 0
        %1694 = vmatpush.bf16.msra.mxu0 0
        %1695 = vmatpush.bf16.msra.mxu0 %v1387
        %1696 = vmatpush.bf16.msra.mxu0 %v1147
        %1697 = vmatpush.bf16.msra.mxu0 %v1115
        %1698 = vmatpush.bf16.msra.mxu0 %v1083
        %1699 = vmatpush.bf16.msra.mxu0 %v1051
        %1700 = vmatmul.bf16.gmra.mxu0 %v1320
        %v1701 = vpop.f32.mrf.mxu0
        %v1702 = vadd.f32 0.0, %v1701
        %v1703 = vpop.f32.mrf.mxu0
        %1704 = vdwg.mxu0
        %1705 = vmatpush.bf16.msra.mxu0 0
        %1706 = vmatpush.bf16.msra.mxu0 0
        %1707 = vmatpush.bf16.msra.mxu0 0
        %1708 = vmatpush.bf16.msra.mxu0 %v1390
        %1709 = vmatpush.bf16.msra.mxu0 %v1148
        %1710 = vmatpush.bf16.msra.mxu0 %v1116
        %1711 = vmatpush.bf16.msra.mxu0 %v1084
        %1712 = vmatpush.bf16.msra.mxu0 %v1052
        %1713 = vmatmul.bf16.gmra.mxu0 %v1320
        %v1714 = vpop.f32.mrf.mxu0
        %v1715 = vadd.f32 0.0, %v1714
        %v1716 = vpop.f32.mrf.mxu0
        %1717 = vdwg.mxu0
        %1718 = vmatpush.bf16.msra.mxu0 0
        %1719 = vmatpush.bf16.msra.mxu0 0
        %1720 = vmatpush.bf16.msra.mxu0 0
        %1721 = vmatpush.bf16.msra.mxu0 %v1393
        %1722 = vmatpush.bf16.msra.mxu0 %v1149
        %1723 = vmatpush.bf16.msra.mxu0 %v1117
        %1724 = vmatpush.bf16.msra.mxu0 %v1085
        %1725 = vmatpush.bf16.msra.mxu0 %v1053
        %1726 = vmatmul.bf16.gmra.mxu0 %v1320
        %v1727 = vpop.f32.mrf.mxu0
        %v1728 = vadd.f32 0.0, %v1727
        %v1729 = vpop.f32.mrf.mxu0
        %1730 = vdwg.mxu0
        %1731 = vmatpush.bf16.msra.mxu0 0
        %1732 = vmatpush.bf16.msra.mxu0 0
        %1733 = vmatpush.bf16.msra.mxu0 0
        %1734 = vmatpush.bf16.msra.mxu0 %v1396
        %1735 = vmatpush.bf16.msra.mxu0 %v1150
        %1736 = vmatpush.bf16.msra.mxu0 %v1118
        %1737 = vmatpush.bf16.msra.mxu0 %v1086
        %1738 = vmatpush.bf16.msra.mxu0 %v1054
        %1739 = vmatmul.bf16.gmra.mxu0 %v1320
        %v1740 = vpop.f32.mrf.mxu0
        %v1741 = vadd.f32 0.0, %v1740
        %v1742 = vpop.f32.mrf.mxu0
        %1743 = vdwg.mxu0
        %1744 = vmatpush.bf16.msra.mxu0 0
        %1745 = vmatpush.bf16.msra.mxu0 0
        %1746 = vmatpush.bf16.msra.mxu0 0
        %1747 = vmatpush.bf16.msra.mxu0 %v1399
        %1748 = vmatpush.bf16.msra.mxu0 %v1151
        %1749 = vmatpush.bf16.msra.mxu0 %v1119
        %1750 = vmatpush.bf16.msra.mxu0 %v1087
        %1751 = vmatpush.bf16.msra.mxu0 %v1055
        %1752 = vmatmul.bf16.gmra.mxu0 %v1320
        %v1753 = vpop.f32.mrf.mxu0
        %v1754 = vadd.f32 0.0, %v1753
        %v1755 = vpop.f32.mrf.mxu0
        %1756 = vdwg.mxu0
        %1757 = vmatpush.bf16.msra.mxu0 0
        %1758 = vmatpush.bf16.msra.mxu0 0
        %1759 = vmatpush.bf16.msra.mxu0 0
        %1760 = vmatpush.bf16.msra.mxu0 %v1402
        %1761 = vmatpush.bf16.msra.mxu0 %v1152
        %1762 = vmatpush.bf16.msra.mxu0 %v1120
        %1763 = vmatpush.bf16.msra.mxu0 %v1088
        %1764 = vmatpush.bf16.msra.mxu0 %v1056
        %1765 = vmatmul.bf16.gmra.mxu0 %v1320
        %v1766 = vpop.f32.mrf.mxu0
        %v1767 = vadd.f32 0.0, %v1766
        %v1768 = vpop.f32.mrf.mxu0
        %1769 = vdwg.mxu0
        %1770 = vmatpush.bf16.msra.mxu0 0
        %1771 = vmatpush.bf16.msra.mxu0 0
        %1772 = vmatpush.bf16.msra.mxu0 0
        %1773 = vmatpush.bf16.msra.mxu0 %v1405
        %1774 = vmatpush.bf16.msra.mxu0 %v1153
        %1775 = vmatpush.bf16.msra.mxu0 %v1121
        %1776 = vmatpush.bf16.msra.mxu0 %v1089
        %1777 = vmatpush.bf16.msra.mxu0 %v1057
        %1778 = vmatmul.bf16.gmra.mxu0 %v1320
        %v1779 = vpop.f32.mrf.mxu0
        %v1780 = vadd.f32 0.0, %v1779
        %v1781 = vpop.f32.mrf.mxu0
        %1782 = vdwg.mxu0
        %1783 = vmatpush.bf16.msra.mxu0 0
        %1784 = vmatpush.bf16.msra.mxu0 0
        %1785 = vmatpush.bf16.msra.mxu0 0
        %1786 = vmatpush.bf16.msra.mxu0 %v1408
        %1787 = vmatpush.bf16.msra.mxu0 %v1154
        %1788 = vmatpush.bf16.msra.mxu0 %v1122
        %1789 = vmatpush.bf16.msra.mxu0 %v1090
        %1790 = vmatpush.bf16.msra.mxu0 %v1058
        %1791 = vmatmul.bf16.gmra.mxu0 %v1320
        %v1792 = vpop.f32.mrf.mxu0
        %v1793 = vadd.f32 0.0, %v1792
        %v1794 = vpop.f32.mrf.mxu0
        %1795 = vdwg.mxu0
        %1796 = vmatpush.bf16.msra.mxu0 0
        %1797 = vmatpush.bf16.msra.mxu0 0
        %1798 = vmatpush.bf16.msra.mxu0 0
        %1799 = vmatpush.bf16.msra.mxu0 %v1411
        %1800 = vmatpush.bf16.msra.mxu0 %v1155
        %1801 = vmatpush.bf16.msra.mxu0 %v1123
        %1802 = vmatpush.bf16.msra.mxu0 %v1091
        %1803 = vmatpush.bf16.msra.mxu0 %v1059
        %1804 = vmatmul.bf16.gmra.mxu0 %v1320
        %v1805 = vpop.f32.mrf.mxu0
        %v1806 = vadd.f32 0.0, %v1805
        %v1807 = vpop.f32.mrf.mxu0
        %1808 = vdwg.mxu0
        %1809 = vmatpush.bf16.msra.mxu0 0
        %1810 = vmatpush.bf16.msra.mxu0 0
        %1811 = vmatpush.bf16.msra.mxu0 0
        %1812 = vmatpush.bf16.msra.mxu0 %v1414
        %1813 = vmatpush.bf16.msra.mxu0 %v1156
        %1814 = vmatpush.bf16.msra.mxu0 %v1124
        %1815 = vmatpush.bf16.msra.mxu0 %v1092
        %1816 = vmatpush.bf16.msra.mxu0 %v1060
        %1817 = vmatmul.bf16.gmra.mxu0 %v1320
        %v1818 = vpop.f32.mrf.mxu0
        %v1819 = vadd.f32 0.0, %v1818
        %v1820 = vpop.f32.mrf.mxu0
        %1821 = vdwg.mxu0
        %1822 = vmatpush.bf16.msra.mxu0 0
        %1823 = vmatpush.bf16.msra.mxu0 0
        %1824 = vmatpush.bf16.msra.mxu0 0
        %1825 = vmatpush.bf16.msra.mxu0 %v1417
        %1826 = vmatpush.bf16.msra.mxu0 %v1157
        %1827 = vmatpush.bf16.msra.mxu0 %v1125
        %1828 = vmatpush.bf16.msra.mxu0 %v1093
        %1829 = vmatpush.bf16.msra.mxu0 %v1061
        %1830 = vmatmul.bf16.gmra.mxu0 %v1320
        %v1831 = vpop.f32.mrf.mxu0
        %v1832 = vadd.f32 0.0, %v1831
        %v1833 = vpop.f32.mrf.mxu0
        %1834 = vdwg.mxu0
        %v1835 = vand.u32 2147483647, %v1429
        %v1836 = vand.u32 2147483647, %v1442
        %v1837 = vand.u32 2147483647, %v1455
        %v1838 = vand.u32 2147483647, %v1468
        %v1839 = vand.u32 2147483647, %v1481
        %v1840 = vand.u32 2147483647, %v1494
        %v1841 = vand.u32 2147483647, %v1507
        %v1842 = vand.u32 2147483647, %v1520
        %v1843 = vand.u32 2147483647, %v1533
        %v1844 = vand.u32 2147483647, %v1546
        %v1845 = vand.u32 2147483647, %v1559
        %v1846 = vand.u32 2147483647, %v1572
        %v1847 = vand.u32 2147483647, %v1585
        %v1848 = vand.u32 2147483647, %v1598
        %v1849 = vand.u32 2147483647, %v1611
        %v1850 = vand.u32 2147483647, %v1624
        %v1851 = vand.u32 2147483647, %v1637
        %v1852 = vand.u32 2147483647, %v1650
        %v1853 = vand.u32 2147483647, %v1663
        %v1854 = vand.u32 2147483647, %v1676
        %v1855 = vand.u32 2147483647, %v1689
        %v1856 = vand.u32 2147483647, %v1702
        %v1857 = vand.u32 2147483647, %v1715
        %v1858 = vand.u32 2147483647, %v1728
        %v1859 = vand.u32 2147483647, %v1741
        %v1860 = vand.u32 2147483647, %v1754
        %v1861 = vand.u32 2147483647, %v1767
        %v1862 = vand.u32 2147483647, %v1780
        %v1863 = vand.u32 2147483647, %v1793
        %v1864 = vand.u32 2147483647, %v1806
        %v1865 = vand.u32 2147483647, %v1819
        %v1866 = vand.u32 2147483647, %v1832
        %v1867 = vsub.f32 0.0, %v1835
        %v1868 = vsub.f32 0.0, %v1836
        %v1869 = vsub.f32 0.0, %v1837
        %v1870 = vsub.f32 0.0, %v1838
        %v1871 = vsub.f32 0.0, %v1839
        %v1872 = vsub.f32 0.0, %v1840
        %v1873 = vsub.f32 0.0, %v1841
        %v1874 = vsub.f32 0.0, %v1842
        %v1875 = vsub.f32 0.0, %v1843
        %v1876 = vsub.f32 0.0, %v1844
        %v1877 = vsub.f32 0.0, %v1845
        %v1878 = vsub.f32 0.0, %v1846
        %v1879 = vsub.f32 0.0, %v1847
        %v1880 = vsub.f32 0.0, %v1848
        %v1881 = vsub.f32 0.0, %v1849
        %v1882 = vsub.f32 0.0, %v1850
        %v1883 = vsub.f32 0.0, %v1851
        %v1884 = vsub.f32 0.0, %v1852
        %v1885 = vsub.f32 0.0, %v1853
        %v1886 = vsub.f32 0.0, %v1854
        %v1887 = vsub.f32 0.0, %v1855
        %v1888 = vsub.f32 0.0, %v1856
        %v1889 = vsub.f32 0.0, %v1857
        %v1890 = vsub.f32 0.0, %v1858
        %v1891 = vsub.f32 0.0, %v1859
        %v1892 = vsub.f32 0.0, %v1860
        %v1893 = vsub.f32 0.0, %v1861
        %v1894 = vsub.f32 0.0, %v1862
        %v1895 = vsub.f32 0.0, %v1863
        %v1896 = vsub.f32 0.0, %v1864
        %v1897 = vsub.f32 0.0, %v1865
        %v1898 = vsub.f32 0.0, %v1866
        %v1899 = vmul.f32 %v1867, 1.442695
        %v1900 = vpow.pop %v1899
        %v1901 = vmul.f32 %v1868, 1.442695
        %v1902 = vpow.pop %v1901
        %v1903 = vmul.f32 %v1869, 1.442695
        %v1904 = vpow.pop %v1903
        %v1905 = vmul.f32 %v1870, 1.442695
        %v1906 = vpow.pop %v1905
        %v1907 = vmul.f32 %v1871, 1.442695
        %v1908 = vpow.pop %v1907
        %v1909 = vmul.f32 %v1872, 1.442695
        %v1910 = vpow.pop %v1909
        %v1911 = vmul.f32 %v1873, 1.442695
        %v1912 = vpow.pop %v1911
        %v1913 = vmul.f32 %v1874, 1.442695
        %v1914 = vpow.pop %v1913
        %v1915 = vmul.f32 %v1875, 1.442695
        %v1916 = vpow.pop %v1915
        %v1917 = vmul.f32 %v1876, 1.442695
        %v1918 = vpow.pop %v1917
        %v1919 = vmul.f32 %v1877, 1.442695
        %v1920 = vpow.pop %v1919
        %v1921 = vmul.f32 %v1878, 1.442695
        %v1922 = vpow.pop %v1921
        %v1923 = vmul.f32 %v1879, 1.442695
        %v1924 = vpow.pop %v1923
        %v1925 = vmul.f32 %v1880, 1.442695
        %v1926 = vpow.pop %v1925
        %v1927 = vmul.f32 %v1881, 1.442695
        %v1928 = vpow.pop %v1927
        %v1929 = vmul.f32 %v1882, 1.442695
        %v1930 = vpow.pop %v1929
        %v1931 = vmul.f32 %v1883, 1.442695
        %v1932 = vpow.pop %v1931
        %v1933 = vmul.f32 %v1884, 1.442695
        %v1934 = vpow.pop %v1933
        %v1935 = vmul.f32 %v1885, 1.442695
        %v1936 = vpow.pop %v1935
        %v1937 = vmul.f32 %v1886, 1.442695
        %v1938 = vpow.pop %v1937
        %v1939 = vmul.f32 %v1887, 1.442695
        %v1940 = vpow.pop %v1939
        %v1941 = vmul.f32 %v1888, 1.442695
        %v1942 = vpow.pop %v1941
        %v1943 = vmul.f32 %v1889, 1.442695
        %v1944 = vpow.pop %v1943
        %v1945 = vmul.f32 %v1890, 1.442695
        %v1946 = vpow.pop %v1945
        %v1947 = vmul.f32 %v1891, 1.442695
        %v1948 = vpow.pop %v1947
        %v1949 = vmul.f32 %v1892, 1.442695
        %v1950 = vpow.pop %v1949
        %v1951 = vmul.f32 %v1893, 1.442695
        %v1952 = vpow.pop %v1951
        %v1953 = vmul.f32 %v1894, 1.442695
        %v1954 = vpow.pop %v1953
        %v1955 = vmul.f32 %v1895, 1.442695
        %v1956 = vpow.pop %v1955
        %v1957 = vmul.f32 %v1896, 1.442695
        %v1958 = vpow.pop %v1957
        %v1959 = vmul.f32 %v1897, 1.442695
        %v1960 = vpow.pop %v1959
        %v1961 = vmul.f32 %v1898, 1.442695
        %v1962 = vpow.pop %v1961
        %v1963 = vadd.f32 %v1900, 1.0
        %v1964 = vadd.f32 %v1902, 1.0
        %v1965 = vadd.f32 %v1904, 1.0
        %v1966 = vadd.f32 %v1906, 1.0
        %v1967 = vadd.f32 %v1908, 1.0
        %v1968 = vadd.f32 %v1910, 1.0
        %v1969 = vadd.f32 %v1912, 1.0
        %v1970 = vadd.f32 %v1914, 1.0
        %v1971 = vadd.f32 %v1916, 1.0
        %v1972 = vadd.f32 %v1918, 1.0
        %v1973 = vadd.f32 %v1920, 1.0
        %v1974 = vadd.f32 %v1922, 1.0
        %v1975 = vadd.f32 %v1924, 1.0
        %v1976 = vadd.f32 %v1926, 1.0
        %v1977 = vadd.f32 %v1928, 1.0
        %v1978 = vadd.f32 %v1930, 1.0
        %v1979 = vadd.f32 %v1932, 1.0
        %v1980 = vadd.f32 %v1934, 1.0
        %v1981 = vadd.f32 %v1936, 1.0
        %v1982 = vadd.f32 %v1938, 1.0
        %v1983 = vadd.f32 %v1940, 1.0
        %v1984 = vadd.f32 %v1942, 1.0
        %v1985 = vadd.f32 %v1944, 1.0
        %v1986 = vadd.f32 %v1946, 1.0
        %v1987 = vadd.f32 %v1948, 1.0
        %v1988 = vadd.f32 %v1950, 1.0
        %v1989 = vadd.f32 %v1952, 1.0
        %v1990 = vadd.f32 %v1954, 1.0
        %v1991 = vadd.f32 %v1956, 1.0
        %v1992 = vadd.f32 %v1958, 1.0
        %v1993 = vadd.f32 %v1960, 1.0
        %v1994 = vadd.f32 %v1962, 1.0
        %v1995 = vrcp.pop %v1963
        %v1996 = vrcp.pop %v1964
        %v1997 = vrcp.pop %v1965
        %v1998 = vrcp.pop %v1966
        %v1999 = vrcp.pop %v1967
        %v2000 = vrcp.pop %v1968
        %v2001 = vrcp.pop %v1969
        %v2002 = vrcp.pop %v1970
        %v2003 = vrcp.pop %v1971
        %v2004 = vrcp.pop %v1972
        %v2005 = vrcp.pop %v1973
        %v2006 = vrcp.pop %v1974
        %v2007 = vrcp.pop %v1975
        %v2008 = vrcp.pop %v1976
        %v2009 = vrcp.pop %v1977
        %v2010 = vrcp.pop %v1978
        %v2011 = vrcp.pop %v1979
        %v2012 = vrcp.pop %v1980
        %v2013 = vrcp.pop %v1981
        %v2014 = vrcp.pop %v1982
        %v2015 = vrcp.pop %v1983
        %v2016 = vrcp.pop %v1984
        %v2017 = vrcp.pop %v1985
        %v2018 = vrcp.pop %v1986
        %v2019 = vrcp.pop %v1987
        %v2020 = vrcp.pop %v1988
        %v2021 = vrcp.pop %v1989
        %v2022 = vrcp.pop %v1990
        %v2023 = vrcp.pop %v1991
        %v2024 = vrcp.pop %v1992
        %v2025 = vrcp.pop %v1993
        %v2026 = vrcp.pop %v1994
        %vm2027 = vcmp.ge.f32.partialorder %v1429, 0.0
        %vm2028 = vcmp.ge.f32.partialorder %v1442, 0.0
        %vm2029 = vcmp.ge.f32.partialorder %v1455, 0.0
        %vm2030 = vcmp.ge.f32.partialorder %v1468, 0.0
        %vm2031 = vcmp.ge.f32.partialorder %v1481, 0.0
        %vm2032 = vcmp.ge.f32.partialorder %v1494, 0.0
        %vm2033 = vcmp.ge.f32.partialorder %v1507, 0.0
        %vm2034 = vcmp.ge.f32.partialorder %v1520, 0.0
        %vm2035 = vcmp.ge.f32.partialorder %v1533, 0.0
        %vm2036 = vcmp.ge.f32.partialorder %v1546, 0.0
        %vm2037 = vcmp.ge.f32.partialorder %v1559, 0.0
        %vm2038 = vcmp.ge.f32.partialorder %v1572, 0.0
        %vm2039 = vcmp.ge.f32.partialorder %v1585, 0.0
        %vm2040 = vcmp.ge.f32.partialorder %v1598, 0.0
        %vm2041 = vcmp.ge.f32.partialorder %v1611, 0.0
        %vm2042 = vcmp.ge.f32.partialorder %v1624, 0.0
        %vm2043 = vcmp.ge.f32.partialorder %v1637, 0.0
        %vm2044 = vcmp.ge.f32.partialorder %v1650, 0.0
        %vm2045 = vcmp.ge.f32.partialorder %v1663, 0.0
        %vm2046 = vcmp.ge.f32.partialorder %v1676, 0.0
        %vm2047 = vcmp.ge.f32.partialorder %v1689, 0.0
        %vm2048 = vcmp.ge.f32.partialorder %v1702, 0.0
        %vm2049 = vcmp.ge.f32.partialorder %v1715, 0.0
        %vm2050 = vcmp.ge.f32.partialorder %v1728, 0.0
        %vm2051 = vcmp.ge.f32.partialorder %v1741, 0.0
        %vm2052 = vcmp.ge.f32.partialorder %v1754, 0.0
        %vm2053 = vcmp.ge.f32.partialorder %v1767, 0.0
        %vm2054 = vcmp.ge.f32.partialorder %v1780, 0.0
        %vm2055 = vcmp.ge.f32.partialorder %v1793, 0.0
        %vm2056 = vcmp.ge.f32.partialorder %v1806, 0.0
        %vm2057 = vcmp.ge.f32.partialorder %v1819, 0.0
        %vm2058 = vcmp.ge.f32.partialorder %v1832, 0.0
        %v2059 = vmul.f32 %v1900, %v1995
        %v2060 = vmul.f32 %v1902, %v1996
        %v2061 = vmul.f32 %v1904, %v1997
        %v2062 = vmul.f32 %v1906, %v1998
        %v2063 = vmul.f32 %v1908, %v1999
        %v2064 = vmul.f32 %v1910, %v2000
        %v2065 = vmul.f32 %v1912, %v2001
        %v2066 = vmul.f32 %v1914, %v2002
        %v2067 = vmul.f32 %v1916, %v2003
        %v2068 = vmul.f32 %v1918, %v2004
        %v2069 = vmul.f32 %v1920, %v2005
        %v2070 = vmul.f32 %v1922, %v2006
        %v2071 = vmul.f32 %v1924, %v2007
        %v2072 = vmul.f32 %v1926, %v2008
        %v2073 = vmul.f32 %v1928, %v2009
        %v2074 = vmul.f32 %v1930, %v2010
        %v2075 = vmul.f32 %v1932, %v2011
        %v2076 = vmul.f32 %v1934, %v2012
        %v2077 = vmul.f32 %v1936, %v2013
        %v2078 = vmul.f32 %v1938, %v2014
        %v2079 = vmul.f32 %v1940, %v2015
        %v2080 = vmul.f32 %v1942, %v2016
        %v2081 = vmul.f32 %v1944, %v2017
        %v2082 = vmul.f32 %v1946, %v2018
        %v2083 = vmul.f32 %v1948, %v2019
        %v2084 = vmul.f32 %v1950, %v2020
        %v2085 = vmul.f32 %v1952, %v2021
        %v2086 = vmul.f32 %v1954, %v2022
        %v2087 = vmul.f32 %v1956, %v2023
        %v2088 = vmul.f32 %v1958, %v2024
        %v2089 = vmul.f32 %v1960, %v2025
        %v2090 = vmul.f32 %v1962, %v2026
        %v2091 = vsub.f32 1.0, %v2059
        %v2092 = vsub.f32 1.0, %v2060
        %v2093 = vsub.f32 1.0, %v2061
        %v2094 = vsub.f32 1.0, %v2062
        %v2095 = vsub.f32 1.0, %v2063
        %v2096 = vsub.f32 1.0, %v2064
        %v2097 = vsub.f32 1.0, %v2065
        %v2098 = vsub.f32 1.0, %v2066
        %v2099 = vsub.f32 1.0, %v2067
        %v2100 = vsub.f32 1.0, %v2068
        %v2101 = vsub.f32 1.0, %v2069
        %v2102 = vsub.f32 1.0, %v2070
        %v2103 = vsub.f32 1.0, %v2071
        %v2104 = vsub.f32 1.0, %v2072
        %v2105 = vsub.f32 1.0, %v2073
        %v2106 = vsub.f32 1.0, %v2074
        %v2107 = vsub.f32 1.0, %v2075
        %v2108 = vsub.f32 1.0, %v2076
        %v2109 = vsub.f32 1.0, %v2077
        %v2110 = vsub.f32 1.0, %v2078
        %v2111 = vsub.f32 1.0, %v2079
        %v2112 = vsub.f32 1.0, %v2080
        %v2113 = vsub.f32 1.0, %v2081
        %v2114 = vsub.f32 1.0, %v2082
        %v2115 = vsub.f32 1.0, %v2083
        %v2116 = vsub.f32 1.0, %v2084
        %v2117 = vsub.f32 1.0, %v2085
        %v2118 = vsub.f32 1.0, %v2086
        %v2119 = vsub.f32 1.0, %v2087
        %v2120 = vsub.f32 1.0, %v2088
        %v2121 = vsub.f32 1.0, %v2089
        %v2122 = vsub.f32 1.0, %v2090
        %v2123 = vsel %vm2027, %v2091, %v2059
        %v2124 = vsel %vm2028, %v2092, %v2060
        %v2125 = vsel %vm2029, %v2093, %v2061
        %v2126 = vsel %vm2030, %v2094, %v2062
        %v2127 = vsel %vm2031, %v2095, %v2063
        %v2128 = vsel %vm2032, %v2096, %v2064
        %v2129 = vsel %vm2033, %v2097, %v2065
        %v2130 = vsel %vm2034, %v2098, %v2066
        %v2131 = vsel %vm2035, %v2099, %v2067
        %v2132 = vsel %vm2036, %v2100, %v2068
        %v2133 = vsel %vm2037, %v2101, %v2069
        %v2134 = vsel %vm2038, %v2102, %v2070
        %v2135 = vsel %vm2039, %v2103, %v2071
        %v2136 = vsel %vm2040, %v2104, %v2072
        %v2137 = vsel %vm2041, %v2105, %v2073
        %v2138 = vsel %vm2042, %v2106, %v2074
        %v2139 = vsel %vm2043, %v2107, %v2075
        %v2140 = vsel %vm2044, %v2108, %v2076
        %v2141 = vsel %vm2045, %v2109, %v2077
        %v2142 = vsel %vm2046, %v2110, %v2078
        %v2143 = vsel %vm2047, %v2111, %v2079
        %v2144 = vsel %vm2048, %v2112, %v2080
        %v2145 = vsel %vm2049, %v2113, %v2081
        %v2146 = vsel %vm2050, %v2114, %v2082
        %v2147 = vsel %vm2051, %v2115, %v2083
        %v2148 = vsel %vm2052, %v2116, %v2084
        %v2149 = vsel %vm2053, %v2117, %v2085
        %v2150 = vsel %vm2054, %v2118, %v2086
        %v2151 = vsel %vm2055, %v2119, %v2087
        %v2152 = vsel %vm2056, %v2120, %v2088
        %v2153 = vsel %vm2057, %v2121, %v2089
        %v2154 = vsel %vm2058, %v2122, %v2090
        %v2187 = vrot.slane %v2124, 4
        %v2188 = vrot.slane %v2126, 4
        %v2189 = vrot.slane %v2128, 4
        %v2190 = vrot.slane %v2130, 4
        %v2191 = vrot.slane %v2132, 4
        %v2192 = vrot.slane %v2134, 4
        %v2193 = vrot.slane %v2136, 4
        %v2194 = vrot.slane %v2138, 4
        %v2195 = vrot.slane %v2140, 4
        %v2196 = vrot.slane %v2142, 4
        %v2197 = vrot.slane %v2144, 4
        %v2198 = vrot.slane %v2146, 4
        %v2199 = vrot.slane %v2148, 4
        %v2200 = vrot.slane %v2150, 4
        %v2201 = vrot.slane %v2152, 4
        %v2202 = vrot.slane %v2154, 4
        %v2203 = vsel %vm1322, %v2123, %v2187
        %v2204 = vsel %vm1322, %v2125, %v2188
        %v2205 = vsel %vm1322, %v2127, %v2189
        %v2206 = vsel %vm1322, %v2129, %v2190
        %v2207 = vsel %vm1322, %v2131, %v2191
        %v2208 = vsel %vm1322, %v2133, %v2192
        %v2209 = vsel %vm1322, %v2135, %v2193
        %v2210 = vsel %vm1322, %v2137, %v2194
        %v2211 = vsel %vm1322, %v2139, %v2195
        %v2212 = vsel %vm1322, %v2141, %v2196
        %v2213 = vsel %vm1322, %v2143, %v2197
        %v2214 = vsel %vm1322, %v2145, %v2198
        %v2215 = vsel %vm1322, %v2147, %v2199
        %v2216 = vsel %vm1322, %v2149, %v2200
        %v2217 = vsel %vm1322, %v2151, %v2201
        %v2218 = vsel %vm1322, %v2153, %v2202
        %2235 = vst [vmem:[%s450] sm:$0xff] %v2203
        %2236 = vst [vmem:[%s450 + $0x8] sm:$0xff] %v2204
        %2237 = vst [vmem:[%s450 + $0x10] sm:$0xff] %v2205
        %2238 = vst [vmem:[%s450 + $0x18] sm:$0xff] %v2206
        %2239 = vst [vmem:[%s450 + $0x20] sm:$0xff] %v2207
        %2240 = vst [vmem:[%s450 + $0x28] sm:$0xff] %v2208
        %2241 = vst [vmem:[%s450 + $0x30] sm:$0xff] %v2209
        %2242 = vst [vmem:[%s450 + $0x38] sm:$0xff] %v2210
        %2243 = vst [vmem:[%s450 + $0x40] sm:$0xff] %v2211
        %2244 = vst [vmem:[%s450 + $0x48] sm:$0xff] %v2212
        %2245 = vst [vmem:[%s450 + $0x50] sm:$0xff] %v2213
        %2246 = vst [vmem:[%s450 + $0x58] sm:$0xff] %v2214
        %2247 = vst [vmem:[%s450 + $0x60] sm:$0xff] %v2215
        %2248 = vst [vmem:[%s450 + $0x68] sm:$0xff] %v2216
        %2249 = vst [vmem:[%s450 + $0x70] sm:$0xff] %v2217
        %2250 = vst [vmem:[%s450 + $0x78] sm:$0xff] %v2218
        %s2251 = smul.u32 32, %s13
        %p2252 = scmp.lt.s32.totalorder %s2251, 63
        %s2253 = scalar_select %p2252, %s2251, 63
        %s2254 = smul.addr %s2253, 4
        %s2255 = scalar_lea.vmem %s2, %s2254
        // Predicated region
        $region52: #{_lambda_.13} parent=46 // pred_check
          %p2256 = pneg %p78
        $region53: #{_lambda_.13} parent=46 // pred_check_branch
          %2258 = sbr.rel (%p2256) target = $region55
        $region54: #{_lambda_.13} parent=46 // pred_region
          %s2259 = smul.u32 32, %s13
        $region55: #{_lambda_.13} parent=46 // pred_fallthru
          _
      $region47: #{_lambda_.13} parent=5 // pred_fallthru
        _
      %p2260 = scmp.le.s32.totalorder 2, %s8
      // Predicated region
      $region56: #{_lambda_.13} parent=5 // pred_check
        %p2261 = pneg %p2260
      $region57: #{_lambda_.13} parent=5 // pred_check_branch
        %2263 = sbr.rel (%p2261) target = $region59
      $region58: #{_lambda_.13} parent=5 // pred_region
        %s2264 = ssub.s32 %s8, 2
        // Predicated region
        $region60: #{_lambda_.13} parent=58 // pred_check
          %p2265 = pneg %p84
        $region61: #{_lambda_.13} parent=58 // pred_check_branch
          %2267 = sbr.rel (%p2265) target = $region63
        $region62: #{_lambda_.13} parent=58 // pred_region
          %s2268 = smul.u32 32, %s14
          %p2269 = scmp.lt.s32.totalorder %s2268, 63
          %s2270 = scalar_select %p2269, %s2268, 63
          %s2271 = smul.addr %s2270, 4
          %s2272 = scalar_lea.vmem %s2, %s2271
        $region63: #{_lambda_.13} parent=58 // pred_fallthru
          _
      $region59: #{_lambda_.13} parent=5 // pred_fallthru
        _
    $region6: #{_lambda_.13} parent=1 // loop_footer
      %s12 = sadd.s32 1, %s8
    $region7: #{_lambda_.13} parent=1 // loop_footer_branch
      %7 = sbr.rel target = $region3
    $region8: #{_lambda_.13} parent=1 // loop_exit
      _

</llo_original>
